<compile_context>
chip_gen: v7x
topology: tpu7x:2x2x1
jax: 0.10.0
libtpu: 0.0.40
codegen_flags: <defaults>
</compile_context>

<pallas_src>
import functools

import jax
import jax.numpy as jnp
from jax.experimental import pallas as pl
from jax.experimental.pallas import tpu as pltpu

LRELU_SLOPE = 0.2
BN_EPS = 1e-5

# MXU operand dtype for the conv matmuls.  float32 keeps numerics aligned with
# the f32 PyTorch reference; flip to jnp.bfloat16 on v6e/v7x for ~2x MXU rate
# and half the patch-matrix footprint (accumulation stays f32 via
# preferred_element_type; BN / LeakyReLU / softmax math stays f32, which is
# required on v5e where the VPU/EUP have no bf16 path).
CONV_COMPUTE_DTYPE = jnp.float32


def _vmem_limit_bytes():
    """Generation-aware VMEM budget: ~3/4 of physical, capped at 100 MiB."""
    try:
        cap = getattr(pltpu.get_tpu_info(), "vmem_capacity_bytes", None)
        if cap:
            return int(min(cap * 3 // 4, 100 * 1024 * 1024))
    except Exception:
        pass
    return 32 * 1024 * 1024  # safe fallback for all listed generations


def _leaky_relu(y):
    return jnp.where(y > 0, y, LRELU_SLOPE * y)


def _zero_pad_hw(x_chw, C, H, W):
    """(C, H, W) -> (C, H+2, W+2) with a 1-px zero halo, built in VMEM."""
    zc = jnp.zeros((C, H, 1), x_chw.dtype)
    x2 = jnp.concatenate([zc, x_chw, zc], axis=2)          # (C, H, W+2)
    zr = jnp.zeros((C, 1, W + 2), x_chw.dtype)
    return jnp.concatenate([zr, x2, zr], axis=1)           # (C, H+2, W+2)


def _im2col_rows(xpad, C, H, W):
    """(C, H+2, W+2) padded tile -> (9C, HW) tap-major patch matrix.

    Taps are stacked along the SUBLANE (row) axis and HW stays on the lane
    axis throughout (lane-dense).  Row order (ky, kx, ci) matches the
    (C_out, 9C) weight layout built in prepare_kernel_params, so one MXU
    matmul realises the whole 3x3 conv.
    """
    rows = []
    for ky in range(3):
        for kx in range(3):
            rows.append(xpad[:, ky:ky + H, kx:kx + W].reshape(C, H * W))
    return jnp.concatenate(rows, axis=0).astype(CONV_COMPUTE_DTYPE)


# --------------------------------------------------------------------------- #
# Fused kernel: dual branch conv + conv11 + SK attention + mix
# --------------------------------------------------------------------------- #
def _make_sk_kernel(B, C, H, W):
    HW = H * W

    def kernel(x_ref, wdual_ref, scdual_ref, bidual_ref,
               w11_ref, sc11_ref, bi11_ref,
               fcw_ref, fcb_ref, a0w_ref, a0b_ref, a1w_ref, a1b_ref,
               alpha_ref, o_ref):
        # x_ref : (B, C, HW)   flattened NCHW input block (B samples)
        # o_ref : (B, C, HW)   flattened NCHW output block
        alpha = alpha_ref[...]                                     # (1, 1)

        for b in range(B):                                         # static unroll
            # ---- conv00 + conv10 as ONE fused MXU matmul (shared im2col) ----
            xpad = _zero_pad_hw(x_ref[b].reshape(C, H, W), C, H, W)
            patches = _im2col_rows(xpad, C, H, W)                  # (9C, HW)
            y = jnp.dot(wdual_ref[...], patches,
                        preferred_element_type=jnp.float32)        # (2C, HW)
            y = _leaky_relu(y * scdual_ref[...] + bidual_ref[...])
            fea0 = y[:C]                                           # branch 0
            t1 = y[C:]                                             # branch 1, block 0

            # ---- branch 1, block 1: conv11 (t1 / fea1 never leave VMEM) ----
            t1pad = _zero_pad_hw(t1.reshape(C, H, W), C, H, W)
            patches = _im2col_rows(t1pad, C, H, W)                 # (9C, HW)
            y1 = jnp.dot(w11_ref[...], patches,
                         preferred_element_type=jnp.float32)       # (C, HW)
            fea1 = _leaky_relu(y1 * sc11_ref[...] + bi11_ref[...])

            # ---- SK attention: pool -> alpha mix -> fc -> fcs -> softmax ----
            fea_u = fea0 + fea1                                    # (C, HW)
            s_mean = jnp.mean(fea_u, axis=1, keepdims=True)        # (C, 1)
            s_max = jnp.max(fea_u, axis=1, keepdims=True)          # (C, 1)
            fea_s = alpha * s_mean + (1.0 - alpha) * s_max         # (C, 1)
            fea_z = jnp.dot(fcw_ref[...], fea_s,
                            preferred_element_type=jnp.float32) + fcb_ref[...]
            v0 = jnp.dot(a0w_ref[...], fea_z,
                         preferred_element_type=jnp.float32) + a0b_ref[...]
            v1 = jnp.dot(a1w_ref[...], fea_z,
                         preferred_element_type=jnp.float32) + a1b_ref[...]
            m = jnp.maximum(v0, v1)
            e0 = jnp.exp(v0 - m)
            e1 = jnp.exp(v1 - m)
            inv = 1.0 / (e0 + e1)          # exact: tiny (C,1) vector, att0+att1 == 1
            att0 = e0 * inv
            att1 = e1 * inv

            # ---- attention-weighted mix; lane-dense (HW last dim) store ----
            o_ref[b] = fea0 * att0 + fea1 * att1                   # (C, HW)

    return kernel


def sk_conv_pallas(x_flat, kp, H, W, samples_per_block=1):
    N, C, HW = x_flat.shape
    assert HW == H * W
    B = samples_per_block
    assert N % B == 0, "pad batch to a multiple of samples_per_block"

    def full_spec(a):
        return pl.BlockSpec(a.shape, lambda n: (0,) * a.ndim)

    weights = (kp["w_dual"], kp["sc_dual"], kp["bi_dual"],
               kp["w11"], kp["sc11"], kp["bi11"],
               kp["fc_w"], kp["fc_b"],
               kp["a0_w"], kp["a0_b"], kp["a1_w"], kp["a1_b"],
               kp["alpha"])

    return pl.pallas_call(
        _make_sk_kernel(B, C, H, W),
        grid=(N // B,),
        in_specs=[pl.BlockSpec((B, C, HW), lambda n: (n, 0, 0))]
                 + [full_spec(w) for w in weights],
        out_specs=pl.BlockSpec((B, C, HW), lambda n: (n, 0, 0)),
        out_shape=jax.ShapeDtypeStruct((N, C, HW), jnp.float32),
        compiler_params=pltpu.CompilerParams(
            dimension_semantics=("parallel",),
            vmem_limit_bytes=_vmem_limit_bytes()),
    )(x_flat, *weights)


@functools.partial(jax.jit, static_argnames=("samples_per_block",))
def sk_conv_forward(x_nchw, kp, samples_per_block=1):
    """Public forward: native NCHW in / NCHW out. No pad/transpose in XLA."""
    N, C, H, W = x_nchw.shape
    out_flat = sk_conv_pallas(x_nchw.reshape(N, C, H * W), kp, H, W,
                              samples_per_block)
    return out_flat.reshape(N, C, H, W)


# --------------------------------------------------------------------------- #
# Parameter construction / folding (glue, plain JAX)
# --------------------------------------------------------------------------- #
def make_params(key, features, r=2, L=8):
    C = features
    d = max(C // r, L)
    ks = iter(jax.random.split(key, 16))

    def conv_bn(k):
        k1, k2, k3, k4, k5, k6 = jax.random.split(k, 6)
        return dict(
            w=0.2 * jax.random.normal(k1, (C, C, 3, 3), jnp.float32),   # OIHW
            b=0.1 * jax.random.normal(k2, (C,), jnp.float32),
            gamma=1.0 + 0.1 * jax.random.normal(k3, (C,), jnp.float32),
            beta=0.1 * jax.random.normal(k4, (C,), jnp.float32),
            rm=0.1 * jax.random.normal(k5, (C,), jnp.float32),
            rv=0.5 + jax.random.uniform(k6, (C,), jnp.float32),
        )

    return dict(
        conv00=conv_bn(next(ks)),
        conv10=conv_bn(next(ks)),
        conv11=conv_bn(next(ks)),
        fc_w=0.3 * jax.random.normal(next(ks), (d, C), jnp.float32),
        fc_b=0.1 * jax.random.normal(next(ks), (d,), jnp.float32),
        fcs0_w=0.3 * jax.random.normal(next(ks), (C, d), jnp.float32),
        fcs0_b=0.1 * jax.random.normal(next(ks), (C,), jnp.float32),
        fcs1_w=0.3 * jax.random.normal(next(ks), (C, d), jnp.float32),
        fcs1_b=0.1 * jax.random.normal(next(ks), (C,), jnp.float32),
        alpha=0.5,
    )


def _fold_conv_bn_rows(p):
    C = p["w"].shape[0]
    # OIHW (co, ci, ky, kx) -> (co, ky, kx, ci) -> (co, 9*C) : matches im2col rows
    w9 = jnp.transpose(p["w"], (0, 2, 3, 1)).reshape(C, 9 * C)
    scale = p["gamma"] / jnp.sqrt(p["rv"] + BN_EPS)
    bias = (p["b"] - p["rm"]) * scale + p["beta"]
    return w9, scale.reshape(C, 1).astype(jnp.float32), bias.reshape(C, 1).astype(jnp.float32)


def prepare_kernel_params(raw):
    w00, sc00, bi00 = _fold_conv_bn_rows(raw["conv00"])
    w10, sc10, bi10 = _fold_conv_bn_rows(raw["conv10"])
    w11, sc11, bi11 = _fold_conv_bn_rows(raw["conv11"])
    return dict(
        # conv00 + conv10 fused into one (2C, 9C) weight / (2C, 1) scale & bias
        w_dual=jnp.concatenate([w00, w10], axis=0).astype(CONV_COMPUTE_DTYPE),
        sc_dual=jnp.concatenate([sc00, sc10], axis=0),
        bi_dual=jnp.concatenate([bi00, bi10], axis=0),
        w11=w11.astype(CONV_COMPUTE_DTYPE), sc11=sc11, bi11=bi11,
        fc_w=raw["fc_w"].astype(jnp.float32),                    # (d, C)
        fc_b=raw["fc_b"].reshape(-1, 1).astype(jnp.float32),     # (d, 1)
        a0_w=raw["fcs0_w"].astype(jnp.float32),                  # (C, d)
        a0_b=raw["fcs0_b"].reshape(-1, 1).astype(jnp.float32),   # (C, 1)
        a1_w=raw["fcs1_w"].astype(jnp.float32),
        a1_b=raw["fcs1_b"].reshape(-1, 1).astype(jnp.float32),
        alpha=jnp.full((1, 1), raw["alpha"], jnp.float32),
    )


# --------------------------------------------------------------------------- #
# Pure-JAX reference (mirrors the PyTorch forward, eval-mode BN)
# --------------------------------------------------------------------------- #
def _ref_conv_bn_lrelu(x_nchw, p):
    y = jax.lax.conv_general_dilated(
        x_nchw, p["w"], window_strides=(1, 1), padding=((1, 1), (1, 1)),
        dimension_numbers=("NCHW", "OIHW", "NCHW"))
    y = y + p["b"][None, :, None, None]
    y = (y - p["rm"][None, :, None, None]) / jnp.sqrt(
        p["rv"][None, :, None, None] + BN_EPS)
    y = y * p["gamma"][None, :, None, None] + p["beta"][None, :, None, None]
    return jnp.where(y > 0, y, LRELU_SLOPE * y)


def ref_forward(x_nchw, raw):
    b0 = _ref_conv_bn_lrelu(x_nchw, raw["conv00"])
    b1 = _ref_conv_bn_lrelu(_ref_conv_bn_lrelu(x_nchw, raw["conv10"]),
                            raw["conv11"])
    feas = jnp.stack([b0, b1], axis=1)                        # (N,M,C,H,W)
    fea_u = feas.sum(axis=1)
    s_mean = fea_u.mean(-1).mean(-1)
    s_max = fea_u.max(-1).max(-1)
    fea_s = raw["alpha"] * s_mean + (1.0 - raw["alpha"]) * s_max
    fea_z = fea_s @ raw["fc_w"].T + raw["fc_b"]
    v0 = fea_z @ raw["fcs0_w"].T + raw["fcs0_b"]
    v1 = fea_z @ raw["fcs1_w"].T + raw["fcs1_b"]
    att = jax.nn.softmax(jnp.stack([v0, v1], axis=1), axis=1)  # (N,M,C)
    return (feas * att[:, :, :, None, None]).sum(axis=1)


# --------------------------------------------------------------------------- #
if __name__ == "__main__":
    key = jax.random.PRNGKey(0)
    kx, kp_key = jax.random.split(key)

    N, C, H, W = 2, 8, 16, 16          # features=8 -> d = max(8//2, 8) = 8
    x = jax.random.normal(kx, (N, C, H, W), jnp.float32)

    raw = make_params(kp_key, C)
    kparams = prepare_kernel_params(raw)

    # samples_per_block=1 keeps the parallel grid >= 2 (both v7x TCs busy);
    # on single-TC v5e/v6e, samples_per_block=N amortizes grid-step overhead.
    out = jax.block_until_ready(sk_conv_forward(x, kparams, samples_per_block=1))

    ref = ref_forward(x, raw)
    err = float(jnp.max(jnp.abs(out - ref)))
    assert out.shape == (N, C, H, W), out.shape
    assert err < 2e-2, f"max abs err {err}"
    print("KERNEL_OK")
</pallas_src>

<mosaic_0001>
module attributes {stable_mosaic.version = 11 : i64} {
  func.func @kernel(%arg0: i32, %arg1: memref<1x8x256xf32, #tpu.memory_space<vmem>>, %arg2: memref<16x72xf32, #tpu.memory_space<vmem>>, %arg3: memref<16x1xf32, #tpu.memory_space<vmem>>, %arg4: memref<16x1xf32, #tpu.memory_space<vmem>>, %arg5: memref<8x72xf32, #tpu.memory_space<vmem>>, %arg6: memref<8x1xf32, #tpu.memory_space<vmem>>, %arg7: memref<8x1xf32, #tpu.memory_space<vmem>>, %arg8: memref<8x8xf32, #tpu.memory_space<vmem>>, %arg9: memref<8x1xf32, #tpu.memory_space<vmem>>, %arg10: memref<8x8xf32, #tpu.memory_space<vmem>>, %arg11: memref<8x1xf32, #tpu.memory_space<vmem>>, %arg12: memref<8x8xf32, #tpu.memory_space<vmem>>, %arg13: memref<8x1xf32, #tpu.memory_space<vmem>>, %arg14: memref<1x1xf32, #tpu.memory_space<vmem>>, %arg15: memref<1x8x256xf32, #tpu.memory_space<vmem>>) attributes {dimension_semantics = [#tpu.dimension_semantics<parallel>], iteration_bounds = array<i64: 2>, scalar_prefetch = 0 : i64, scratch_operands = 0 : i64, tpu.core_type = #tpu.core_type<tc>, window_params = [{transform_indices = @transform_0, window_bounds = array<i64: 1, 8, 256>}, {pipeline_mode = #tpu.pipeline_mode<synchronous>, transform_indices = @transform_1, window_bounds = array<i64: 16, 72>}, {pipeline_mode = #tpu.pipeline_mode<synchronous>, transform_indices = @transform_2, window_bounds = array<i64: 16, 1>}, {pipeline_mode = #tpu.pipeline_mode<synchronous>, transform_indices = @transform_3, window_bounds = array<i64: 16, 1>}, {pipeline_mode = #tpu.pipeline_mode<synchronous>, transform_indices = @transform_4, window_bounds = array<i64: 8, 72>}, {pipeline_mode = #tpu.pipeline_mode<synchronous>, transform_indices = @transform_5, window_bounds = array<i64: 8, 1>}, {pipeline_mode = #tpu.pipeline_mode<synchronous>, transform_indices = @transform_6, window_bounds = array<i64: 8, 1>}, {pipeline_mode = #tpu.pipeline_mode<synchronous>, transform_indices = @transform_7, window_bounds = array<i64: 8, 8>}, {pipeline_mode = #tpu.pipeline_mode<synchronous>, transform_indices = @transform_8, window_bounds = array<i64: 8, 1>}, {pipeline_mode = #tpu.pipeline_mode<synchronous>, transform_indices = @transform_9, window_bounds = array<i64: 8, 8>}, {pipeline_mode = #tpu.pipeline_mode<synchronous>, transform_indices = @transform_10, window_bounds = array<i64: 8, 1>}, {pipeline_mode = #tpu.pipeline_mode<synchronous>, transform_indices = @transform_11, window_bounds = array<i64: 8, 8>}, {pipeline_mode = #tpu.pipeline_mode<synchronous>, transform_indices = @transform_12, window_bounds = array<i64: 8, 1>}, {pipeline_mode = #tpu.pipeline_mode<synchronous>, transform_indices = @transform_13, window_bounds = array<i64: 1, 1>}, {transform_indices = @transform_14, window_bounds = array<i64: 1, 8, 256>}]} {
    %c0 = arith.constant 0 : index
    %c0_0 = arith.constant 0 : index
    %0 = vector.load %arg14[%c0, %c0_0] : memref<1x1xf32, #tpu.memory_space<vmem>>, vector<1x1xf32>
    %c0_1 = arith.constant 0 : index
    %c0_2 = arith.constant 0 : index
    %c0_3 = arith.constant 0 : index
    %1 = vector.load %arg1[%c0_1, %c0_2, %c0_3] : memref<1x8x256xf32, #tpu.memory_space<vmem>>, vector<1x8x256xf32>
    %2 = vector.shape_cast %1 : vector<1x8x256xf32> to vector<8x256xf32>
    %3 = vector.shape_cast %2 : vector<8x256xf32> to vector<8x16x16xf32>
    %cst = arith.constant 0.000000e+00 : f32
    %4 = vector.broadcast %cst : f32 to vector<8x16x1xf32>
    %5 = tpu.concatenate %4, %3, %4 in 2 : vector<8x16x1xf32>, vector<8x16x16xf32>, vector<8x16x1xf32> -> vector<8x16x18xf32>
    %cst_4 = arith.constant 0.000000e+00 : f32
    %6 = vector.broadcast %cst_4 : f32 to vector<8x1x18xf32>
    %7 = tpu.concatenate %6, %5, %6 in 1 : vector<8x1x18xf32>, vector<8x16x18xf32>, vector<8x1x18xf32> -> vector<8x18x18xf32>
    %8 = vector.extract_strided_slice %7 {offsets = [0, 0, 0], sizes = [8, 16, 16], strides = [1, 1, 1]} : vector<8x18x18xf32> to vector<8x16x16xf32>
    %9 = vector.shape_cast %8 : vector<8x16x16xf32> to vector<8x256xf32>
    %10 = vector.extract_strided_slice %7 {offsets = [0, 0, 1], sizes = [8, 16, 16], strides = [1, 1, 1]} : vector<8x18x18xf32> to vector<8x16x16xf32>
    %11 = vector.shape_cast %10 : vector<8x16x16xf32> to vector<8x256xf32>
    %12 = vector.extract_strided_slice %7 {offsets = [0, 0, 2], sizes = [8, 16, 16], strides = [1, 1, 1]} : vector<8x18x18xf32> to vector<8x16x16xf32>
    %13 = vector.shape_cast %12 : vector<8x16x16xf32> to vector<8x256xf32>
    %14 = vector.extract_strided_slice %7 {offsets = [0, 1, 0], sizes = [8, 16, 16], strides = [1, 1, 1]} : vector<8x18x18xf32> to vector<8x16x16xf32>
    %15 = vector.shape_cast %14 : vector<8x16x16xf32> to vector<8x256xf32>
    %16 = vector.extract_strided_slice %7 {offsets = [0, 1, 1], sizes = [8, 16, 16], strides = [1, 1, 1]} : vector<8x18x18xf32> to vector<8x16x16xf32>
    %17 = vector.shape_cast %16 : vector<8x16x16xf32> to vector<8x256xf32>
    %18 = vector.extract_strided_slice %7 {offsets = [0, 1, 2], sizes = [8, 16, 16], strides = [1, 1, 1]} : vector<8x18x18xf32> to vector<8x16x16xf32>
    %19 = vector.shape_cast %18 : vector<8x16x16xf32> to vector<8x256xf32>
    %20 = vector.extract_strided_slice %7 {offsets = [0, 2, 0], sizes = [8, 16, 16], strides = [1, 1, 1]} : vector<8x18x18xf32> to vector<8x16x16xf32>
    %21 = vector.shape_cast %20 : vector<8x16x16xf32> to vector<8x256xf32>
    %22 = vector.extract_strided_slice %7 {offsets = [0, 2, 1], sizes = [8, 16, 16], strides = [1, 1, 1]} : vector<8x18x18xf32> to vector<8x16x16xf32>
    %23 = vector.shape_cast %22 : vector<8x16x16xf32> to vector<8x256xf32>
    %24 = vector.extract_strided_slice %7 {offsets = [0, 2, 2], sizes = [8, 16, 16], strides = [1, 1, 1]} : vector<8x18x18xf32> to vector<8x16x16xf32>
    %25 = vector.shape_cast %24 : vector<8x16x16xf32> to vector<8x256xf32>
    %26 = tpu.concatenate %9, %11, %13, %15, %17, %19, %21, %23, %25 in 0 : vector<8x256xf32>, vector<8x256xf32>, vector<8x256xf32>, vector<8x256xf32>, vector<8x256xf32>, vector<8x256xf32>, vector<8x256xf32>, vector<8x256xf32>, vector<8x256xf32> -> vector<72x256xf32>
    %c0_5 = arith.constant 0 : index
    %c0_6 = arith.constant 0 : index
    %27 = vector.load %arg2[%c0_5, %c0_6] : memref<16x72xf32, #tpu.memory_space<vmem>>, vector<16x72xf32>
    %cst_7 = arith.constant dense<0.000000e+00> : vector<16x256xf32>
    %28 = tpu.matmul %27, %26, %cst_7 {dimension_numbers = #tpu.dot_dimension_numbers<[1], [0], [0], [1], [0, 0, 1, 1], [], []>} : vector<16x72xf32>, vector<72x256xf32>, vector<16x256xf32> -> vector<16x256xf32>
    %c0_8 = arith.constant 0 : index
    %c0_9 = arith.constant 0 : index
    %29 = vector.load %arg3[%c0_8, %c0_9] : memref<16x1xf32, #tpu.memory_space<vmem>>, vector<16x1xf32>
    %30 = vector.broadcast %29 : vector<16x1xf32> to vector<16x256xf32>
    %31 = arith.mulf %28, %30 : vector<16x256xf32>
    %c0_10 = arith.constant 0 : index
    %c0_11 = arith.constant 0 : index
    %32 = vector.load %arg4[%c0_10, %c0_11] : memref<16x1xf32, #tpu.memory_space<vmem>>, vector<16x1xf32>
    %33 = vector.broadcast %32 : vector<16x1xf32> to vector<16x256xf32>
    %34 = arith.addf %31, %33 : vector<16x256xf32>
    %cst_12 = arith.constant 0.000000e+00 : f32
    %35 = vector.broadcast %cst_12 : f32 to vector<16x256xf32>
    %36 = arith.cmpf ogt, %34, %35 : vector<16x256xf32>
    %cst_13 = arith.constant 2.000000e-01 : f32
    %37 = vector.broadcast %cst_13 : f32 to vector<16x256xf32>
    %38 = arith.mulf %37, %34 : vector<16x256xf32>
    %39 = arith.select %36, %34, %38 : vector<16x256xi1>, vector<16x256xf32>
    %40 = vector.extract_strided_slice %39 {offsets = [0, 0], sizes = [8, 256], strides = [1, 1]} : vector<16x256xf32> to vector<8x256xf32>
    %41 = vector.extract_strided_slice %39 {offsets = [8, 0], sizes = [8, 256], strides = [1, 1]} : vector<16x256xf32> to vector<8x256xf32>
    %42 = vector.shape_cast %41 : vector<8x256xf32> to vector<8x16x16xf32>
    %cst_14 = arith.constant 0.000000e+00 : f32
    %43 = vector.broadcast %cst_14 : f32 to vector<8x16x1xf32>
    %44 = tpu.concatenate %43, %42, %43 in 2 : vector<8x16x1xf32>, vector<8x16x16xf32>, vector<8x16x1xf32> -> vector<8x16x18xf32>
    %cst_15 = arith.constant 0.000000e+00 : f32
    %45 = vector.broadcast %cst_15 : f32 to vector<8x1x18xf32>
    %46 = tpu.concatenate %45, %44, %45 in 1 : vector<8x1x18xf32>, vector<8x16x18xf32>, vector<8x1x18xf32> -> vector<8x18x18xf32>
    %47 = vector.extract_strided_slice %46 {offsets = [0, 0, 0], sizes = [8, 16, 16], strides = [1, 1, 1]} : vector<8x18x18xf32> to vector<8x16x16xf32>
    %48 = vector.shape_cast %47 : vector<8x16x16xf32> to vector<8x256xf32>
    %49 = vector.extract_strided_slice %46 {offsets = [0, 0, 1], sizes = [8, 16, 16], strides = [1, 1, 1]} : vector<8x18x18xf32> to vector<8x16x16xf32>
    %50 = vector.shape_cast %49 : vector<8x16x16xf32> to vector<8x256xf32>
    %51 = vector.extract_strided_slice %46 {offsets = [0, 0, 2], sizes = [8, 16, 16], strides = [1, 1, 1]} : vector<8x18x18xf32> to vector<8x16x16xf32>
    %52 = vector.shape_cast %51 : vector<8x16x16xf32> to vector<8x256xf32>
    %53 = vector.extract_strided_slice %46 {offsets = [0, 1, 0], sizes = [8, 16, 16], strides = [1, 1, 1]} : vector<8x18x18xf32> to vector<8x16x16xf32>
    %54 = vector.shape_cast %53 : vector<8x16x16xf32> to vector<8x256xf32>
    %55 = vector.extract_strided_slice %46 {offsets = [0, 1, 1], sizes = [8, 16, 16], strides = [1, 1, 1]} : vector<8x18x18xf32> to vector<8x16x16xf32>
    %56 = vector.shape_cast %55 : vector<8x16x16xf32> to vector<8x256xf32>
    %57 = vector.extract_strided_slice %46 {offsets = [0, 1, 2], sizes = [8, 16, 16], strides = [1, 1, 1]} : vector<8x18x18xf32> to vector<8x16x16xf32>
    %58 = vector.shape_cast %57 : vector<8x16x16xf32> to vector<8x256xf32>
    %59 = vector.extract_strided_slice %46 {offsets = [0, 2, 0], sizes = [8, 16, 16], strides = [1, 1, 1]} : vector<8x18x18xf32> to vector<8x16x16xf32>
    %60 = vector.shape_cast %59 : vector<8x16x16xf32> to vector<8x256xf32>
    %61 = vector.extract_strided_slice %46 {offsets = [0, 2, 1], sizes = [8, 16, 16], strides = [1, 1, 1]} : vector<8x18x18xf32> to vector<8x16x16xf32>
    %62 = vector.shape_cast %61 : vector<8x16x16xf32> to vector<8x256xf32>
    %63 = vector.extract_strided_slice %46 {offsets = [0, 2, 2], sizes = [8, 16, 16], strides = [1, 1, 1]} : vector<8x18x18xf32> to vector<8x16x16xf32>
    %64 = vector.shape_cast %63 : vector<8x16x16xf32> to vector<8x256xf32>
    %65 = tpu.concatenate %48, %50, %52, %54, %56, %58, %60, %62, %64 in 0 : vector<8x256xf32>, vector<8x256xf32>, vector<8x256xf32>, vector<8x256xf32>, vector<8x256xf32>, vector<8x256xf32>, vector<8x256xf32>, vector<8x256xf32>, vector<8x256xf32> -> vector<72x256xf32>
    %c0_16 = arith.constant 0 : index
    %c0_17 = arith.constant 0 : index
    %66 = vector.load %arg5[%c0_16, %c0_17] : memref<8x72xf32, #tpu.memory_space<vmem>>, vector<8x72xf32>
    %cst_18 = arith.constant dense<0.000000e+00> : vector<8x256xf32>
    %67 = tpu.matmul %66, %65, %cst_18 {dimension_numbers = #tpu.dot_dimension_numbers<[1], [0], [0], [1], [0, 0, 1, 1], [], []>} : vector<8x72xf32>, vector<72x256xf32>, vector<8x256xf32> -> vector<8x256xf32>
    %c0_19 = arith.constant 0 : index
    %c0_20 = arith.constant 0 : index
    %68 = vector.load %arg6[%c0_19, %c0_20] : memref<8x1xf32, #tpu.memory_space<vmem>>, vector<8x1xf32>
    %69 = vector.broadcast %68 : vector<8x1xf32> to vector<8x256xf32>
    %70 = arith.mulf %67, %69 : vector<8x256xf32>
    %c0_21 = arith.constant 0 : index
    %c0_22 = arith.constant 0 : index
    %71 = vector.load %arg7[%c0_21, %c0_22] : memref<8x1xf32, #tpu.memory_space<vmem>>, vector<8x1xf32>
    %72 = vector.broadcast %71 : vector<8x1xf32> to vector<8x256xf32>
    %73 = arith.addf %70, %72 : vector<8x256xf32>
    %cst_23 = arith.constant 0.000000e+00 : f32
    %74 = vector.broadcast %cst_23 : f32 to vector<8x256xf32>
    %75 = arith.cmpf ogt, %73, %74 : vector<8x256xf32>
    %cst_24 = arith.constant 2.000000e-01 : f32
    %76 = vector.broadcast %cst_24 : f32 to vector<8x256xf32>
    %77 = arith.mulf %76, %73 : vector<8x256xf32>
    %78 = arith.select %75, %73, %77 : vector<8x256xi1>, vector<8x256xf32>
    %79 = arith.addf %40, %78 : vector<8x256xf32>
    %cst_25 = arith.constant dense<0.000000e+00> : vector<8xf32>
    %80 = vector.multi_reduction <add>, %79, %cst_25 [1] : vector<8x256xf32> to vector<8xf32>
    %81 = vector.shape_cast %80 : vector<8xf32> to vector<8x1xf32>
    %cst_26 = arith.constant 2.560000e+02 : f32
    %82 = vector.broadcast %cst_26 : f32 to vector<8x1xf32>
    %83 = arith.divf %81, %82 : vector<8x1xf32>
    %cst_27 = arith.constant dense<0xFF800000> : vector<8xf32>
    %84 = vector.multi_reduction <maximumf>, %79, %cst_27 [1] : vector<8x256xf32> to vector<8xf32>
    %85 = vector.shape_cast %84 : vector<8xf32> to vector<8x1xf32>
    %86 = vector.broadcast %0 : vector<1x1xf32> to vector<8x1xf32>
    %87 = arith.mulf %86, %83 : vector<8x1xf32>
    %cst_28 = arith.constant 1.000000e+00 : f32
    %88 = vector.broadcast %cst_28 : f32 to vector<1x1xf32>
    %89 = arith.subf %88, %0 : vector<1x1xf32>
    %90 = vector.broadcast %89 : vector<1x1xf32> to vector<8x1xf32>
    %91 = arith.mulf %90, %85 : vector<8x1xf32>
    %92 = arith.addf %87, %91 : vector<8x1xf32>
    %c0_29 = arith.constant 0 : index
    %c0_30 = arith.constant 0 : index
    %93 = vector.load %arg8[%c0_29, %c0_30] : memref<8x8xf32, #tpu.memory_space<vmem>>, vector<8x8xf32>
    %cst_31 = arith.constant dense<0.000000e+00> : vector<8x1xf32>
    %94 = tpu.matmul %93, %92, %cst_31 {dimension_numbers = #tpu.dot_dimension_numbers<[1], [0], [0], [1], [0, 0, 1, 1], [], []>} : vector<8x8xf32>, vector<8x1xf32>, vector<8x1xf32> -> vector<8x1xf32>
    %c0_32 = arith.constant 0 : index
    %c0_33 = arith.constant 0 : index
    %95 = vector.load %arg9[%c0_32, %c0_33] : memref<8x1xf32, #tpu.memory_space<vmem>>, vector<8x1xf32>
    %96 = arith.addf %94, %95 : vector<8x1xf32>
    %c0_34 = arith.constant 0 : index
    %c0_35 = arith.constant 0 : index
    %97 = vector.load %arg10[%c0_34, %c0_35] : memref<8x8xf32, #tpu.memory_space<vmem>>, vector<8x8xf32>
    %cst_36 = arith.constant dense<0.000000e+00> : vector<8x1xf32>
    %98 = tpu.matmul %97, %96, %cst_36 {dimension_numbers = #tpu.dot_dimension_numbers<[1], [0], [0], [1], [0, 0, 1, 1], [], []>} : vector<8x8xf32>, vector<8x1xf32>, vector<8x1xf32> -> vector<8x1xf32>
    %c0_37 = arith.constant 0 : index
    %c0_38 = arith.constant 0 : index
    %99 = vector.load %arg11[%c0_37, %c0_38] : memref<8x1xf32, #tpu.memory_space<vmem>>, vector<8x1xf32>
    %100 = arith.addf %98, %99 : vector<8x1xf32>
    %c0_39 = arith.constant 0 : index
    %c0_40 = arith.constant 0 : index
    %101 = vector.load %arg12[%c0_39, %c0_40] : memref<8x8xf32, #tpu.memory_space<vmem>>, vector<8x8xf32>
    %cst_41 = arith.constant dense<0.000000e+00> : vector<8x1xf32>
    %102 = tpu.matmul %101, %96, %cst_41 {dimension_numbers = #tpu.dot_dimension_numbers<[1], [0], [0], [1], [0, 0, 1, 1], [], []>} : vector<8x8xf32>, vector<8x1xf32>, vector<8x1xf32> -> vector<8x1xf32>
    %c0_42 = arith.constant 0 : index
    %c0_43 = arith.constant 0 : index
    %103 = vector.load %arg13[%c0_42, %c0_43] : memref<8x1xf32, #tpu.memory_space<vmem>>, vector<8x1xf32>
    %104 = arith.addf %102, %103 : vector<8x1xf32>
    %105 = arith.maximumf %100, %104 : vector<8x1xf32>
    %106 = arith.subf %100, %105 : vector<8x1xf32>
    %107 = math.exp %106 : vector<8x1xf32>
    %108 = arith.subf %104, %105 : vector<8x1xf32>
    %109 = math.exp %108 : vector<8x1xf32>
    %110 = arith.addf %107, %109 : vector<8x1xf32>
    %cst_44 = arith.constant 1.000000e+00 : f32
    %111 = vector.broadcast %cst_44 : f32 to vector<8x1xf32>
    %112 = arith.divf %111, %110 : vector<8x1xf32>
    %113 = arith.mulf %107, %112 : vector<8x1xf32>
    %114 = arith.mulf %109, %112 : vector<8x1xf32>
    %115 = vector.broadcast %113 : vector<8x1xf32> to vector<8x256xf32>
    %116 = arith.mulf %40, %115 : vector<8x256xf32>
    %117 = vector.broadcast %114 : vector<8x1xf32> to vector<8x256xf32>
    %118 = arith.mulf %78, %117 : vector<8x256xf32>
    %119 = arith.addf %116, %118 : vector<8x256xf32>
    %c0_45 = arith.constant 0 : index
    %c0_46 = arith.constant 0 : index
    %c0_47 = arith.constant 0 : index
    %120 = vector.load %arg15[%c0_45, %c0_46, %c0_47] : memref<1x8x256xf32, #tpu.memory_space<vmem>>, vector<1x8x256xf32>
    %121 = vector.shape_cast %120 : vector<1x8x256xf32> to vector<8x256xf32>
    %122 = vector.shape_cast %119 : vector<8x256xf32> to vector<1x8x256xf32>
    tpu.vector_store %arg15[%c0_45, %c0_46, %c0_47], %122 {strides = array<i32>} : memref<1x8x256xf32, #tpu.memory_space<vmem>>, vector<1x8x256xf32>,
    return
  }
  func.func @transform_0(%arg0: i32) -> (i32, i32, i32) {
    %c0_i32 = arith.constant 0 : i32
    %c0_i32_0 = arith.constant 0 : i32
    %c0_i32_1 = arith.constant 0 : i32
    return %arg0, %c0_i32, %c0_i32_0 : i32, i32, i32
  }
  func.func @transform_1(%arg0: i32) -> (i32, i32) {
    %c0_i32 = arith.constant 0 : i32
    %c0_i32_0 = arith.constant 0 : i32
    %c0_i32_1 = arith.constant 0 : i32
    return %c0_i32, %c0_i32_0 : i32, i32
  }
  func.func @transform_2(%arg0: i32) -> (i32, i32) {
    %c0_i32 = arith.constant 0 : i32
    %c0_i32_0 = arith.constant 0 : i32
    %c0_i32_1 = arith.constant 0 : i32
    return %c0_i32, %c0_i32_0 : i32, i32
  }
  func.func @transform_3(%arg0: i32) -> (i32, i32) {
    %c0_i32 = arith.constant 0 : i32
    %c0_i32_0 = arith.constant 0 : i32
    %c0_i32_1 = arith.constant 0 : i32
    return %c0_i32, %c0_i32_0 : i32, i32
  }
  func.func @transform_4(%arg0: i32) -> (i32, i32) {
    %c0_i32 = arith.constant 0 : i32
    %c0_i32_0 = arith.constant 0 : i32
    %c0_i32_1 = arith.constant 0 : i32
    return %c0_i32, %c0_i32_0 : i32, i32
  }
  func.func @transform_5(%arg0: i32) -> (i32, i32) {
    %c0_i32 = arith.constant 0 : i32
    %c0_i32_0 = arith.constant 0 : i32
    %c0_i32_1 = arith.constant 0 : i32
    return %c0_i32, %c0_i32_0 : i32, i32
  }
  func.func @transform_6(%arg0: i32) -> (i32, i32) {
    %c0_i32 = arith.constant 0 : i32
    %c0_i32_0 = arith.constant 0 : i32
    %c0_i32_1 = arith.constant 0 : i32
    return %c0_i32, %c0_i32_0 : i32, i32
  }
  func.func @transform_7(%arg0: i32) -> (i32, i32) {
    %c0_i32 = arith.constant 0 : i32
    %c0_i32_0 = arith.constant 0 : i32
    %c0_i32_1 = arith.constant 0 : i32
    return %c0_i32, %c0_i32_0 : i32, i32
  }
  func.func @transform_8(%arg0: i32) -> (i32, i32) {
    %c0_i32 = arith.constant 0 : i32
    %c0_i32_0 = arith.constant 0 : i32
    %c0_i32_1 = arith.constant 0 : i32
    return %c0_i32, %c0_i32_0 : i32, i32
  }
  func.func @transform_9(%arg0: i32) -> (i32, i32) {
    %c0_i32 = arith.constant 0 : i32
    %c0_i32_0 = arith.constant 0 : i32
    %c0_i32_1 = arith.constant 0 : i32
    return %c0_i32, %c0_i32_0 : i32, i32
  }
  func.func @transform_10(%arg0: i32) -> (i32, i32) {
    %c0_i32 = arith.constant 0 : i32
    %c0_i32_0 = arith.constant 0 : i32
    %c0_i32_1 = arith.constant 0 : i32
    return %c0_i32, %c0_i32_0 : i32, i32
  }
  func.func @transform_11(%arg0: i32) -> (i32, i32) {
    %c0_i32 = arith.constant 0 : i32
    %c0_i32_0 = arith.constant 0 : i32
    %c0_i32_1 = arith.constant 0 : i32
    return %c0_i32, %c0_i32_0 : i32, i32
  }
  func.func @transform_12(%arg0: i32) -> (i32, i32) {
    %c0_i32 = arith.constant 0 : i32
    %c0_i32_0 = arith.constant 0 : i32
    %c0_i32_1 = arith.constant 0 : i32
    return %c0_i32, %c0_i32_0 : i32, i32
  }
  func.func @transform_13(%arg0: i32) -> (i32, i32) {
    %c0_i32 = arith.constant 0 : i32
    %c0_i32_0 = arith.constant 0 : i32
    %c0_i32_1 = arith.constant 0 : i32
    return %c0_i32, %c0_i32_0 : i32, i32
  }
  func.func @transform_14(%arg0: i32) -> (i32, i32, i32) {
    %c0_i32 = arith.constant 0 : i32
    %c0_i32_0 = arith.constant 0 : i32
    %c0_i32_1 = arith.constant 0 : i32
    return %arg0, %c0_i32, %c0_i32_0 : i32, i32, i32
  }
}

</mosaic_0001>

<llo_original>
// kernel: sk_conv_forward.1
$region0: #{sk_conv_forward.1}
  #allocation0 [shape = 'u32[]', space=smem, size = 0x4, offset = 0x4, fixed_abs, tag = 'smem constant byte address 0x4 - core index']
  #allocation1 [shape = 'u32[144,128]{1,0:T(1,128)}', space=vmem, size = 0x12000, scoped, tag = 'internal scratch']
  #allocation2 [shape = 'f32[1,1]{1,0:T(1,128)S(1)}', space=vmem, size = 0x200, scoped, tag = 'scoped memory for sk_conv_forward.1']
  %s0 = inlined_call_operand.vmem [shape: f32[2,8,256], index: 0, kind: input, shape index: {}]
  %s1 = inlined_call_operand.vmem [shape: f32[16,72], index: 1, kind: input, shape index: {}]
  %s2 = inlined_call_operand.vmem [shape: f32[16,1], index: 2, kind: input, shape index: {}]
  %s3 = inlined_call_operand.vmem [shape: f32[16,1], index: 3, kind: input, shape index: {}]
  %s4 = inlined_call_operand.vmem [shape: f32[8,72], index: 4, kind: input, shape index: {}]
  %s5 = inlined_call_operand.vmem [shape: f32[8,1], index: 5, kind: input, shape index: {}]
  %s6 = inlined_call_operand.vmem [shape: f32[8,1], index: 6, kind: input, shape index: {}]
  %s7 = inlined_call_operand.vmem [shape: f32[8,8], index: 7, kind: input, shape index: {}]
  %s8 = inlined_call_operand.vmem [shape: f32[8,1], index: 8, kind: input, shape index: {}]
  %s9 = inlined_call_operand.vmem [shape: f32[8,8], index: 9, kind: input, shape index: {}]
  %s10 = inlined_call_operand.vmem [shape: f32[8,1], index: 10, kind: input, shape index: {}]
  %s11 = inlined_call_operand.vmem [shape: f32[8,8], index: 11, kind: input, shape index: {}]
  %s12 = inlined_call_operand.vmem [shape: f32[8,1], index: 12, kind: input, shape index: {}]
  %s13 = inlined_call_operand.<no memory space> [shape: f32[1,1], index: 13, kind: input, shape index: {}]
  %s14 = inlined_call_operand.vmem [shape: f32[2,8,256], index: 14, kind: output, shape index: {}]
  %s15 = sld [smem:[#allocation0]]
  $region89: #{sk_conv_forward.1} parent=0
    _
  %s17 = ssub.s32 1, %s15
  %s18 = scalar_select 0, %s17, %s15
  %v19 = vstv %s13
  %20 = vst [vmem:[#allocation2] sm:$0x1] %v19
  loop: start=0, step=1, limit=4
  $region2: #{sk_conv_forward.1} parent=0 // loop_pre_header
    _
  $region3: #{sk_conv_forward.1} parent=0 // loop_header
    %s22 = sphi 0, %s26
    %p23 = scmp.ge.s32.totalorder %s22, 4
    %s32 = sphi 0, %s34
    %s35 = sphi 0, %s32
    %s36 = sphi 0, %s35
    %s52 = sphi 0, %s36
    %s56 = sphi 0, %s56
    %s58 = sphi 0, %s56
    %s59 = sphi 0, %s58
    %s73 = sphi 0, %s59
    %s77 = sphi 0, %s77
    %s79 = sphi 0, %s77
    %s80 = sphi 0, %s79
    %s94 = sphi 0, %s80
    %s98 = sphi 0, %s98
    %s100 = sphi 0, %s98
    %s101 = sphi 0, %s100
    %s115 = sphi 0, %s101
    %s119 = sphi 0, %s119
    %s121 = sphi 0, %s119
    %s122 = sphi 0, %s121
    %s136 = sphi 0, %s122
    %s140 = sphi 0, %s140
    %s142 = sphi 0, %s140
    %s143 = sphi 0, %s142
    %s157 = sphi 0, %s143
    %s161 = sphi 0, %s161
    %s163 = sphi 0, %s161
    %s164 = sphi 0, %s163
    %s178 = sphi 0, %s164
    %s182 = sphi 0, %s182
    %s184 = sphi 0, %s182
    %s185 = sphi 0, %s184
    %s199 = sphi 0, %s185
    %s203 = sphi 0, %s203
    %s205 = sphi 0, %s203
    %s206 = sphi 0, %s205
    %s220 = sphi 0, %s206
    %s224 = sphi 0, %s224
    %s226 = sphi 0, %s224
    %s227 = sphi 0, %s226
    %s241 = sphi 0, %s227
    %s245 = sphi 0, %s245
    %s247 = sphi 0, %s245
    %s248 = sphi 0, %s247
    %s262 = sphi 0, %s248
    %s266 = sphi 0, %s266
    %s268 = sphi 0, %s266
    %s269 = sphi 0, %s268
    %s283 = sphi 0, %s269
    %s287 = sphi 0, %s287
    %s289 = sphi 0, %s287
    %s290 = sphi 0, %s289
    %s304 = sphi 0, %s290
    %s308 = sphi 0, %s308
    %s310 = sphi 0, %s308
    %s311 = sphi 0, %s310
    %s325 = sphi 0, %s311
    %s331 = sphi 0, %s333
    %s334 = sphi 0, %s331
    %s335 = sphi 0, %s334
    %s351 = sphi 0, %s335
  $region4: #{sk_conv_forward.1} parent=0 // loop_header_branch
    %25 = sbr.rel (%p23) target = $region8
  $region5: #{sk_conv_forward.1} parent=0 // loop_body
    %s27 = ssub.s32 %s22, 1
    %s28 = ssub.s32 %s22, 2
    %s29 = sadd.s32 %s22, 1
    %s30 = ssub.s32 %s22, %s29
    %p31 = scmp.eq.s32.totalorder %s30, 0
    %s33 = sadd.s32 %s32, 1
    %s34 = scalar_select %p31, %s32, %s33
    %p37 = pneg %p31
    %p38 = scmp.eq.s32.totalorder %s22, 1
    %p39 = por %p37, %p38
    %p40 = scmp.ne.s32.totalorder %s32, %s35
    %p41 = scmp.eq.s32.totalorder %s22, 0
    %p42 = por %p40, %p41
    %p43 = scmp.ne.s32.totalorder %s32, %s35
    %p44 = scmp.eq.s32.totalorder %s27, 1
    %p45 = por %p43, %p44
    %p46 = scmp.ne.s32.totalorder %s35, %s36
    %p47 = scmp.eq.s32.totalorder %s27, 0
    %p48 = por %p46, %p47
    %p49 = scmp.ne.s32.totalorder %s35, %s36
    %p50 = scmp.eq.s32.totalorder %s28, 1
    %p51 = por %p49, %p50
    %p53 = scmp.ne.s32.totalorder %s36, %s52
    %p54 = scmp.eq.s32.totalorder %s28, 0
    %p55 = por %p53, %p54
    %s57 = sadd.s32 %s56, 1
    %p60 = scmp.eq.s32.totalorder %s22, 1
    %p61 = scmp.ne.s32.totalorder %s56, %s58
    %p62 = scmp.eq.s32.totalorder %s22, 0
    %p63 = por %p61, %p62
    %p64 = scmp.ne.s32.totalorder %s56, %s58
    %p65 = scmp.eq.s32.totalorder %s27, 1
    %p66 = por %p64, %p65
    %p67 = scmp.ne.s32.totalorder %s58, %s59
    %p68 = scmp.eq.s32.totalorder %s27, 0
    %p69 = por %p67, %p68
    %p70 = scmp.ne.s32.totalorder %s58, %s59
    %p71 = scmp.eq.s32.totalorder %s28, 1
    %p72 = por %p70, %p71
    %p74 = scmp.ne.s32.totalorder %s59, %s73
    %p75 = scmp.eq.s32.totalorder %s28, 0
    %p76 = por %p74, %p75
    %s78 = sadd.s32 %s77, 1
    %p81 = scmp.eq.s32.totalorder %s22, 1
    %p82 = scmp.ne.s32.totalorder %s77, %s79
    %p83 = scmp.eq.s32.totalorder %s22, 0
    %p84 = por %p82, %p83
    %p85 = scmp.ne.s32.totalorder %s77, %s79
    %p86 = scmp.eq.s32.totalorder %s27, 1
    %p87 = por %p85, %p86
    %p88 = scmp.ne.s32.totalorder %s79, %s80
    %p89 = scmp.eq.s32.totalorder %s27, 0
    %p90 = por %p88, %p89
    %p91 = scmp.ne.s32.totalorder %s79, %s80
    %p92 = scmp.eq.s32.totalorder %s28, 1
    %p93 = por %p91, %p92
    %p95 = scmp.ne.s32.totalorder %s80, %s94
    %p96 = scmp.eq.s32.totalorder %s28, 0
    %p97 = por %p95, %p96
    %s99 = sadd.s32 %s98, 1
    %p102 = scmp.eq.s32.totalorder %s22, 1
    %p103 = scmp.ne.s32.totalorder %s98, %s100
    %p104 = scmp.eq.s32.totalorder %s22, 0
    %p105 = por %p103, %p104
    %p106 = scmp.ne.s32.totalorder %s98, %s100
    %p107 = scmp.eq.s32.totalorder %s27, 1
    %p108 = por %p106, %p107
    %p109 = scmp.ne.s32.totalorder %s100, %s101
    %p110 = scmp.eq.s32.totalorder %s27, 0
    %p111 = por %p109, %p110
    %p112 = scmp.ne.s32.totalorder %s100, %s101
    %p113 = scmp.eq.s32.totalorder %s28, 1
    %p114 = por %p112, %p113
    %p116 = scmp.ne.s32.totalorder %s101, %s115
    %p117 = scmp.eq.s32.totalorder %s28, 0
    %p118 = por %p116, %p117
    %s120 = sadd.s32 %s119, 1
    %p123 = scmp.eq.s32.totalorder %s22, 1
    %p124 = scmp.ne.s32.totalorder %s119, %s121
    %p125 = scmp.eq.s32.totalorder %s22, 0
    %p126 = por %p124, %p125
    %p127 = scmp.ne.s32.totalorder %s119, %s121
    %p128 = scmp.eq.s32.totalorder %s27, 1
    %p129 = por %p127, %p128
    %p130 = scmp.ne.s32.totalorder %s121, %s122
    %p131 = scmp.eq.s32.totalorder %s27, 0
    %p132 = por %p130, %p131
    %p133 = scmp.ne.s32.totalorder %s121, %s122
    %p134 = scmp.eq.s32.totalorder %s28, 1
    %p135 = por %p133, %p134
    %p137 = scmp.ne.s32.totalorder %s122, %s136
    %p138 = scmp.eq.s32.totalorder %s28, 0
    %p139 = por %p137, %p138
    %s141 = sadd.s32 %s140, 1
    %p144 = scmp.eq.s32.totalorder %s22, 1
    %p145 = scmp.ne.s32.totalorder %s140, %s142
    %p146 = scmp.eq.s32.totalorder %s22, 0
    %p147 = por %p145, %p146
    %p148 = scmp.ne.s32.totalorder %s140, %s142
    %p149 = scmp.eq.s32.totalorder %s27, 1
    %p150 = por %p148, %p149
    %p151 = scmp.ne.s32.totalorder %s142, %s143
    %p152 = scmp.eq.s32.totalorder %s27, 0
    %p153 = por %p151, %p152
    %p154 = scmp.ne.s32.totalorder %s142, %s143
    %p155 = scmp.eq.s32.totalorder %s28, 1
    %p156 = por %p154, %p155
    %p158 = scmp.ne.s32.totalorder %s143, %s157
    %p159 = scmp.eq.s32.totalorder %s28, 0
    %p160 = por %p158, %p159
    %s162 = sadd.s32 %s161, 1
    %p165 = scmp.eq.s32.totalorder %s22, 1
    %p166 = scmp.ne.s32.totalorder %s161, %s163
    %p167 = scmp.eq.s32.totalorder %s22, 0
    %p168 = por %p166, %p167
    %p169 = scmp.ne.s32.totalorder %s161, %s163
    %p170 = scmp.eq.s32.totalorder %s27, 1
    %p171 = por %p169, %p170
    %p172 = scmp.ne.s32.totalorder %s163, %s164
    %p173 = scmp.eq.s32.totalorder %s27, 0
    %p174 = por %p172, %p173
    %p175 = scmp.ne.s32.totalorder %s163, %s164
    %p176 = scmp.eq.s32.totalorder %s28, 1
    %p177 = por %p175, %p176
    %p179 = scmp.ne.s32.totalorder %s164, %s178
    %p180 = scmp.eq.s32.totalorder %s28, 0
    %p181 = por %p179, %p180
    %s183 = sadd.s32 %s182, 1
    %p186 = scmp.eq.s32.totalorder %s22, 1
    %p187 = scmp.ne.s32.totalorder %s182, %s184
    %p188 = scmp.eq.s32.totalorder %s22, 0
    %p189 = por %p187, %p188
    %p190 = scmp.ne.s32.totalorder %s182, %s184
    %p191 = scmp.eq.s32.totalorder %s27, 1
    %p192 = por %p190, %p191
    %p193 = scmp.ne.s32.totalorder %s184, %s185
    %p194 = scmp.eq.s32.totalorder %s27, 0
    %p195 = por %p193, %p194
    %p196 = scmp.ne.s32.totalorder %s184, %s185
    %p197 = scmp.eq.s32.totalorder %s28, 1
    %p198 = por %p196, %p197
    %p200 = scmp.ne.s32.totalorder %s185, %s199
    %p201 = scmp.eq.s32.totalorder %s28, 0
    %p202 = por %p200, %p201
    %s204 = sadd.s32 %s203, 1
    %p207 = scmp.eq.s32.totalorder %s22, 1
    %p208 = scmp.ne.s32.totalorder %s203, %s205
    %p209 = scmp.eq.s32.totalorder %s22, 0
    %p210 = por %p208, %p209
    %p211 = scmp.ne.s32.totalorder %s203, %s205
    %p212 = scmp.eq.s32.totalorder %s27, 1
    %p213 = por %p211, %p212
    %p214 = scmp.ne.s32.totalorder %s205, %s206
    %p215 = scmp.eq.s32.totalorder %s27, 0
    %p216 = por %p214, %p215
    %p217 = scmp.ne.s32.totalorder %s205, %s206
    %p218 = scmp.eq.s32.totalorder %s28, 1
    %p219 = por %p217, %p218
    %p221 = scmp.ne.s32.totalorder %s206, %s220
    %p222 = scmp.eq.s32.totalorder %s28, 0
    %p223 = por %p221, %p222
    %s225 = sadd.s32 %s224, 1
    %p228 = scmp.eq.s32.totalorder %s22, 1
    %p229 = scmp.ne.s32.totalorder %s224, %s226
    %p230 = scmp.eq.s32.totalorder %s22, 0
    %p231 = por %p229, %p230
    %p232 = scmp.ne.s32.totalorder %s224, %s226
    %p233 = scmp.eq.s32.totalorder %s27, 1
    %p234 = por %p232, %p233
    %p235 = scmp.ne.s32.totalorder %s226, %s227
    %p236 = scmp.eq.s32.totalorder %s27, 0
    %p237 = por %p235, %p236
    %p238 = scmp.ne.s32.totalorder %s226, %s227
    %p239 = scmp.eq.s32.totalorder %s28, 1
    %p240 = por %p238, %p239
    %p242 = scmp.ne.s32.totalorder %s227, %s241
    %p243 = scmp.eq.s32.totalorder %s28, 0
    %p244 = por %p242, %p243
    %s246 = sadd.s32 %s245, 1
    %p249 = scmp.eq.s32.totalorder %s22, 1
    %p250 = scmp.ne.s32.totalorder %s245, %s247
    %p251 = scmp.eq.s32.totalorder %s22, 0
    %p252 = por %p250, %p251
    %p253 = scmp.ne.s32.totalorder %s245, %s247
    %p254 = scmp.eq.s32.totalorder %s27, 1
    %p255 = por %p253, %p254
    %p256 = scmp.ne.s32.totalorder %s247, %s248
    %p257 = scmp.eq.s32.totalorder %s27, 0
    %p258 = por %p256, %p257
    %p259 = scmp.ne.s32.totalorder %s247, %s248
    %p260 = scmp.eq.s32.totalorder %s28, 1
    %p261 = por %p259, %p260
    %p263 = scmp.ne.s32.totalorder %s248, %s262
    %p264 = scmp.eq.s32.totalorder %s28, 0
    %p265 = por %p263, %p264
    %s267 = sadd.s32 %s266, 1
    %p270 = scmp.eq.s32.totalorder %s22, 1
    %p271 = scmp.ne.s32.totalorder %s266, %s268
    %p272 = scmp.eq.s32.totalorder %s22, 0
    %p273 = por %p271, %p272
    %p274 = scmp.ne.s32.totalorder %s266, %s268
    %p275 = scmp.eq.s32.totalorder %s27, 1
    %p276 = por %p274, %p275
    %p277 = scmp.ne.s32.totalorder %s268, %s269
    %p278 = scmp.eq.s32.totalorder %s27, 0
    %p279 = por %p277, %p278
    %p280 = scmp.ne.s32.totalorder %s268, %s269
    %p281 = scmp.eq.s32.totalorder %s28, 1
    %p282 = por %p280, %p281
    %p284 = scmp.ne.s32.totalorder %s269, %s283
    %p285 = scmp.eq.s32.totalorder %s28, 0
    %p286 = por %p284, %p285
    %s288 = sadd.s32 %s287, 1
    %p291 = scmp.eq.s32.totalorder %s22, 1
    %p292 = scmp.ne.s32.totalorder %s287, %s289
    %p293 = scmp.eq.s32.totalorder %s22, 0
    %p294 = por %p292, %p293
    %p295 = scmp.ne.s32.totalorder %s287, %s289
    %p296 = scmp.eq.s32.totalorder %s27, 1
    %p297 = por %p295, %p296
    %p298 = scmp.ne.s32.totalorder %s289, %s290
    %p299 = scmp.eq.s32.totalorder %s27, 0
    %p300 = por %p298, %p299
    %p301 = scmp.ne.s32.totalorder %s289, %s290
    %p302 = scmp.eq.s32.totalorder %s28, 1
    %p303 = por %p301, %p302
    %p305 = scmp.ne.s32.totalorder %s290, %s304
    %p306 = scmp.eq.s32.totalorder %s28, 0
    %p307 = por %p305, %p306
    %s309 = sadd.s32 %s308, 1
    %p312 = scmp.eq.s32.totalorder %s22, 1
    %p313 = scmp.ne.s32.totalorder %s308, %s310
    %p314 = scmp.eq.s32.totalorder %s22, 0
    %p315 = por %p313, %p314
    %p316 = scmp.ne.s32.totalorder %s308, %s310
    %p317 = scmp.eq.s32.totalorder %s27, 1
    %p318 = por %p316, %p317
    %p319 = scmp.ne.s32.totalorder %s310, %s311
    %p320 = scmp.eq.s32.totalorder %s27, 0
    %p321 = por %p319, %p320
    %p322 = scmp.ne.s32.totalorder %s310, %s311
    %p323 = scmp.eq.s32.totalorder %s28, 1
    %p324 = por %p322, %p323
    %p326 = scmp.ne.s32.totalorder %s311, %s325
    %p327 = scmp.eq.s32.totalorder %s28, 0
    %p328 = por %p326, %p327
    %s329 = ssub.s32 %s22, %s29
    %p330 = scmp.eq.s32.totalorder %s329, 0
    %s332 = sadd.s32 %s331, 1
    %s333 = scalar_select %p330, %s331, %s332
    %p336 = pneg %p330
    %p337 = scmp.eq.s32.totalorder %s22, 1
    %p338 = por %p336, %p337
    %p339 = scmp.ne.s32.totalorder %s331, %s334
    %p340 = scmp.eq.s32.totalorder %s22, 0
    %p341 = por %p339, %p340
    %p342 = scmp.ne.s32.totalorder %s331, %s334
    %p343 = scmp.eq.s32.totalorder %s27, 1
    %p344 = por %p342, %p343
    %p345 = scmp.ne.s32.totalorder %s334, %s335
    %p346 = scmp.eq.s32.totalorder %s27, 0
    %p347 = por %p345, %p346
    %p348 = scmp.ne.s32.totalorder %s334, %s335
    %p349 = scmp.eq.s32.totalorder %s28, 1
    %p350 = por %p348, %p349
    %p352 = scmp.ne.s32.totalorder %s335, %s351
    %p353 = scmp.eq.s32.totalorder %s28, 0
    %p354 = por %p352, %p353
    %p355 = scmp.le.s32.totalorder 1, %s22
    %p356 = scmp.lt.s32.totalorder %s22, 3
    %p357 = pnand %p355, %p356
    %p358 = pneg %p357
    // Predicated region
    $region9: #{sk_conv_forward.1} parent=5 // pred_check
      _
    $region10: #{sk_conv_forward.1} parent=5 // pred_check_branch
      %360 = sbr.rel (%p357) target = $region12
    $region11: #{sk_conv_forward.1} parent=5 // pred_region
      %s361 = ssub.s32 %s22, 1
      // Predicated region
      $region13: #{sk_conv_forward.1} parent=11 // pred_check
        %p362 = pneg %p69
      $region14: #{sk_conv_forward.1} parent=11 // pred_check_branch
        %364 = sbr.rel (%p362) target = $region16
      $region15: #{sk_conv_forward.1} parent=11 // pred_region
        _
      $region16: #{sk_conv_forward.1} parent=11 // pred_fallthru
        _
      // Predicated region
      $region17: #{sk_conv_forward.1} parent=11 // pred_check
        %p365 = pneg %p90
      $region18: #{sk_conv_forward.1} parent=11 // pred_check_branch
        %367 = sbr.rel (%p365) target = $region20
      $region19: #{sk_conv_forward.1} parent=11 // pred_region
        _
      $region20: #{sk_conv_forward.1} parent=11 // pred_fallthru
        _
      // Predicated region
      $region21: #{sk_conv_forward.1} parent=11 // pred_check
        %p368 = pneg %p111
      $region22: #{sk_conv_forward.1} parent=11 // pred_check_branch
        %370 = sbr.rel (%p368) target = $region24
      $region23: #{sk_conv_forward.1} parent=11 // pred_region
        _
      $region24: #{sk_conv_forward.1} parent=11 // pred_fallthru
        _
      // Predicated region
      $region25: #{sk_conv_forward.1} parent=11 // pred_check
        %p371 = pneg %p132
      $region26: #{sk_conv_forward.1} parent=11 // pred_check_branch
        %373 = sbr.rel (%p371) target = $region28
      $region27: #{sk_conv_forward.1} parent=11 // pred_region
        _
      $region28: #{sk_conv_forward.1} parent=11 // pred_fallthru
        _
      // Predicated region
      $region29: #{sk_conv_forward.1} parent=11 // pred_check
        %p374 = pneg %p153
      $region30: #{sk_conv_forward.1} parent=11 // pred_check_branch
        %376 = sbr.rel (%p374) target = $region32
      $region31: #{sk_conv_forward.1} parent=11 // pred_region
        _
      $region32: #{sk_conv_forward.1} parent=11 // pred_fallthru
        _
      // Predicated region
      $region33: #{sk_conv_forward.1} parent=11 // pred_check
        %p377 = pneg %p174
      $region34: #{sk_conv_forward.1} parent=11 // pred_check_branch
        %379 = sbr.rel (%p377) target = $region36
      $region35: #{sk_conv_forward.1} parent=11 // pred_region
        _
      $region36: #{sk_conv_forward.1} parent=11 // pred_fallthru
        _
      // Predicated region
      $region37: #{sk_conv_forward.1} parent=11 // pred_check
        %p380 = pneg %p195
      $region38: #{sk_conv_forward.1} parent=11 // pred_check_branch
        %382 = sbr.rel (%p380) target = $region40
      $region39: #{sk_conv_forward.1} parent=11 // pred_region
        _
      $region40: #{sk_conv_forward.1} parent=11 // pred_fallthru
        _
      // Predicated region
      $region41: #{sk_conv_forward.1} parent=11 // pred_check
        %p383 = pneg %p216
      $region42: #{sk_conv_forward.1} parent=11 // pred_check_branch
        %385 = sbr.rel (%p383) target = $region44
      $region43: #{sk_conv_forward.1} parent=11 // pred_region
        _
      $region44: #{sk_conv_forward.1} parent=11 // pred_fallthru
        _
      // Predicated region
      $region45: #{sk_conv_forward.1} parent=11 // pred_check
        %p386 = pneg %p237
      $region46: #{sk_conv_forward.1} parent=11 // pred_check_branch
        %388 = sbr.rel (%p386) target = $region48
      $region47: #{sk_conv_forward.1} parent=11 // pred_region
        _
      $region48: #{sk_conv_forward.1} parent=11 // pred_fallthru
        _
      // Predicated region
      $region49: #{sk_conv_forward.1} parent=11 // pred_check
        %p389 = pneg %p258
      $region50: #{sk_conv_forward.1} parent=11 // pred_check_branch
        %391 = sbr.rel (%p389) target = $region52
      $region51: #{sk_conv_forward.1} parent=11 // pred_region
        _
      $region52: #{sk_conv_forward.1} parent=11 // pred_fallthru
        _
      // Predicated region
      $region53: #{sk_conv_forward.1} parent=11 // pred_check
        %p392 = pneg %p279
      $region54: #{sk_conv_forward.1} parent=11 // pred_check_branch
        %394 = sbr.rel (%p392) target = $region56
      $region55: #{sk_conv_forward.1} parent=11 // pred_region
        _
      $region56: #{sk_conv_forward.1} parent=11 // pred_fallthru
        _
      // Predicated region
      $region57: #{sk_conv_forward.1} parent=11 // pred_check
        %p395 = pneg %p300
      $region58: #{sk_conv_forward.1} parent=11 // pred_check_branch
        %397 = sbr.rel (%p395) target = $region60
      $region59: #{sk_conv_forward.1} parent=11 // pred_region
        _
      $region60: #{sk_conv_forward.1} parent=11 // pred_fallthru
        _
      // Predicated region
      $region61: #{sk_conv_forward.1} parent=11 // pred_check
        %p398 = pneg %p321
      $region62: #{sk_conv_forward.1} parent=11 // pred_check_branch
        %400 = sbr.rel (%p398) target = $region64
      $region63: #{sk_conv_forward.1} parent=11 // pred_region
        _
      $region64: #{sk_conv_forward.1} parent=11 // pred_fallthru
        _
    $region12: #{sk_conv_forward.1} parent=5 // pred_fallthru
      _
    %p401 = scmp.lt.s32.totalorder %s22, 2
    // Predicated region
    $region65: #{sk_conv_forward.1} parent=5 // pred_check
      %p402 = pneg %p401
    $region66: #{sk_conv_forward.1} parent=5 // pred_check_branch
      %404 = sbr.rel (%p402) target = $region68
    $region67: #{sk_conv_forward.1} parent=5 // pred_region
      // Predicated region
      $region69: #{sk_conv_forward.1} parent=67 // pred_check
        %p405 = pneg %p42
      $region70: #{sk_conv_forward.1} parent=67 // pred_check_branch
        %407 = sbr.rel (%p405) target = $region72
      $region71: #{sk_conv_forward.1} parent=67 // pred_region
        %p408 = scmp.lt.s32.totalorder %s22, 1
        %s409 = scalar_select %p408, %s22, 1
        %s410 = smul.addr %s409, 2
        %s411 = smul.addr %s410, 8
        %s412 = scalar_lea.vmem %s0, %s411
      $region72: #{sk_conv_forward.1} parent=67 // pred_fallthru
        _
    $region68: #{sk_conv_forward.1} parent=5 // pred_fallthru
      _
    %p413 = scmp.le.s32.totalorder 1, %s22
    %p414 = scmp.lt.s32.totalorder %s22, 3
    %p415 = pnand %p413, %p414
    %p416 = pneg %p415
    // Predicated region
    $region73: #{sk_conv_forward.1} parent=5 // pred_check
      _
    $region74: #{sk_conv_forward.1} parent=5 // pred_check_branch
      %418 = sbr.rel (%p415) target = $region76
    $region75: #{sk_conv_forward.1} parent=5 // pred_region
      %s419 = ssub.s32 %s22, 1
      %p420 = scmp.lt.s32.totalorder %s27, 1
      %s421 = scalar_select %p420, %s27, 1
      %s422 = smul.addr %s421, 2
      %s423 = smul.addr %s422, 8
      %s424 = scalar_lea.vmem %s0, %s423
      %p425 = pneg %p48
      %p426 = pneg %p45
      %p427 = pneg %p69
      %p428 = pneg %p66
      %p429 = pneg %p90
      %p430 = pneg %p87
      %p431 = pneg %p111
      %p432 = pneg %p108
      %p433 = pneg %p132
      %p434 = pneg %p129
      %p435 = pneg %p153
      %p436 = pneg %p150
      %p437 = pneg %p174
      %p438 = pneg %p171
      %p439 = pneg %p195
      %p440 = pneg %p192
      %p441 = pneg %p216
      %p442 = pneg %p213
      %p443 = pneg %p237
      %p444 = pneg %p234
      %p445 = pneg %p258
      %p446 = pneg %p255
      %p447 = pneg %p279
      %p448 = pneg %p276
      %p449 = pneg %p300
      %p450 = pneg %p297
      %p451 = pneg %p321
      %p452 = pneg %p318
      %p453 = pneg %p347
      %p454 = pneg %p344
      %p455 = scmp.lt.s32.totalorder %s27, 1
      %s456 = scalar_select %p455, %s27, 1
      %s457 = smul.addr %s456, 2
      %s458 = smul.addr %s457, 8
      %s459 = scalar_lea.vmem %s14, %s458
      %p460 = scmp.lt.s32.totalorder %s27, 1
      %s461 = scalar_select %p460, %s27, 1
      %s462 = smul.addr %s461, 2
      %s463 = smul.addr %s462, 8
      %s464 = scalar_lea.vmem %s0, %s463
      %p465 = scmp.lt.s32.totalorder %s27, 1
      %s466 = scalar_select %p465, %s27, 1
      %s467 = smul.addr %s466, 2
      %s468 = smul.addr %s467, 8
      %s469 = scalar_lea.vmem %s14, %s468
      %v470 = vld [vmem:[#allocation2] sm:$0x1]
      %v471 = vld [vmem:[%s464] sm:$0xff]
      %v472 = vld [vmem:[%s464 + $0x8] sm:$0xff]
      %474 = vrot.lane.b32.xlu0 %v471, 112
      %v475 = vpop.permute.xlu0 %474
      %477 = vrot.lane.b32.xlu0 %v471, 96
      %v478 = vpop.permute.xlu0 %477
      %480 = vrot.lane.b32.xlu0 %v471, 80
      %v481 = vpop.permute.xlu0 %480
      %483 = vrot.lane.b32.xlu0 %v471, 64
      %v484 = vpop.permute.xlu0 %483
      %486 = vrot.lane.b32.xlu0 %v471, 48
      %v487 = vpop.permute.xlu0 %486
      %489 = vrot.lane.b32.xlu0 %v471, 32
      %v490 = vpop.permute.xlu0 %489
      %492 = vrot.lane.b32.xlu0 %v471, 16
      %v493 = vpop.permute.xlu0 %492
      %496 = vrot.lane.b32.xlu0 %v472, 112
      %v497 = vpop.permute.xlu0 %496
      %499 = vrot.lane.b32.xlu0 %v472, 96
      %v500 = vpop.permute.xlu0 %499
      %502 = vrot.lane.b32.xlu0 %v472, 80
      %v503 = vpop.permute.xlu0 %502
      %505 = vrot.lane.b32.xlu0 %v472, 64
      %v506 = vpop.permute.xlu0 %505
      %508 = vrot.lane.b32.xlu0 %v472, 48
      %v509 = vpop.permute.xlu0 %508
      %511 = vrot.lane.b32.xlu0 %v472, 32
      %v512 = vpop.permute.xlu0 %511
      %514 = vrot.lane.b32.xlu0 %v472, 16
      %v515 = vpop.permute.xlu0 %514
      %v517 = vcombine.low %v471, %v478
      %v518 = vcombine.high %v471, %v478
      %v520 = vunpack.c.l.s4 1983009808
      %v521 = vunpack.c.0.s8 %v520
      %v522 = vlaneseq
      %v523 = vshrl.u32 %v522, 7
      %v524 = vsub.s32 %v521, %v523
      %v525 = vrot.slane %v517, %v524
      %v527 = vunpack.c.l.s4 1983009808
      %v528 = vunpack.c.0.s8 %v527
      %v529 = vlaneseq
      %v530 = vshrl.u32 %v529, 7
      %v531 = vsub.s32 %v528, %v530
      %v532 = vrot.slane %v518, %v531
      %v533 = vcombine.low %v475, %v481
      %v534 = vcombine.high %v475, %v481
      %v536 = vunpack.c.l.s4 1983009808
      %v537 = vunpack.c.0.s8 %v536
      %v538 = vlaneseq
      %v539 = vshrl.u32 %v538, 7
      %v540 = vsub.s32 %v537, %v539
      %v541 = vrot.slane %v533, %v540
      %v543 = vunpack.c.l.s4 1983009808
      %v544 = vunpack.c.0.s8 %v543
      %v545 = vlaneseq
      %v546 = vshrl.u32 %v545, 7
      %v547 = vsub.s32 %v544, %v546
      %v548 = vrot.slane %v534, %v547
      %v549 = vcombine.low %v484, %v490
      %v550 = vcombine.high %v484, %v490
      %v552 = vunpack.c.l.s4 1983009808
      %v553 = vunpack.c.0.s8 %v552
      %v554 = vlaneseq
      %v555 = vshrl.u32 %v554, 7
      %v556 = vsub.s32 %v553, %v555
      %v557 = vrot.slane %v549, %v556
      %v559 = vunpack.c.l.s4 1983009808
      %v560 = vunpack.c.0.s8 %v559
      %v561 = vlaneseq
      %v562 = vshrl.u32 %v561, 7
      %v563 = vsub.s32 %v560, %v562
      %v564 = vrot.slane %v550, %v563
      %v565 = vcombine.low %v487, %v493
      %v566 = vcombine.high %v487, %v493
      %v568 = vunpack.c.l.s4 1983009808
      %v569 = vunpack.c.0.s8 %v568
      %v570 = vlaneseq
      %v571 = vshrl.u32 %v570, 7
      %v572 = vsub.s32 %v569, %v571
      %v573 = vrot.slane %v565, %v572
      %v575 = vunpack.c.l.s4 1983009808
      %v576 = vunpack.c.0.s8 %v575
      %v577 = vlaneseq
      %v578 = vshrl.u32 %v577, 7
      %v579 = vsub.s32 %v576, %v578
      %v580 = vrot.slane %v566, %v579
      %v581 = vcombine.low %v525, %v541
      %v582 = vcombine.high %v525, %v541
      %v584 = vunpack.c.l.s4 1934713408
      %v585 = vunpack.c.0.s8 %v584
      %v586 = vlaneseq
      %v587 = vshrl.u32 %v586, 7
      %v588 = vsub.s32 %v585, %v587
      %v589 = vrot.slane %v581, %v588
      %v591 = vunpack.c.l.s4 1934713408
      %v592 = vunpack.c.0.s8 %v591
      %v593 = vlaneseq
      %v594 = vshrl.u32 %v593, 7
      %v595 = vsub.s32 %v592, %v594
      %v596 = vrot.slane %v582, %v595
      %v597 = vcombine.low %v532, %v548
      %v598 = vcombine.high %v532, %v548
      %v600 = vunpack.c.l.s4 1934713408
      %v601 = vunpack.c.0.s8 %v600
      %v602 = vlaneseq
      %v603 = vshrl.u32 %v602, 7
      %v604 = vsub.s32 %v601, %v603
      %v605 = vrot.slane %v597, %v604
      %v607 = vunpack.c.l.s4 1934713408
      %v608 = vunpack.c.0.s8 %v607
      %v609 = vlaneseq
      %v610 = vshrl.u32 %v609, 7
      %v611 = vsub.s32 %v608, %v610
      %v612 = vrot.slane %v598, %v611
      %v613 = vcombine.low %v557, %v573
      %v614 = vcombine.high %v557, %v573
      %v616 = vunpack.c.l.s4 1934713408
      %v617 = vunpack.c.0.s8 %v616
      %v618 = vlaneseq
      %v619 = vshrl.u32 %v618, 7
      %v620 = vsub.s32 %v617, %v619
      %v621 = vrot.slane %v613, %v620
      %v623 = vunpack.c.l.s4 1934713408
      %v624 = vunpack.c.0.s8 %v623
      %v625 = vlaneseq
      %v626 = vshrl.u32 %v625, 7
      %v627 = vsub.s32 %v624, %v626
      %v628 = vrot.slane %v614, %v627
      %v629 = vcombine.low %v564, %v580
      %v630 = vcombine.high %v564, %v580
      %v632 = vunpack.c.l.s4 1934713408
      %v633 = vunpack.c.0.s8 %v632
      %v634 = vlaneseq
      %v635 = vshrl.u32 %v634, 7
      %v636 = vsub.s32 %v633, %v635
      %v637 = vrot.slane %v629, %v636
      %v639 = vunpack.c.l.s4 1934713408
      %v640 = vunpack.c.0.s8 %v639
      %v641 = vlaneseq
      %v642 = vshrl.u32 %v641, 7
      %v643 = vsub.s32 %v640, %v642
      %v644 = vrot.slane %v630, %v643
      %v645 = vcombine.low %v589, %v621
      %v646 = vcombine.high %v589, %v621
      %v647 = vcombine.low %v596, %v628
      %v648 = vcombine.high %v596, %v628
      %v649 = vcombine.low %v605, %v637
      %v650 = vcombine.high %v605, %v637
      %v651 = vcombine.low %v612, %v644
      %v652 = vcombine.high %v612, %v644
      %v653 = vcombine.low %v472, %v500
      %v654 = vcombine.high %v472, %v500
      %v656 = vunpack.c.l.s4 1983009808
      %v657 = vunpack.c.0.s8 %v656
      %v658 = vlaneseq
      %v659 = vshrl.u32 %v658, 7
      %v660 = vsub.s32 %v657, %v659
      %v661 = vrot.slane %v653, %v660
      %v663 = vunpack.c.l.s4 1983009808
      %v664 = vunpack.c.0.s8 %v663
      %v665 = vlaneseq
      %v666 = vshrl.u32 %v665, 7
      %v667 = vsub.s32 %v664, %v666
      %v668 = vrot.slane %v654, %v667
      %v669 = vcombine.low %v497, %v503
      %v670 = vcombine.high %v497, %v503
      %v672 = vunpack.c.l.s4 1983009808
      %v673 = vunpack.c.0.s8 %v672
      %v674 = vlaneseq
      %v675 = vshrl.u32 %v674, 7
      %v676 = vsub.s32 %v673, %v675
      %v677 = vrot.slane %v669, %v676
      %v679 = vunpack.c.l.s4 1983009808
      %v680 = vunpack.c.0.s8 %v679
      %v681 = vlaneseq
      %v682 = vshrl.u32 %v681, 7
      %v683 = vsub.s32 %v680, %v682
      %v684 = vrot.slane %v670, %v683
      %v685 = vcombine.low %v506, %v512
      %v686 = vcombine.high %v506, %v512
      %v688 = vunpack.c.l.s4 1983009808
      %v689 = vunpack.c.0.s8 %v688
      %v690 = vlaneseq
      %v691 = vshrl.u32 %v690, 7
      %v692 = vsub.s32 %v689, %v691
      %v693 = vrot.slane %v685, %v692
      %v695 = vunpack.c.l.s4 1983009808
      %v696 = vunpack.c.0.s8 %v695
      %v697 = vlaneseq
      %v698 = vshrl.u32 %v697, 7
      %v699 = vsub.s32 %v696, %v698
      %v700 = vrot.slane %v686, %v699
      %v701 = vcombine.low %v509, %v515
      %v702 = vcombine.high %v509, %v515
      %v704 = vunpack.c.l.s4 1983009808
      %v705 = vunpack.c.0.s8 %v704
      %v706 = vlaneseq
      %v707 = vshrl.u32 %v706, 7
      %v708 = vsub.s32 %v705, %v707
      %v709 = vrot.slane %v701, %v708
      %v711 = vunpack.c.l.s4 1983009808
      %v712 = vunpack.c.0.s8 %v711
      %v713 = vlaneseq
      %v714 = vshrl.u32 %v713, 7
      %v715 = vsub.s32 %v712, %v714
      %v716 = vrot.slane %v702, %v715
      %v717 = vcombine.low %v661, %v677
      %v718 = vcombine.high %v661, %v677
      %v720 = vunpack.c.l.s4 1934713408
      %v721 = vunpack.c.0.s8 %v720
      %v722 = vlaneseq
      %v723 = vshrl.u32 %v722, 7
      %v724 = vsub.s32 %v721, %v723
      %v725 = vrot.slane %v717, %v724
      %v727 = vunpack.c.l.s4 1934713408
      %v728 = vunpack.c.0.s8 %v727
      %v729 = vlaneseq
      %v730 = vshrl.u32 %v729, 7
      %v731 = vsub.s32 %v728, %v730
      %v732 = vrot.slane %v718, %v731
      %v733 = vcombine.low %v668, %v684
      %v734 = vcombine.high %v668, %v684
      %v736 = vunpack.c.l.s4 1934713408
      %v737 = vunpack.c.0.s8 %v736
      %v738 = vlaneseq
      %v739 = vshrl.u32 %v738, 7
      %v740 = vsub.s32 %v737, %v739
      %v741 = vrot.slane %v733, %v740
      %v743 = vunpack.c.l.s4 1934713408
      %v744 = vunpack.c.0.s8 %v743
      %v745 = vlaneseq
      %v746 = vshrl.u32 %v745, 7
      %v747 = vsub.s32 %v744, %v746
      %v748 = vrot.slane %v734, %v747
      %v749 = vcombine.low %v693, %v709
      %v750 = vcombine.high %v693, %v709
      %v752 = vunpack.c.l.s4 1934713408
      %v753 = vunpack.c.0.s8 %v752
      %v754 = vlaneseq
      %v755 = vshrl.u32 %v754, 7
      %v756 = vsub.s32 %v753, %v755
      %v757 = vrot.slane %v749, %v756
      %v759 = vunpack.c.l.s4 1934713408
      %v760 = vunpack.c.0.s8 %v759
      %v761 = vlaneseq
      %v762 = vshrl.u32 %v761, 7
      %v763 = vsub.s32 %v760, %v762
      %v764 = vrot.slane %v750, %v763
      %v765 = vcombine.low %v700, %v716
      %v766 = vcombine.high %v700, %v716
      %v768 = vunpack.c.l.s4 1934713408
      %v769 = vunpack.c.0.s8 %v768
      %v770 = vlaneseq
      %v771 = vshrl.u32 %v770, 7
      %v772 = vsub.s32 %v769, %v771
      %v773 = vrot.slane %v765, %v772
      %v775 = vunpack.c.l.s4 1934713408
      %v776 = vunpack.c.0.s8 %v775
      %v777 = vlaneseq
      %v778 = vshrl.u32 %v777, 7
      %v779 = vsub.s32 %v776, %v778
      %v780 = vrot.slane %v766, %v779
      %v781 = vcombine.low %v725, %v757
      %v782 = vcombine.high %v725, %v757
      %v783 = vcombine.low %v732, %v764
      %v784 = vcombine.high %v732, %v764
      %v785 = vcombine.low %v741, %v773
      %v786 = vcombine.high %v741, %v773
      %v787 = vcombine.low %v748, %v780
      %v788 = vcombine.high %v748, %v780
      %805 = vrot.lane.b32.xlu0 %v645, 1
      %v806 = vpop.permute.xlu0 %805
      %807 = vrot.lane.b32.xlu0 %v781, 1
      %v808 = vpop.permute.xlu0 %807
      %809 = vrot.lane.b32.xlu0 %v646, 1
      %v810 = vpop.permute.xlu0 %809
      %811 = vrot.lane.b32.xlu0 %v782, 1
      %v812 = vpop.permute.xlu0 %811
      %813 = vrot.lane.b32.xlu0 %v647, 1
      %v814 = vpop.permute.xlu0 %813
      %815 = vrot.lane.b32.xlu0 %v783, 1
      %v816 = vpop.permute.xlu0 %815
      %817 = vrot.lane.b32.xlu0 %v648, 1
      %v818 = vpop.permute.xlu0 %817
      %819 = vrot.lane.b32.xlu0 %v784, 1
      %v820 = vpop.permute.xlu0 %819
      %821 = vrot.lane.b32.xlu0 %v649, 1
      %v822 = vpop.permute.xlu0 %821
      %823 = vrot.lane.b32.xlu0 %v785, 1
      %v824 = vpop.permute.xlu0 %823
      %825 = vrot.lane.b32.xlu0 %v650, 1
      %v826 = vpop.permute.xlu0 %825
      %827 = vrot.lane.b32.xlu0 %v786, 1
      %v828 = vpop.permute.xlu0 %827
      %829 = vrot.lane.b32.xlu0 %v651, 1
      %v830 = vpop.permute.xlu0 %829
      %831 = vrot.lane.b32.xlu0 %v787, 1
      %v832 = vpop.permute.xlu0 %831
      %833 = vrot.lane.b32.xlu0 %v652, 1
      %v834 = vpop.permute.xlu0 %833
      %835 = vrot.lane.b32.xlu0 %v788, 1
      %v836 = vpop.permute.xlu0 %835
      %vm853 = vcmask 7168
      %v854 = vsel %vm853, 0.0, %v806
      %v855 = vsel %vm853, 0.0, %v808
      %v856 = vsel %vm853, 0.0, %v810
      %v857 = vsel %vm853, 0.0, %v812
      %v858 = vsel %vm853, 0.0, %v814
      %v859 = vsel %vm853, 0.0, %v816
      %v860 = vsel %vm853, 0.0, %v818
      %v861 = vsel %vm853, 0.0, %v820
      %v862 = vsel %vm853, 0.0, %v822
      %v863 = vsel %vm853, 0.0, %v824
      %v864 = vsel %vm853, 0.0, %v826
      %v865 = vsel %vm853, 0.0, %v828
      %v866 = vsel %vm853, 0.0, %v830
      %v867 = vsel %vm853, 0.0, %v832
      %v868 = vsel %vm853, 0.0, %v834
      %v869 = vsel %vm853, 0.0, %v836
      %vm870 = vcmask 138240
      %v871 = vsel %vm870, %v854, 0.0
      %v872 = vsel %vm870, %v855, 0.0
      %v873 = vsel %vm870, %v856, 0.0
      %v874 = vsel %vm870, %v857, 0.0
      %v875 = vsel %vm870, %v858, 0.0
      %v876 = vsel %vm870, %v859, 0.0
      %v877 = vsel %vm870, %v860, 0.0
      %v878 = vsel %vm870, %v861, 0.0
      %v879 = vsel %vm870, %v862, 0.0
      %v880 = vsel %vm870, %v863, 0.0
      %v881 = vsel %vm870, %v864, 0.0
      %v882 = vsel %vm870, %v865, 0.0
      %v883 = vsel %vm870, %v866, 0.0
      %v884 = vsel %vm870, %v867, 0.0
      %v885 = vsel %vm870, %v868, 0.0
      %v886 = vsel %vm870, %v869, 0.0
      %vm903 = vcmask 1040384
      %v904 = vrot.slane %v871, 7
      %v905 = vrot.slane %v872, 7
      %v906 = vsel %vm903, %v904, %v905
      %v907 = vrot.slane %v873, 7
      %v908 = vrot.slane %v874, 7
      %v909 = vsel %vm903, %v907, %v908
      %v910 = vrot.slane %v875, 7
      %v911 = vrot.slane %v876, 7
      %v912 = vsel %vm903, %v910, %v911
      %v913 = vrot.slane %v877, 7
      %v914 = vrot.slane %v878, 7
      %v915 = vsel %vm903, %v913, %v914
      %v916 = vrot.slane %v879, 7
      %v917 = vrot.slane %v880, 7
      %v918 = vsel %vm903, %v916, %v917
      %v919 = vrot.slane %v881, 7
      %v920 = vrot.slane %v882, 7
      %v921 = vsel %vm903, %v919, %v920
      %v922 = vrot.slane %v883, 7
      %v923 = vrot.slane %v884, 7
      %v924 = vsel %vm903, %v922, %v923
      %v925 = vrot.slane %v885, 7
      %v926 = vrot.slane %v886, 7
      %v927 = vsel %vm903, %v925, %v926
      %v952 = vsel %vm903, 0.0, %v904
      %v953 = vsel %vm903, 0.0, %v907
      %v954 = vsel %vm903, 0.0, %v910
      %v955 = vsel %vm903, 0.0, %v913
      %v956 = vsel %vm903, 0.0, %v916
      %v957 = vsel %vm903, 0.0, %v919
      %v958 = vsel %vm903, 0.0, %v922
      %v959 = vsel %vm903, 0.0, %v925
      %v960 = vsel %vm903, %v905, 0.0
      %v961 = vsel %vm903, %v908, 0.0
      %v962 = vsel %vm903, %v911, 0.0
      %v963 = vsel %vm903, %v914, 0.0
      %v964 = vsel %vm903, %v917, 0.0
      %v965 = vsel %vm903, %v920, 0.0
      %v966 = vsel %vm903, %v923, 0.0
      %v967 = vsel %vm903, %v926, 0.0
      %v968 = vcombine.low %v952, %v954
      %v969 = vcombine.high %v952, %v954
      %v971 = vunpack.c.l.s4 1983009808
      %v972 = vunpack.c.0.s8 %v971
      %v973 = vlaneseq
      %v974 = vshrl.u32 %v973, 7
      %v975 = vsub.s32 %v972, %v974
      %v976 = vrot.slane %v968, %v975
      %v978 = vunpack.c.l.s4 1983009808
      %v979 = vunpack.c.0.s8 %v978
      %v980 = vlaneseq
      %v981 = vshrl.u32 %v980, 7
      %v982 = vsub.s32 %v979, %v981
      %v983 = vrot.slane %v969, %v982
      %v984 = vcombine.low %v953, %v955
      %v985 = vcombine.high %v953, %v955
      %v987 = vunpack.c.l.s4 1983009808
      %v988 = vunpack.c.0.s8 %v987
      %v989 = vlaneseq
      %v990 = vshrl.u32 %v989, 7
      %v991 = vsub.s32 %v988, %v990
      %v992 = vrot.slane %v984, %v991
      %v994 = vunpack.c.l.s4 1983009808
      %v995 = vunpack.c.0.s8 %v994
      %v996 = vlaneseq
      %v997 = vshrl.u32 %v996, 7
      %v998 = vsub.s32 %v995, %v997
      %v999 = vrot.slane %v985, %v998
      %v1000 = vcombine.low %v956, %v958
      %v1001 = vcombine.high %v956, %v958
      %v1003 = vunpack.c.l.s4 1983009808
      %v1004 = vunpack.c.0.s8 %v1003
      %v1005 = vlaneseq
      %v1006 = vshrl.u32 %v1005, 7
      %v1007 = vsub.s32 %v1004, %v1006
      %v1008 = vrot.slane %v1000, %v1007
      %v1010 = vunpack.c.l.s4 1983009808
      %v1011 = vunpack.c.0.s8 %v1010
      %v1012 = vlaneseq
      %v1013 = vshrl.u32 %v1012, 7
      %v1014 = vsub.s32 %v1011, %v1013
      %v1015 = vrot.slane %v1001, %v1014
      %v1016 = vcombine.low %v957, %v959
      %v1017 = vcombine.high %v957, %v959
      %v1019 = vunpack.c.l.s4 1983009808
      %v1020 = vunpack.c.0.s8 %v1019
      %v1021 = vlaneseq
      %v1022 = vshrl.u32 %v1021, 7
      %v1023 = vsub.s32 %v1020, %v1022
      %v1024 = vrot.slane %v1016, %v1023
      %v1026 = vunpack.c.l.s4 1983009808
      %v1027 = vunpack.c.0.s8 %v1026
      %v1028 = vlaneseq
      %v1029 = vshrl.u32 %v1028, 7
      %v1030 = vsub.s32 %v1027, %v1029
      %v1031 = vrot.slane %v1017, %v1030
      %v1032 = vcombine.low %v976, %v992
      %v1033 = vcombine.high %v976, %v992
      %v1035 = vunpack.c.l.s4 1934713408
      %v1036 = vunpack.c.0.s8 %v1035
      %v1037 = vlaneseq
      %v1038 = vshrl.u32 %v1037, 7
      %v1039 = vsub.s32 %v1036, %v1038
      %v1040 = vrot.slane %v1032, %v1039
      %v1042 = vunpack.c.l.s4 1934713408
      %v1043 = vunpack.c.0.s8 %v1042
      %v1044 = vlaneseq
      %v1045 = vshrl.u32 %v1044, 7
      %v1046 = vsub.s32 %v1043, %v1045
      %v1047 = vrot.slane %v1033, %v1046
      %v1048 = vcombine.low %v983, %v999
      %v1049 = vcombine.high %v983, %v999
      %v1051 = vunpack.c.l.s4 1934713408
      %v1052 = vunpack.c.0.s8 %v1051
      %v1053 = vlaneseq
      %v1054 = vshrl.u32 %v1053, 7
      %v1055 = vsub.s32 %v1052, %v1054
      %v1056 = vrot.slane %v1048, %v1055
      %v1058 = vunpack.c.l.s4 1934713408
      %v1059 = vunpack.c.0.s8 %v1058
      %v1060 = vlaneseq
      %v1061 = vshrl.u32 %v1060, 7
      %v1062 = vsub.s32 %v1059, %v1061
      %v1063 = vrot.slane %v1049, %v1062
      %v1064 = vcombine.low %v1008, %v1024
      %v1065 = vcombine.high %v1008, %v1024
      %v1067 = vunpack.c.l.s4 1934713408
      %v1068 = vunpack.c.0.s8 %v1067
      %v1069 = vlaneseq
      %v1070 = vshrl.u32 %v1069, 7
      %v1071 = vsub.s32 %v1068, %v1070
      %v1072 = vrot.slane %v1064, %v1071
      %v1074 = vunpack.c.l.s4 1934713408
      %v1075 = vunpack.c.0.s8 %v1074
      %v1076 = vlaneseq
      %v1077 = vshrl.u32 %v1076, 7
      %v1078 = vsub.s32 %v1075, %v1077
      %v1079 = vrot.slane %v1065, %v1078
      %v1080 = vcombine.low %v1015, %v1031
      %v1081 = vcombine.high %v1015, %v1031
      %v1083 = vunpack.c.l.s4 1934713408
      %v1084 = vunpack.c.0.s8 %v1083
      %v1085 = vlaneseq
      %v1086 = vshrl.u32 %v1085, 7
      %v1087 = vsub.s32 %v1084, %v1086
      %v1088 = vrot.slane %v1080, %v1087
      %v1090 = vunpack.c.l.s4 1934713408
      %v1091 = vunpack.c.0.s8 %v1090
      %v1092 = vlaneseq
      %v1093 = vshrl.u32 %v1092, 7
      %v1094 = vsub.s32 %v1091, %v1093
      %v1095 = vrot.slane %v1081, %v1094
      %v1096 = vcombine.low %v1040, %v1072
      %v1097 = vcombine.high %v1040, %v1072
      %v1098 = vcombine.low %v1047, %v1079
      %v1099 = vcombine.high %v1047, %v1079
      %v1100 = vcombine.low %v1056, %v1088
      %v1101 = vcombine.high %v1056, %v1088
      %v1102 = vcombine.low %v1063, %v1095
      %v1103 = vcombine.high %v1063, %v1095
      %v1104 = vcombine.low %v906, %v912
      %v1105 = vcombine.high %v906, %v912
      %v1107 = vunpack.c.l.s4 1983009808
      %v1108 = vunpack.c.0.s8 %v1107
      %v1109 = vlaneseq
      %v1110 = vshrl.u32 %v1109, 7
      %v1111 = vsub.s32 %v1108, %v1110
      %v1112 = vrot.slane %v1104, %v1111
      %v1114 = vunpack.c.l.s4 1983009808
      %v1115 = vunpack.c.0.s8 %v1114
      %v1116 = vlaneseq
      %v1117 = vshrl.u32 %v1116, 7
      %v1118 = vsub.s32 %v1115, %v1117
      %v1119 = vrot.slane %v1105, %v1118
      %v1120 = vcombine.low %v909, %v915
      %v1121 = vcombine.high %v909, %v915
      %v1123 = vunpack.c.l.s4 1983009808
      %v1124 = vunpack.c.0.s8 %v1123
      %v1125 = vlaneseq
      %v1126 = vshrl.u32 %v1125, 7
      %v1127 = vsub.s32 %v1124, %v1126
      %v1128 = vrot.slane %v1120, %v1127
      %v1130 = vunpack.c.l.s4 1983009808
      %v1131 = vunpack.c.0.s8 %v1130
      %v1132 = vlaneseq
      %v1133 = vshrl.u32 %v1132, 7
      %v1134 = vsub.s32 %v1131, %v1133
      %v1135 = vrot.slane %v1121, %v1134
      %v1136 = vcombine.low %v918, %v924
      %v1137 = vcombine.high %v918, %v924
      %v1139 = vunpack.c.l.s4 1983009808
      %v1140 = vunpack.c.0.s8 %v1139
      %v1141 = vlaneseq
      %v1142 = vshrl.u32 %v1141, 7
      %v1143 = vsub.s32 %v1140, %v1142
      %v1144 = vrot.slane %v1136, %v1143
      %v1146 = vunpack.c.l.s4 1983009808
      %v1147 = vunpack.c.0.s8 %v1146
      %v1148 = vlaneseq
      %v1149 = vshrl.u32 %v1148, 7
      %v1150 = vsub.s32 %v1147, %v1149
      %v1151 = vrot.slane %v1137, %v1150
      %v1152 = vcombine.low %v921, %v927
      %v1153 = vcombine.high %v921, %v927
      %v1155 = vunpack.c.l.s4 1983009808
      %v1156 = vunpack.c.0.s8 %v1155
      %v1157 = vlaneseq
      %v1158 = vshrl.u32 %v1157, 7
      %v1159 = vsub.s32 %v1156, %v1158
      %v1160 = vrot.slane %v1152, %v1159
      %v1162 = vunpack.c.l.s4 1983009808
      %v1163 = vunpack.c.0.s8 %v1162
      %v1164 = vlaneseq
      %v1165 = vshrl.u32 %v1164, 7
      %v1166 = vsub.s32 %v1163, %v1165
      %v1167 = vrot.slane %v1153, %v1166
      %v1168 = vcombine.low %v1112, %v1128
      %v1169 = vcombine.high %v1112, %v1128
      %v1171 = vunpack.c.l.s4 1934713408
      %v1172 = vunpack.c.0.s8 %v1171
      %v1173 = vlaneseq
      %v1174 = vshrl.u32 %v1173, 7
      %v1175 = vsub.s32 %v1172, %v1174
      %v1176 = vrot.slane %v1168, %v1175
      %v1178 = vunpack.c.l.s4 1934713408
      %v1179 = vunpack.c.0.s8 %v1178
      %v1180 = vlaneseq
      %v1181 = vshrl.u32 %v1180, 7
      %v1182 = vsub.s32 %v1179, %v1181
      %v1183 = vrot.slane %v1169, %v1182
      %v1184 = vcombine.low %v1119, %v1135
      %v1185 = vcombine.high %v1119, %v1135
      %v1187 = vunpack.c.l.s4 1934713408
      %v1188 = vunpack.c.0.s8 %v1187
      %v1189 = vlaneseq
      %v1190 = vshrl.u32 %v1189, 7
      %v1191 = vsub.s32 %v1188, %v1190
      %v1192 = vrot.slane %v1184, %v1191
      %v1194 = vunpack.c.l.s4 1934713408
      %v1195 = vunpack.c.0.s8 %v1194
      %v1196 = vlaneseq
      %v1197 = vshrl.u32 %v1196, 7
      %v1198 = vsub.s32 %v1195, %v1197
      %v1199 = vrot.slane %v1185, %v1198
      %v1200 = vcombine.low %v1144, %v1160
      %v1201 = vcombine.high %v1144, %v1160
      %v1203 = vunpack.c.l.s4 1934713408
      %v1204 = vunpack.c.0.s8 %v1203
      %v1205 = vlaneseq
      %v1206 = vshrl.u32 %v1205, 7
      %v1207 = vsub.s32 %v1204, %v1206
      %v1208 = vrot.slane %v1200, %v1207
      %v1210 = vunpack.c.l.s4 1934713408
      %v1211 = vunpack.c.0.s8 %v1210
      %v1212 = vlaneseq
      %v1213 = vshrl.u32 %v1212, 7
      %v1214 = vsub.s32 %v1211, %v1213
      %v1215 = vrot.slane %v1201, %v1214
      %v1216 = vcombine.low %v1151, %v1167
      %v1217 = vcombine.high %v1151, %v1167
      %v1219 = vunpack.c.l.s4 1934713408
      %v1220 = vunpack.c.0.s8 %v1219
      %v1221 = vlaneseq
      %v1222 = vshrl.u32 %v1221, 7
      %v1223 = vsub.s32 %v1220, %v1222
      %v1224 = vrot.slane %v1216, %v1223
      %v1226 = vunpack.c.l.s4 1934713408
      %v1227 = vunpack.c.0.s8 %v1226
      %v1228 = vlaneseq
      %v1229 = vshrl.u32 %v1228, 7
      %v1230 = vsub.s32 %v1227, %v1229
      %v1231 = vrot.slane %v1217, %v1230
      %v1232 = vcombine.low %v1176, %v1208
      %v1233 = vcombine.high %v1176, %v1208
      %v1234 = vcombine.low %v1183, %v1215
      %v1235 = vcombine.high %v1183, %v1215
      %v1236 = vcombine.low %v1192, %v1224
      %v1237 = vcombine.high %v1192, %v1224
      %v1238 = vcombine.low %v1199, %v1231
      %v1239 = vcombine.high %v1199, %v1231
      %1241 = vrot.lane.b32.xlu0 %v1097, 16
      %v1242 = vpop.permute.xlu0 %1241
      %1245 = vrot.lane.b32.xlu0 %v1098, 32
      %v1246 = vpop.permute.xlu0 %1245
      %1249 = vrot.lane.b32.xlu0 %v1099, 48
      %v1250 = vpop.permute.xlu0 %1249
      %1253 = vrot.lane.b32.xlu0 %v1100, 64
      %v1254 = vpop.permute.xlu0 %1253
      %1257 = vrot.lane.b32.xlu0 %v1101, 80
      %v1258 = vpop.permute.xlu0 %1257
      %1261 = vrot.lane.b32.xlu0 %v1102, 96
      %v1262 = vpop.permute.xlu0 %1261
      %1265 = vrot.lane.b32.xlu0 %v1103, 112
      %v1266 = vpop.permute.xlu0 %1265
      %1269 = vrot.lane.b32.xlu0 %v1233, 16
      %v1270 = vpop.permute.xlu0 %1269
      %1273 = vrot.lane.b32.xlu0 %v1234, 32
      %v1274 = vpop.permute.xlu0 %1273
      %1277 = vrot.lane.b32.xlu0 %v1235, 48
      %v1278 = vpop.permute.xlu0 %1277
      %1281 = vrot.lane.b32.xlu0 %v1236, 64
      %v1282 = vpop.permute.xlu0 %1281
      %1285 = vrot.lane.b32.xlu0 %v1237, 80
      %v1286 = vpop.permute.xlu0 %1285
      %1289 = vrot.lane.b32.xlu0 %v1238, 96
      %v1290 = vpop.permute.xlu0 %1289
      %1293 = vrot.lane.b32.xlu0 %v1239, 112
      %v1294 = vpop.permute.xlu0 %1293
      %vm1296 = vcmask 130048
      %v1297 = vsel %vm1296, %v1096, %v1242
      %vm1298 = vcmask 261120
      %v1299 = vsel %vm1298, %v1297, %v1246
      %vm1300 = vcmask 392192
      %v1301 = vsel %vm1300, %v1299, %v1250
      %vm1302 = vcmask 523264
      %v1303 = vsel %vm1302, %v1301, %v1254
      %vm1304 = vcmask 654336
      %v1305 = vsel %vm1304, %v1303, %v1258
      %vm1306 = vcmask 785408
      %v1307 = vsel %vm1306, %v1305, %v1262
      %vm1308 = vcmask 916480
      %v1309 = vsel %vm1308, %v1307, %v1266
      %v1310 = vsel %vm1296, %v1232, %v1270
      %v1311 = vsel %vm1298, %v1310, %v1274
      %v1312 = vsel %vm1300, %v1311, %v1278
      %v1313 = vsel %vm1302, %v1312, %v1282
      %v1314 = vsel %vm1304, %v1313, %v1286
      %v1315 = vsel %vm1306, %v1314, %v1290
      %v1316 = vsel %vm1308, %v1315, %v1294
      %1325 = vrot.lane.b32.xlu0 %v952, 127
      %v1326 = vpop.permute.xlu0 %1325
      %1327 = vrot.lane.b32.xlu0 %v906, 127
      %v1328 = vpop.permute.xlu0 %1327
      %1329 = vrot.lane.b32.xlu0 %v953, 127
      %v1330 = vpop.permute.xlu0 %1329
      %1331 = vrot.lane.b32.xlu0 %v909, 127
      %v1332 = vpop.permute.xlu0 %1331
      %1333 = vrot.lane.b32.xlu0 %v954, 127
      %v1334 = vpop.permute.xlu0 %1333
      %1335 = vrot.lane.b32.xlu0 %v912, 127
      %v1336 = vpop.permute.xlu0 %1335
      %1337 = vrot.lane.b32.xlu0 %v955, 127
      %v1338 = vpop.permute.xlu0 %1337
      %1339 = vrot.lane.b32.xlu0 %v915, 127
      %v1340 = vpop.permute.xlu0 %1339
      %1341 = vrot.lane.b32.xlu0 %v956, 127
      %v1342 = vpop.permute.xlu0 %1341
      %1343 = vrot.lane.b32.xlu0 %v918, 127
      %v1344 = vpop.permute.xlu0 %1343
      %1345 = vrot.lane.b32.xlu0 %v957, 127
      %v1346 = vpop.permute.xlu0 %1345
      %1347 = vrot.lane.b32.xlu0 %v921, 127
      %v1348 = vpop.permute.xlu0 %1347
      %1349 = vrot.lane.b32.xlu0 %v958, 127
      %v1350 = vpop.permute.xlu0 %1349
      %1351 = vrot.lane.b32.xlu0 %v924, 127
      %v1352 = vpop.permute.xlu0 %1351
      %1353 = vrot.lane.b32.xlu0 %v959, 127
      %v1354 = vpop.permute.xlu0 %1353
      %1355 = vrot.lane.b32.xlu0 %v927, 127
      %v1356 = vpop.permute.xlu0 %1355
      %v1373 = vcombine.low %v1326, %v1334
      %v1374 = vcombine.high %v1326, %v1334
      %v1376 = vunpack.c.l.s4 1983009808
      %v1377 = vunpack.c.0.s8 %v1376
      %v1378 = vlaneseq
      %v1379 = vshrl.u32 %v1378, 7
      %v1380 = vsub.s32 %v1377, %v1379
      %v1381 = vrot.slane %v1373, %v1380
      %v1383 = vunpack.c.l.s4 1983009808
      %v1384 = vunpack.c.0.s8 %v1383
      %v1385 = vlaneseq
      %v1386 = vshrl.u32 %v1385, 7
      %v1387 = vsub.s32 %v1384, %v1386
      %v1388 = vrot.slane %v1374, %v1387
      %v1389 = vcombine.low %v1330, %v1338
      %v1390 = vcombine.high %v1330, %v1338
      %v1392 = vunpack.c.l.s4 1983009808
      %v1393 = vunpack.c.0.s8 %v1392
      %v1394 = vlaneseq
      %v1395 = vshrl.u32 %v1394, 7
      %v1396 = vsub.s32 %v1393, %v1395
      %v1397 = vrot.slane %v1389, %v1396
      %v1399 = vunpack.c.l.s4 1983009808
      %v1400 = vunpack.c.0.s8 %v1399
      %v1401 = vlaneseq
      %v1402 = vshrl.u32 %v1401, 7
      %v1403 = vsub.s32 %v1400, %v1402
      %v1404 = vrot.slane %v1390, %v1403
      %v1405 = vcombine.low %v1342, %v1350
      %v1406 = vcombine.high %v1342, %v1350
      %v1408 = vunpack.c.l.s4 1983009808
      %v1409 = vunpack.c.0.s8 %v1408
      %v1410 = vlaneseq
      %v1411 = vshrl.u32 %v1410, 7
      %v1412 = vsub.s32 %v1409, %v1411
      %v1413 = vrot.slane %v1405, %v1412
      %v1415 = vunpack.c.l.s4 1983009808
      %v1416 = vunpack.c.0.s8 %v1415
      %v1417 = vlaneseq
      %v1418 = vshrl.u32 %v1417, 7
      %v1419 = vsub.s32 %v1416, %v1418
      %v1420 = vrot.slane %v1406, %v1419
      %v1421 = vcombine.low %v1346, %v1354
      %v1422 = vcombine.high %v1346, %v1354
      %v1424 = vunpack.c.l.s4 1983009808
      %v1425 = vunpack.c.0.s8 %v1424
      %v1426 = vlaneseq
      %v1427 = vshrl.u32 %v1426, 7
      %v1428 = vsub.s32 %v1425, %v1427
      %v1429 = vrot.slane %v1421, %v1428
      %v1431 = vunpack.c.l.s4 1983009808
      %v1432 = vunpack.c.0.s8 %v1431
      %v1433 = vlaneseq
      %v1434 = vshrl.u32 %v1433, 7
      %v1435 = vsub.s32 %v1432, %v1434
      %v1436 = vrot.slane %v1422, %v1435
      %v1437 = vcombine.low %v1381, %v1397
      %v1438 = vcombine.high %v1381, %v1397
      %v1440 = vunpack.c.l.s4 1934713408
      %v1441 = vunpack.c.0.s8 %v1440
      %v1442 = vlaneseq
      %v1443 = vshrl.u32 %v1442, 7
      %v1444 = vsub.s32 %v1441, %v1443
      %v1445 = vrot.slane %v1437, %v1444
      %v1447 = vunpack.c.l.s4 1934713408
      %v1448 = vunpack.c.0.s8 %v1447
      %v1449 = vlaneseq
      %v1450 = vshrl.u32 %v1449, 7
      %v1451 = vsub.s32 %v1448, %v1450
      %v1452 = vrot.slane %v1438, %v1451
      %v1453 = vcombine.low %v1388, %v1404
      %v1454 = vcombine.high %v1388, %v1404
      %v1456 = vunpack.c.l.s4 1934713408
      %v1457 = vunpack.c.0.s8 %v1456
      %v1458 = vlaneseq
      %v1459 = vshrl.u32 %v1458, 7
      %v1460 = vsub.s32 %v1457, %v1459
      %v1461 = vrot.slane %v1453, %v1460
      %v1463 = vunpack.c.l.s4 1934713408
      %v1464 = vunpack.c.0.s8 %v1463
      %v1465 = vlaneseq
      %v1466 = vshrl.u32 %v1465, 7
      %v1467 = vsub.s32 %v1464, %v1466
      %v1468 = vrot.slane %v1454, %v1467
      %v1469 = vcombine.low %v1413, %v1429
      %v1470 = vcombine.high %v1413, %v1429
      %v1472 = vunpack.c.l.s4 1934713408
      %v1473 = vunpack.c.0.s8 %v1472
      %v1474 = vlaneseq
      %v1475 = vshrl.u32 %v1474, 7
      %v1476 = vsub.s32 %v1473, %v1475
      %v1477 = vrot.slane %v1469, %v1476
      %v1479 = vunpack.c.l.s4 1934713408
      %v1480 = vunpack.c.0.s8 %v1479
      %v1481 = vlaneseq
      %v1482 = vshrl.u32 %v1481, 7
      %v1483 = vsub.s32 %v1480, %v1482
      %v1484 = vrot.slane %v1470, %v1483
      %v1485 = vcombine.low %v1420, %v1436
      %v1486 = vcombine.high %v1420, %v1436
      %v1488 = vunpack.c.l.s4 1934713408
      %v1489 = vunpack.c.0.s8 %v1488
      %v1490 = vlaneseq
      %v1491 = vshrl.u32 %v1490, 7
      %v1492 = vsub.s32 %v1489, %v1491
      %v1493 = vrot.slane %v1485, %v1492
      %v1495 = vunpack.c.l.s4 1934713408
      %v1496 = vunpack.c.0.s8 %v1495
      %v1497 = vlaneseq
      %v1498 = vshrl.u32 %v1497, 7
      %v1499 = vsub.s32 %v1496, %v1498
      %v1500 = vrot.slane %v1486, %v1499
      %v1501 = vcombine.low %v1445, %v1477
      %v1502 = vcombine.high %v1445, %v1477
      %v1503 = vcombine.low %v1452, %v1484
      %v1504 = vcombine.high %v1452, %v1484
      %v1505 = vcombine.low %v1461, %v1493
      %v1506 = vcombine.high %v1461, %v1493
      %v1507 = vcombine.low %v1468, %v1500
      %v1508 = vcombine.high %v1468, %v1500
      %v1509 = vcombine.low %v1328, %v1336
      %v1510 = vcombine.high %v1328, %v1336
      %v1512 = vunpack.c.l.s4 1983009808
      %v1513 = vunpack.c.0.s8 %v1512
      %v1514 = vlaneseq
      %v1515 = vshrl.u32 %v1514, 7
      %v1516 = vsub.s32 %v1513, %v1515
      %v1517 = vrot.slane %v1509, %v1516
      %v1519 = vunpack.c.l.s4 1983009808
      %v1520 = vunpack.c.0.s8 %v1519
      %v1521 = vlaneseq
      %v1522 = vshrl.u32 %v1521, 7
      %v1523 = vsub.s32 %v1520, %v1522
      %v1524 = vrot.slane %v1510, %v1523
      %v1525 = vcombine.low %v1332, %v1340
      %v1526 = vcombine.high %v1332, %v1340
      %v1528 = vunpack.c.l.s4 1983009808
      %v1529 = vunpack.c.0.s8 %v1528
      %v1530 = vlaneseq
      %v1531 = vshrl.u32 %v1530, 7
      %v1532 = vsub.s32 %v1529, %v1531
      %v1533 = vrot.slane %v1525, %v1532
      %v1535 = vunpack.c.l.s4 1983009808
      %v1536 = vunpack.c.0.s8 %v1535
      %v1537 = vlaneseq
      %v1538 = vshrl.u32 %v1537, 7
      %v1539 = vsub.s32 %v1536, %v1538
      %v1540 = vrot.slane %v1526, %v1539
      %v1541 = vcombine.low %v1344, %v1352
      %v1542 = vcombine.high %v1344, %v1352
      %v1544 = vunpack.c.l.s4 1983009808
      %v1545 = vunpack.c.0.s8 %v1544
      %v1546 = vlaneseq
      %v1547 = vshrl.u32 %v1546, 7
      %v1548 = vsub.s32 %v1545, %v1547
      %v1549 = vrot.slane %v1541, %v1548
      %v1551 = vunpack.c.l.s4 1983009808
      %v1552 = vunpack.c.0.s8 %v1551
      %v1553 = vlaneseq
      %v1554 = vshrl.u32 %v1553, 7
      %v1555 = vsub.s32 %v1552, %v1554
      %v1556 = vrot.slane %v1542, %v1555
      %v1557 = vcombine.low %v1348, %v1356
      %v1558 = vcombine.high %v1348, %v1356
      %v1560 = vunpack.c.l.s4 1983009808
      %v1561 = vunpack.c.0.s8 %v1560
      %v1562 = vlaneseq
      %v1563 = vshrl.u32 %v1562, 7
      %v1564 = vsub.s32 %v1561, %v1563
      %v1565 = vrot.slane %v1557, %v1564
      %v1567 = vunpack.c.l.s4 1983009808
      %v1568 = vunpack.c.0.s8 %v1567
      %v1569 = vlaneseq
      %v1570 = vshrl.u32 %v1569, 7
      %v1571 = vsub.s32 %v1568, %v1570
      %v1572 = vrot.slane %v1558, %v1571
      %v1573 = vcombine.low %v1517, %v1533
      %v1574 = vcombine.high %v1517, %v1533
      %v1576 = vunpack.c.l.s4 1934713408
      %v1577 = vunpack.c.0.s8 %v1576
      %v1578 = vlaneseq
      %v1579 = vshrl.u32 %v1578, 7
      %v1580 = vsub.s32 %v1577, %v1579
      %v1581 = vrot.slane %v1573, %v1580
      %v1583 = vunpack.c.l.s4 1934713408
      %v1584 = vunpack.c.0.s8 %v1583
      %v1585 = vlaneseq
      %v1586 = vshrl.u32 %v1585, 7
      %v1587 = vsub.s32 %v1584, %v1586
      %v1588 = vrot.slane %v1574, %v1587
      %v1589 = vcombine.low %v1524, %v1540
      %v1590 = vcombine.high %v1524, %v1540
      %v1592 = vunpack.c.l.s4 1934713408
      %v1593 = vunpack.c.0.s8 %v1592
      %v1594 = vlaneseq
      %v1595 = vshrl.u32 %v1594, 7
      %v1596 = vsub.s32 %v1593, %v1595
      %v1597 = vrot.slane %v1589, %v1596
      %v1599 = vunpack.c.l.s4 1934713408
      %v1600 = vunpack.c.0.s8 %v1599
      %v1601 = vlaneseq
      %v1602 = vshrl.u32 %v1601, 7
      %v1603 = vsub.s32 %v1600, %v1602
      %v1604 = vrot.slane %v1590, %v1603
      %v1605 = vcombine.low %v1549, %v1565
      %v1606 = vcombine.high %v1549, %v1565
      %v1608 = vunpack.c.l.s4 1934713408
      %v1609 = vunpack.c.0.s8 %v1608
      %v1610 = vlaneseq
      %v1611 = vshrl.u32 %v1610, 7
      %v1612 = vsub.s32 %v1609, %v1611
      %v1613 = vrot.slane %v1605, %v1612
      %v1615 = vunpack.c.l.s4 1934713408
      %v1616 = vunpack.c.0.s8 %v1615
      %v1617 = vlaneseq
      %v1618 = vshrl.u32 %v1617, 7
      %v1619 = vsub.s32 %v1616, %v1618
      %v1620 = vrot.slane %v1606, %v1619
      %v1621 = vcombine.low %v1556, %v1572
      %v1622 = vcombine.high %v1556, %v1572
      %v1624 = vunpack.c.l.s4 1934713408
      %v1625 = vunpack.c.0.s8 %v1624
      %v1626 = vlaneseq
      %v1627 = vshrl.u32 %v1626, 7
      %v1628 = vsub.s32 %v1625, %v1627
      %v1629 = vrot.slane %v1621, %v1628
      %v1631 = vunpack.c.l.s4 1934713408
      %v1632 = vunpack.c.0.s8 %v1631
      %v1633 = vlaneseq
      %v1634 = vshrl.u32 %v1633, 7
      %v1635 = vsub.s32 %v1632, %v1634
      %v1636 = vrot.slane %v1622, %v1635
      %v1637 = vcombine.low %v1581, %v1613
      %v1638 = vcombine.high %v1581, %v1613
      %v1639 = vcombine.low %v1588, %v1620
      %v1640 = vcombine.high %v1588, %v1620
      %v1641 = vcombine.low %v1597, %v1629
      %v1642 = vcombine.high %v1597, %v1629
      %v1643 = vcombine.low %v1604, %v1636
      %v1644 = vcombine.high %v1604, %v1636
      %1646 = vrot.lane.b32.xlu0 %v1502, 16
      %v1647 = vpop.permute.xlu0 %1646
      %1650 = vrot.lane.b32.xlu0 %v1503, 32
      %v1651 = vpop.permute.xlu0 %1650
      %1654 = vrot.lane.b32.xlu0 %v1504, 48
      %v1655 = vpop.permute.xlu0 %1654
      %1658 = vrot.lane.b32.xlu0 %v1505, 64
      %v1659 = vpop.permute.xlu0 %1658
      %1662 = vrot.lane.b32.xlu0 %v1506, 80
      %v1663 = vpop.permute.xlu0 %1662
      %1666 = vrot.lane.b32.xlu0 %v1507, 96
      %v1667 = vpop.permute.xlu0 %1666
      %1670 = vrot.lane.b32.xlu0 %v1508, 112
      %v1671 = vpop.permute.xlu0 %1670
      %1674 = vrot.lane.b32.xlu0 %v1638, 16
      %v1675 = vpop.permute.xlu0 %1674
      %1678 = vrot.lane.b32.xlu0 %v1639, 32
      %v1679 = vpop.permute.xlu0 %1678
      %1682 = vrot.lane.b32.xlu0 %v1640, 48
      %v1683 = vpop.permute.xlu0 %1682
      %1686 = vrot.lane.b32.xlu0 %v1641, 64
      %v1687 = vpop.permute.xlu0 %1686
      %1690 = vrot.lane.b32.xlu0 %v1642, 80
      %v1691 = vpop.permute.xlu0 %1690
      %1694 = vrot.lane.b32.xlu0 %v1643, 96
      %v1695 = vpop.permute.xlu0 %1694
      %1698 = vrot.lane.b32.xlu0 %v1644, 112
      %v1699 = vpop.permute.xlu0 %1698
      %v1701 = vsel %vm1296, %v1501, %v1647
      %v1702 = vsel %vm1298, %v1701, %v1651
      %v1703 = vsel %vm1300, %v1702, %v1655
      %v1704 = vsel %vm1302, %v1703, %v1659
      %v1705 = vsel %vm1304, %v1704, %v1663
      %v1706 = vsel %vm1306, %v1705, %v1667
      %v1707 = vsel %vm1308, %v1706, %v1671
      %v1708 = vsel %vm1296, %v1637, %v1675
      %v1709 = vsel %vm1298, %v1708, %v1679
      %v1710 = vsel %vm1300, %v1709, %v1683
      %v1711 = vsel %vm1302, %v1710, %v1687
      %v1712 = vsel %vm1304, %v1711, %v1691
      %v1713 = vsel %vm1306, %v1712, %v1695
      %v1714 = vsel %vm1308, %v1713, %v1699
      %1715 = vrot.lane.b32.xlu0 %v952, 126
      %v1716 = vpop.permute.xlu0 %1715
      %1717 = vrot.lane.b32.xlu0 %v906, 126
      %v1718 = vpop.permute.xlu0 %1717
      %1719 = vrot.lane.b32.xlu0 %v953, 126
      %v1720 = vpop.permute.xlu0 %1719
      %1721 = vrot.lane.b32.xlu0 %v909, 126
      %v1722 = vpop.permute.xlu0 %1721
      %1723 = vrot.lane.b32.xlu0 %v954, 126
      %v1724 = vpop.permute.xlu0 %1723
      %1725 = vrot.lane.b32.xlu0 %v912, 126
      %v1726 = vpop.permute.xlu0 %1725
      %1727 = vrot.lane.b32.xlu0 %v955, 126
      %v1728 = vpop.permute.xlu0 %1727
      %1729 = vrot.lane.b32.xlu0 %v915, 126
      %v1730 = vpop.permute.xlu0 %1729
      %1731 = vrot.lane.b32.xlu0 %v956, 126
      %v1732 = vpop.permute.xlu0 %1731
      %1733 = vrot.lane.b32.xlu0 %v918, 126
      %v1734 = vpop.permute.xlu0 %1733
      %1735 = vrot.lane.b32.xlu0 %v957, 126
      %v1736 = vpop.permute.xlu0 %1735
      %1737 = vrot.lane.b32.xlu0 %v921, 126
      %v1738 = vpop.permute.xlu0 %1737
      %1739 = vrot.lane.b32.xlu0 %v958, 126
      %v1740 = vpop.permute.xlu0 %1739
      %1741 = vrot.lane.b32.xlu0 %v924, 126
      %v1742 = vpop.permute.xlu0 %1741
      %1743 = vrot.lane.b32.xlu0 %v959, 126
      %v1744 = vpop.permute.xlu0 %1743
      %1745 = vrot.lane.b32.xlu0 %v927, 126
      %v1746 = vpop.permute.xlu0 %1745
      %v1763 = vcombine.low %v1716, %v1724
      %v1764 = vcombine.high %v1716, %v1724
      %v1766 = vunpack.c.l.s4 1983009808
      %v1767 = vunpack.c.0.s8 %v1766
      %v1768 = vlaneseq
      %v1769 = vshrl.u32 %v1768, 7
      %v1770 = vsub.s32 %v1767, %v1769
      %v1771 = vrot.slane %v1763, %v1770
      %v1773 = vunpack.c.l.s4 1983009808
      %v1774 = vunpack.c.0.s8 %v1773
      %v1775 = vlaneseq
      %v1776 = vshrl.u32 %v1775, 7
      %v1777 = vsub.s32 %v1774, %v1776
      %v1778 = vrot.slane %v1764, %v1777
      %v1779 = vcombine.low %v1720, %v1728
      %v1780 = vcombine.high %v1720, %v1728
      %v1782 = vunpack.c.l.s4 1983009808
      %v1783 = vunpack.c.0.s8 %v1782
      %v1784 = vlaneseq
      %v1785 = vshrl.u32 %v1784, 7
      %v1786 = vsub.s32 %v1783, %v1785
      %v1787 = vrot.slane %v1779, %v1786
      %v1789 = vunpack.c.l.s4 1983009808
      %v1790 = vunpack.c.0.s8 %v1789
      %v1791 = vlaneseq
      %v1792 = vshrl.u32 %v1791, 7
      %v1793 = vsub.s32 %v1790, %v1792
      %v1794 = vrot.slane %v1780, %v1793
      %v1795 = vcombine.low %v1732, %v1740
      %v1796 = vcombine.high %v1732, %v1740
      %v1798 = vunpack.c.l.s4 1983009808
      %v1799 = vunpack.c.0.s8 %v1798
      %v1800 = vlaneseq
      %v1801 = vshrl.u32 %v1800, 7
      %v1802 = vsub.s32 %v1799, %v1801
      %v1803 = vrot.slane %v1795, %v1802
      %v1805 = vunpack.c.l.s4 1983009808
      %v1806 = vunpack.c.0.s8 %v1805
      %v1807 = vlaneseq
      %v1808 = vshrl.u32 %v1807, 7
      %v1809 = vsub.s32 %v1806, %v1808
      %v1810 = vrot.slane %v1796, %v1809
      %v1811 = vcombine.low %v1736, %v1744
      %v1812 = vcombine.high %v1736, %v1744
      %v1814 = vunpack.c.l.s4 1983009808
      %v1815 = vunpack.c.0.s8 %v1814
      %v1816 = vlaneseq
      %v1817 = vshrl.u32 %v1816, 7
      %v1818 = vsub.s32 %v1815, %v1817
      %v1819 = vrot.slane %v1811, %v1818
      %v1821 = vunpack.c.l.s4 1983009808
      %v1822 = vunpack.c.0.s8 %v1821
      %v1823 = vlaneseq
      %v1824 = vshrl.u32 %v1823, 7
      %v1825 = vsub.s32 %v1822, %v1824
      %v1826 = vrot.slane %v1812, %v1825
      %v1827 = vcombine.low %v1771, %v1787
      %v1828 = vcombine.high %v1771, %v1787
      %v1830 = vunpack.c.l.s4 1934713408
      %v1831 = vunpack.c.0.s8 %v1830
      %v1832 = vlaneseq
      %v1833 = vshrl.u32 %v1832, 7
      %v1834 = vsub.s32 %v1831, %v1833
      %v1835 = vrot.slane %v1827, %v1834
      %v1837 = vunpack.c.l.s4 1934713408
      %v1838 = vunpack.c.0.s8 %v1837
      %v1839 = vlaneseq
      %v1840 = vshrl.u32 %v1839, 7
      %v1841 = vsub.s32 %v1838, %v1840
      %v1842 = vrot.slane %v1828, %v1841
      %v1843 = vcombine.low %v1778, %v1794
      %v1844 = vcombine.high %v1778, %v1794
      %v1846 = vunpack.c.l.s4 1934713408
      %v1847 = vunpack.c.0.s8 %v1846
      %v1848 = vlaneseq
      %v1849 = vshrl.u32 %v1848, 7
      %v1850 = vsub.s32 %v1847, %v1849
      %v1851 = vrot.slane %v1843, %v1850
      %v1853 = vunpack.c.l.s4 1934713408
      %v1854 = vunpack.c.0.s8 %v1853
      %v1855 = vlaneseq
      %v1856 = vshrl.u32 %v1855, 7
      %v1857 = vsub.s32 %v1854, %v1856
      %v1858 = vrot.slane %v1844, %v1857
      %v1859 = vcombine.low %v1803, %v1819
      %v1860 = vcombine.high %v1803, %v1819
      %v1862 = vunpack.c.l.s4 1934713408
      %v1863 = vunpack.c.0.s8 %v1862
      %v1864 = vlaneseq
      %v1865 = vshrl.u32 %v1864, 7
      %v1866 = vsub.s32 %v1863, %v1865
      %v1867 = vrot.slane %v1859, %v1866
      %v1869 = vunpack.c.l.s4 1934713408
      %v1870 = vunpack.c.0.s8 %v1869
      %v1871 = vlaneseq
      %v1872 = vshrl.u32 %v1871, 7
      %v1873 = vsub.s32 %v1870, %v1872
      %v1874 = vrot.slane %v1860, %v1873
      %v1875 = vcombine.low %v1810, %v1826
      %v1876 = vcombine.high %v1810, %v1826
      %v1878 = vunpack.c.l.s4 1934713408
      %v1879 = vunpack.c.0.s8 %v1878
      %v1880 = vlaneseq
      %v1881 = vshrl.u32 %v1880, 7
      %v1882 = vsub.s32 %v1879, %v1881
      %v1883 = vrot.slane %v1875, %v1882
      %v1885 = vunpack.c.l.s4 1934713408
      %v1886 = vunpack.c.0.s8 %v1885
      %v1887 = vlaneseq
      %v1888 = vshrl.u32 %v1887, 7
      %v1889 = vsub.s32 %v1886, %v1888
      %v1890 = vrot.slane %v1876, %v1889
      %v1891 = vcombine.low %v1835, %v1867
      %v1892 = vcombine.high %v1835, %v1867
      %v1893 = vcombine.low %v1842, %v1874
      %v1894 = vcombine.high %v1842, %v1874
      %v1895 = vcombine.low %v1851, %v1883
      %v1896 = vcombine.high %v1851, %v1883
      %v1897 = vcombine.low %v1858, %v1890
      %v1898 = vcombine.high %v1858, %v1890
      %v1899 = vcombine.low %v1718, %v1726
      %v1900 = vcombine.high %v1718, %v1726
      %v1902 = vunpack.c.l.s4 1983009808
      %v1903 = vunpack.c.0.s8 %v1902
      %v1904 = vlaneseq
      %v1905 = vshrl.u32 %v1904, 7
      %v1906 = vsub.s32 %v1903, %v1905
      %v1907 = vrot.slane %v1899, %v1906
      %v1909 = vunpack.c.l.s4 1983009808
      %v1910 = vunpack.c.0.s8 %v1909
      %v1911 = vlaneseq
      %v1912 = vshrl.u32 %v1911, 7
      %v1913 = vsub.s32 %v1910, %v1912
      %v1914 = vrot.slane %v1900, %v1913
      %v1915 = vcombine.low %v1722, %v1730
      %v1916 = vcombine.high %v1722, %v1730
      %v1918 = vunpack.c.l.s4 1983009808
      %v1919 = vunpack.c.0.s8 %v1918
      %v1920 = vlaneseq
      %v1921 = vshrl.u32 %v1920, 7
      %v1922 = vsub.s32 %v1919, %v1921
      %v1923 = vrot.slane %v1915, %v1922
      %v1925 = vunpack.c.l.s4 1983009808
      %v1926 = vunpack.c.0.s8 %v1925
      %v1927 = vlaneseq
      %v1928 = vshrl.u32 %v1927, 7
      %v1929 = vsub.s32 %v1926, %v1928
      %v1930 = vrot.slane %v1916, %v1929
      %v1931 = vcombine.low %v1734, %v1742
      %v1932 = vcombine.high %v1734, %v1742
      %v1934 = vunpack.c.l.s4 1983009808
      %v1935 = vunpack.c.0.s8 %v1934
      %v1936 = vlaneseq
      %v1937 = vshrl.u32 %v1936, 7
      %v1938 = vsub.s32 %v1935, %v1937
      %v1939 = vrot.slane %v1931, %v1938
      %v1941 = vunpack.c.l.s4 1983009808
      %v1942 = vunpack.c.0.s8 %v1941
      %v1943 = vlaneseq
      %v1944 = vshrl.u32 %v1943, 7
      %v1945 = vsub.s32 %v1942, %v1944
      %v1946 = vrot.slane %v1932, %v1945
      %v1947 = vcombine.low %v1738, %v1746
      %v1948 = vcombine.high %v1738, %v1746
      %v1950 = vunpack.c.l.s4 1983009808
      %v1951 = vunpack.c.0.s8 %v1950
      %v1952 = vlaneseq
      %v1953 = vshrl.u32 %v1952, 7
      %v1954 = vsub.s32 %v1951, %v1953
      %v1955 = vrot.slane %v1947, %v1954
      %v1957 = vunpack.c.l.s4 1983009808
      %v1958 = vunpack.c.0.s8 %v1957
      %v1959 = vlaneseq
      %v1960 = vshrl.u32 %v1959, 7
      %v1961 = vsub.s32 %v1958, %v1960
      %v1962 = vrot.slane %v1948, %v1961
      %v1963 = vcombine.low %v1907, %v1923
      %v1964 = vcombine.high %v1907, %v1923
      %v1966 = vunpack.c.l.s4 1934713408
      %v1967 = vunpack.c.0.s8 %v1966
      %v1968 = vlaneseq
      %v1969 = vshrl.u32 %v1968, 7
      %v1970 = vsub.s32 %v1967, %v1969
      %v1971 = vrot.slane %v1963, %v1970
      %v1973 = vunpack.c.l.s4 1934713408
      %v1974 = vunpack.c.0.s8 %v1973
      %v1975 = vlaneseq
      %v1976 = vshrl.u32 %v1975, 7
      %v1977 = vsub.s32 %v1974, %v1976
      %v1978 = vrot.slane %v1964, %v1977
      %v1979 = vcombine.low %v1914, %v1930
      %v1980 = vcombine.high %v1914, %v1930
      %v1982 = vunpack.c.l.s4 1934713408
      %v1983 = vunpack.c.0.s8 %v1982
      %v1984 = vlaneseq
      %v1985 = vshrl.u32 %v1984, 7
      %v1986 = vsub.s32 %v1983, %v1985
      %v1987 = vrot.slane %v1979, %v1986
      %v1989 = vunpack.c.l.s4 1934713408
      %v1990 = vunpack.c.0.s8 %v1989
      %v1991 = vlaneseq
      %v1992 = vshrl.u32 %v1991, 7
      %v1993 = vsub.s32 %v1990, %v1992
      %v1994 = vrot.slane %v1980, %v1993
      %v1995 = vcombine.low %v1939, %v1955
      %v1996 = vcombine.high %v1939, %v1955
      %v1998 = vunpack.c.l.s4 1934713408
      %v1999 = vunpack.c.0.s8 %v1998
      %v2000 = vlaneseq
      %v2001 = vshrl.u32 %v2000, 7
      %v2002 = vsub.s32 %v1999, %v2001
      %v2003 = vrot.slane %v1995, %v2002
      %v2005 = vunpack.c.l.s4 1934713408
      %v2006 = vunpack.c.0.s8 %v2005
      %v2007 = vlaneseq
      %v2008 = vshrl.u32 %v2007, 7
      %v2009 = vsub.s32 %v2006, %v2008
      %v2010 = vrot.slane %v1996, %v2009
      %v2011 = vcombine.low %v1946, %v1962
      %v2012 = vcombine.high %v1946, %v1962
      %v2014 = vunpack.c.l.s4 1934713408
      %v2015 = vunpack.c.0.s8 %v2014
      %v2016 = vlaneseq
      %v2017 = vshrl.u32 %v2016, 7
      %v2018 = vsub.s32 %v2015, %v2017
      %v2019 = vrot.slane %v2011, %v2018
      %v2021 = vunpack.c.l.s4 1934713408
      %v2022 = vunpack.c.0.s8 %v2021
      %v2023 = vlaneseq
      %v2024 = vshrl.u32 %v2023, 7
      %v2025 = vsub.s32 %v2022, %v2024
      %v2026 = vrot.slane %v2012, %v2025
      %v2027 = vcombine.low %v1971, %v2003
      %v2028 = vcombine.high %v1971, %v2003
      %v2029 = vcombine.low %v1978, %v2010
      %v2030 = vcombine.high %v1978, %v2010
      %v2031 = vcombine.low %v1987, %v2019
      %v2032 = vcombine.high %v1987, %v2019
      %v2033 = vcombine.low %v1994, %v2026
      %v2034 = vcombine.high %v1994, %v2026
      %2036 = vrot.lane.b32.xlu0 %v1892, 16
      %v2037 = vpop.permute.xlu0 %2036
      %2040 = vrot.lane.b32.xlu0 %v1893, 32
      %v2041 = vpop.permute.xlu0 %2040
      %2044 = vrot.lane.b32.xlu0 %v1894, 48
      %v2045 = vpop.permute.xlu0 %2044
      %2048 = vrot.lane.b32.xlu0 %v1895, 64
      %v2049 = vpop.permute.xlu0 %2048
      %2052 = vrot.lane.b32.xlu0 %v1896, 80
      %v2053 = vpop.permute.xlu0 %2052
      %2056 = vrot.lane.b32.xlu0 %v1897, 96
      %v2057 = vpop.permute.xlu0 %2056
      %2060 = vrot.lane.b32.xlu0 %v1898, 112
      %v2061 = vpop.permute.xlu0 %2060
      %2064 = vrot.lane.b32.xlu0 %v2028, 16
      %v2065 = vpop.permute.xlu0 %2064
      %2068 = vrot.lane.b32.xlu0 %v2029, 32
      %v2069 = vpop.permute.xlu0 %2068
      %2072 = vrot.lane.b32.xlu0 %v2030, 48
      %v2073 = vpop.permute.xlu0 %2072
      %2076 = vrot.lane.b32.xlu0 %v2031, 64
      %v2077 = vpop.permute.xlu0 %2076
      %2080 = vrot.lane.b32.xlu0 %v2032, 80
      %v2081 = vpop.permute.xlu0 %2080
      %2084 = vrot.lane.b32.xlu0 %v2033, 96
      %v2085 = vpop.permute.xlu0 %2084
      %2088 = vrot.lane.b32.xlu0 %v2034, 112
      %v2089 = vpop.permute.xlu0 %2088
      %v2091 = vsel %vm1296, %v1891, %v2037
      %v2092 = vsel %vm1298, %v2091, %v2041
      %v2093 = vsel %vm1300, %v2092, %v2045
      %v2094 = vsel %vm1302, %v2093, %v2049
      %v2095 = vsel %vm1304, %v2094, %v2053
      %v2096 = vsel %vm1306, %v2095, %v2057
      %v2097 = vsel %vm1308, %v2096, %v2061
      %v2098 = vsel %vm1296, %v2027, %v2065
      %v2099 = vsel %vm1298, %v2098, %v2069
      %v2100 = vsel %vm1300, %v2099, %v2073
      %v2101 = vsel %vm1302, %v2100, %v2077
      %v2102 = vsel %vm1304, %v2101, %v2081
      %v2103 = vsel %vm1306, %v2102, %v2085
      %v2104 = vsel %vm1308, %v2103, %v2089
      %vm2113 = vcmask 1046528
      %v2114 = vrot.slane %v952, 1
      %v2115 = vrot.slane %v906, 1
      %v2116 = vsel %vm2113, %v2114, %v2115
      %v2117 = vrot.slane %v960, 1
      %v2118 = vsel %vm2113, %v2115, %v2117
      %v2119 = vrot.slane %v953, 1
      %v2120 = vrot.slane %v909, 1
      %v2121 = vsel %vm2113, %v2119, %v2120
      %v2122 = vrot.slane %v961, 1
      %v2123 = vsel %vm2113, %v2120, %v2122
      %v2124 = vrot.slane %v954, 1
      %v2125 = vrot.slane %v912, 1
      %v2126 = vsel %vm2113, %v2124, %v2125
      %v2127 = vrot.slane %v962, 1
      %v2128 = vsel %vm2113, %v2125, %v2127
      %v2129 = vrot.slane %v955, 1
      %v2130 = vrot.slane %v915, 1
      %v2131 = vsel %vm2113, %v2129, %v2130
      %v2132 = vrot.slane %v963, 1
      %v2133 = vsel %vm2113, %v2130, %v2132
      %v2134 = vrot.slane %v956, 1
      %v2135 = vrot.slane %v918, 1
      %v2136 = vsel %vm2113, %v2134, %v2135
      %v2137 = vrot.slane %v964, 1
      %v2138 = vsel %vm2113, %v2135, %v2137
      %v2139 = vrot.slane %v957, 1
      %v2140 = vrot.slane %v921, 1
      %v2141 = vsel %vm2113, %v2139, %v2140
      %v2142 = vrot.slane %v965, 1
      %v2143 = vsel %vm2113, %v2140, %v2142
      %v2144 = vrot.slane %v958, 1
      %v2145 = vrot.slane %v924, 1
      %v2146 = vsel %vm2113, %v2144, %v2145
      %v2147 = vrot.slane %v966, 1
      %v2148 = vsel %vm2113, %v2145, %v2147
      %v2149 = vrot.slane %v959, 1
      %v2150 = vrot.slane %v927, 1
      %v2151 = vsel %vm2113, %v2149, %v2150
      %v2152 = vrot.slane %v967, 1
      %v2153 = vsel %vm2113, %v2150, %v2152
      %v2170 = vcombine.low %v2116, %v2126
      %v2171 = vcombine.high %v2116, %v2126
      %v2173 = vunpack.c.l.s4 1983009808
      %v2174 = vunpack.c.0.s8 %v2173
      %v2175 = vlaneseq
      %v2176 = vshrl.u32 %v2175, 7
      %v2177 = vsub.s32 %v2174, %v2176
      %v2178 = vrot.slane %v2170, %v2177
      %v2180 = vunpack.c.l.s4 1983009808
      %v2181 = vunpack.c.0.s8 %v2180
      %v2182 = vlaneseq
      %v2183 = vshrl.u32 %v2182, 7
      %v2184 = vsub.s32 %v2181, %v2183
      %v2185 = vrot.slane %v2171, %v2184
      %v2186 = vcombine.low %v2121, %v2131
      %v2187 = vcombine.high %v2121, %v2131
      %v2189 = vunpack.c.l.s4 1983009808
      %v2190 = vunpack.c.0.s8 %v2189
      %v2191 = vlaneseq
      %v2192 = vshrl.u32 %v2191, 7
      %v2193 = vsub.s32 %v2190, %v2192
      %v2194 = vrot.slane %v2186, %v2193
      %v2196 = vunpack.c.l.s4 1983009808
      %v2197 = vunpack.c.0.s8 %v2196
      %v2198 = vlaneseq
      %v2199 = vshrl.u32 %v2198, 7
      %v2200 = vsub.s32 %v2197, %v2199
      %v2201 = vrot.slane %v2187, %v2200
      %v2202 = vcombine.low %v2136, %v2146
      %v2203 = vcombine.high %v2136, %v2146
      %v2205 = vunpack.c.l.s4 1983009808
      %v2206 = vunpack.c.0.s8 %v2205
      %v2207 = vlaneseq
      %v2208 = vshrl.u32 %v2207, 7
      %v2209 = vsub.s32 %v2206, %v2208
      %v2210 = vrot.slane %v2202, %v2209
      %v2212 = vunpack.c.l.s4 1983009808
      %v2213 = vunpack.c.0.s8 %v2212
      %v2214 = vlaneseq
      %v2215 = vshrl.u32 %v2214, 7
      %v2216 = vsub.s32 %v2213, %v2215
      %v2217 = vrot.slane %v2203, %v2216
      %v2218 = vcombine.low %v2141, %v2151
      %v2219 = vcombine.high %v2141, %v2151
      %v2221 = vunpack.c.l.s4 1983009808
      %v2222 = vunpack.c.0.s8 %v2221
      %v2223 = vlaneseq
      %v2224 = vshrl.u32 %v2223, 7
      %v2225 = vsub.s32 %v2222, %v2224
      %v2226 = vrot.slane %v2218, %v2225
      %v2228 = vunpack.c.l.s4 1983009808
      %v2229 = vunpack.c.0.s8 %v2228
      %v2230 = vlaneseq
      %v2231 = vshrl.u32 %v2230, 7
      %v2232 = vsub.s32 %v2229, %v2231
      %v2233 = vrot.slane %v2219, %v2232
      %v2234 = vcombine.low %v2178, %v2194
      %v2235 = vcombine.high %v2178, %v2194
      %v2237 = vunpack.c.l.s4 1934713408
      %v2238 = vunpack.c.0.s8 %v2237
      %v2239 = vlaneseq
      %v2240 = vshrl.u32 %v2239, 7
      %v2241 = vsub.s32 %v2238, %v2240
      %v2242 = vrot.slane %v2234, %v2241
      %v2244 = vunpack.c.l.s4 1934713408
      %v2245 = vunpack.c.0.s8 %v2244
      %v2246 = vlaneseq
      %v2247 = vshrl.u32 %v2246, 7
      %v2248 = vsub.s32 %v2245, %v2247
      %v2249 = vrot.slane %v2235, %v2248
      %v2250 = vcombine.low %v2185, %v2201
      %v2251 = vcombine.high %v2185, %v2201
      %v2253 = vunpack.c.l.s4 1934713408
      %v2254 = vunpack.c.0.s8 %v2253
      %v2255 = vlaneseq
      %v2256 = vshrl.u32 %v2255, 7
      %v2257 = vsub.s32 %v2254, %v2256
      %v2258 = vrot.slane %v2250, %v2257
      %v2260 = vunpack.c.l.s4 1934713408
      %v2261 = vunpack.c.0.s8 %v2260
      %v2262 = vlaneseq
      %v2263 = vshrl.u32 %v2262, 7
      %v2264 = vsub.s32 %v2261, %v2263
      %v2265 = vrot.slane %v2251, %v2264
      %v2266 = vcombine.low %v2210, %v2226
      %v2267 = vcombine.high %v2210, %v2226
      %v2269 = vunpack.c.l.s4 1934713408
      %v2270 = vunpack.c.0.s8 %v2269
      %v2271 = vlaneseq
      %v2272 = vshrl.u32 %v2271, 7
      %v2273 = vsub.s32 %v2270, %v2272
      %v2274 = vrot.slane %v2266, %v2273
      %v2276 = vunpack.c.l.s4 1934713408
      %v2277 = vunpack.c.0.s8 %v2276
      %v2278 = vlaneseq
      %v2279 = vshrl.u32 %v2278, 7
      %v2280 = vsub.s32 %v2277, %v2279
      %v2281 = vrot.slane %v2267, %v2280
      %v2282 = vcombine.low %v2217, %v2233
      %v2283 = vcombine.high %v2217, %v2233
      %v2285 = vunpack.c.l.s4 1934713408
      %v2286 = vunpack.c.0.s8 %v2285
      %v2287 = vlaneseq
      %v2288 = vshrl.u32 %v2287, 7
      %v2289 = vsub.s32 %v2286, %v2288
      %v2290 = vrot.slane %v2282, %v2289
      %v2292 = vunpack.c.l.s4 1934713408
      %v2293 = vunpack.c.0.s8 %v2292
      %v2294 = vlaneseq
      %v2295 = vshrl.u32 %v2294, 7
      %v2296 = vsub.s32 %v2293, %v2295
      %v2297 = vrot.slane %v2283, %v2296
      %v2298 = vcombine.low %v2242, %v2274
      %v2299 = vcombine.high %v2242, %v2274
      %v2300 = vcombine.low %v2249, %v2281
      %v2301 = vcombine.high %v2249, %v2281
      %v2302 = vcombine.low %v2258, %v2290
      %v2303 = vcombine.high %v2258, %v2290
      %v2304 = vcombine.low %v2265, %v2297
      %v2305 = vcombine.high %v2265, %v2297
      %v2306 = vcombine.low %v2118, %v2128
      %v2307 = vcombine.high %v2118, %v2128
      %v2309 = vunpack.c.l.s4 1983009808
      %v2310 = vunpack.c.0.s8 %v2309
      %v2311 = vlaneseq
      %v2312 = vshrl.u32 %v2311, 7
      %v2313 = vsub.s32 %v2310, %v2312
      %v2314 = vrot.slane %v2306, %v2313
      %v2316 = vunpack.c.l.s4 1983009808
      %v2317 = vunpack.c.0.s8 %v2316
      %v2318 = vlaneseq
      %v2319 = vshrl.u32 %v2318, 7
      %v2320 = vsub.s32 %v2317, %v2319
      %v2321 = vrot.slane %v2307, %v2320
      %v2322 = vcombine.low %v2123, %v2133
      %v2323 = vcombine.high %v2123, %v2133
      %v2325 = vunpack.c.l.s4 1983009808
      %v2326 = vunpack.c.0.s8 %v2325
      %v2327 = vlaneseq
      %v2328 = vshrl.u32 %v2327, 7
      %v2329 = vsub.s32 %v2326, %v2328
      %v2330 = vrot.slane %v2322, %v2329
      %v2332 = vunpack.c.l.s4 1983009808
      %v2333 = vunpack.c.0.s8 %v2332
      %v2334 = vlaneseq
      %v2335 = vshrl.u32 %v2334, 7
      %v2336 = vsub.s32 %v2333, %v2335
      %v2337 = vrot.slane %v2323, %v2336
      %v2338 = vcombine.low %v2138, %v2148
      %v2339 = vcombine.high %v2138, %v2148
      %v2341 = vunpack.c.l.s4 1983009808
      %v2342 = vunpack.c.0.s8 %v2341
      %v2343 = vlaneseq
      %v2344 = vshrl.u32 %v2343, 7
      %v2345 = vsub.s32 %v2342, %v2344
      %v2346 = vrot.slane %v2338, %v2345
      %v2348 = vunpack.c.l.s4 1983009808
      %v2349 = vunpack.c.0.s8 %v2348
      %v2350 = vlaneseq
      %v2351 = vshrl.u32 %v2350, 7
      %v2352 = vsub.s32 %v2349, %v2351
      %v2353 = vrot.slane %v2339, %v2352
      %v2354 = vcombine.low %v2143, %v2153
      %v2355 = vcombine.high %v2143, %v2153
      %v2357 = vunpack.c.l.s4 1983009808
      %v2358 = vunpack.c.0.s8 %v2357
      %v2359 = vlaneseq
      %v2360 = vshrl.u32 %v2359, 7
      %v2361 = vsub.s32 %v2358, %v2360
      %v2362 = vrot.slane %v2354, %v2361
      %v2364 = vunpack.c.l.s4 1983009808
      %v2365 = vunpack.c.0.s8 %v2364
      %v2366 = vlaneseq
      %v2367 = vshrl.u32 %v2366, 7
      %v2368 = vsub.s32 %v2365, %v2367
      %v2369 = vrot.slane %v2355, %v2368
      %v2370 = vcombine.low %v2314, %v2330
      %v2371 = vcombine.high %v2314, %v2330
      %v2373 = vunpack.c.l.s4 1934713408
      %v2374 = vunpack.c.0.s8 %v2373
      %v2375 = vlaneseq
      %v2376 = vshrl.u32 %v2375, 7
      %v2377 = vsub.s32 %v2374, %v2376
      %v2378 = vrot.slane %v2370, %v2377
      %v2380 = vunpack.c.l.s4 1934713408
      %v2381 = vunpack.c.0.s8 %v2380
      %v2382 = vlaneseq
      %v2383 = vshrl.u32 %v2382, 7
      %v2384 = vsub.s32 %v2381, %v2383
      %v2385 = vrot.slane %v2371, %v2384
      %v2386 = vcombine.low %v2321, %v2337
      %v2387 = vcombine.high %v2321, %v2337
      %v2389 = vunpack.c.l.s4 1934713408
      %v2390 = vunpack.c.0.s8 %v2389
      %v2391 = vlaneseq
      %v2392 = vshrl.u32 %v2391, 7
      %v2393 = vsub.s32 %v2390, %v2392
      %v2394 = vrot.slane %v2386, %v2393
      %v2396 = vunpack.c.l.s4 1934713408
      %v2397 = vunpack.c.0.s8 %v2396
      %v2398 = vlaneseq
      %v2399 = vshrl.u32 %v2398, 7
      %v2400 = vsub.s32 %v2397, %v2399
      %v2401 = vrot.slane %v2387, %v2400
      %v2402 = vcombine.low %v2346, %v2362
      %v2403 = vcombine.high %v2346, %v2362
      %v2405 = vunpack.c.l.s4 1934713408
      %v2406 = vunpack.c.0.s8 %v2405
      %v2407 = vlaneseq
      %v2408 = vshrl.u32 %v2407, 7
      %v2409 = vsub.s32 %v2406, %v2408
      %v2410 = vrot.slane %v2402, %v2409
      %v2412 = vunpack.c.l.s4 1934713408
      %v2413 = vunpack.c.0.s8 %v2412
      %v2414 = vlaneseq
      %v2415 = vshrl.u32 %v2414, 7
      %v2416 = vsub.s32 %v2413, %v2415
      %v2417 = vrot.slane %v2403, %v2416
      %v2418 = vcombine.low %v2353, %v2369
      %v2419 = vcombine.high %v2353, %v2369
      %v2421 = vunpack.c.l.s4 1934713408
      %v2422 = vunpack.c.0.s8 %v2421
      %v2423 = vlaneseq
      %v2424 = vshrl.u32 %v2423, 7
      %v2425 = vsub.s32 %v2422, %v2424
      %v2426 = vrot.slane %v2418, %v2425
      %v2428 = vunpack.c.l.s4 1934713408
      %v2429 = vunpack.c.0.s8 %v2428
      %v2430 = vlaneseq
      %v2431 = vshrl.u32 %v2430, 7
      %v2432 = vsub.s32 %v2429, %v2431
      %v2433 = vrot.slane %v2419, %v2432
      %v2434 = vcombine.low %v2378, %v2410
      %v2435 = vcombine.high %v2378, %v2410
      %v2436 = vcombine.low %v2385, %v2417
      %v2437 = vcombine.high %v2385, %v2417
      %v2438 = vcombine.low %v2394, %v2426
      %v2439 = vcombine.high %v2394, %v2426
      %v2440 = vcombine.low %v2401, %v2433
      %v2441 = vcombine.high %v2401, %v2433
      %2443 = vrot.lane.b32.xlu0 %v2299, 16
      %v2444 = vpop.permute.xlu0 %2443
      %2447 = vrot.lane.b32.xlu0 %v2300, 32
      %v2448 = vpop.permute.xlu0 %2447
      %2451 = vrot.lane.b32.xlu0 %v2301, 48
      %v2452 = vpop.permute.xlu0 %2451
      %2455 = vrot.lane.b32.xlu0 %v2302, 64
      %v2456 = vpop.permute.xlu0 %2455
      %2459 = vrot.lane.b32.xlu0 %v2303, 80
      %v2460 = vpop.permute.xlu0 %2459
      %2463 = vrot.lane.b32.xlu0 %v2304, 96
      %v2464 = vpop.permute.xlu0 %2463
      %2467 = vrot.lane.b32.xlu0 %v2305, 112
      %v2468 = vpop.permute.xlu0 %2467
      %2471 = vrot.lane.b32.xlu0 %v2435, 16
      %v2472 = vpop.permute.xlu0 %2471
      %2475 = vrot.lane.b32.xlu0 %v2436, 32
      %v2476 = vpop.permute.xlu0 %2475
      %2479 = vrot.lane.b32.xlu0 %v2437, 48
      %v2480 = vpop.permute.xlu0 %2479
      %2483 = vrot.lane.b32.xlu0 %v2438, 64
      %v2484 = vpop.permute.xlu0 %2483
      %2487 = vrot.lane.b32.xlu0 %v2439, 80
      %v2488 = vpop.permute.xlu0 %2487
      %2491 = vrot.lane.b32.xlu0 %v2440, 96
      %v2492 = vpop.permute.xlu0 %2491
      %2495 = vrot.lane.b32.xlu0 %v2441, 112
      %v2496 = vpop.permute.xlu0 %2495
      %v2498 = vsel %vm1296, %v2298, %v2444
      %v2499 = vsel %vm1298, %v2498, %v2448
      %v2500 = vsel %vm1300, %v2499, %v2452
      %v2501 = vsel %vm1302, %v2500, %v2456
      %v2502 = vsel %vm1304, %v2501, %v2460
      %v2503 = vsel %vm1306, %v2502, %v2464
      %v2504 = vsel %vm1308, %v2503, %v2468
      %v2505 = vsel %vm1296, %v2434, %v2472
      %v2506 = vsel %vm1298, %v2505, %v2476
      %v2507 = vsel %vm1300, %v2506, %v2480
      %v2508 = vsel %vm1302, %v2507, %v2484
      %v2509 = vsel %vm1304, %v2508, %v2488
      %v2510 = vsel %vm1306, %v2509, %v2492
      %v2511 = vsel %vm1308, %v2510, %v2496
      %2512 = vrot.lane.b32.xlu0 %v2116, 127
      %v2513 = vpop.permute.xlu0 %2512
      %2514 = vrot.lane.b32.xlu0 %v2118, 127
      %v2515 = vpop.permute.xlu0 %2514
      %2516 = vrot.lane.b32.xlu0 %v2121, 127
      %v2517 = vpop.permute.xlu0 %2516
      %2518 = vrot.lane.b32.xlu0 %v2123, 127
      %v2519 = vpop.permute.xlu0 %2518
      %2520 = vrot.lane.b32.xlu0 %v2126, 127
      %v2521 = vpop.permute.xlu0 %2520
      %2522 = vrot.lane.b32.xlu0 %v2128, 127
      %v2523 = vpop.permute.xlu0 %2522
      %2524 = vrot.lane.b32.xlu0 %v2131, 127
      %v2525 = vpop.permute.xlu0 %2524
      %2526 = vrot.lane.b32.xlu0 %v2133, 127
      %v2527 = vpop.permute.xlu0 %2526
      %2528 = vrot.lane.b32.xlu0 %v2136, 127
      %v2529 = vpop.permute.xlu0 %2528
      %2530 = vrot.lane.b32.xlu0 %v2138, 127
      %v2531 = vpop.permute.xlu0 %2530
      %2532 = vrot.lane.b32.xlu0 %v2141, 127
      %v2533 = vpop.permute.xlu0 %2532
      %2534 = vrot.lane.b32.xlu0 %v2143, 127
      %v2535 = vpop.permute.xlu0 %2534
      %2536 = vrot.lane.b32.xlu0 %v2146, 127
      %v2537 = vpop.permute.xlu0 %2536
      %2538 = vrot.lane.b32.xlu0 %v2148, 127
      %v2539 = vpop.permute.xlu0 %2538
      %2540 = vrot.lane.b32.xlu0 %v2151, 127
      %v2541 = vpop.permute.xlu0 %2540
      %2542 = vrot.lane.b32.xlu0 %v2153, 127
      %v2543 = vpop.permute.xlu0 %2542
      %v2560 = vcombine.low %v2513, %v2521
      %v2561 = vcombine.high %v2513, %v2521
      %v2563 = vunpack.c.l.s4 1983009808
      %v2564 = vunpack.c.0.s8 %v2563
      %v2565 = vlaneseq
      %v2566 = vshrl.u32 %v2565, 7
      %v2567 = vsub.s32 %v2564, %v2566
      %v2568 = vrot.slane %v2560, %v2567
      %v2570 = vunpack.c.l.s4 1983009808
      %v2571 = vunpack.c.0.s8 %v2570
      %v2572 = vlaneseq
      %v2573 = vshrl.u32 %v2572, 7
      %v2574 = vsub.s32 %v2571, %v2573
      %v2575 = vrot.slane %v2561, %v2574
      %v2576 = vcombine.low %v2517, %v2525
      %v2577 = vcombine.high %v2517, %v2525
      %v2579 = vunpack.c.l.s4 1983009808
      %v2580 = vunpack.c.0.s8 %v2579
      %v2581 = vlaneseq
      %v2582 = vshrl.u32 %v2581, 7
      %v2583 = vsub.s32 %v2580, %v2582
      %v2584 = vrot.slane %v2576, %v2583
      %v2586 = vunpack.c.l.s4 1983009808
      %v2587 = vunpack.c.0.s8 %v2586
      %v2588 = vlaneseq
      %v2589 = vshrl.u32 %v2588, 7
      %v2590 = vsub.s32 %v2587, %v2589
      %v2591 = vrot.slane %v2577, %v2590
      %v2592 = vcombine.low %v2529, %v2537
      %v2593 = vcombine.high %v2529, %v2537
      %v2595 = vunpack.c.l.s4 1983009808
      %v2596 = vunpack.c.0.s8 %v2595
      %v2597 = vlaneseq
      %v2598 = vshrl.u32 %v2597, 7
      %v2599 = vsub.s32 %v2596, %v2598
      %v2600 = vrot.slane %v2592, %v2599
      %v2602 = vunpack.c.l.s4 1983009808
      %v2603 = vunpack.c.0.s8 %v2602
      %v2604 = vlaneseq
      %v2605 = vshrl.u32 %v2604, 7
      %v2606 = vsub.s32 %v2603, %v2605
      %v2607 = vrot.slane %v2593, %v2606
      %v2608 = vcombine.low %v2533, %v2541
      %v2609 = vcombine.high %v2533, %v2541
      %v2611 = vunpack.c.l.s4 1983009808
      %v2612 = vunpack.c.0.s8 %v2611
      %v2613 = vlaneseq
      %v2614 = vshrl.u32 %v2613, 7
      %v2615 = vsub.s32 %v2612, %v2614
      %v2616 = vrot.slane %v2608, %v2615
      %v2618 = vunpack.c.l.s4 1983009808
      %v2619 = vunpack.c.0.s8 %v2618
      %v2620 = vlaneseq
      %v2621 = vshrl.u32 %v2620, 7
      %v2622 = vsub.s32 %v2619, %v2621
      %v2623 = vrot.slane %v2609, %v2622
      %v2624 = vcombine.low %v2568, %v2584
      %v2625 = vcombine.high %v2568, %v2584
      %v2627 = vunpack.c.l.s4 1934713408
      %v2628 = vunpack.c.0.s8 %v2627
      %v2629 = vlaneseq
      %v2630 = vshrl.u32 %v2629, 7
      %v2631 = vsub.s32 %v2628, %v2630
      %v2632 = vrot.slane %v2624, %v2631
      %v2634 = vunpack.c.l.s4 1934713408
      %v2635 = vunpack.c.0.s8 %v2634
      %v2636 = vlaneseq
      %v2637 = vshrl.u32 %v2636, 7
      %v2638 = vsub.s32 %v2635, %v2637
      %v2639 = vrot.slane %v2625, %v2638
      %v2640 = vcombine.low %v2575, %v2591
      %v2641 = vcombine.high %v2575, %v2591
      %v2643 = vunpack.c.l.s4 1934713408
      %v2644 = vunpack.c.0.s8 %v2643
      %v2645 = vlaneseq
      %v2646 = vshrl.u32 %v2645, 7
      %v2647 = vsub.s32 %v2644, %v2646
      %v2648 = vrot.slane %v2640, %v2647
      %v2650 = vunpack.c.l.s4 1934713408
      %v2651 = vunpack.c.0.s8 %v2650
      %v2652 = vlaneseq
      %v2653 = vshrl.u32 %v2652, 7
      %v2654 = vsub.s32 %v2651, %v2653
      %v2655 = vrot.slane %v2641, %v2654
      %v2656 = vcombine.low %v2600, %v2616
      %v2657 = vcombine.high %v2600, %v2616
      %v2659 = vunpack.c.l.s4 1934713408
      %v2660 = vunpack.c.0.s8 %v2659
      %v2661 = vlaneseq
      %v2662 = vshrl.u32 %v2661, 7
      %v2663 = vsub.s32 %v2660, %v2662
      %v2664 = vrot.slane %v2656, %v2663
      %v2666 = vunpack.c.l.s4 1934713408
      %v2667 = vunpack.c.0.s8 %v2666
      %v2668 = vlaneseq
      %v2669 = vshrl.u32 %v2668, 7
      %v2670 = vsub.s32 %v2667, %v2669
      %v2671 = vrot.slane %v2657, %v2670
      %v2672 = vcombine.low %v2607, %v2623
      %v2673 = vcombine.high %v2607, %v2623
      %v2675 = vunpack.c.l.s4 1934713408
      %v2676 = vunpack.c.0.s8 %v2675
      %v2677 = vlaneseq
      %v2678 = vshrl.u32 %v2677, 7
      %v2679 = vsub.s32 %v2676, %v2678
      %v2680 = vrot.slane %v2672, %v2679
      %v2682 = vunpack.c.l.s4 1934713408
      %v2683 = vunpack.c.0.s8 %v2682
      %v2684 = vlaneseq
      %v2685 = vshrl.u32 %v2684, 7
      %v2686 = vsub.s32 %v2683, %v2685
      %v2687 = vrot.slane %v2673, %v2686
      %v2688 = vcombine.low %v2632, %v2664
      %v2689 = vcombine.high %v2632, %v2664
      %v2690 = vcombine.low %v2639, %v2671
      %v2691 = vcombine.high %v2639, %v2671
      %v2692 = vcombine.low %v2648, %v2680
      %v2693 = vcombine.high %v2648, %v2680
      %v2694 = vcombine.low %v2655, %v2687
      %v2695 = vcombine.high %v2655, %v2687
      %v2696 = vcombine.low %v2515, %v2523
      %v2697 = vcombine.high %v2515, %v2523
      %v2699 = vunpack.c.l.s4 1983009808
      %v2700 = vunpack.c.0.s8 %v2699
      %v2701 = vlaneseq
      %v2702 = vshrl.u32 %v2701, 7
      %v2703 = vsub.s32 %v2700, %v2702
      %v2704 = vrot.slane %v2696, %v2703
      %v2706 = vunpack.c.l.s4 1983009808
      %v2707 = vunpack.c.0.s8 %v2706
      %v2708 = vlaneseq
      %v2709 = vshrl.u32 %v2708, 7
      %v2710 = vsub.s32 %v2707, %v2709
      %v2711 = vrot.slane %v2697, %v2710
      %v2712 = vcombine.low %v2519, %v2527
      %v2713 = vcombine.high %v2519, %v2527
      %v2715 = vunpack.c.l.s4 1983009808
      %v2716 = vunpack.c.0.s8 %v2715
      %v2717 = vlaneseq
      %v2718 = vshrl.u32 %v2717, 7
      %v2719 = vsub.s32 %v2716, %v2718
      %v2720 = vrot.slane %v2712, %v2719
      %v2722 = vunpack.c.l.s4 1983009808
      %v2723 = vunpack.c.0.s8 %v2722
      %v2724 = vlaneseq
      %v2725 = vshrl.u32 %v2724, 7
      %v2726 = vsub.s32 %v2723, %v2725
      %v2727 = vrot.slane %v2713, %v2726
      %v2728 = vcombine.low %v2531, %v2539
      %v2729 = vcombine.high %v2531, %v2539
      %v2731 = vunpack.c.l.s4 1983009808
      %v2732 = vunpack.c.0.s8 %v2731
      %v2733 = vlaneseq
      %v2734 = vshrl.u32 %v2733, 7
      %v2735 = vsub.s32 %v2732, %v2734
      %v2736 = vrot.slane %v2728, %v2735
      %v2738 = vunpack.c.l.s4 1983009808
      %v2739 = vunpack.c.0.s8 %v2738
      %v2740 = vlaneseq
      %v2741 = vshrl.u32 %v2740, 7
      %v2742 = vsub.s32 %v2739, %v2741
      %v2743 = vrot.slane %v2729, %v2742
      %v2744 = vcombine.low %v2535, %v2543
      %v2745 = vcombine.high %v2535, %v2543
      %v2747 = vunpack.c.l.s4 1983009808
      %v2748 = vunpack.c.0.s8 %v2747
      %v2749 = vlaneseq
      %v2750 = vshrl.u32 %v2749, 7
      %v2751 = vsub.s32 %v2748, %v2750
      %v2752 = vrot.slane %v2744, %v2751
      %v2754 = vunpack.c.l.s4 1983009808
      %v2755 = vunpack.c.0.s8 %v2754
      %v2756 = vlaneseq
      %v2757 = vshrl.u32 %v2756, 7
      %v2758 = vsub.s32 %v2755, %v2757
      %v2759 = vrot.slane %v2745, %v2758
      %v2760 = vcombine.low %v2704, %v2720
      %v2761 = vcombine.high %v2704, %v2720
      %v2763 = vunpack.c.l.s4 1934713408
      %v2764 = vunpack.c.0.s8 %v2763
      %v2765 = vlaneseq
      %v2766 = vshrl.u32 %v2765, 7
      %v2767 = vsub.s32 %v2764, %v2766
      %v2768 = vrot.slane %v2760, %v2767
      %v2770 = vunpack.c.l.s4 1934713408
      %v2771 = vunpack.c.0.s8 %v2770
      %v2772 = vlaneseq
      %v2773 = vshrl.u32 %v2772, 7
      %v2774 = vsub.s32 %v2771, %v2773
      %v2775 = vrot.slane %v2761, %v2774
      %v2776 = vcombine.low %v2711, %v2727
      %v2777 = vcombine.high %v2711, %v2727
      %v2779 = vunpack.c.l.s4 1934713408
      %v2780 = vunpack.c.0.s8 %v2779
      %v2781 = vlaneseq
      %v2782 = vshrl.u32 %v2781, 7
      %v2783 = vsub.s32 %v2780, %v2782
      %v2784 = vrot.slane %v2776, %v2783
      %v2786 = vunpack.c.l.s4 1934713408
      %v2787 = vunpack.c.0.s8 %v2786
      %v2788 = vlaneseq
      %v2789 = vshrl.u32 %v2788, 7
      %v2790 = vsub.s32 %v2787, %v2789
      %v2791 = vrot.slane %v2777, %v2790
      %v2792 = vcombine.low %v2736, %v2752
      %v2793 = vcombine.high %v2736, %v2752
      %v2795 = vunpack.c.l.s4 1934713408
      %v2796 = vunpack.c.0.s8 %v2795
      %v2797 = vlaneseq
      %v2798 = vshrl.u32 %v2797, 7
      %v2799 = vsub.s32 %v2796, %v2798
      %v2800 = vrot.slane %v2792, %v2799
      %v2802 = vunpack.c.l.s4 1934713408
      %v2803 = vunpack.c.0.s8 %v2802
      %v2804 = vlaneseq
      %v2805 = vshrl.u32 %v2804, 7
      %v2806 = vsub.s32 %v2803, %v2805
      %v2807 = vrot.slane %v2793, %v2806
      %v2808 = vcombine.low %v2743, %v2759
      %v2809 = vcombine.high %v2743, %v2759
      %v2811 = vunpack.c.l.s4 1934713408
      %v2812 = vunpack.c.0.s8 %v2811
      %v2813 = vlaneseq
      %v2814 = vshrl.u32 %v2813, 7
      %v2815 = vsub.s32 %v2812, %v2814
      %v2816 = vrot.slane %v2808, %v2815
      %v2818 = vunpack.c.l.s4 1934713408
      %v2819 = vunpack.c.0.s8 %v2818
      %v2820 = vlaneseq
      %v2821 = vshrl.u32 %v2820, 7
      %v2822 = vsub.s32 %v2819, %v2821
      %v2823 = vrot.slane %v2809, %v2822
      %v2824 = vcombine.low %v2768, %v2800
      %v2825 = vcombine.high %v2768, %v2800
      %v2826 = vcombine.low %v2775, %v2807
      %v2827 = vcombine.high %v2775, %v2807
      %v2828 = vcombine.low %v2784, %v2816
      %v2829 = vcombine.high %v2784, %v2816
      %v2830 = vcombine.low %v2791, %v2823
      %v2831 = vcombine.high %v2791, %v2823
      %2833 = vrot.lane.b32.xlu0 %v2689, 16
      %v2834 = vpop.permute.xlu0 %2833
      %2837 = vrot.lane.b32.xlu0 %v2690, 32
      %v2838 = vpop.permute.xlu0 %2837
      %2841 = vrot.lane.b32.xlu0 %v2691, 48
      %v2842 = vpop.permute.xlu0 %2841
      %2845 = vrot.lane.b32.xlu0 %v2692, 64
      %v2846 = vpop.permute.xlu0 %2845
      %2849 = vrot.lane.b32.xlu0 %v2693, 80
      %v2850 = vpop.permute.xlu0 %2849
      %2853 = vrot.lane.b32.xlu0 %v2694, 96
      %v2854 = vpop.permute.xlu0 %2853
      %2857 = vrot.lane.b32.xlu0 %v2695, 112
      %v2858 = vpop.permute.xlu0 %2857
      %2861 = vrot.lane.b32.xlu0 %v2825, 16
      %v2862 = vpop.permute.xlu0 %2861
      %2865 = vrot.lane.b32.xlu0 %v2826, 32
      %v2866 = vpop.permute.xlu0 %2865
      %2869 = vrot.lane.b32.xlu0 %v2827, 48
      %v2870 = vpop.permute.xlu0 %2869
      %2873 = vrot.lane.b32.xlu0 %v2828, 64
      %v2874 = vpop.permute.xlu0 %2873
      %2877 = vrot.lane.b32.xlu0 %v2829, 80
      %v2878 = vpop.permute.xlu0 %2877
      %2881 = vrot.lane.b32.xlu0 %v2830, 96
      %v2882 = vpop.permute.xlu0 %2881
      %2885 = vrot.lane.b32.xlu0 %v2831, 112
      %v2886 = vpop.permute.xlu0 %2885
      %v2888 = vsel %vm1296, %v2688, %v2834
      %v2889 = vsel %vm1298, %v2888, %v2838
      %v2890 = vsel %vm1300, %v2889, %v2842
      %v2891 = vsel %vm1302, %v2890, %v2846
      %v2892 = vsel %vm1304, %v2891, %v2850
      %v2893 = vsel %vm1306, %v2892, %v2854
      %v2894 = vsel %vm1308, %v2893, %v2858
      %v2895 = vsel %vm1296, %v2824, %v2862
      %v2896 = vsel %vm1298, %v2895, %v2866
      %v2897 = vsel %vm1300, %v2896, %v2870
      %v2898 = vsel %vm1302, %v2897, %v2874
      %v2899 = vsel %vm1304, %v2898, %v2878
      %v2900 = vsel %vm1306, %v2899, %v2882
      %v2901 = vsel %vm1308, %v2900, %v2886
      %2902 = vrot.lane.b32.xlu0 %v2116, 126
      %v2903 = vpop.permute.xlu0 %2902
      %2904 = vrot.lane.b32.xlu0 %v2118, 126
      %v2905 = vpop.permute.xlu0 %2904
      %2906 = vrot.lane.b32.xlu0 %v2121, 126
      %v2907 = vpop.permute.xlu0 %2906
      %2908 = vrot.lane.b32.xlu0 %v2123, 126
      %v2909 = vpop.permute.xlu0 %2908
      %2910 = vrot.lane.b32.xlu0 %v2126, 126
      %v2911 = vpop.permute.xlu0 %2910
      %2912 = vrot.lane.b32.xlu0 %v2128, 126
      %v2913 = vpop.permute.xlu0 %2912
      %2914 = vrot.lane.b32.xlu0 %v2131, 126
      %v2915 = vpop.permute.xlu0 %2914
      %2916 = vrot.lane.b32.xlu0 %v2133, 126
      %v2917 = vpop.permute.xlu0 %2916
      %2918 = vrot.lane.b32.xlu0 %v2136, 126
      %v2919 = vpop.permute.xlu0 %2918
      %2920 = vrot.lane.b32.xlu0 %v2138, 126
      %v2921 = vpop.permute.xlu0 %2920
      %2922 = vrot.lane.b32.xlu0 %v2141, 126
      %v2923 = vpop.permute.xlu0 %2922
      %2924 = vrot.lane.b32.xlu0 %v2143, 126
      %v2925 = vpop.permute.xlu0 %2924
      %2926 = vrot.lane.b32.xlu0 %v2146, 126
      %v2927 = vpop.permute.xlu0 %2926
      %2928 = vrot.lane.b32.xlu0 %v2148, 126
      %v2929 = vpop.permute.xlu0 %2928
      %2930 = vrot.lane.b32.xlu0 %v2151, 126
      %v2931 = vpop.permute.xlu0 %2930
      %2932 = vrot.lane.b32.xlu0 %v2153, 126
      %v2933 = vpop.permute.xlu0 %2932
      %v2950 = vcombine.low %v2903, %v2911
      %v2951 = vcombine.high %v2903, %v2911
      %v2953 = vunpack.c.l.s4 1983009808
      %v2954 = vunpack.c.0.s8 %v2953
      %v2955 = vlaneseq
      %v2956 = vshrl.u32 %v2955, 7
      %v2957 = vsub.s32 %v2954, %v2956
      %v2958 = vrot.slane %v2950, %v2957
      %v2960 = vunpack.c.l.s4 1983009808
      %v2961 = vunpack.c.0.s8 %v2960
      %v2962 = vlaneseq
      %v2963 = vshrl.u32 %v2962, 7
      %v2964 = vsub.s32 %v2961, %v2963
      %v2965 = vrot.slane %v2951, %v2964
      %v2966 = vcombine.low %v2907, %v2915
      %v2967 = vcombine.high %v2907, %v2915
      %v2969 = vunpack.c.l.s4 1983009808
      %v2970 = vunpack.c.0.s8 %v2969
      %v2971 = vlaneseq
      %v2972 = vshrl.u32 %v2971, 7
      %v2973 = vsub.s32 %v2970, %v2972
      %v2974 = vrot.slane %v2966, %v2973
      %v2976 = vunpack.c.l.s4 1983009808
      %v2977 = vunpack.c.0.s8 %v2976
      %v2978 = vlaneseq
      %v2979 = vshrl.u32 %v2978, 7
      %v2980 = vsub.s32 %v2977, %v2979
      %v2981 = vrot.slane %v2967, %v2980
      %v2982 = vcombine.low %v2919, %v2927
      %v2983 = vcombine.high %v2919, %v2927
      %v2985 = vunpack.c.l.s4 1983009808
      %v2986 = vunpack.c.0.s8 %v2985
      %v2987 = vlaneseq
      %v2988 = vshrl.u32 %v2987, 7
      %v2989 = vsub.s32 %v2986, %v2988
      %v2990 = vrot.slane %v2982, %v2989
      %v2992 = vunpack.c.l.s4 1983009808
      %v2993 = vunpack.c.0.s8 %v2992
      %v2994 = vlaneseq
      %v2995 = vshrl.u32 %v2994, 7
      %v2996 = vsub.s32 %v2993, %v2995
      %v2997 = vrot.slane %v2983, %v2996
      %v2998 = vcombine.low %v2923, %v2931
      %v2999 = vcombine.high %v2923, %v2931
      %v3001 = vunpack.c.l.s4 1983009808
      %v3002 = vunpack.c.0.s8 %v3001
      %v3003 = vlaneseq
      %v3004 = vshrl.u32 %v3003, 7
      %v3005 = vsub.s32 %v3002, %v3004
      %v3006 = vrot.slane %v2998, %v3005
      %v3008 = vunpack.c.l.s4 1983009808
      %v3009 = vunpack.c.0.s8 %v3008
      %v3010 = vlaneseq
      %v3011 = vshrl.u32 %v3010, 7
      %v3012 = vsub.s32 %v3009, %v3011
      %v3013 = vrot.slane %v2999, %v3012
      %v3014 = vcombine.low %v2958, %v2974
      %v3015 = vcombine.high %v2958, %v2974
      %v3017 = vunpack.c.l.s4 1934713408
      %v3018 = vunpack.c.0.s8 %v3017
      %v3019 = vlaneseq
      %v3020 = vshrl.u32 %v3019, 7
      %v3021 = vsub.s32 %v3018, %v3020
      %v3022 = vrot.slane %v3014, %v3021
      %v3024 = vunpack.c.l.s4 1934713408
      %v3025 = vunpack.c.0.s8 %v3024
      %v3026 = vlaneseq
      %v3027 = vshrl.u32 %v3026, 7
      %v3028 = vsub.s32 %v3025, %v3027
      %v3029 = vrot.slane %v3015, %v3028
      %v3030 = vcombine.low %v2965, %v2981
      %v3031 = vcombine.high %v2965, %v2981
      %v3033 = vunpack.c.l.s4 1934713408
      %v3034 = vunpack.c.0.s8 %v3033
      %v3035 = vlaneseq
      %v3036 = vshrl.u32 %v3035, 7
      %v3037 = vsub.s32 %v3034, %v3036
      %v3038 = vrot.slane %v3030, %v3037
      %v3040 = vunpack.c.l.s4 1934713408
      %v3041 = vunpack.c.0.s8 %v3040
      %v3042 = vlaneseq
      %v3043 = vshrl.u32 %v3042, 7
      %v3044 = vsub.s32 %v3041, %v3043
      %v3045 = vrot.slane %v3031, %v3044
      %v3046 = vcombine.low %v2990, %v3006
      %v3047 = vcombine.high %v2990, %v3006
      %v3049 = vunpack.c.l.s4 1934713408
      %v3050 = vunpack.c.0.s8 %v3049
      %v3051 = vlaneseq
      %v3052 = vshrl.u32 %v3051, 7
      %v3053 = vsub.s32 %v3050, %v3052
      %v3054 = vrot.slane %v3046, %v3053
      %v3056 = vunpack.c.l.s4 1934713408
      %v3057 = vunpack.c.0.s8 %v3056
      %v3058 = vlaneseq
      %v3059 = vshrl.u32 %v3058, 7
      %v3060 = vsub.s32 %v3057, %v3059
      %v3061 = vrot.slane %v3047, %v3060
      %v3062 = vcombine.low %v2997, %v3013
      %v3063 = vcombine.high %v2997, %v3013
      %v3065 = vunpack.c.l.s4 1934713408
      %v3066 = vunpack.c.0.s8 %v3065
      %v3067 = vlaneseq
      %v3068 = vshrl.u32 %v3067, 7
      %v3069 = vsub.s32 %v3066, %v3068
      %v3070 = vrot.slane %v3062, %v3069
      %v3072 = vunpack.c.l.s4 1934713408
      %v3073 = vunpack.c.0.s8 %v3072
      %v3074 = vlaneseq
      %v3075 = vshrl.u32 %v3074, 7
      %v3076 = vsub.s32 %v3073, %v3075
      %v3077 = vrot.slane %v3063, %v3076
      %v3078 = vcombine.low %v3022, %v3054
      %v3079 = vcombine.high %v3022, %v3054
      %v3080 = vcombine.low %v3029, %v3061
      %v3081 = vcombine.high %v3029, %v3061
      %v3082 = vcombine.low %v3038, %v3070
      %v3083 = vcombine.high %v3038, %v3070
      %v3084 = vcombine.low %v3045, %v3077
      %v3085 = vcombine.high %v3045, %v3077
      %v3086 = vcombine.low %v2905, %v2913
      %v3087 = vcombine.high %v2905, %v2913
      %v3089 = vunpack.c.l.s4 1983009808
      %v3090 = vunpack.c.0.s8 %v3089
      %v3091 = vlaneseq
      %v3092 = vshrl.u32 %v3091, 7
      %v3093 = vsub.s32 %v3090, %v3092
      %v3094 = vrot.slane %v3086, %v3093
      %v3096 = vunpack.c.l.s4 1983009808
      %v3097 = vunpack.c.0.s8 %v3096
      %v3098 = vlaneseq
      %v3099 = vshrl.u32 %v3098, 7
      %v3100 = vsub.s32 %v3097, %v3099
      %v3101 = vrot.slane %v3087, %v3100
      %v3102 = vcombine.low %v2909, %v2917
      %v3103 = vcombine.high %v2909, %v2917
      %v3105 = vunpack.c.l.s4 1983009808
      %v3106 = vunpack.c.0.s8 %v3105
      %v3107 = vlaneseq
      %v3108 = vshrl.u32 %v3107, 7
      %v3109 = vsub.s32 %v3106, %v3108
      %v3110 = vrot.slane %v3102, %v3109
      %v3112 = vunpack.c.l.s4 1983009808
      %v3113 = vunpack.c.0.s8 %v3112
      %v3114 = vlaneseq
      %v3115 = vshrl.u32 %v3114, 7
      %v3116 = vsub.s32 %v3113, %v3115
      %v3117 = vrot.slane %v3103, %v3116
      %v3118 = vcombine.low %v2921, %v2929
      %v3119 = vcombine.high %v2921, %v2929
      %v3121 = vunpack.c.l.s4 1983009808
      %v3122 = vunpack.c.0.s8 %v3121
      %v3123 = vlaneseq
      %v3124 = vshrl.u32 %v3123, 7
      %v3125 = vsub.s32 %v3122, %v3124
      %v3126 = vrot.slane %v3118, %v3125
      %v3128 = vunpack.c.l.s4 1983009808
      %v3129 = vunpack.c.0.s8 %v3128
      %v3130 = vlaneseq
      %v3131 = vshrl.u32 %v3130, 7
      %v3132 = vsub.s32 %v3129, %v3131
      %v3133 = vrot.slane %v3119, %v3132
      %v3134 = vcombine.low %v2925, %v2933
      %v3135 = vcombine.high %v2925, %v2933
      %v3137 = vunpack.c.l.s4 1983009808
      %v3138 = vunpack.c.0.s8 %v3137
      %v3139 = vlaneseq
      %v3140 = vshrl.u32 %v3139, 7
      %v3141 = vsub.s32 %v3138, %v3140
      %v3142 = vrot.slane %v3134, %v3141
      %v3144 = vunpack.c.l.s4 1983009808
      %v3145 = vunpack.c.0.s8 %v3144
      %v3146 = vlaneseq
      %v3147 = vshrl.u32 %v3146, 7
      %v3148 = vsub.s32 %v3145, %v3147
      %v3149 = vrot.slane %v3135, %v3148
      %v3150 = vcombine.low %v3094, %v3110
      %v3151 = vcombine.high %v3094, %v3110
      %v3153 = vunpack.c.l.s4 1934713408
      %v3154 = vunpack.c.0.s8 %v3153
      %v3155 = vlaneseq
      %v3156 = vshrl.u32 %v3155, 7
      %v3157 = vsub.s32 %v3154, %v3156
      %v3158 = vrot.slane %v3150, %v3157
      %v3160 = vunpack.c.l.s4 1934713408
      %v3161 = vunpack.c.0.s8 %v3160
      %v3162 = vlaneseq
      %v3163 = vshrl.u32 %v3162, 7
      %v3164 = vsub.s32 %v3161, %v3163
      %v3165 = vrot.slane %v3151, %v3164
      %v3166 = vcombine.low %v3101, %v3117
      %v3167 = vcombine.high %v3101, %v3117
      %v3169 = vunpack.c.l.s4 1934713408
      %v3170 = vunpack.c.0.s8 %v3169
      %v3171 = vlaneseq
      %v3172 = vshrl.u32 %v3171, 7
      %v3173 = vsub.s32 %v3170, %v3172
      %v3174 = vrot.slane %v3166, %v3173
      %v3176 = vunpack.c.l.s4 1934713408
      %v3177 = vunpack.c.0.s8 %v3176
      %v3178 = vlaneseq
      %v3179 = vshrl.u32 %v3178, 7
      %v3180 = vsub.s32 %v3177, %v3179
      %v3181 = vrot.slane %v3167, %v3180
      %v3182 = vcombine.low %v3126, %v3142
      %v3183 = vcombine.high %v3126, %v3142
      %v3185 = vunpack.c.l.s4 1934713408
      %v3186 = vunpack.c.0.s8 %v3185
      %v3187 = vlaneseq
      %v3188 = vshrl.u32 %v3187, 7
      %v3189 = vsub.s32 %v3186, %v3188
      %v3190 = vrot.slane %v3182, %v3189
      %v3192 = vunpack.c.l.s4 1934713408
      %v3193 = vunpack.c.0.s8 %v3192
      %v3194 = vlaneseq
      %v3195 = vshrl.u32 %v3194, 7
      %v3196 = vsub.s32 %v3193, %v3195
      %v3197 = vrot.slane %v3183, %v3196
      %v3198 = vcombine.low %v3133, %v3149
      %v3199 = vcombine.high %v3133, %v3149
      %v3201 = vunpack.c.l.s4 1934713408
      %v3202 = vunpack.c.0.s8 %v3201
      %v3203 = vlaneseq
      %v3204 = vshrl.u32 %v3203, 7
      %v3205 = vsub.s32 %v3202, %v3204
      %v3206 = vrot.slane %v3198, %v3205
      %v3208 = vunpack.c.l.s4 1934713408
      %v3209 = vunpack.c.0.s8 %v3208
      %v3210 = vlaneseq
      %v3211 = vshrl.u32 %v3210, 7
      %v3212 = vsub.s32 %v3209, %v3211
      %v3213 = vrot.slane %v3199, %v3212
      %v3214 = vcombine.low %v3158, %v3190
      %v3215 = vcombine.high %v3158, %v3190
      %v3216 = vcombine.low %v3165, %v3197
      %v3217 = vcombine.high %v3165, %v3197
      %v3218 = vcombine.low %v3174, %v3206
      %v3219 = vcombine.high %v3174, %v3206
      %v3220 = vcombine.low %v3181, %v3213
      %v3221 = vcombine.high %v3181, %v3213
      %3223 = vrot.lane.b32.xlu0 %v3079, 16
      %v3224 = vpop.permute.xlu0 %3223
      %3227 = vrot.lane.b32.xlu0 %v3080, 32
      %v3228 = vpop.permute.xlu0 %3227
      %3231 = vrot.lane.b32.xlu0 %v3081, 48
      %v3232 = vpop.permute.xlu0 %3231
      %3235 = vrot.lane.b32.xlu0 %v3082, 64
      %v3236 = vpop.permute.xlu0 %3235
      %3239 = vrot.lane.b32.xlu0 %v3083, 80
      %v3240 = vpop.permute.xlu0 %3239
      %3243 = vrot.lane.b32.xlu0 %v3084, 96
      %v3244 = vpop.permute.xlu0 %3243
      %3247 = vrot.lane.b32.xlu0 %v3085, 112
      %v3248 = vpop.permute.xlu0 %3247
      %3251 = vrot.lane.b32.xlu0 %v3215, 16
      %v3252 = vpop.permute.xlu0 %3251
      %3255 = vrot.lane.b32.xlu0 %v3216, 32
      %v3256 = vpop.permute.xlu0 %3255
      %3259 = vrot.lane.b32.xlu0 %v3217, 48
      %v3260 = vpop.permute.xlu0 %3259
      %3263 = vrot.lane.b32.xlu0 %v3218, 64
      %v3264 = vpop.permute.xlu0 %3263
      %3267 = vrot.lane.b32.xlu0 %v3219, 80
      %v3268 = vpop.permute.xlu0 %3267
      %3271 = vrot.lane.b32.xlu0 %v3220, 96
      %v3272 = vpop.permute.xlu0 %3271
      %3275 = vrot.lane.b32.xlu0 %v3221, 112
      %v3276 = vpop.permute.xlu0 %3275
      %v3278 = vsel %vm1296, %v3078, %v3224
      %v3279 = vsel %vm1298, %v3278, %v3228
      %v3280 = vsel %vm1300, %v3279, %v3232
      %v3281 = vsel %vm1302, %v3280, %v3236
      %v3282 = vsel %vm1304, %v3281, %v3240
      %v3283 = vsel %vm1306, %v3282, %v3244
      %v3284 = vsel %vm1308, %v3283, %v3248
      %v3285 = vsel %vm1296, %v3214, %v3252
      %v3286 = vsel %vm1298, %v3285, %v3256
      %v3287 = vsel %vm1300, %v3286, %v3260
      %v3288 = vsel %vm1302, %v3287, %v3264
      %v3289 = vsel %vm1304, %v3288, %v3268
      %v3290 = vsel %vm1306, %v3289, %v3272
      %v3291 = vsel %vm1308, %v3290, %v3276
      %vm3292 = vcmask 1045504
      %v3293 = vrot.slane %v952, 2
      %v3294 = vrot.slane %v906, 2
      %v3295 = vsel %vm3292, %v3293, %v3294
      %v3296 = vrot.slane %v960, 2
      %v3297 = vsel %vm3292, %v3294, %v3296
      %v3298 = vrot.slane %v953, 2
      %v3299 = vrot.slane %v909, 2
      %v3300 = vsel %vm3292, %v3298, %v3299
      %v3301 = vrot.slane %v961, 2
      %v3302 = vsel %vm3292, %v3299, %v3301
      %v3303 = vrot.slane %v954, 2
      %v3304 = vrot.slane %v912, 2
      %v3305 = vsel %vm3292, %v3303, %v3304
      %v3306 = vrot.slane %v962, 2
      %v3307 = vsel %vm3292, %v3304, %v3306
      %v3308 = vrot.slane %v955, 2
      %v3309 = vrot.slane %v915, 2
      %v3310 = vsel %vm3292, %v3308, %v3309
      %v3311 = vrot.slane %v963, 2
      %v3312 = vsel %vm3292, %v3309, %v3311
      %v3313 = vrot.slane %v956, 2
      %v3314 = vrot.slane %v918, 2
      %v3315 = vsel %vm3292, %v3313, %v3314
      %v3316 = vrot.slane %v964, 2
      %v3317 = vsel %vm3292, %v3314, %v3316
      %v3318 = vrot.slane %v957, 2
      %v3319 = vrot.slane %v921, 2
      %v3320 = vsel %vm3292, %v3318, %v3319
      %v3321 = vrot.slane %v965, 2
      %v3322 = vsel %vm3292, %v3319, %v3321
      %v3323 = vrot.slane %v958, 2
      %v3324 = vrot.slane %v924, 2
      %v3325 = vsel %vm3292, %v3323, %v3324
      %v3326 = vrot.slane %v966, 2
      %v3327 = vsel %vm3292, %v3324, %v3326
      %v3328 = vrot.slane %v959, 2
      %v3329 = vrot.slane %v927, 2
      %v3330 = vsel %vm3292, %v3328, %v3329
      %v3331 = vrot.slane %v967, 2
      %v3332 = vsel %vm3292, %v3329, %v3331
      %v3349 = vcombine.low %v3295, %v3305
      %v3350 = vcombine.high %v3295, %v3305
      %v3352 = vunpack.c.l.s4 1983009808
      %v3353 = vunpack.c.0.s8 %v3352
      %v3354 = vlaneseq
      %v3355 = vshrl.u32 %v3354, 7
      %v3356 = vsub.s32 %v3353, %v3355
      %v3357 = vrot.slane %v3349, %v3356
      %v3359 = vunpack.c.l.s4 1983009808
      %v3360 = vunpack.c.0.s8 %v3359
      %v3361 = vlaneseq
      %v3362 = vshrl.u32 %v3361, 7
      %v3363 = vsub.s32 %v3360, %v3362
      %v3364 = vrot.slane %v3350, %v3363
      %v3365 = vcombine.low %v3300, %v3310
      %v3366 = vcombine.high %v3300, %v3310
      %v3368 = vunpack.c.l.s4 1983009808
      %v3369 = vunpack.c.0.s8 %v3368
      %v3370 = vlaneseq
      %v3371 = vshrl.u32 %v3370, 7
      %v3372 = vsub.s32 %v3369, %v3371
      %v3373 = vrot.slane %v3365, %v3372
      %v3375 = vunpack.c.l.s4 1983009808
      %v3376 = vunpack.c.0.s8 %v3375
      %v3377 = vlaneseq
      %v3378 = vshrl.u32 %v3377, 7
      %v3379 = vsub.s32 %v3376, %v3378
      %v3380 = vrot.slane %v3366, %v3379
      %v3381 = vcombine.low %v3315, %v3325
      %v3382 = vcombine.high %v3315, %v3325
      %v3384 = vunpack.c.l.s4 1983009808
      %v3385 = vunpack.c.0.s8 %v3384
      %v3386 = vlaneseq
      %v3387 = vshrl.u32 %v3386, 7
      %v3388 = vsub.s32 %v3385, %v3387
      %v3389 = vrot.slane %v3381, %v3388
      %v3391 = vunpack.c.l.s4 1983009808
      %v3392 = vunpack.c.0.s8 %v3391
      %v3393 = vlaneseq
      %v3394 = vshrl.u32 %v3393, 7
      %v3395 = vsub.s32 %v3392, %v3394
      %v3396 = vrot.slane %v3382, %v3395
      %v3397 = vcombine.low %v3320, %v3330
      %v3398 = vcombine.high %v3320, %v3330
      %v3400 = vunpack.c.l.s4 1983009808
      %v3401 = vunpack.c.0.s8 %v3400
      %v3402 = vlaneseq
      %v3403 = vshrl.u32 %v3402, 7
      %v3404 = vsub.s32 %v3401, %v3403
      %v3405 = vrot.slane %v3397, %v3404
      %v3407 = vunpack.c.l.s4 1983009808
      %v3408 = vunpack.c.0.s8 %v3407
      %v3409 = vlaneseq
      %v3410 = vshrl.u32 %v3409, 7
      %v3411 = vsub.s32 %v3408, %v3410
      %v3412 = vrot.slane %v3398, %v3411
      %v3413 = vcombine.low %v3357, %v3373
      %v3414 = vcombine.high %v3357, %v3373
      %v3416 = vunpack.c.l.s4 1934713408
      %v3417 = vunpack.c.0.s8 %v3416
      %v3418 = vlaneseq
      %v3419 = vshrl.u32 %v3418, 7
      %v3420 = vsub.s32 %v3417, %v3419
      %v3421 = vrot.slane %v3413, %v3420
      %v3423 = vunpack.c.l.s4 1934713408
      %v3424 = vunpack.c.0.s8 %v3423
      %v3425 = vlaneseq
      %v3426 = vshrl.u32 %v3425, 7
      %v3427 = vsub.s32 %v3424, %v3426
      %v3428 = vrot.slane %v3414, %v3427
      %v3429 = vcombine.low %v3364, %v3380
      %v3430 = vcombine.high %v3364, %v3380
      %v3432 = vunpack.c.l.s4 1934713408
      %v3433 = vunpack.c.0.s8 %v3432
      %v3434 = vlaneseq
      %v3435 = vshrl.u32 %v3434, 7
      %v3436 = vsub.s32 %v3433, %v3435
      %v3437 = vrot.slane %v3429, %v3436
      %v3439 = vunpack.c.l.s4 1934713408
      %v3440 = vunpack.c.0.s8 %v3439
      %v3441 = vlaneseq
      %v3442 = vshrl.u32 %v3441, 7
      %v3443 = vsub.s32 %v3440, %v3442
      %v3444 = vrot.slane %v3430, %v3443
      %v3445 = vcombine.low %v3389, %v3405
      %v3446 = vcombine.high %v3389, %v3405
      %v3448 = vunpack.c.l.s4 1934713408
      %v3449 = vunpack.c.0.s8 %v3448
      %v3450 = vlaneseq
      %v3451 = vshrl.u32 %v3450, 7
      %v3452 = vsub.s32 %v3449, %v3451
      %v3453 = vrot.slane %v3445, %v3452
      %v3455 = vunpack.c.l.s4 1934713408
      %v3456 = vunpack.c.0.s8 %v3455
      %v3457 = vlaneseq
      %v3458 = vshrl.u32 %v3457, 7
      %v3459 = vsub.s32 %v3456, %v3458
      %v3460 = vrot.slane %v3446, %v3459
      %v3461 = vcombine.low %v3396, %v3412
      %v3462 = vcombine.high %v3396, %v3412
      %v3464 = vunpack.c.l.s4 1934713408
      %v3465 = vunpack.c.0.s8 %v3464
      %v3466 = vlaneseq
      %v3467 = vshrl.u32 %v3466, 7
      %v3468 = vsub.s32 %v3465, %v3467
      %v3469 = vrot.slane %v3461, %v3468
      %v3471 = vunpack.c.l.s4 1934713408
      %v3472 = vunpack.c.0.s8 %v3471
      %v3473 = vlaneseq
      %v3474 = vshrl.u32 %v3473, 7
      %v3475 = vsub.s32 %v3472, %v3474
      %v3476 = vrot.slane %v3462, %v3475
      %v3477 = vcombine.low %v3421, %v3453
      %v3478 = vcombine.high %v3421, %v3453
      %v3479 = vcombine.low %v3428, %v3460
      %v3480 = vcombine.high %v3428, %v3460
      %v3481 = vcombine.low %v3437, %v3469
      %v3482 = vcombine.high %v3437, %v3469
      %v3483 = vcombine.low %v3444, %v3476
      %v3484 = vcombine.high %v3444, %v3476
      %v3485 = vcombine.low %v3297, %v3307
      %v3486 = vcombine.high %v3297, %v3307
      %v3488 = vunpack.c.l.s4 1983009808
      %v3489 = vunpack.c.0.s8 %v3488
      %v3490 = vlaneseq
      %v3491 = vshrl.u32 %v3490, 7
      %v3492 = vsub.s32 %v3489, %v3491
      %v3493 = vrot.slane %v3485, %v3492
      %v3495 = vunpack.c.l.s4 1983009808
      %v3496 = vunpack.c.0.s8 %v3495
      %v3497 = vlaneseq
      %v3498 = vshrl.u32 %v3497, 7
      %v3499 = vsub.s32 %v3496, %v3498
      %v3500 = vrot.slane %v3486, %v3499
      %v3501 = vcombine.low %v3302, %v3312
      %v3502 = vcombine.high %v3302, %v3312
      %v3504 = vunpack.c.l.s4 1983009808
      %v3505 = vunpack.c.0.s8 %v3504
      %v3506 = vlaneseq
      %v3507 = vshrl.u32 %v3506, 7
      %v3508 = vsub.s32 %v3505, %v3507
      %v3509 = vrot.slane %v3501, %v3508
      %v3511 = vunpack.c.l.s4 1983009808
      %v3512 = vunpack.c.0.s8 %v3511
      %v3513 = vlaneseq
      %v3514 = vshrl.u32 %v3513, 7
      %v3515 = vsub.s32 %v3512, %v3514
      %v3516 = vrot.slane %v3502, %v3515
      %v3517 = vcombine.low %v3317, %v3327
      %v3518 = vcombine.high %v3317, %v3327
      %v3520 = vunpack.c.l.s4 1983009808
      %v3521 = vunpack.c.0.s8 %v3520
      %v3522 = vlaneseq
      %v3523 = vshrl.u32 %v3522, 7
      %v3524 = vsub.s32 %v3521, %v3523
      %v3525 = vrot.slane %v3517, %v3524
      %v3527 = vunpack.c.l.s4 1983009808
      %v3528 = vunpack.c.0.s8 %v3527
      %v3529 = vlaneseq
      %v3530 = vshrl.u32 %v3529, 7
      %v3531 = vsub.s32 %v3528, %v3530
      %v3532 = vrot.slane %v3518, %v3531
      %v3533 = vcombine.low %v3322, %v3332
      %v3534 = vcombine.high %v3322, %v3332
      %v3536 = vunpack.c.l.s4 1983009808
      %v3537 = vunpack.c.0.s8 %v3536
      %v3538 = vlaneseq
      %v3539 = vshrl.u32 %v3538, 7
      %v3540 = vsub.s32 %v3537, %v3539
      %v3541 = vrot.slane %v3533, %v3540
      %v3543 = vunpack.c.l.s4 1983009808
      %v3544 = vunpack.c.0.s8 %v3543
      %v3545 = vlaneseq
      %v3546 = vshrl.u32 %v3545, 7
      %v3547 = vsub.s32 %v3544, %v3546
      %v3548 = vrot.slane %v3534, %v3547
      %v3549 = vcombine.low %v3493, %v3509
      %v3550 = vcombine.high %v3493, %v3509
      %v3552 = vunpack.c.l.s4 1934713408
      %v3553 = vunpack.c.0.s8 %v3552
      %v3554 = vlaneseq
      %v3555 = vshrl.u32 %v3554, 7
      %v3556 = vsub.s32 %v3553, %v3555
      %v3557 = vrot.slane %v3549, %v3556
      %v3559 = vunpack.c.l.s4 1934713408
      %v3560 = vunpack.c.0.s8 %v3559
      %v3561 = vlaneseq
      %v3562 = vshrl.u32 %v3561, 7
      %v3563 = vsub.s32 %v3560, %v3562
      %v3564 = vrot.slane %v3550, %v3563
      %v3565 = vcombine.low %v3500, %v3516
      %v3566 = vcombine.high %v3500, %v3516
      %v3568 = vunpack.c.l.s4 1934713408
      %v3569 = vunpack.c.0.s8 %v3568
      %v3570 = vlaneseq
      %v3571 = vshrl.u32 %v3570, 7
      %v3572 = vsub.s32 %v3569, %v3571
      %v3573 = vrot.slane %v3565, %v3572
      %v3575 = vunpack.c.l.s4 1934713408
      %v3576 = vunpack.c.0.s8 %v3575
      %v3577 = vlaneseq
      %v3578 = vshrl.u32 %v3577, 7
      %v3579 = vsub.s32 %v3576, %v3578
      %v3580 = vrot.slane %v3566, %v3579
      %v3581 = vcombine.low %v3525, %v3541
      %v3582 = vcombine.high %v3525, %v3541
      %v3584 = vunpack.c.l.s4 1934713408
      %v3585 = vunpack.c.0.s8 %v3584
      %v3586 = vlaneseq
      %v3587 = vshrl.u32 %v3586, 7
      %v3588 = vsub.s32 %v3585, %v3587
      %v3589 = vrot.slane %v3581, %v3588
      %v3591 = vunpack.c.l.s4 1934713408
      %v3592 = vunpack.c.0.s8 %v3591
      %v3593 = vlaneseq
      %v3594 = vshrl.u32 %v3593, 7
      %v3595 = vsub.s32 %v3592, %v3594
      %v3596 = vrot.slane %v3582, %v3595
      %v3597 = vcombine.low %v3532, %v3548
      %v3598 = vcombine.high %v3532, %v3548
      %v3600 = vunpack.c.l.s4 1934713408
      %v3601 = vunpack.c.0.s8 %v3600
      %v3602 = vlaneseq
      %v3603 = vshrl.u32 %v3602, 7
      %v3604 = vsub.s32 %v3601, %v3603
      %v3605 = vrot.slane %v3597, %v3604
      %v3607 = vunpack.c.l.s4 1934713408
      %v3608 = vunpack.c.0.s8 %v3607
      %v3609 = vlaneseq
      %v3610 = vshrl.u32 %v3609, 7
      %v3611 = vsub.s32 %v3608, %v3610
      %v3612 = vrot.slane %v3598, %v3611
      %v3613 = vcombine.low %v3557, %v3589
      %v3614 = vcombine.high %v3557, %v3589
      %v3615 = vcombine.low %v3564, %v3596
      %v3616 = vcombine.high %v3564, %v3596
      %v3617 = vcombine.low %v3573, %v3605
      %v3618 = vcombine.high %v3573, %v3605
      %v3619 = vcombine.low %v3580, %v3612
      %v3620 = vcombine.high %v3580, %v3612
      %3622 = vrot.lane.b32.xlu0 %v3478, 16
      %v3623 = vpop.permute.xlu0 %3622
      %3626 = vrot.lane.b32.xlu0 %v3479, 32
      %v3627 = vpop.permute.xlu0 %3626
      %3630 = vrot.lane.b32.xlu0 %v3480, 48
      %v3631 = vpop.permute.xlu0 %3630
      %3634 = vrot.lane.b32.xlu0 %v3481, 64
      %v3635 = vpop.permute.xlu0 %3634
      %3638 = vrot.lane.b32.xlu0 %v3482, 80
      %v3639 = vpop.permute.xlu0 %3638
      %3642 = vrot.lane.b32.xlu0 %v3483, 96
      %v3643 = vpop.permute.xlu0 %3642
      %3646 = vrot.lane.b32.xlu0 %v3484, 112
      %v3647 = vpop.permute.xlu0 %3646
      %3650 = vrot.lane.b32.xlu0 %v3614, 16
      %v3651 = vpop.permute.xlu0 %3650
      %3654 = vrot.lane.b32.xlu0 %v3615, 32
      %v3655 = vpop.permute.xlu0 %3654
      %3658 = vrot.lane.b32.xlu0 %v3616, 48
      %v3659 = vpop.permute.xlu0 %3658
      %3662 = vrot.lane.b32.xlu0 %v3617, 64
      %v3663 = vpop.permute.xlu0 %3662
      %3666 = vrot.lane.b32.xlu0 %v3618, 80
      %v3667 = vpop.permute.xlu0 %3666
      %3670 = vrot.lane.b32.xlu0 %v3619, 96
      %v3671 = vpop.permute.xlu0 %3670
      %3674 = vrot.lane.b32.xlu0 %v3620, 112
      %v3675 = vpop.permute.xlu0 %3674
      %v3677 = vsel %vm1296, %v3477, %v3623
      %v3678 = vsel %vm1298, %v3677, %v3627
      %v3679 = vsel %vm1300, %v3678, %v3631
      %v3680 = vsel %vm1302, %v3679, %v3635
      %v3681 = vsel %vm1304, %v3680, %v3639
      %v3682 = vsel %vm1306, %v3681, %v3643
      %v3683 = vsel %vm1308, %v3682, %v3647
      %v3684 = vsel %vm1296, %v3613, %v3651
      %v3685 = vsel %vm1298, %v3684, %v3655
      %v3686 = vsel %vm1300, %v3685, %v3659
      %v3687 = vsel %vm1302, %v3686, %v3663
      %v3688 = vsel %vm1304, %v3687, %v3667
      %v3689 = vsel %vm1306, %v3688, %v3671
      %v3690 = vsel %vm1308, %v3689, %v3675
      %3691 = vrot.lane.b32.xlu0 %v3295, 127
      %v3692 = vpop.permute.xlu0 %3691
      %3693 = vrot.lane.b32.xlu0 %v3297, 127
      %v3694 = vpop.permute.xlu0 %3693
      %3695 = vrot.lane.b32.xlu0 %v3300, 127
      %v3696 = vpop.permute.xlu0 %3695
      %3697 = vrot.lane.b32.xlu0 %v3302, 127
      %v3698 = vpop.permute.xlu0 %3697
      %3699 = vrot.lane.b32.xlu0 %v3305, 127
      %v3700 = vpop.permute.xlu0 %3699
      %3701 = vrot.lane.b32.xlu0 %v3307, 127
      %v3702 = vpop.permute.xlu0 %3701
      %3703 = vrot.lane.b32.xlu0 %v3310, 127
      %v3704 = vpop.permute.xlu0 %3703
      %3705 = vrot.lane.b32.xlu0 %v3312, 127
      %v3706 = vpop.permute.xlu0 %3705
      %3707 = vrot.lane.b32.xlu0 %v3315, 127
      %v3708 = vpop.permute.xlu0 %3707
      %3709 = vrot.lane.b32.xlu0 %v3317, 127
      %v3710 = vpop.permute.xlu0 %3709
      %3711 = vrot.lane.b32.xlu0 %v3320, 127
      %v3712 = vpop.permute.xlu0 %3711
      %3713 = vrot.lane.b32.xlu0 %v3322, 127
      %v3714 = vpop.permute.xlu0 %3713
      %3715 = vrot.lane.b32.xlu0 %v3325, 127
      %v3716 = vpop.permute.xlu0 %3715
      %3717 = vrot.lane.b32.xlu0 %v3327, 127
      %v3718 = vpop.permute.xlu0 %3717
      %3719 = vrot.lane.b32.xlu0 %v3330, 127
      %v3720 = vpop.permute.xlu0 %3719
      %3721 = vrot.lane.b32.xlu0 %v3332, 127
      %v3722 = vpop.permute.xlu0 %3721
      %v3739 = vcombine.low %v3692, %v3700
      %v3740 = vcombine.high %v3692, %v3700
      %v3742 = vunpack.c.l.s4 1983009808
      %v3743 = vunpack.c.0.s8 %v3742
      %v3744 = vlaneseq
      %v3745 = vshrl.u32 %v3744, 7
      %v3746 = vsub.s32 %v3743, %v3745
      %v3747 = vrot.slane %v3739, %v3746
      %v3749 = vunpack.c.l.s4 1983009808
      %v3750 = vunpack.c.0.s8 %v3749
      %v3751 = vlaneseq
      %v3752 = vshrl.u32 %v3751, 7
      %v3753 = vsub.s32 %v3750, %v3752
      %v3754 = vrot.slane %v3740, %v3753
      %v3755 = vcombine.low %v3696, %v3704
      %v3756 = vcombine.high %v3696, %v3704
      %v3758 = vunpack.c.l.s4 1983009808
      %v3759 = vunpack.c.0.s8 %v3758
      %v3760 = vlaneseq
      %v3761 = vshrl.u32 %v3760, 7
      %v3762 = vsub.s32 %v3759, %v3761
      %v3763 = vrot.slane %v3755, %v3762
      %v3765 = vunpack.c.l.s4 1983009808
      %v3766 = vunpack.c.0.s8 %v3765
      %v3767 = vlaneseq
      %v3768 = vshrl.u32 %v3767, 7
      %v3769 = vsub.s32 %v3766, %v3768
      %v3770 = vrot.slane %v3756, %v3769
      %v3771 = vcombine.low %v3708, %v3716
      %v3772 = vcombine.high %v3708, %v3716
      %v3774 = vunpack.c.l.s4 1983009808
      %v3775 = vunpack.c.0.s8 %v3774
      %v3776 = vlaneseq
      %v3777 = vshrl.u32 %v3776, 7
      %v3778 = vsub.s32 %v3775, %v3777
      %v3779 = vrot.slane %v3771, %v3778
      %v3781 = vunpack.c.l.s4 1983009808
      %v3782 = vunpack.c.0.s8 %v3781
      %v3783 = vlaneseq
      %v3784 = vshrl.u32 %v3783, 7
      %v3785 = vsub.s32 %v3782, %v3784
      %v3786 = vrot.slane %v3772, %v3785
      %v3787 = vcombine.low %v3712, %v3720
      %v3788 = vcombine.high %v3712, %v3720
      %v3790 = vunpack.c.l.s4 1983009808
      %v3791 = vunpack.c.0.s8 %v3790
      %v3792 = vlaneseq
      %v3793 = vshrl.u32 %v3792, 7
      %v3794 = vsub.s32 %v3791, %v3793
      %v3795 = vrot.slane %v3787, %v3794
      %v3797 = vunpack.c.l.s4 1983009808
      %v3798 = vunpack.c.0.s8 %v3797
      %v3799 = vlaneseq
      %v3800 = vshrl.u32 %v3799, 7
      %v3801 = vsub.s32 %v3798, %v3800
      %v3802 = vrot.slane %v3788, %v3801
      %v3803 = vcombine.low %v3747, %v3763
      %v3804 = vcombine.high %v3747, %v3763
      %v3806 = vunpack.c.l.s4 1934713408
      %v3807 = vunpack.c.0.s8 %v3806
      %v3808 = vlaneseq
      %v3809 = vshrl.u32 %v3808, 7
      %v3810 = vsub.s32 %v3807, %v3809
      %v3811 = vrot.slane %v3803, %v3810
      %v3813 = vunpack.c.l.s4 1934713408
      %v3814 = vunpack.c.0.s8 %v3813
      %v3815 = vlaneseq
      %v3816 = vshrl.u32 %v3815, 7
      %v3817 = vsub.s32 %v3814, %v3816
      %v3818 = vrot.slane %v3804, %v3817
      %v3819 = vcombine.low %v3754, %v3770
      %v3820 = vcombine.high %v3754, %v3770
      %v3822 = vunpack.c.l.s4 1934713408
      %v3823 = vunpack.c.0.s8 %v3822
      %v3824 = vlaneseq
      %v3825 = vshrl.u32 %v3824, 7
      %v3826 = vsub.s32 %v3823, %v3825
      %v3827 = vrot.slane %v3819, %v3826
      %v3829 = vunpack.c.l.s4 1934713408
      %v3830 = vunpack.c.0.s8 %v3829
      %v3831 = vlaneseq
      %v3832 = vshrl.u32 %v3831, 7
      %v3833 = vsub.s32 %v3830, %v3832
      %v3834 = vrot.slane %v3820, %v3833
      %v3835 = vcombine.low %v3779, %v3795
      %v3836 = vcombine.high %v3779, %v3795
      %v3838 = vunpack.c.l.s4 1934713408
      %v3839 = vunpack.c.0.s8 %v3838
      %v3840 = vlaneseq
      %v3841 = vshrl.u32 %v3840, 7
      %v3842 = vsub.s32 %v3839, %v3841
      %v3843 = vrot.slane %v3835, %v3842
      %v3845 = vunpack.c.l.s4 1934713408
      %v3846 = vunpack.c.0.s8 %v3845
      %v3847 = vlaneseq
      %v3848 = vshrl.u32 %v3847, 7
      %v3849 = vsub.s32 %v3846, %v3848
      %v3850 = vrot.slane %v3836, %v3849
      %v3851 = vcombine.low %v3786, %v3802
      %v3852 = vcombine.high %v3786, %v3802
      %v3854 = vunpack.c.l.s4 1934713408
      %v3855 = vunpack.c.0.s8 %v3854
      %v3856 = vlaneseq
      %v3857 = vshrl.u32 %v3856, 7
      %v3858 = vsub.s32 %v3855, %v3857
      %v3859 = vrot.slane %v3851, %v3858
      %v3861 = vunpack.c.l.s4 1934713408
      %v3862 = vunpack.c.0.s8 %v3861
      %v3863 = vlaneseq
      %v3864 = vshrl.u32 %v3863, 7
      %v3865 = vsub.s32 %v3862, %v3864
      %v3866 = vrot.slane %v3852, %v3865
      %v3867 = vcombine.low %v3811, %v3843
      %v3868 = vcombine.high %v3811, %v3843
      %v3869 = vcombine.low %v3818, %v3850
      %v3870 = vcombine.high %v3818, %v3850
      %v3871 = vcombine.low %v3827, %v3859
      %v3872 = vcombine.high %v3827, %v3859
      %v3873 = vcombine.low %v3834, %v3866
      %v3874 = vcombine.high %v3834, %v3866
      %v3875 = vcombine.low %v3694, %v3702
      %v3876 = vcombine.high %v3694, %v3702
      %v3878 = vunpack.c.l.s4 1983009808
      %v3879 = vunpack.c.0.s8 %v3878
      %v3880 = vlaneseq
      %v3881 = vshrl.u32 %v3880, 7
      %v3882 = vsub.s32 %v3879, %v3881
      %v3883 = vrot.slane %v3875, %v3882
      %v3885 = vunpack.c.l.s4 1983009808
      %v3886 = vunpack.c.0.s8 %v3885
      %v3887 = vlaneseq
      %v3888 = vshrl.u32 %v3887, 7
      %v3889 = vsub.s32 %v3886, %v3888
      %v3890 = vrot.slane %v3876, %v3889
      %v3891 = vcombine.low %v3698, %v3706
      %v3892 = vcombine.high %v3698, %v3706
      %v3894 = vunpack.c.l.s4 1983009808
      %v3895 = vunpack.c.0.s8 %v3894
      %v3896 = vlaneseq
      %v3897 = vshrl.u32 %v3896, 7
      %v3898 = vsub.s32 %v3895, %v3897
      %v3899 = vrot.slane %v3891, %v3898
      %v3901 = vunpack.c.l.s4 1983009808
      %v3902 = vunpack.c.0.s8 %v3901
      %v3903 = vlaneseq
      %v3904 = vshrl.u32 %v3903, 7
      %v3905 = vsub.s32 %v3902, %v3904
      %v3906 = vrot.slane %v3892, %v3905
      %v3907 = vcombine.low %v3710, %v3718
      %v3908 = vcombine.high %v3710, %v3718
      %v3910 = vunpack.c.l.s4 1983009808
      %v3911 = vunpack.c.0.s8 %v3910
      %v3912 = vlaneseq
      %v3913 = vshrl.u32 %v3912, 7
      %v3914 = vsub.s32 %v3911, %v3913
      %v3915 = vrot.slane %v3907, %v3914
      %v3917 = vunpack.c.l.s4 1983009808
      %v3918 = vunpack.c.0.s8 %v3917
      %v3919 = vlaneseq
      %v3920 = vshrl.u32 %v3919, 7
      %v3921 = vsub.s32 %v3918, %v3920
      %v3922 = vrot.slane %v3908, %v3921
      %v3923 = vcombine.low %v3714, %v3722
      %v3924 = vcombine.high %v3714, %v3722
      %v3926 = vunpack.c.l.s4 1983009808
      %v3927 = vunpack.c.0.s8 %v3926
      %v3928 = vlaneseq
      %v3929 = vshrl.u32 %v3928, 7
      %v3930 = vsub.s32 %v3927, %v3929
      %v3931 = vrot.slane %v3923, %v3930
      %v3933 = vunpack.c.l.s4 1983009808
      %v3934 = vunpack.c.0.s8 %v3933
      %v3935 = vlaneseq
      %v3936 = vshrl.u32 %v3935, 7
      %v3937 = vsub.s32 %v3934, %v3936
      %v3938 = vrot.slane %v3924, %v3937
      %v3939 = vcombine.low %v3883, %v3899
      %v3940 = vcombine.high %v3883, %v3899
      %v3942 = vunpack.c.l.s4 1934713408
      %v3943 = vunpack.c.0.s8 %v3942
      %v3944 = vlaneseq
      %v3945 = vshrl.u32 %v3944, 7
      %v3946 = vsub.s32 %v3943, %v3945
      %v3947 = vrot.slane %v3939, %v3946
      %v3949 = vunpack.c.l.s4 1934713408
      %v3950 = vunpack.c.0.s8 %v3949
      %v3951 = vlaneseq
      %v3952 = vshrl.u32 %v3951, 7
      %v3953 = vsub.s32 %v3950, %v3952
      %v3954 = vrot.slane %v3940, %v3953
      %v3955 = vcombine.low %v3890, %v3906
      %v3956 = vcombine.high %v3890, %v3906
      %v3958 = vunpack.c.l.s4 1934713408
      %v3959 = vunpack.c.0.s8 %v3958
      %v3960 = vlaneseq
      %v3961 = vshrl.u32 %v3960, 7
      %v3962 = vsub.s32 %v3959, %v3961
      %v3963 = vrot.slane %v3955, %v3962
      %v3965 = vunpack.c.l.s4 1934713408
      %v3966 = vunpack.c.0.s8 %v3965
      %v3967 = vlaneseq
      %v3968 = vshrl.u32 %v3967, 7
      %v3969 = vsub.s32 %v3966, %v3968
      %v3970 = vrot.slane %v3956, %v3969
      %v3971 = vcombine.low %v3915, %v3931
      %v3972 = vcombine.high %v3915, %v3931
      %v3974 = vunpack.c.l.s4 1934713408
      %v3975 = vunpack.c.0.s8 %v3974
      %v3976 = vlaneseq
      %v3977 = vshrl.u32 %v3976, 7
      %v3978 = vsub.s32 %v3975, %v3977
      %v3979 = vrot.slane %v3971, %v3978
      %v3981 = vunpack.c.l.s4 1934713408
      %v3982 = vunpack.c.0.s8 %v3981
      %v3983 = vlaneseq
      %v3984 = vshrl.u32 %v3983, 7
      %v3985 = vsub.s32 %v3982, %v3984
      %v3986 = vrot.slane %v3972, %v3985
      %v3987 = vcombine.low %v3922, %v3938
      %v3988 = vcombine.high %v3922, %v3938
      %v3990 = vunpack.c.l.s4 1934713408
      %v3991 = vunpack.c.0.s8 %v3990
      %v3992 = vlaneseq
      %v3993 = vshrl.u32 %v3992, 7
      %v3994 = vsub.s32 %v3991, %v3993
      %v3995 = vrot.slane %v3987, %v3994
      %v3997 = vunpack.c.l.s4 1934713408
      %v3998 = vunpack.c.0.s8 %v3997
      %v3999 = vlaneseq
      %v4000 = vshrl.u32 %v3999, 7
      %v4001 = vsub.s32 %v3998, %v4000
      %v4002 = vrot.slane %v3988, %v4001
      %v4003 = vcombine.low %v3947, %v3979
      %v4004 = vcombine.high %v3947, %v3979
      %v4005 = vcombine.low %v3954, %v3986
      %v4006 = vcombine.high %v3954, %v3986
      %v4007 = vcombine.low %v3963, %v3995
      %v4008 = vcombine.high %v3963, %v3995
      %v4009 = vcombine.low %v3970, %v4002
      %v4010 = vcombine.high %v3970, %v4002
      %4012 = vrot.lane.b32.xlu0 %v3868, 16
      %v4013 = vpop.permute.xlu0 %4012
      %4016 = vrot.lane.b32.xlu0 %v3869, 32
      %v4017 = vpop.permute.xlu0 %4016
      %4020 = vrot.lane.b32.xlu0 %v3870, 48
      %v4021 = vpop.permute.xlu0 %4020
      %4024 = vrot.lane.b32.xlu0 %v3871, 64
      %v4025 = vpop.permute.xlu0 %4024
      %4028 = vrot.lane.b32.xlu0 %v3872, 80
      %v4029 = vpop.permute.xlu0 %4028
      %4032 = vrot.lane.b32.xlu0 %v3873, 96
      %v4033 = vpop.permute.xlu0 %4032
      %4036 = vrot.lane.b32.xlu0 %v3874, 112
      %v4037 = vpop.permute.xlu0 %4036
      %4040 = vrot.lane.b32.xlu0 %v4004, 16
      %v4041 = vpop.permute.xlu0 %4040
      %4044 = vrot.lane.b32.xlu0 %v4005, 32
      %v4045 = vpop.permute.xlu0 %4044
      %4048 = vrot.lane.b32.xlu0 %v4006, 48
      %v4049 = vpop.permute.xlu0 %4048
      %4052 = vrot.lane.b32.xlu0 %v4007, 64
      %v4053 = vpop.permute.xlu0 %4052
      %4056 = vrot.lane.b32.xlu0 %v4008, 80
      %v4057 = vpop.permute.xlu0 %4056
      %4060 = vrot.lane.b32.xlu0 %v4009, 96
      %v4061 = vpop.permute.xlu0 %4060
      %4064 = vrot.lane.b32.xlu0 %v4010, 112
      %v4065 = vpop.permute.xlu0 %4064
      %v4067 = vsel %vm1296, %v3867, %v4013
      %v4068 = vsel %vm1298, %v4067, %v4017
      %v4069 = vsel %vm1300, %v4068, %v4021
      %v4070 = vsel %vm1302, %v4069, %v4025
      %v4071 = vsel %vm1304, %v4070, %v4029
      %v4072 = vsel %vm1306, %v4071, %v4033
      %v4073 = vsel %vm1308, %v4072, %v4037
      %v4074 = vsel %vm1296, %v4003, %v4041
      %v4075 = vsel %vm1298, %v4074, %v4045
      %v4076 = vsel %vm1300, %v4075, %v4049
      %v4077 = vsel %vm1302, %v4076, %v4053
      %v4078 = vsel %vm1304, %v4077, %v4057
      %v4079 = vsel %vm1306, %v4078, %v4061
      %v4080 = vsel %vm1308, %v4079, %v4065
      %4081 = vrot.lane.b32.xlu0 %v3295, 126
      %v4082 = vpop.permute.xlu0 %4081
      %4083 = vrot.lane.b32.xlu0 %v3297, 126
      %v4084 = vpop.permute.xlu0 %4083
      %4085 = vrot.lane.b32.xlu0 %v3300, 126
      %v4086 = vpop.permute.xlu0 %4085
      %4087 = vrot.lane.b32.xlu0 %v3302, 126
      %v4088 = vpop.permute.xlu0 %4087
      %4089 = vrot.lane.b32.xlu0 %v3305, 126
      %v4090 = vpop.permute.xlu0 %4089
      %4091 = vrot.lane.b32.xlu0 %v3307, 126
      %v4092 = vpop.permute.xlu0 %4091
      %4093 = vrot.lane.b32.xlu0 %v3310, 126
      %v4094 = vpop.permute.xlu0 %4093
      %4095 = vrot.lane.b32.xlu0 %v3312, 126
      %v4096 = vpop.permute.xlu0 %4095
      %4097 = vrot.lane.b32.xlu0 %v3315, 126
      %v4098 = vpop.permute.xlu0 %4097
      %4099 = vrot.lane.b32.xlu0 %v3317, 126
      %v4100 = vpop.permute.xlu0 %4099
      %4101 = vrot.lane.b32.xlu0 %v3320, 126
      %v4102 = vpop.permute.xlu0 %4101
      %4103 = vrot.lane.b32.xlu0 %v3322, 126
      %v4104 = vpop.permute.xlu0 %4103
      %4105 = vrot.lane.b32.xlu0 %v3325, 126
      %v4106 = vpop.permute.xlu0 %4105
      %4107 = vrot.lane.b32.xlu0 %v3327, 126
      %v4108 = vpop.permute.xlu0 %4107
      %4109 = vrot.lane.b32.xlu0 %v3330, 126
      %v4110 = vpop.permute.xlu0 %4109
      %4111 = vrot.lane.b32.xlu0 %v3332, 126
      %v4112 = vpop.permute.xlu0 %4111
      %v4129 = vcombine.low %v4082, %v4090
      %v4130 = vcombine.high %v4082, %v4090
      %v4132 = vunpack.c.l.s4 1983009808
      %v4133 = vunpack.c.0.s8 %v4132
      %v4134 = vlaneseq
      %v4135 = vshrl.u32 %v4134, 7
      %v4136 = vsub.s32 %v4133, %v4135
      %v4137 = vrot.slane %v4129, %v4136
      %v4139 = vunpack.c.l.s4 1983009808
      %v4140 = vunpack.c.0.s8 %v4139
      %v4141 = vlaneseq
      %v4142 = vshrl.u32 %v4141, 7
      %v4143 = vsub.s32 %v4140, %v4142
      %v4144 = vrot.slane %v4130, %v4143
      %v4145 = vcombine.low %v4086, %v4094
      %v4146 = vcombine.high %v4086, %v4094
      %v4148 = vunpack.c.l.s4 1983009808
      %v4149 = vunpack.c.0.s8 %v4148
      %v4150 = vlaneseq
      %v4151 = vshrl.u32 %v4150, 7
      %v4152 = vsub.s32 %v4149, %v4151
      %v4153 = vrot.slane %v4145, %v4152
      %v4155 = vunpack.c.l.s4 1983009808
      %v4156 = vunpack.c.0.s8 %v4155
      %v4157 = vlaneseq
      %v4158 = vshrl.u32 %v4157, 7
      %v4159 = vsub.s32 %v4156, %v4158
      %v4160 = vrot.slane %v4146, %v4159
      %v4161 = vcombine.low %v4098, %v4106
      %v4162 = vcombine.high %v4098, %v4106
      %v4164 = vunpack.c.l.s4 1983009808
      %v4165 = vunpack.c.0.s8 %v4164
      %v4166 = vlaneseq
      %v4167 = vshrl.u32 %v4166, 7
      %v4168 = vsub.s32 %v4165, %v4167
      %v4169 = vrot.slane %v4161, %v4168
      %v4171 = vunpack.c.l.s4 1983009808
      %v4172 = vunpack.c.0.s8 %v4171
      %v4173 = vlaneseq
      %v4174 = vshrl.u32 %v4173, 7
      %v4175 = vsub.s32 %v4172, %v4174
      %v4176 = vrot.slane %v4162, %v4175
      %v4177 = vcombine.low %v4102, %v4110
      %v4178 = vcombine.high %v4102, %v4110
      %v4180 = vunpack.c.l.s4 1983009808
      %v4181 = vunpack.c.0.s8 %v4180
      %v4182 = vlaneseq
      %v4183 = vshrl.u32 %v4182, 7
      %v4184 = vsub.s32 %v4181, %v4183
      %v4185 = vrot.slane %v4177, %v4184
      %v4187 = vunpack.c.l.s4 1983009808
      %v4188 = vunpack.c.0.s8 %v4187
      %v4189 = vlaneseq
      %v4190 = vshrl.u32 %v4189, 7
      %v4191 = vsub.s32 %v4188, %v4190
      %v4192 = vrot.slane %v4178, %v4191
      %v4193 = vcombine.low %v4137, %v4153
      %v4194 = vcombine.high %v4137, %v4153
      %v4196 = vunpack.c.l.s4 1934713408
      %v4197 = vunpack.c.0.s8 %v4196
      %v4198 = vlaneseq
      %v4199 = vshrl.u32 %v4198, 7
      %v4200 = vsub.s32 %v4197, %v4199
      %v4201 = vrot.slane %v4193, %v4200
      %v4203 = vunpack.c.l.s4 1934713408
      %v4204 = vunpack.c.0.s8 %v4203
      %v4205 = vlaneseq
      %v4206 = vshrl.u32 %v4205, 7
      %v4207 = vsub.s32 %v4204, %v4206
      %v4208 = vrot.slane %v4194, %v4207
      %v4209 = vcombine.low %v4144, %v4160
      %v4210 = vcombine.high %v4144, %v4160
      %v4212 = vunpack.c.l.s4 1934713408
      %v4213 = vunpack.c.0.s8 %v4212
      %v4214 = vlaneseq
      %v4215 = vshrl.u32 %v4214, 7
      %v4216 = vsub.s32 %v4213, %v4215
      %v4217 = vrot.slane %v4209, %v4216
      %v4219 = vunpack.c.l.s4 1934713408
      %v4220 = vunpack.c.0.s8 %v4219
      %v4221 = vlaneseq
      %v4222 = vshrl.u32 %v4221, 7
      %v4223 = vsub.s32 %v4220, %v4222
      %v4224 = vrot.slane %v4210, %v4223
      %v4225 = vcombine.low %v4169, %v4185
      %v4226 = vcombine.high %v4169, %v4185
      %v4228 = vunpack.c.l.s4 1934713408
      %v4229 = vunpack.c.0.s8 %v4228
      %v4230 = vlaneseq
      %v4231 = vshrl.u32 %v4230, 7
      %v4232 = vsub.s32 %v4229, %v4231
      %v4233 = vrot.slane %v4225, %v4232
      %v4235 = vunpack.c.l.s4 1934713408
      %v4236 = vunpack.c.0.s8 %v4235
      %v4237 = vlaneseq
      %v4238 = vshrl.u32 %v4237, 7
      %v4239 = vsub.s32 %v4236, %v4238
      %v4240 = vrot.slane %v4226, %v4239
      %v4241 = vcombine.low %v4176, %v4192
      %v4242 = vcombine.high %v4176, %v4192
      %v4244 = vunpack.c.l.s4 1934713408
      %v4245 = vunpack.c.0.s8 %v4244
      %v4246 = vlaneseq
      %v4247 = vshrl.u32 %v4246, 7
      %v4248 = vsub.s32 %v4245, %v4247
      %v4249 = vrot.slane %v4241, %v4248
      %v4251 = vunpack.c.l.s4 1934713408
      %v4252 = vunpack.c.0.s8 %v4251
      %v4253 = vlaneseq
      %v4254 = vshrl.u32 %v4253, 7
      %v4255 = vsub.s32 %v4252, %v4254
      %v4256 = vrot.slane %v4242, %v4255
      %v4257 = vcombine.low %v4201, %v4233
      %v4258 = vcombine.high %v4201, %v4233
      %v4259 = vcombine.low %v4208, %v4240
      %v4260 = vcombine.high %v4208, %v4240
      %v4261 = vcombine.low %v4217, %v4249
      %v4262 = vcombine.high %v4217, %v4249
      %v4263 = vcombine.low %v4224, %v4256
      %v4264 = vcombine.high %v4224, %v4256
      %v4265 = vcombine.low %v4084, %v4092
      %v4266 = vcombine.high %v4084, %v4092
      %v4268 = vunpack.c.l.s4 1983009808
      %v4269 = vunpack.c.0.s8 %v4268
      %v4270 = vlaneseq
      %v4271 = vshrl.u32 %v4270, 7
      %v4272 = vsub.s32 %v4269, %v4271
      %v4273 = vrot.slane %v4265, %v4272
      %v4275 = vunpack.c.l.s4 1983009808
      %v4276 = vunpack.c.0.s8 %v4275
      %v4277 = vlaneseq
      %v4278 = vshrl.u32 %v4277, 7
      %v4279 = vsub.s32 %v4276, %v4278
      %v4280 = vrot.slane %v4266, %v4279
      %v4281 = vcombine.low %v4088, %v4096
      %v4282 = vcombine.high %v4088, %v4096
      %v4284 = vunpack.c.l.s4 1983009808
      %v4285 = vunpack.c.0.s8 %v4284
      %v4286 = vlaneseq
      %v4287 = vshrl.u32 %v4286, 7
      %v4288 = vsub.s32 %v4285, %v4287
      %v4289 = vrot.slane %v4281, %v4288
      %v4291 = vunpack.c.l.s4 1983009808
      %v4292 = vunpack.c.0.s8 %v4291
      %v4293 = vlaneseq
      %v4294 = vshrl.u32 %v4293, 7
      %v4295 = vsub.s32 %v4292, %v4294
      %v4296 = vrot.slane %v4282, %v4295
      %v4297 = vcombine.low %v4100, %v4108
      %v4298 = vcombine.high %v4100, %v4108
      %v4300 = vunpack.c.l.s4 1983009808
      %v4301 = vunpack.c.0.s8 %v4300
      %v4302 = vlaneseq
      %v4303 = vshrl.u32 %v4302, 7
      %v4304 = vsub.s32 %v4301, %v4303
      %v4305 = vrot.slane %v4297, %v4304
      %v4307 = vunpack.c.l.s4 1983009808
      %v4308 = vunpack.c.0.s8 %v4307
      %v4309 = vlaneseq
      %v4310 = vshrl.u32 %v4309, 7
      %v4311 = vsub.s32 %v4308, %v4310
      %v4312 = vrot.slane %v4298, %v4311
      %v4313 = vcombine.low %v4104, %v4112
      %v4314 = vcombine.high %v4104, %v4112
      %v4316 = vunpack.c.l.s4 1983009808
      %v4317 = vunpack.c.0.s8 %v4316
      %v4318 = vlaneseq
      %v4319 = vshrl.u32 %v4318, 7
      %v4320 = vsub.s32 %v4317, %v4319
      %v4321 = vrot.slane %v4313, %v4320
      %v4323 = vunpack.c.l.s4 1983009808
      %v4324 = vunpack.c.0.s8 %v4323
      %v4325 = vlaneseq
      %v4326 = vshrl.u32 %v4325, 7
      %v4327 = vsub.s32 %v4324, %v4326
      %v4328 = vrot.slane %v4314, %v4327
      %v4329 = vcombine.low %v4273, %v4289
      %v4330 = vcombine.high %v4273, %v4289
      %v4332 = vunpack.c.l.s4 1934713408
      %v4333 = vunpack.c.0.s8 %v4332
      %v4334 = vlaneseq
      %v4335 = vshrl.u32 %v4334, 7
      %v4336 = vsub.s32 %v4333, %v4335
      %v4337 = vrot.slane %v4329, %v4336
      %v4339 = vunpack.c.l.s4 1934713408
      %v4340 = vunpack.c.0.s8 %v4339
      %v4341 = vlaneseq
      %v4342 = vshrl.u32 %v4341, 7
      %v4343 = vsub.s32 %v4340, %v4342
      %v4344 = vrot.slane %v4330, %v4343
      %v4345 = vcombine.low %v4280, %v4296
      %v4346 = vcombine.high %v4280, %v4296
      %v4348 = vunpack.c.l.s4 1934713408
      %v4349 = vunpack.c.0.s8 %v4348
      %v4350 = vlaneseq
      %v4351 = vshrl.u32 %v4350, 7
      %v4352 = vsub.s32 %v4349, %v4351
      %v4353 = vrot.slane %v4345, %v4352
      %v4355 = vunpack.c.l.s4 1934713408
      %v4356 = vunpack.c.0.s8 %v4355
      %v4357 = vlaneseq
      %v4358 = vshrl.u32 %v4357, 7
      %v4359 = vsub.s32 %v4356, %v4358
      %v4360 = vrot.slane %v4346, %v4359
      %v4361 = vcombine.low %v4305, %v4321
      %v4362 = vcombine.high %v4305, %v4321
      %v4364 = vunpack.c.l.s4 1934713408
      %v4365 = vunpack.c.0.s8 %v4364
      %v4366 = vlaneseq
      %v4367 = vshrl.u32 %v4366, 7
      %v4368 = vsub.s32 %v4365, %v4367
      %v4369 = vrot.slane %v4361, %v4368
      %v4371 = vunpack.c.l.s4 1934713408
      %v4372 = vunpack.c.0.s8 %v4371
      %v4373 = vlaneseq
      %v4374 = vshrl.u32 %v4373, 7
      %v4375 = vsub.s32 %v4372, %v4374
      %v4376 = vrot.slane %v4362, %v4375
      %v4377 = vcombine.low %v4312, %v4328
      %v4378 = vcombine.high %v4312, %v4328
      %v4380 = vunpack.c.l.s4 1934713408
      %v4381 = vunpack.c.0.s8 %v4380
      %v4382 = vlaneseq
      %v4383 = vshrl.u32 %v4382, 7
      %v4384 = vsub.s32 %v4381, %v4383
      %v4385 = vrot.slane %v4377, %v4384
      %v4387 = vunpack.c.l.s4 1934713408
      %v4388 = vunpack.c.0.s8 %v4387
      %v4389 = vlaneseq
      %v4390 = vshrl.u32 %v4389, 7
      %v4391 = vsub.s32 %v4388, %v4390
      %v4392 = vrot.slane %v4378, %v4391
      %v4393 = vcombine.low %v4337, %v4369
      %v4394 = vcombine.high %v4337, %v4369
      %v4395 = vcombine.low %v4344, %v4376
      %v4396 = vcombine.high %v4344, %v4376
      %v4397 = vcombine.low %v4353, %v4385
      %v4398 = vcombine.high %v4353, %v4385
      %v4399 = vcombine.low %v4360, %v4392
      %v4400 = vcombine.high %v4360, %v4392
      %4402 = vrot.lane.b32.xlu0 %v4258, 16
      %v4403 = vpop.permute.xlu0 %4402
      %4406 = vrot.lane.b32.xlu0 %v4259, 32
      %v4407 = vpop.permute.xlu0 %4406
      %4410 = vrot.lane.b32.xlu0 %v4260, 48
      %v4411 = vpop.permute.xlu0 %4410
      %4414 = vrot.lane.b32.xlu0 %v4261, 64
      %v4415 = vpop.permute.xlu0 %4414
      %4418 = vrot.lane.b32.xlu0 %v4262, 80
      %v4419 = vpop.permute.xlu0 %4418
      %4422 = vrot.lane.b32.xlu0 %v4263, 96
      %v4423 = vpop.permute.xlu0 %4422
      %4426 = vrot.lane.b32.xlu0 %v4264, 112
      %v4427 = vpop.permute.xlu0 %4426
      %4430 = vrot.lane.b32.xlu0 %v4394, 16
      %v4431 = vpop.permute.xlu0 %4430
      %4434 = vrot.lane.b32.xlu0 %v4395, 32
      %v4435 = vpop.permute.xlu0 %4434
      %4438 = vrot.lane.b32.xlu0 %v4396, 48
      %v4439 = vpop.permute.xlu0 %4438
      %4442 = vrot.lane.b32.xlu0 %v4397, 64
      %v4443 = vpop.permute.xlu0 %4442
      %4446 = vrot.lane.b32.xlu0 %v4398, 80
      %v4447 = vpop.permute.xlu0 %4446
      %4450 = vrot.lane.b32.xlu0 %v4399, 96
      %v4451 = vpop.permute.xlu0 %4450
      %4454 = vrot.lane.b32.xlu0 %v4400, 112
      %v4455 = vpop.permute.xlu0 %4454
      %v4457 = vsel %vm1296, %v4257, %v4403
      %v4458 = vsel %vm1298, %v4457, %v4407
      %v4459 = vsel %vm1300, %v4458, %v4411
      %v4460 = vsel %vm1302, %v4459, %v4415
      %v4461 = vsel %vm1304, %v4460, %v4419
      %v4462 = vsel %vm1306, %v4461, %v4423
      %v4463 = vsel %vm1308, %v4462, %v4427
      %v4464 = vsel %vm1296, %v4393, %v4431
      %v4465 = vsel %vm1298, %v4464, %v4435
      %v4466 = vsel %vm1300, %v4465, %v4439
      %v4467 = vsel %vm1302, %v4466, %v4443
      %v4468 = vsel %vm1304, %v4467, %v4447
      %v4469 = vsel %vm1306, %v4468, %v4451
      %v4470 = vsel %vm1308, %v4469, %v4455
      %v4471 = vld [vmem:[%s1] sm:$0xff]
      %v4472 = vld [vmem:[%s1 + $0x8] sm:$0xff]
      %vm4473 = vcmask 588800
      %v4475 = vsel %vm4473, %v4471, 0
      %v4478 = vsel %vm4473, %v4472, 0
      %4480 = vmatprep.subr.mxu0 %v1316
      %4481 = vmatpush1.msra.mxu0 %v1309
      %4482 = vmatprep.subr.mxu0 %v1714
      %4483 = vmatpush1.msra.mxu0 %v1707
      %4484 = vmatprep.subr.mxu0 %v2104
      %4485 = vmatpush1.msra.mxu0 %v2097
      %4486 = vmatprep.subr.mxu0 %v2511
      %4487 = vmatpush1.msra.mxu0 %v2504
      %4488 = vmatprep.subr.mxu0 %v2901
      %4489 = vmatpush1.msra.mxu0 %v2894
      %4490 = vmatprep.subr.mxu0 %v3291
      %4491 = vmatpush1.msra.mxu0 %v3284
      %4492 = vmatprep.subr.mxu0 %v3690
      %4493 = vmatpush1.msra.mxu0 %v3683
      %4494 = vmatprep.subr.mxu0 %v4080
      %4495 = vmatpush1.msra.mxu0 %v4073
      %4496 = vmatprep.subr.mxu0 %v4470
      %4497 = vmatpush1.msra.mxu0 %v4463
      %4498 = vmatprep.subr.mxu0 0.0
      %4499 = vmatpush1.msra.mxu0 0.0
      %4500 = vmatprep.subr.mxu0 0.0
      %4501 = vmatpush1.msra.mxu0 0.0
      %4502 = vmatprep.subr.mxu0 0.0
      %4503 = vmatpush1.msra.mxu0 0.0
      %4504 = vmatprep.subr.mxu0 0.0
      %4505 = vmatpush1.msra.mxu0 0.0
      %4506 = vmatprep.subr.mxu0 0.0
      %4507 = vmatpush1.msra.mxu0 0.0
      %4508 = vmatprep.subr.mxu0 0.0
      %4509 = vmatpush1.msra.mxu0 0.0
      %4510 = vmatprep.subr.mxu0 0.0
      %4511 = vmatpush1.msra.mxu0 0.0
      %4512 = vmatprep.subr.mxu0 0.0
      %4513 = vmatpush1.msra.mxu0 0.0
      %4514 = vmatprep.subr.mxu0 0.0
      %4515 = vmatpush1.msra.mxu0 0.0
      %4516 = vmatprep.subr.mxu0 0.0
      %4517 = vmatpush1.msra.mxu0 0.0
      %4518 = vmatprep.subr.mxu0 0.0
      %4519 = vmatpush1.msra.mxu0 0.0
      %4520 = vmatprep.subr.mxu0 0.0
      %4521 = vmatpush1.msra.mxu0 0.0
      %4522 = vmatprep.subr.mxu0 0.0
      %4523 = vmatpush1.msra.mxu0 0.0
      %4524 = vmatprep.subr.mxu0 0.0
      %4525 = vmatpush1.msra.mxu0 0.0
      %4526 = vmatprep.subr.mxu0 0.0
      %4527 = vmatpush1.msra.mxu0 0.0
      %4528 = vmatprep.subr.mxu0 0.0
      %4529 = vmatpush1.msra.mxu0 0.0
      %4530 = vmatprep.subr.mxu0 0.0
      %4531 = vmatpush1.msra.mxu0 0.0
      %4532 = vmatprep.subr.mxu0 0.0
      %4533 = vmatpush1.msra.mxu0 0.0
      %4534 = vmatprep.subr.mxu0 0.0
      %4535 = vmatpush1.msra.mxu0 0.0
      %4536 = vmatprep.subr.mxu0 0.0
      %4537 = vmatpush1.msra.mxu0 0.0
      %4538 = vmatprep.subr.mxu0 0.0
      %4539 = vmatpush1.msra.mxu0 0.0
      %4540 = vmatprep.subr.mxu0 0.0
      %4541 = vmatpush1.msra.mxu0 0.0
      %4542 = vmatprep.subr.mxu0 0.0
      %4543 = vmatpush1.msra.mxu0 0.0
      %4544 = vmatprep.mubr.f32.mxu0 0.0
      %4545 = vmatmul.mubr.f32.gmra.mrb[0].mxu0 %v4475
      %v4546 = vpop.f32.mrb[0].mxu0
      %v4547 = vadd.f32 0.0, %v4546
      %v4548 = vpop.f32.mrb[0].mxu0
      %v4549 = vadd.f32 0.0, %v4548
      %4550 = vmatprep.mubr.f32.mxu0 0.0
      %4551 = vmatmul.mubr.f32.gmra.mrb[0].mxu0 %v4478
      %v4552 = vpop.f32.mrb[0].mxu0
      %v4553 = vadd.f32 0.0, %v4552
      %v4554 = vpop.f32.mrb[0].mxu0
      %v4555 = vadd.f32 0.0, %v4554
      %4556 = vdwg.mxu0
      %v4557 = vld [vmem:[%s2] sm:$0xff]
      %v4558 = vld [vmem:[%s2 + $0x8] sm:$0xff]
      %4560 = vset.pattern.permute.xlu0 0
      %4561 = vperm.xlu0 %4560, %v4557
      %v4562 = vpop.permute.xlu0 %4561
      %4565 = vset.pattern.permute.xlu0 0
      %4566 = vperm.xlu0 %4565, %v4558
      %v4567 = vpop.permute.xlu0 %4566
      %v4569 = vmul.f32 %v4547, %v4562
      %v4570 = vmul.f32 %v4549, %v4562
      %v4571 = vmul.f32 %v4553, %v4567
      %v4572 = vmul.f32 %v4555, %v4567
      %v4573 = vld [vmem:[%s3] sm:$0xff]
      %v4574 = vld [vmem:[%s3 + $0x8] sm:$0xff]
      %4576 = vset.pattern.permute.xlu0 0
      %4577 = vperm.xlu0 %4576, %v4573
      %v4578 = vpop.permute.xlu0 %4577
      %4581 = vset.pattern.permute.xlu0 0
      %4582 = vperm.xlu0 %4581, %v4574
      %v4583 = vpop.permute.xlu0 %4582
      %v4585 = vadd.f32 %v4569, %v4578
      %v4586 = vadd.f32 %v4570, %v4578
      %v4587 = vadd.f32 %v4571, %v4583
      %v4588 = vadd.f32 %v4572, %v4583
      %vm4589 = vcmp.gt.f32.partialorder %v4585, 0.0
      %vm4590 = vcmp.gt.f32.partialorder %v4586, 0.0
      %vm4591 = vcmp.gt.f32.partialorder %v4587, 0.0
      %vm4592 = vcmp.gt.f32.partialorder %v4588, 0.0
      %v4593 = vmul.f32 %v4585, 0.2
      %v4594 = vmul.f32 %v4586, 0.2
      %v4595 = vmul.f32 %v4587, 0.2
      %v4596 = vmul.f32 %v4588, 0.2
      %v4597 = vsel %vm4589, %v4585, %v4593
      %v4598 = vsel %vm4590, %v4586, %v4594
      %v4599 = vsel %vm4591, %v4587, %v4595
      %v4600 = vsel %vm4592, %v4588, %v4596
      %4602 = vrot.lane.b32.xlu0 %v4599, 112
      %v4603 = vpop.permute.xlu0 %4602
      %4605 = vrot.lane.b32.xlu0 %v4599, 96
      %v4606 = vpop.permute.xlu0 %4605
      %4608 = vrot.lane.b32.xlu0 %v4599, 80
      %v4609 = vpop.permute.xlu0 %4608
      %4611 = vrot.lane.b32.xlu0 %v4599, 64
      %v4612 = vpop.permute.xlu0 %4611
      %4614 = vrot.lane.b32.xlu0 %v4599, 48
      %v4615 = vpop.permute.xlu0 %4614
      %4617 = vrot.lane.b32.xlu0 %v4599, 32
      %v4618 = vpop.permute.xlu0 %4617
      %4620 = vrot.lane.b32.xlu0 %v4599, 16
      %v4621 = vpop.permute.xlu0 %4620
      %4624 = vrot.lane.b32.xlu0 %v4600, 112
      %v4625 = vpop.permute.xlu0 %4624
      %4627 = vrot.lane.b32.xlu0 %v4600, 96
      %v4628 = vpop.permute.xlu0 %4627
      %4630 = vrot.lane.b32.xlu0 %v4600, 80
      %v4631 = vpop.permute.xlu0 %4630
      %4633 = vrot.lane.b32.xlu0 %v4600, 64
      %v4634 = vpop.permute.xlu0 %4633
      %4636 = vrot.lane.b32.xlu0 %v4600, 48
      %v4637 = vpop.permute.xlu0 %4636
      %4639 = vrot.lane.b32.xlu0 %v4600, 32
      %v4640 = vpop.permute.xlu0 %4639
      %4642 = vrot.lane.b32.xlu0 %v4600, 16
      %v4643 = vpop.permute.xlu0 %4642
      %v4645 = vcombine.low %v4599, %v4606
      %v4646 = vcombine.high %v4599, %v4606
      %v4648 = vunpack.c.l.s4 1983009808
      %v4649 = vunpack.c.0.s8 %v4648
      %v4650 = vlaneseq
      %v4651 = vshrl.u32 %v4650, 7
      %v4652 = vsub.s32 %v4649, %v4651
      %v4653 = vrot.slane %v4645, %v4652
      %v4655 = vunpack.c.l.s4 1983009808
      %v4656 = vunpack.c.0.s8 %v4655
      %v4657 = vlaneseq
      %v4658 = vshrl.u32 %v4657, 7
      %v4659 = vsub.s32 %v4656, %v4658
      %v4660 = vrot.slane %v4646, %v4659
      %v4661 = vcombine.low %v4603, %v4609
      %v4662 = vcombine.high %v4603, %v4609
      %v4664 = vunpack.c.l.s4 1983009808
      %v4665 = vunpack.c.0.s8 %v4664
      %v4666 = vlaneseq
      %v4667 = vshrl.u32 %v4666, 7
      %v4668 = vsub.s32 %v4665, %v4667
      %v4669 = vrot.slane %v4661, %v4668
      %v4671 = vunpack.c.l.s4 1983009808
      %v4672 = vunpack.c.0.s8 %v4671
      %v4673 = vlaneseq
      %v4674 = vshrl.u32 %v4673, 7
      %v4675 = vsub.s32 %v4672, %v4674
      %v4676 = vrot.slane %v4662, %v4675
      %v4677 = vcombine.low %v4612, %v4618
      %v4678 = vcombine.high %v4612, %v4618
      %v4680 = vunpack.c.l.s4 1983009808
      %v4681 = vunpack.c.0.s8 %v4680
      %v4682 = vlaneseq
      %v4683 = vshrl.u32 %v4682, 7
      %v4684 = vsub.s32 %v4681, %v4683
      %v4685 = vrot.slane %v4677, %v4684
      %v4687 = vunpack.c.l.s4 1983009808
      %v4688 = vunpack.c.0.s8 %v4687
      %v4689 = vlaneseq
      %v4690 = vshrl.u32 %v4689, 7
      %v4691 = vsub.s32 %v4688, %v4690
      %v4692 = vrot.slane %v4678, %v4691
      %v4693 = vcombine.low %v4615, %v4621
      %v4694 = vcombine.high %v4615, %v4621
      %v4696 = vunpack.c.l.s4 1983009808
      %v4697 = vunpack.c.0.s8 %v4696
      %v4698 = vlaneseq
      %v4699 = vshrl.u32 %v4698, 7
      %v4700 = vsub.s32 %v4697, %v4699
      %v4701 = vrot.slane %v4693, %v4700
      %v4703 = vunpack.c.l.s4 1983009808
      %v4704 = vunpack.c.0.s8 %v4703
      %v4705 = vlaneseq
      %v4706 = vshrl.u32 %v4705, 7
      %v4707 = vsub.s32 %v4704, %v4706
      %v4708 = vrot.slane %v4694, %v4707
      %v4709 = vcombine.low %v4653, %v4669
      %v4710 = vcombine.high %v4653, %v4669
      %v4712 = vunpack.c.l.s4 1934713408
      %v4713 = vunpack.c.0.s8 %v4712
      %v4714 = vlaneseq
      %v4715 = vshrl.u32 %v4714, 7
      %v4716 = vsub.s32 %v4713, %v4715
      %v4717 = vrot.slane %v4709, %v4716
      %v4719 = vunpack.c.l.s4 1934713408
      %v4720 = vunpack.c.0.s8 %v4719
      %v4721 = vlaneseq
      %v4722 = vshrl.u32 %v4721, 7
      %v4723 = vsub.s32 %v4720, %v4722
      %v4724 = vrot.slane %v4710, %v4723
      %v4725 = vcombine.low %v4660, %v4676
      %v4726 = vcombine.high %v4660, %v4676
      %v4728 = vunpack.c.l.s4 1934713408
      %v4729 = vunpack.c.0.s8 %v4728
      %v4730 = vlaneseq
      %v4731 = vshrl.u32 %v4730, 7
      %v4732 = vsub.s32 %v4729, %v4731
      %v4733 = vrot.slane %v4725, %v4732
      %v4735 = vunpack.c.l.s4 1934713408
      %v4736 = vunpack.c.0.s8 %v4735
      %v4737 = vlaneseq
      %v4738 = vshrl.u32 %v4737, 7
      %v4739 = vsub.s32 %v4736, %v4738
      %v4740 = vrot.slane %v4726, %v4739
      %v4741 = vcombine.low %v4685, %v4701
      %v4742 = vcombine.high %v4685, %v4701
      %v4744 = vunpack.c.l.s4 1934713408
      %v4745 = vunpack.c.0.s8 %v4744
      %v4746 = vlaneseq
      %v4747 = vshrl.u32 %v4746, 7
      %v4748 = vsub.s32 %v4745, %v4747
      %v4749 = vrot.slane %v4741, %v4748
      %v4751 = vunpack.c.l.s4 1934713408
      %v4752 = vunpack.c.0.s8 %v4751
      %v4753 = vlaneseq
      %v4754 = vshrl.u32 %v4753, 7
      %v4755 = vsub.s32 %v4752, %v4754
      %v4756 = vrot.slane %v4742, %v4755
      %v4757 = vcombine.low %v4692, %v4708
      %v4758 = vcombine.high %v4692, %v4708
      %v4760 = vunpack.c.l.s4 1934713408
      %v4761 = vunpack.c.0.s8 %v4760
      %v4762 = vlaneseq
      %v4763 = vshrl.u32 %v4762, 7
      %v4764 = vsub.s32 %v4761, %v4763
      %v4765 = vrot.slane %v4757, %v4764
      %v4767 = vunpack.c.l.s4 1934713408
      %v4768 = vunpack.c.0.s8 %v4767
      %v4769 = vlaneseq
      %v4770 = vshrl.u32 %v4769, 7
      %v4771 = vsub.s32 %v4768, %v4770
      %v4772 = vrot.slane %v4758, %v4771
      %v4773 = vcombine.low %v4717, %v4749
      %v4774 = vcombine.high %v4717, %v4749
      %v4775 = vcombine.low %v4724, %v4756
      %v4776 = vcombine.high %v4724, %v4756
      %v4777 = vcombine.low %v4733, %v4765
      %v4778 = vcombine.high %v4733, %v4765
      %v4779 = vcombine.low %v4740, %v4772
      %v4780 = vcombine.high %v4740, %v4772
      %v4781 = vcombine.low %v4600, %v4628
      %v4782 = vcombine.high %v4600, %v4628
      %v4784 = vunpack.c.l.s4 1983009808
      %v4785 = vunpack.c.0.s8 %v4784
      %v4786 = vlaneseq
      %v4787 = vshrl.u32 %v4786, 7
      %v4788 = vsub.s32 %v4785, %v4787
      %v4789 = vrot.slane %v4781, %v4788
      %v4791 = vunpack.c.l.s4 1983009808
      %v4792 = vunpack.c.0.s8 %v4791
      %v4793 = vlaneseq
      %v4794 = vshrl.u32 %v4793, 7
      %v4795 = vsub.s32 %v4792, %v4794
      %v4796 = vrot.slane %v4782, %v4795
      %v4797 = vcombine.low %v4625, %v4631
      %v4798 = vcombine.high %v4625, %v4631
      %v4800 = vunpack.c.l.s4 1983009808
      %v4801 = vunpack.c.0.s8 %v4800
      %v4802 = vlaneseq
      %v4803 = vshrl.u32 %v4802, 7
      %v4804 = vsub.s32 %v4801, %v4803
      %v4805 = vrot.slane %v4797, %v4804
      %v4807 = vunpack.c.l.s4 1983009808
      %v4808 = vunpack.c.0.s8 %v4807
      %v4809 = vlaneseq
      %v4810 = vshrl.u32 %v4809, 7
      %v4811 = vsub.s32 %v4808, %v4810
      %v4812 = vrot.slane %v4798, %v4811
      %v4813 = vcombine.low %v4634, %v4640
      %v4814 = vcombine.high %v4634, %v4640
      %v4816 = vunpack.c.l.s4 1983009808
      %v4817 = vunpack.c.0.s8 %v4816
      %v4818 = vlaneseq
      %v4819 = vshrl.u32 %v4818, 7
      %v4820 = vsub.s32 %v4817, %v4819
      %v4821 = vrot.slane %v4813, %v4820
      %v4823 = vunpack.c.l.s4 1983009808
      %v4824 = vunpack.c.0.s8 %v4823
      %v4825 = vlaneseq
      %v4826 = vshrl.u32 %v4825, 7
      %v4827 = vsub.s32 %v4824, %v4826
      %v4828 = vrot.slane %v4814, %v4827
      %v4829 = vcombine.low %v4637, %v4643
      %v4830 = vcombine.high %v4637, %v4643
      %v4832 = vunpack.c.l.s4 1983009808
      %v4833 = vunpack.c.0.s8 %v4832
      %v4834 = vlaneseq
      %v4835 = vshrl.u32 %v4834, 7
      %v4836 = vsub.s32 %v4833, %v4835
      %v4837 = vrot.slane %v4829, %v4836
      %v4839 = vunpack.c.l.s4 1983009808
      %v4840 = vunpack.c.0.s8 %v4839
      %v4841 = vlaneseq
      %v4842 = vshrl.u32 %v4841, 7
      %v4843 = vsub.s32 %v4840, %v4842
      %v4844 = vrot.slane %v4830, %v4843
      %v4845 = vcombine.low %v4789, %v4805
      %v4846 = vcombine.high %v4789, %v4805
      %v4848 = vunpack.c.l.s4 1934713408
      %v4849 = vunpack.c.0.s8 %v4848
      %v4850 = vlaneseq
      %v4851 = vshrl.u32 %v4850, 7
      %v4852 = vsub.s32 %v4849, %v4851
      %v4853 = vrot.slane %v4845, %v4852
      %v4855 = vunpack.c.l.s4 1934713408
      %v4856 = vunpack.c.0.s8 %v4855
      %v4857 = vlaneseq
      %v4858 = vshrl.u32 %v4857, 7
      %v4859 = vsub.s32 %v4856, %v4858
      %v4860 = vrot.slane %v4846, %v4859
      %v4861 = vcombine.low %v4796, %v4812
      %v4862 = vcombine.high %v4796, %v4812
      %v4864 = vunpack.c.l.s4 1934713408
      %v4865 = vunpack.c.0.s8 %v4864
      %v4866 = vlaneseq
      %v4867 = vshrl.u32 %v4866, 7
      %v4868 = vsub.s32 %v4865, %v4867
      %v4869 = vrot.slane %v4861, %v4868
      %v4871 = vunpack.c.l.s4 1934713408
      %v4872 = vunpack.c.0.s8 %v4871
      %v4873 = vlaneseq
      %v4874 = vshrl.u32 %v4873, 7
      %v4875 = vsub.s32 %v4872, %v4874
      %v4876 = vrot.slane %v4862, %v4875
      %v4877 = vcombine.low %v4821, %v4837
      %v4878 = vcombine.high %v4821, %v4837
      %v4880 = vunpack.c.l.s4 1934713408
      %v4881 = vunpack.c.0.s8 %v4880
      %v4882 = vlaneseq
      %v4883 = vshrl.u32 %v4882, 7
      %v4884 = vsub.s32 %v4881, %v4883
      %v4885 = vrot.slane %v4877, %v4884
      %v4887 = vunpack.c.l.s4 1934713408
      %v4888 = vunpack.c.0.s8 %v4887
      %v4889 = vlaneseq
      %v4890 = vshrl.u32 %v4889, 7
      %v4891 = vsub.s32 %v4888, %v4890
      %v4892 = vrot.slane %v4878, %v4891
      %v4893 = vcombine.low %v4828, %v4844
      %v4894 = vcombine.high %v4828, %v4844
      %v4896 = vunpack.c.l.s4 1934713408
      %v4897 = vunpack.c.0.s8 %v4896
      %v4898 = vlaneseq
      %v4899 = vshrl.u32 %v4898, 7
      %v4900 = vsub.s32 %v4897, %v4899
      %v4901 = vrot.slane %v4893, %v4900
      %v4903 = vunpack.c.l.s4 1934713408
      %v4904 = vunpack.c.0.s8 %v4903
      %v4905 = vlaneseq
      %v4906 = vshrl.u32 %v4905, 7
      %v4907 = vsub.s32 %v4904, %v4906
      %v4908 = vrot.slane %v4894, %v4907
      %v4909 = vcombine.low %v4853, %v4885
      %v4910 = vcombine.high %v4853, %v4885
      %v4911 = vcombine.low %v4860, %v4892
      %v4912 = vcombine.high %v4860, %v4892
      %v4913 = vcombine.low %v4869, %v4901
      %v4914 = vcombine.high %v4869, %v4901
      %v4915 = vcombine.low %v4876, %v4908
      %v4916 = vcombine.high %v4876, %v4908
      %4933 = vrot.lane.b32.xlu0 %v4773, 1
      %v4934 = vpop.permute.xlu0 %4933
      %4935 = vrot.lane.b32.xlu0 %v4909, 1
      %v4936 = vpop.permute.xlu0 %4935
      %4937 = vrot.lane.b32.xlu0 %v4774, 1
      %v4938 = vpop.permute.xlu0 %4937
      %4939 = vrot.lane.b32.xlu0 %v4910, 1
      %v4940 = vpop.permute.xlu0 %4939
      %4941 = vrot.lane.b32.xlu0 %v4775, 1
      %v4942 = vpop.permute.xlu0 %4941
      %4943 = vrot.lane.b32.xlu0 %v4911, 1
      %v4944 = vpop.permute.xlu0 %4943
      %4945 = vrot.lane.b32.xlu0 %v4776, 1
      %v4946 = vpop.permute.xlu0 %4945
      %4947 = vrot.lane.b32.xlu0 %v4912, 1
      %v4948 = vpop.permute.xlu0 %4947
      %4949 = vrot.lane.b32.xlu0 %v4777, 1
      %v4950 = vpop.permute.xlu0 %4949
      %4951 = vrot.lane.b32.xlu0 %v4913, 1
      %v4952 = vpop.permute.xlu0 %4951
      %4953 = vrot.lane.b32.xlu0 %v4778, 1
      %v4954 = vpop.permute.xlu0 %4953
      %4955 = vrot.lane.b32.xlu0 %v4914, 1
      %v4956 = vpop.permute.xlu0 %4955
      %4957 = vrot.lane.b32.xlu0 %v4779, 1
      %v4958 = vpop.permute.xlu0 %4957
      %4959 = vrot.lane.b32.xlu0 %v4915, 1
      %v4960 = vpop.permute.xlu0 %4959
      %4961 = vrot.lane.b32.xlu0 %v4780, 1
      %v4962 = vpop.permute.xlu0 %4961
      %4963 = vrot.lane.b32.xlu0 %v4916, 1
      %v4964 = vpop.permute.xlu0 %4963
      %v4981 = vsel %vm853, 0.0, %v4934
      %v4982 = vsel %vm853, 0.0, %v4936
      %v4983 = vsel %vm853, 0.0, %v4938
      %v4984 = vsel %vm853, 0.0, %v4940
      %v4985 = vsel %vm853, 0.0, %v4942
      %v4986 = vsel %vm853, 0.0, %v4944
      %v4987 = vsel %vm853, 0.0, %v4946
      %v4988 = vsel %vm853, 0.0, %v4948
      %v4989 = vsel %vm853, 0.0, %v4950
      %v4990 = vsel %vm853, 0.0, %v4952
      %v4991 = vsel %vm853, 0.0, %v4954
      %v4992 = vsel %vm853, 0.0, %v4956
      %v4993 = vsel %vm853, 0.0, %v4958
      %v4994 = vsel %vm853, 0.0, %v4960
      %v4995 = vsel %vm853, 0.0, %v4962
      %v4996 = vsel %vm853, 0.0, %v4964
      %v4997 = vsel %vm870, %v4981, 0.0
      %v4998 = vsel %vm870, %v4982, 0.0
      %v4999 = vsel %vm870, %v4983, 0.0
      %v5000 = vsel %vm870, %v4984, 0.0
      %v5001 = vsel %vm870, %v4985, 0.0
      %v5002 = vsel %vm870, %v4986, 0.0
      %v5003 = vsel %vm870, %v4987, 0.0
      %v5004 = vsel %vm870, %v4988, 0.0
      %v5005 = vsel %vm870, %v4989, 0.0
      %v5006 = vsel %vm870, %v4990, 0.0
      %v5007 = vsel %vm870, %v4991, 0.0
      %v5008 = vsel %vm870, %v4992, 0.0
      %v5009 = vsel %vm870, %v4993, 0.0
      %v5010 = vsel %vm870, %v4994, 0.0
      %v5011 = vsel %vm870, %v4995, 0.0
      %v5012 = vsel %vm870, %v4996, 0.0
      %v5029 = vrot.slane %v4997, 7
      %v5030 = vrot.slane %v4998, 7
      %v5031 = vsel %vm903, %v5029, %v5030
      %v5032 = vrot.slane %v4999, 7
      %v5033 = vrot.slane %v5000, 7
      %v5034 = vsel %vm903, %v5032, %v5033
      %v5035 = vrot.slane %v5001, 7
      %v5036 = vrot.slane %v5002, 7
      %v5037 = vsel %vm903, %v5035, %v5036
      %v5038 = vrot.slane %v5003, 7
      %v5039 = vrot.slane %v5004, 7
      %v5040 = vsel %vm903, %v5038, %v5039
      %v5041 = vrot.slane %v5005, 7
      %v5042 = vrot.slane %v5006, 7
      %v5043 = vsel %vm903, %v5041, %v5042
      %v5044 = vrot.slane %v5007, 7
      %v5045 = vrot.slane %v5008, 7
      %v5046 = vsel %vm903, %v5044, %v5045
      %v5047 = vrot.slane %v5009, 7
      %v5048 = vrot.slane %v5010, 7
      %v5049 = vsel %vm903, %v5047, %v5048
      %v5050 = vrot.slane %v5011, 7
      %v5051 = vrot.slane %v5012, 7
      %v5052 = vsel %vm903, %v5050, %v5051
      %v5077 = vsel %vm903, 0.0, %v5029
      %v5078 = vsel %vm903, 0.0, %v5032
      %v5079 = vsel %vm903, 0.0, %v5035
      %v5080 = vsel %vm903, 0.0, %v5038
      %v5081 = vsel %vm903, 0.0, %v5041
      %v5082 = vsel %vm903, 0.0, %v5044
      %v5083 = vsel %vm903, 0.0, %v5047
      %v5084 = vsel %vm903, 0.0, %v5050
      %v5085 = vsel %vm903, %v5030, 0.0
      %v5086 = vsel %vm903, %v5033, 0.0
      %v5087 = vsel %vm903, %v5036, 0.0
      %v5088 = vsel %vm903, %v5039, 0.0
      %v5089 = vsel %vm903, %v5042, 0.0
      %v5090 = vsel %vm903, %v5045, 0.0
      %v5091 = vsel %vm903, %v5048, 0.0
      %v5092 = vsel %vm903, %v5051, 0.0
      %v5093 = vcombine.low %v5077, %v5079
      %v5094 = vcombine.high %v5077, %v5079
      %v5096 = vunpack.c.l.s4 1983009808
      %v5097 = vunpack.c.0.s8 %v5096
      %v5098 = vlaneseq
      %v5099 = vshrl.u32 %v5098, 7
      %v5100 = vsub.s32 %v5097, %v5099
      %v5101 = vrot.slane %v5093, %v5100
      %v5103 = vunpack.c.l.s4 1983009808
      %v5104 = vunpack.c.0.s8 %v5103
      %v5105 = vlaneseq
      %v5106 = vshrl.u32 %v5105, 7
      %v5107 = vsub.s32 %v5104, %v5106
      %v5108 = vrot.slane %v5094, %v5107
      %v5109 = vcombine.low %v5078, %v5080
      %v5110 = vcombine.high %v5078, %v5080
      %v5112 = vunpack.c.l.s4 1983009808
      %v5113 = vunpack.c.0.s8 %v5112
      %v5114 = vlaneseq
      %v5115 = vshrl.u32 %v5114, 7
      %v5116 = vsub.s32 %v5113, %v5115
      %v5117 = vrot.slane %v5109, %v5116
      %v5119 = vunpack.c.l.s4 1983009808
      %v5120 = vunpack.c.0.s8 %v5119
      %v5121 = vlaneseq
      %v5122 = vshrl.u32 %v5121, 7
      %v5123 = vsub.s32 %v5120, %v5122
      %v5124 = vrot.slane %v5110, %v5123
      %v5125 = vcombine.low %v5081, %v5083
      %v5126 = vcombine.high %v5081, %v5083
      %v5128 = vunpack.c.l.s4 1983009808
      %v5129 = vunpack.c.0.s8 %v5128
      %v5130 = vlaneseq
      %v5131 = vshrl.u32 %v5130, 7
      %v5132 = vsub.s32 %v5129, %v5131
      %v5133 = vrot.slane %v5125, %v5132
      %v5135 = vunpack.c.l.s4 1983009808
      %v5136 = vunpack.c.0.s8 %v5135
      %v5137 = vlaneseq
      %v5138 = vshrl.u32 %v5137, 7
      %v5139 = vsub.s32 %v5136, %v5138
      %v5140 = vrot.slane %v5126, %v5139
      %v5141 = vcombine.low %v5082, %v5084
      %v5142 = vcombine.high %v5082, %v5084
      %v5144 = vunpack.c.l.s4 1983009808
      %v5145 = vunpack.c.0.s8 %v5144
      %v5146 = vlaneseq
      %v5147 = vshrl.u32 %v5146, 7
      %v5148 = vsub.s32 %v5145, %v5147
      %v5149 = vrot.slane %v5141, %v5148
      %v5151 = vunpack.c.l.s4 1983009808
      %v5152 = vunpack.c.0.s8 %v5151
      %v5153 = vlaneseq
      %v5154 = vshrl.u32 %v5153, 7
      %v5155 = vsub.s32 %v5152, %v5154
      %v5156 = vrot.slane %v5142, %v5155
      %v5157 = vcombine.low %v5101, %v5117
      %v5158 = vcombine.high %v5101, %v5117
      %v5160 = vunpack.c.l.s4 1934713408
      %v5161 = vunpack.c.0.s8 %v5160
      %v5162 = vlaneseq
      %v5163 = vshrl.u32 %v5162, 7
      %v5164 = vsub.s32 %v5161, %v5163
      %v5165 = vrot.slane %v5157, %v5164
      %v5167 = vunpack.c.l.s4 1934713408
      %v5168 = vunpack.c.0.s8 %v5167
      %v5169 = vlaneseq
      %v5170 = vshrl.u32 %v5169, 7
      %v5171 = vsub.s32 %v5168, %v5170
      %v5172 = vrot.slane %v5158, %v5171
      %v5173 = vcombine.low %v5108, %v5124
      %v5174 = vcombine.high %v5108, %v5124
      %v5176 = vunpack.c.l.s4 1934713408
      %v5177 = vunpack.c.0.s8 %v5176
      %v5178 = vlaneseq
      %v5179 = vshrl.u32 %v5178, 7
      %v5180 = vsub.s32 %v5177, %v5179
      %v5181 = vrot.slane %v5173, %v5180
      %v5183 = vunpack.c.l.s4 1934713408
      %v5184 = vunpack.c.0.s8 %v5183
      %v5185 = vlaneseq
      %v5186 = vshrl.u32 %v5185, 7
      %v5187 = vsub.s32 %v5184, %v5186
      %v5188 = vrot.slane %v5174, %v5187
      %v5189 = vcombine.low %v5133, %v5149
      %v5190 = vcombine.high %v5133, %v5149
      %v5192 = vunpack.c.l.s4 1934713408
      %v5193 = vunpack.c.0.s8 %v5192
      %v5194 = vlaneseq
      %v5195 = vshrl.u32 %v5194, 7
      %v5196 = vsub.s32 %v5193, %v5195
      %v5197 = vrot.slane %v5189, %v5196
      %v5199 = vunpack.c.l.s4 1934713408
      %v5200 = vunpack.c.0.s8 %v5199
      %v5201 = vlaneseq
      %v5202 = vshrl.u32 %v5201, 7
      %v5203 = vsub.s32 %v5200, %v5202
      %v5204 = vrot.slane %v5190, %v5203
      %v5205 = vcombine.low %v5140, %v5156
      %v5206 = vcombine.high %v5140, %v5156
      %v5208 = vunpack.c.l.s4 1934713408
      %v5209 = vunpack.c.0.s8 %v5208
      %v5210 = vlaneseq
      %v5211 = vshrl.u32 %v5210, 7
      %v5212 = vsub.s32 %v5209, %v5211
      %v5213 = vrot.slane %v5205, %v5212
      %v5215 = vunpack.c.l.s4 1934713408
      %v5216 = vunpack.c.0.s8 %v5215
      %v5217 = vlaneseq
      %v5218 = vshrl.u32 %v5217, 7
      %v5219 = vsub.s32 %v5216, %v5218
      %v5220 = vrot.slane %v5206, %v5219
      %v5221 = vcombine.low %v5165, %v5197
      %v5222 = vcombine.high %v5165, %v5197
      %v5223 = vcombine.low %v5172, %v5204
      %v5224 = vcombine.high %v5172, %v5204
      %v5225 = vcombine.low %v5181, %v5213
      %v5226 = vcombine.high %v5181, %v5213
      %v5227 = vcombine.low %v5188, %v5220
      %v5228 = vcombine.high %v5188, %v5220
      %v5229 = vcombine.low %v5031, %v5037
      %v5230 = vcombine.high %v5031, %v5037
      %v5232 = vunpack.c.l.s4 1983009808
      %v5233 = vunpack.c.0.s8 %v5232
      %v5234 = vlaneseq
      %v5235 = vshrl.u32 %v5234, 7
      %v5236 = vsub.s32 %v5233, %v5235
      %v5237 = vrot.slane %v5229, %v5236
      %v5239 = vunpack.c.l.s4 1983009808
      %v5240 = vunpack.c.0.s8 %v5239
      %v5241 = vlaneseq
      %v5242 = vshrl.u32 %v5241, 7
      %v5243 = vsub.s32 %v5240, %v5242
      %v5244 = vrot.slane %v5230, %v5243
      %v5245 = vcombine.low %v5034, %v5040
      %v5246 = vcombine.high %v5034, %v5040
      %v5248 = vunpack.c.l.s4 1983009808
      %v5249 = vunpack.c.0.s8 %v5248
      %v5250 = vlaneseq
      %v5251 = vshrl.u32 %v5250, 7
      %v5252 = vsub.s32 %v5249, %v5251
      %v5253 = vrot.slane %v5245, %v5252
      %v5255 = vunpack.c.l.s4 1983009808
      %v5256 = vunpack.c.0.s8 %v5255
      %v5257 = vlaneseq
      %v5258 = vshrl.u32 %v5257, 7
      %v5259 = vsub.s32 %v5256, %v5258
      %v5260 = vrot.slane %v5246, %v5259
      %v5261 = vcombine.low %v5043, %v5049
      %v5262 = vcombine.high %v5043, %v5049
      %v5264 = vunpack.c.l.s4 1983009808
      %v5265 = vunpack.c.0.s8 %v5264
      %v5266 = vlaneseq
      %v5267 = vshrl.u32 %v5266, 7
      %v5268 = vsub.s32 %v5265, %v5267
      %v5269 = vrot.slane %v5261, %v5268
      %v5271 = vunpack.c.l.s4 1983009808
      %v5272 = vunpack.c.0.s8 %v5271
      %v5273 = vlaneseq
      %v5274 = vshrl.u32 %v5273, 7
      %v5275 = vsub.s32 %v5272, %v5274
      %v5276 = vrot.slane %v5262, %v5275
      %v5277 = vcombine.low %v5046, %v5052
      %v5278 = vcombine.high %v5046, %v5052
      %v5280 = vunpack.c.l.s4 1983009808
      %v5281 = vunpack.c.0.s8 %v5280
      %v5282 = vlaneseq
      %v5283 = vshrl.u32 %v5282, 7
      %v5284 = vsub.s32 %v5281, %v5283
      %v5285 = vrot.slane %v5277, %v5284
      %v5287 = vunpack.c.l.s4 1983009808
      %v5288 = vunpack.c.0.s8 %v5287
      %v5289 = vlaneseq
      %v5290 = vshrl.u32 %v5289, 7
      %v5291 = vsub.s32 %v5288, %v5290
      %v5292 = vrot.slane %v5278, %v5291
      %v5293 = vcombine.low %v5237, %v5253
      %v5294 = vcombine.high %v5237, %v5253
      %v5296 = vunpack.c.l.s4 1934713408
      %v5297 = vunpack.c.0.s8 %v5296
      %v5298 = vlaneseq
      %v5299 = vshrl.u32 %v5298, 7
      %v5300 = vsub.s32 %v5297, %v5299
      %v5301 = vrot.slane %v5293, %v5300
      %v5303 = vunpack.c.l.s4 1934713408
      %v5304 = vunpack.c.0.s8 %v5303
      %v5305 = vlaneseq
      %v5306 = vshrl.u32 %v5305, 7
      %v5307 = vsub.s32 %v5304, %v5306
      %v5308 = vrot.slane %v5294, %v5307
      %v5309 = vcombine.low %v5244, %v5260
      %v5310 = vcombine.high %v5244, %v5260
      %v5312 = vunpack.c.l.s4 1934713408
      %v5313 = vunpack.c.0.s8 %v5312
      %v5314 = vlaneseq
      %v5315 = vshrl.u32 %v5314, 7
      %v5316 = vsub.s32 %v5313, %v5315
      %v5317 = vrot.slane %v5309, %v5316
      %v5319 = vunpack.c.l.s4 1934713408
      %v5320 = vunpack.c.0.s8 %v5319
      %v5321 = vlaneseq
      %v5322 = vshrl.u32 %v5321, 7
      %v5323 = vsub.s32 %v5320, %v5322
      %v5324 = vrot.slane %v5310, %v5323
      %v5325 = vcombine.low %v5269, %v5285
      %v5326 = vcombine.high %v5269, %v5285
      %v5328 = vunpack.c.l.s4 1934713408
      %v5329 = vunpack.c.0.s8 %v5328
      %v5330 = vlaneseq
      %v5331 = vshrl.u32 %v5330, 7
      %v5332 = vsub.s32 %v5329, %v5331
      %v5333 = vrot.slane %v5325, %v5332
      %v5335 = vunpack.c.l.s4 1934713408
      %v5336 = vunpack.c.0.s8 %v5335
      %v5337 = vlaneseq
      %v5338 = vshrl.u32 %v5337, 7
      %v5339 = vsub.s32 %v5336, %v5338
      %v5340 = vrot.slane %v5326, %v5339
      %v5341 = vcombine.low %v5276, %v5292
      %v5342 = vcombine.high %v5276, %v5292
      %v5344 = vunpack.c.l.s4 1934713408
      %v5345 = vunpack.c.0.s8 %v5344
      %v5346 = vlaneseq
      %v5347 = vshrl.u32 %v5346, 7
      %v5348 = vsub.s32 %v5345, %v5347
      %v5349 = vrot.slane %v5341, %v5348
      %v5351 = vunpack.c.l.s4 1934713408
      %v5352 = vunpack.c.0.s8 %v5351
      %v5353 = vlaneseq
      %v5354 = vshrl.u32 %v5353, 7
      %v5355 = vsub.s32 %v5352, %v5354
      %v5356 = vrot.slane %v5342, %v5355
      %v5357 = vcombine.low %v5301, %v5333
      %v5358 = vcombine.high %v5301, %v5333
      %v5359 = vcombine.low %v5308, %v5340
      %v5360 = vcombine.high %v5308, %v5340
      %v5361 = vcombine.low %v5317, %v5349
      %v5362 = vcombine.high %v5317, %v5349
      %v5363 = vcombine.low %v5324, %v5356
      %v5364 = vcombine.high %v5324, %v5356
      %5366 = vrot.lane.b32.xlu0 %v5222, 16
      %v5367 = vpop.permute.xlu0 %5366
      %5370 = vrot.lane.b32.xlu0 %v5223, 32
      %v5371 = vpop.permute.xlu0 %5370
      %5374 = vrot.lane.b32.xlu0 %v5224, 48
      %v5375 = vpop.permute.xlu0 %5374
      %5378 = vrot.lane.b32.xlu0 %v5225, 64
      %v5379 = vpop.permute.xlu0 %5378
      %5382 = vrot.lane.b32.xlu0 %v5226, 80
      %v5383 = vpop.permute.xlu0 %5382
      %5386 = vrot.lane.b32.xlu0 %v5227, 96
      %v5387 = vpop.permute.xlu0 %5386
      %5390 = vrot.lane.b32.xlu0 %v5228, 112
      %v5391 = vpop.permute.xlu0 %5390
      %5394 = vrot.lane.b32.xlu0 %v5358, 16
      %v5395 = vpop.permute.xlu0 %5394
      %5398 = vrot.lane.b32.xlu0 %v5359, 32
      %v5399 = vpop.permute.xlu0 %5398
      %5402 = vrot.lane.b32.xlu0 %v5360, 48
      %v5403 = vpop.permute.xlu0 %5402
      %5406 = vrot.lane.b32.xlu0 %v5361, 64
      %v5407 = vpop.permute.xlu0 %5406
      %5410 = vrot.lane.b32.xlu0 %v5362, 80
      %v5411 = vpop.permute.xlu0 %5410
      %5414 = vrot.lane.b32.xlu0 %v5363, 96
      %v5415 = vpop.permute.xlu0 %5414
      %5418 = vrot.lane.b32.xlu0 %v5364, 112
      %v5419 = vpop.permute.xlu0 %5418
      %v5421 = vsel %vm1296, %v5221, %v5367
      %v5422 = vsel %vm1298, %v5421, %v5371
      %v5423 = vsel %vm1300, %v5422, %v5375
      %v5424 = vsel %vm1302, %v5423, %v5379
      %v5425 = vsel %vm1304, %v5424, %v5383
      %v5426 = vsel %vm1306, %v5425, %v5387
      %v5427 = vsel %vm1308, %v5426, %v5391
      %v5428 = vsel %vm1296, %v5357, %v5395
      %v5429 = vsel %vm1298, %v5428, %v5399
      %v5430 = vsel %vm1300, %v5429, %v5403
      %v5431 = vsel %vm1302, %v5430, %v5407
      %v5432 = vsel %vm1304, %v5431, %v5411
      %v5433 = vsel %vm1306, %v5432, %v5415
      %v5434 = vsel %vm1308, %v5433, %v5419
      %5443 = vrot.lane.b32.xlu0 %v5077, 127
      %v5444 = vpop.permute.xlu0 %5443
      %5445 = vrot.lane.b32.xlu0 %v5031, 127
      %v5446 = vpop.permute.xlu0 %5445
      %5447 = vrot.lane.b32.xlu0 %v5078, 127
      %v5448 = vpop.permute.xlu0 %5447
      %5449 = vrot.lane.b32.xlu0 %v5034, 127
      %v5450 = vpop.permute.xlu0 %5449
      %5451 = vrot.lane.b32.xlu0 %v5079, 127
      %v5452 = vpop.permute.xlu0 %5451
      %5453 = vrot.lane.b32.xlu0 %v5037, 127
      %v5454 = vpop.permute.xlu0 %5453
      %5455 = vrot.lane.b32.xlu0 %v5080, 127
      %v5456 = vpop.permute.xlu0 %5455
      %5457 = vrot.lane.b32.xlu0 %v5040, 127
      %v5458 = vpop.permute.xlu0 %5457
      %5459 = vrot.lane.b32.xlu0 %v5081, 127
      %v5460 = vpop.permute.xlu0 %5459
      %5461 = vrot.lane.b32.xlu0 %v5043, 127
      %v5462 = vpop.permute.xlu0 %5461
      %5463 = vrot.lane.b32.xlu0 %v5082, 127
      %v5464 = vpop.permute.xlu0 %5463
      %5465 = vrot.lane.b32.xlu0 %v5046, 127
      %v5466 = vpop.permute.xlu0 %5465
      %5467 = vrot.lane.b32.xlu0 %v5083, 127
      %v5468 = vpop.permute.xlu0 %5467
      %5469 = vrot.lane.b32.xlu0 %v5049, 127
      %v5470 = vpop.permute.xlu0 %5469
      %5471 = vrot.lane.b32.xlu0 %v5084, 127
      %v5472 = vpop.permute.xlu0 %5471
      %5473 = vrot.lane.b32.xlu0 %v5052, 127
      %v5474 = vpop.permute.xlu0 %5473
      %v5491 = vcombine.low %v5444, %v5452
      %v5492 = vcombine.high %v5444, %v5452
      %v5494 = vunpack.c.l.s4 1983009808
      %v5495 = vunpack.c.0.s8 %v5494
      %v5496 = vlaneseq
      %v5497 = vshrl.u32 %v5496, 7
      %v5498 = vsub.s32 %v5495, %v5497
      %v5499 = vrot.slane %v5491, %v5498
      %v5501 = vunpack.c.l.s4 1983009808
      %v5502 = vunpack.c.0.s8 %v5501
      %v5503 = vlaneseq
      %v5504 = vshrl.u32 %v5503, 7
      %v5505 = vsub.s32 %v5502, %v5504
      %v5506 = vrot.slane %v5492, %v5505
      %v5507 = vcombine.low %v5448, %v5456
      %v5508 = vcombine.high %v5448, %v5456
      %v5510 = vunpack.c.l.s4 1983009808
      %v5511 = vunpack.c.0.s8 %v5510
      %v5512 = vlaneseq
      %v5513 = vshrl.u32 %v5512, 7
      %v5514 = vsub.s32 %v5511, %v5513
      %v5515 = vrot.slane %v5507, %v5514
      %v5517 = vunpack.c.l.s4 1983009808
      %v5518 = vunpack.c.0.s8 %v5517
      %v5519 = vlaneseq
      %v5520 = vshrl.u32 %v5519, 7
      %v5521 = vsub.s32 %v5518, %v5520
      %v5522 = vrot.slane %v5508, %v5521
      %v5523 = vcombine.low %v5460, %v5468
      %v5524 = vcombine.high %v5460, %v5468
      %v5526 = vunpack.c.l.s4 1983009808
      %v5527 = vunpack.c.0.s8 %v5526
      %v5528 = vlaneseq
      %v5529 = vshrl.u32 %v5528, 7
      %v5530 = vsub.s32 %v5527, %v5529
      %v5531 = vrot.slane %v5523, %v5530
      %v5533 = vunpack.c.l.s4 1983009808
      %v5534 = vunpack.c.0.s8 %v5533
      %v5535 = vlaneseq
      %v5536 = vshrl.u32 %v5535, 7
      %v5537 = vsub.s32 %v5534, %v5536
      %v5538 = vrot.slane %v5524, %v5537
      %v5539 = vcombine.low %v5464, %v5472
      %v5540 = vcombine.high %v5464, %v5472
      %v5542 = vunpack.c.l.s4 1983009808
      %v5543 = vunpack.c.0.s8 %v5542
      %v5544 = vlaneseq
      %v5545 = vshrl.u32 %v5544, 7
      %v5546 = vsub.s32 %v5543, %v5545
      %v5547 = vrot.slane %v5539, %v5546
      %v5549 = vunpack.c.l.s4 1983009808
      %v5550 = vunpack.c.0.s8 %v5549
      %v5551 = vlaneseq
      %v5552 = vshrl.u32 %v5551, 7
      %v5553 = vsub.s32 %v5550, %v5552
      %v5554 = vrot.slane %v5540, %v5553
      %v5555 = vcombine.low %v5499, %v5515
      %v5556 = vcombine.high %v5499, %v5515
      %v5558 = vunpack.c.l.s4 1934713408
      %v5559 = vunpack.c.0.s8 %v5558
      %v5560 = vlaneseq
      %v5561 = vshrl.u32 %v5560, 7
      %v5562 = vsub.s32 %v5559, %v5561
      %v5563 = vrot.slane %v5555, %v5562
      %v5565 = vunpack.c.l.s4 1934713408
      %v5566 = vunpack.c.0.s8 %v5565
      %v5567 = vlaneseq
      %v5568 = vshrl.u32 %v5567, 7
      %v5569 = vsub.s32 %v5566, %v5568
      %v5570 = vrot.slane %v5556, %v5569
      %v5571 = vcombine.low %v5506, %v5522
      %v5572 = vcombine.high %v5506, %v5522
      %v5574 = vunpack.c.l.s4 1934713408
      %v5575 = vunpack.c.0.s8 %v5574
      %v5576 = vlaneseq
      %v5577 = vshrl.u32 %v5576, 7
      %v5578 = vsub.s32 %v5575, %v5577
      %v5579 = vrot.slane %v5571, %v5578
      %v5581 = vunpack.c.l.s4 1934713408
      %v5582 = vunpack.c.0.s8 %v5581
      %v5583 = vlaneseq
      %v5584 = vshrl.u32 %v5583, 7
      %v5585 = vsub.s32 %v5582, %v5584
      %v5586 = vrot.slane %v5572, %v5585
      %v5587 = vcombine.low %v5531, %v5547
      %v5588 = vcombine.high %v5531, %v5547
      %v5590 = vunpack.c.l.s4 1934713408
      %v5591 = vunpack.c.0.s8 %v5590
      %v5592 = vlaneseq
      %v5593 = vshrl.u32 %v5592, 7
      %v5594 = vsub.s32 %v5591, %v5593
      %v5595 = vrot.slane %v5587, %v5594
      %v5597 = vunpack.c.l.s4 1934713408
      %v5598 = vunpack.c.0.s8 %v5597
      %v5599 = vlaneseq
      %v5600 = vshrl.u32 %v5599, 7
      %v5601 = vsub.s32 %v5598, %v5600
      %v5602 = vrot.slane %v5588, %v5601
      %v5603 = vcombine.low %v5538, %v5554
      %v5604 = vcombine.high %v5538, %v5554
      %v5606 = vunpack.c.l.s4 1934713408
      %v5607 = vunpack.c.0.s8 %v5606
      %v5608 = vlaneseq
      %v5609 = vshrl.u32 %v5608, 7
      %v5610 = vsub.s32 %v5607, %v5609
      %v5611 = vrot.slane %v5603, %v5610
      %v5613 = vunpack.c.l.s4 1934713408
      %v5614 = vunpack.c.0.s8 %v5613
      %v5615 = vlaneseq
      %v5616 = vshrl.u32 %v5615, 7
      %v5617 = vsub.s32 %v5614, %v5616
      %v5618 = vrot.slane %v5604, %v5617
      %v5619 = vcombine.low %v5563, %v5595
      %v5620 = vcombine.high %v5563, %v5595
      %v5621 = vcombine.low %v5570, %v5602
      %v5622 = vcombine.high %v5570, %v5602
      %v5623 = vcombine.low %v5579, %v5611
      %v5624 = vcombine.high %v5579, %v5611
      %v5625 = vcombine.low %v5586, %v5618
      %v5626 = vcombine.high %v5586, %v5618
      %v5627 = vcombine.low %v5446, %v5454
      %v5628 = vcombine.high %v5446, %v5454
      %v5630 = vunpack.c.l.s4 1983009808
      %v5631 = vunpack.c.0.s8 %v5630
      %v5632 = vlaneseq
      %v5633 = vshrl.u32 %v5632, 7
      %v5634 = vsub.s32 %v5631, %v5633
      %v5635 = vrot.slane %v5627, %v5634
      %v5637 = vunpack.c.l.s4 1983009808
      %v5638 = vunpack.c.0.s8 %v5637
      %v5639 = vlaneseq
      %v5640 = vshrl.u32 %v5639, 7
      %v5641 = vsub.s32 %v5638, %v5640
      %v5642 = vrot.slane %v5628, %v5641
      %v5643 = vcombine.low %v5450, %v5458
      %v5644 = vcombine.high %v5450, %v5458
      %v5646 = vunpack.c.l.s4 1983009808
      %v5647 = vunpack.c.0.s8 %v5646
      %v5648 = vlaneseq
      %v5649 = vshrl.u32 %v5648, 7
      %v5650 = vsub.s32 %v5647, %v5649
      %v5651 = vrot.slane %v5643, %v5650
      %v5653 = vunpack.c.l.s4 1983009808
      %v5654 = vunpack.c.0.s8 %v5653
      %v5655 = vlaneseq
      %v5656 = vshrl.u32 %v5655, 7
      %v5657 = vsub.s32 %v5654, %v5656
      %v5658 = vrot.slane %v5644, %v5657
      %v5659 = vcombine.low %v5462, %v5470
      %v5660 = vcombine.high %v5462, %v5470
      %v5662 = vunpack.c.l.s4 1983009808
      %v5663 = vunpack.c.0.s8 %v5662
      %v5664 = vlaneseq
      %v5665 = vshrl.u32 %v5664, 7
      %v5666 = vsub.s32 %v5663, %v5665
      %v5667 = vrot.slane %v5659, %v5666
      %v5669 = vunpack.c.l.s4 1983009808
      %v5670 = vunpack.c.0.s8 %v5669
      %v5671 = vlaneseq
      %v5672 = vshrl.u32 %v5671, 7
      %v5673 = vsub.s32 %v5670, %v5672
      %v5674 = vrot.slane %v5660, %v5673
      %v5675 = vcombine.low %v5466, %v5474
      %v5676 = vcombine.high %v5466, %v5474
      %v5678 = vunpack.c.l.s4 1983009808
      %v5679 = vunpack.c.0.s8 %v5678
      %v5680 = vlaneseq
      %v5681 = vshrl.u32 %v5680, 7
      %v5682 = vsub.s32 %v5679, %v5681
      %v5683 = vrot.slane %v5675, %v5682
      %v5685 = vunpack.c.l.s4 1983009808
      %v5686 = vunpack.c.0.s8 %v5685
      %v5687 = vlaneseq
      %v5688 = vshrl.u32 %v5687, 7
      %v5689 = vsub.s32 %v5686, %v5688
      %v5690 = vrot.slane %v5676, %v5689
      %v5691 = vcombine.low %v5635, %v5651
      %v5692 = vcombine.high %v5635, %v5651
      %v5694 = vunpack.c.l.s4 1934713408
      %v5695 = vunpack.c.0.s8 %v5694
      %v5696 = vlaneseq
      %v5697 = vshrl.u32 %v5696, 7
      %v5698 = vsub.s32 %v5695, %v5697
      %v5699 = vrot.slane %v5691, %v5698
      %v5701 = vunpack.c.l.s4 1934713408
      %v5702 = vunpack.c.0.s8 %v5701
      %v5703 = vlaneseq
      %v5704 = vshrl.u32 %v5703, 7
      %v5705 = vsub.s32 %v5702, %v5704
      %v5706 = vrot.slane %v5692, %v5705
      %v5707 = vcombine.low %v5642, %v5658
      %v5708 = vcombine.high %v5642, %v5658
      %v5710 = vunpack.c.l.s4 1934713408
      %v5711 = vunpack.c.0.s8 %v5710
      %v5712 = vlaneseq
      %v5713 = vshrl.u32 %v5712, 7
      %v5714 = vsub.s32 %v5711, %v5713
      %v5715 = vrot.slane %v5707, %v5714
      %v5717 = vunpack.c.l.s4 1934713408
      %v5718 = vunpack.c.0.s8 %v5717
      %v5719 = vlaneseq
      %v5720 = vshrl.u32 %v5719, 7
      %v5721 = vsub.s32 %v5718, %v5720
      %v5722 = vrot.slane %v5708, %v5721
      %v5723 = vcombine.low %v5667, %v5683
      %v5724 = vcombine.high %v5667, %v5683
      %v5726 = vunpack.c.l.s4 1934713408
      %v5727 = vunpack.c.0.s8 %v5726
      %v5728 = vlaneseq
      %v5729 = vshrl.u32 %v5728, 7
      %v5730 = vsub.s32 %v5727, %v5729
      %v5731 = vrot.slane %v5723, %v5730
      %v5733 = vunpack.c.l.s4 1934713408
      %v5734 = vunpack.c.0.s8 %v5733
      %v5735 = vlaneseq
      %v5736 = vshrl.u32 %v5735, 7
      %v5737 = vsub.s32 %v5734, %v5736
      %v5738 = vrot.slane %v5724, %v5737
      %v5739 = vcombine.low %v5674, %v5690
      %v5740 = vcombine.high %v5674, %v5690
      %v5742 = vunpack.c.l.s4 1934713408
      %v5743 = vunpack.c.0.s8 %v5742
      %v5744 = vlaneseq
      %v5745 = vshrl.u32 %v5744, 7
      %v5746 = vsub.s32 %v5743, %v5745
      %v5747 = vrot.slane %v5739, %v5746
      %v5749 = vunpack.c.l.s4 1934713408
      %v5750 = vunpack.c.0.s8 %v5749
      %v5751 = vlaneseq
      %v5752 = vshrl.u32 %v5751, 7
      %v5753 = vsub.s32 %v5750, %v5752
      %v5754 = vrot.slane %v5740, %v5753
      %v5755 = vcombine.low %v5699, %v5731
      %v5756 = vcombine.high %v5699, %v5731
      %v5757 = vcombine.low %v5706, %v5738
      %v5758 = vcombine.high %v5706, %v5738
      %v5759 = vcombine.low %v5715, %v5747
      %v5760 = vcombine.high %v5715, %v5747
      %v5761 = vcombine.low %v5722, %v5754
      %v5762 = vcombine.high %v5722, %v5754
      %5764 = vrot.lane.b32.xlu0 %v5620, 16
      %v5765 = vpop.permute.xlu0 %5764
      %5768 = vrot.lane.b32.xlu0 %v5621, 32
      %v5769 = vpop.permute.xlu0 %5768
      %5772 = vrot.lane.b32.xlu0 %v5622, 48
      %v5773 = vpop.permute.xlu0 %5772
      %5776 = vrot.lane.b32.xlu0 %v5623, 64
      %v5777 = vpop.permute.xlu0 %5776
      %5780 = vrot.lane.b32.xlu0 %v5624, 80
      %v5781 = vpop.permute.xlu0 %5780
      %5784 = vrot.lane.b32.xlu0 %v5625, 96
      %v5785 = vpop.permute.xlu0 %5784
      %5788 = vrot.lane.b32.xlu0 %v5626, 112
      %v5789 = vpop.permute.xlu0 %5788
      %5792 = vrot.lane.b32.xlu0 %v5756, 16
      %v5793 = vpop.permute.xlu0 %5792
      %5796 = vrot.lane.b32.xlu0 %v5757, 32
      %v5797 = vpop.permute.xlu0 %5796
      %5800 = vrot.lane.b32.xlu0 %v5758, 48
      %v5801 = vpop.permute.xlu0 %5800
      %5804 = vrot.lane.b32.xlu0 %v5759, 64
      %v5805 = vpop.permute.xlu0 %5804
      %5808 = vrot.lane.b32.xlu0 %v5760, 80
      %v5809 = vpop.permute.xlu0 %5808
      %5812 = vrot.lane.b32.xlu0 %v5761, 96
      %v5813 = vpop.permute.xlu0 %5812
      %5816 = vrot.lane.b32.xlu0 %v5762, 112
      %v5817 = vpop.permute.xlu0 %5816
      %v5819 = vsel %vm1296, %v5619, %v5765
      %v5820 = vsel %vm1298, %v5819, %v5769
      %v5821 = vsel %vm1300, %v5820, %v5773
      %v5822 = vsel %vm1302, %v5821, %v5777
      %v5823 = vsel %vm1304, %v5822, %v5781
      %v5824 = vsel %vm1306, %v5823, %v5785
      %v5825 = vsel %vm1308, %v5824, %v5789
      %v5826 = vsel %vm1296, %v5755, %v5793
      %v5827 = vsel %vm1298, %v5826, %v5797
      %v5828 = vsel %vm1300, %v5827, %v5801
      %v5829 = vsel %vm1302, %v5828, %v5805
      %v5830 = vsel %vm1304, %v5829, %v5809
      %v5831 = vsel %vm1306, %v5830, %v5813
      %v5832 = vsel %vm1308, %v5831, %v5817
      %5833 = vrot.lane.b32.xlu0 %v5077, 126
      %v5834 = vpop.permute.xlu0 %5833
      %5835 = vrot.lane.b32.xlu0 %v5031, 126
      %v5836 = vpop.permute.xlu0 %5835
      %5837 = vrot.lane.b32.xlu0 %v5078, 126
      %v5838 = vpop.permute.xlu0 %5837
      %5839 = vrot.lane.b32.xlu0 %v5034, 126
      %v5840 = vpop.permute.xlu0 %5839
      %5841 = vrot.lane.b32.xlu0 %v5079, 126
      %v5842 = vpop.permute.xlu0 %5841
      %5843 = vrot.lane.b32.xlu0 %v5037, 126
      %v5844 = vpop.permute.xlu0 %5843
      %5845 = vrot.lane.b32.xlu0 %v5080, 126
      %v5846 = vpop.permute.xlu0 %5845
      %5847 = vrot.lane.b32.xlu0 %v5040, 126
      %v5848 = vpop.permute.xlu0 %5847
      %5849 = vrot.lane.b32.xlu0 %v5081, 126
      %v5850 = vpop.permute.xlu0 %5849
      %5851 = vrot.lane.b32.xlu0 %v5043, 126
      %v5852 = vpop.permute.xlu0 %5851
      %5853 = vrot.lane.b32.xlu0 %v5082, 126
      %v5854 = vpop.permute.xlu0 %5853
      %5855 = vrot.lane.b32.xlu0 %v5046, 126
      %v5856 = vpop.permute.xlu0 %5855
      %5857 = vrot.lane.b32.xlu0 %v5083, 126
      %v5858 = vpop.permute.xlu0 %5857
      %5859 = vrot.lane.b32.xlu0 %v5049, 126
      %v5860 = vpop.permute.xlu0 %5859
      %5861 = vrot.lane.b32.xlu0 %v5084, 126
      %v5862 = vpop.permute.xlu0 %5861
      %5863 = vrot.lane.b32.xlu0 %v5052, 126
      %v5864 = vpop.permute.xlu0 %5863
      %v5881 = vcombine.low %v5834, %v5842
      %v5882 = vcombine.high %v5834, %v5842
      %v5884 = vunpack.c.l.s4 1983009808
      %v5885 = vunpack.c.0.s8 %v5884
      %v5886 = vlaneseq
      %v5887 = vshrl.u32 %v5886, 7
      %v5888 = vsub.s32 %v5885, %v5887
      %v5889 = vrot.slane %v5881, %v5888
      %v5891 = vunpack.c.l.s4 1983009808
      %v5892 = vunpack.c.0.s8 %v5891
      %v5893 = vlaneseq
      %v5894 = vshrl.u32 %v5893, 7
      %v5895 = vsub.s32 %v5892, %v5894
      %v5896 = vrot.slane %v5882, %v5895
      %v5897 = vcombine.low %v5838, %v5846
      %v5898 = vcombine.high %v5838, %v5846
      %v5900 = vunpack.c.l.s4 1983009808
      %v5901 = vunpack.c.0.s8 %v5900
      %v5902 = vlaneseq
      %v5903 = vshrl.u32 %v5902, 7
      %v5904 = vsub.s32 %v5901, %v5903
      %v5905 = vrot.slane %v5897, %v5904
      %v5907 = vunpack.c.l.s4 1983009808
      %v5908 = vunpack.c.0.s8 %v5907
      %v5909 = vlaneseq
      %v5910 = vshrl.u32 %v5909, 7
      %v5911 = vsub.s32 %v5908, %v5910
      %v5912 = vrot.slane %v5898, %v5911
      %v5913 = vcombine.low %v5850, %v5858
      %v5914 = vcombine.high %v5850, %v5858
      %v5916 = vunpack.c.l.s4 1983009808
      %v5917 = vunpack.c.0.s8 %v5916
      %v5918 = vlaneseq
      %v5919 = vshrl.u32 %v5918, 7
      %v5920 = vsub.s32 %v5917, %v5919
      %v5921 = vrot.slane %v5913, %v5920
      %v5923 = vunpack.c.l.s4 1983009808
      %v5924 = vunpack.c.0.s8 %v5923
      %v5925 = vlaneseq
      %v5926 = vshrl.u32 %v5925, 7
      %v5927 = vsub.s32 %v5924, %v5926
      %v5928 = vrot.slane %v5914, %v5927
      %v5929 = vcombine.low %v5854, %v5862
      %v5930 = vcombine.high %v5854, %v5862
      %v5932 = vunpack.c.l.s4 1983009808
      %v5933 = vunpack.c.0.s8 %v5932
      %v5934 = vlaneseq
      %v5935 = vshrl.u32 %v5934, 7
      %v5936 = vsub.s32 %v5933, %v5935
      %v5937 = vrot.slane %v5929, %v5936
      %v5939 = vunpack.c.l.s4 1983009808
      %v5940 = vunpack.c.0.s8 %v5939
      %v5941 = vlaneseq
      %v5942 = vshrl.u32 %v5941, 7
      %v5943 = vsub.s32 %v5940, %v5942
      %v5944 = vrot.slane %v5930, %v5943
      %v5945 = vcombine.low %v5889, %v5905
      %v5946 = vcombine.high %v5889, %v5905
      %v5948 = vunpack.c.l.s4 1934713408
      %v5949 = vunpack.c.0.s8 %v5948
      %v5950 = vlaneseq
      %v5951 = vshrl.u32 %v5950, 7
      %v5952 = vsub.s32 %v5949, %v5951
      %v5953 = vrot.slane %v5945, %v5952
      %v5955 = vunpack.c.l.s4 1934713408
      %v5956 = vunpack.c.0.s8 %v5955
      %v5957 = vlaneseq
      %v5958 = vshrl.u32 %v5957, 7
      %v5959 = vsub.s32 %v5956, %v5958
      %v5960 = vrot.slane %v5946, %v5959
      %v5961 = vcombine.low %v5896, %v5912
      %v5962 = vcombine.high %v5896, %v5912
      %v5964 = vunpack.c.l.s4 1934713408
      %v5965 = vunpack.c.0.s8 %v5964
      %v5966 = vlaneseq
      %v5967 = vshrl.u32 %v5966, 7
      %v5968 = vsub.s32 %v5965, %v5967
      %v5969 = vrot.slane %v5961, %v5968
      %v5971 = vunpack.c.l.s4 1934713408
      %v5972 = vunpack.c.0.s8 %v5971
      %v5973 = vlaneseq
      %v5974 = vshrl.u32 %v5973, 7
      %v5975 = vsub.s32 %v5972, %v5974
      %v5976 = vrot.slane %v5962, %v5975
      %v5977 = vcombine.low %v5921, %v5937
      %v5978 = vcombine.high %v5921, %v5937
      %v5980 = vunpack.c.l.s4 1934713408
      %v5981 = vunpack.c.0.s8 %v5980
      %v5982 = vlaneseq
      %v5983 = vshrl.u32 %v5982, 7
      %v5984 = vsub.s32 %v5981, %v5983
      %v5985 = vrot.slane %v5977, %v5984
      %v5987 = vunpack.c.l.s4 1934713408
      %v5988 = vunpack.c.0.s8 %v5987
      %v5989 = vlaneseq
      %v5990 = vshrl.u32 %v5989, 7
      %v5991 = vsub.s32 %v5988, %v5990
      %v5992 = vrot.slane %v5978, %v5991
      %v5993 = vcombine.low %v5928, %v5944
      %v5994 = vcombine.high %v5928, %v5944
      %v5996 = vunpack.c.l.s4 1934713408
      %v5997 = vunpack.c.0.s8 %v5996
      %v5998 = vlaneseq
      %v5999 = vshrl.u32 %v5998, 7
      %v6000 = vsub.s32 %v5997, %v5999
      %v6001 = vrot.slane %v5993, %v6000
      %v6003 = vunpack.c.l.s4 1934713408
      %v6004 = vunpack.c.0.s8 %v6003
      %v6005 = vlaneseq
      %v6006 = vshrl.u32 %v6005, 7
      %v6007 = vsub.s32 %v6004, %v6006
      %v6008 = vrot.slane %v5994, %v6007
      %v6009 = vcombine.low %v5953, %v5985
      %v6010 = vcombine.high %v5953, %v5985
      %v6011 = vcombine.low %v5960, %v5992
      %v6012 = vcombine.high %v5960, %v5992
      %v6013 = vcombine.low %v5969, %v6001
      %v6014 = vcombine.high %v5969, %v6001
      %v6015 = vcombine.low %v5976, %v6008
      %v6016 = vcombine.high %v5976, %v6008
      %v6017 = vcombine.low %v5836, %v5844
      %v6018 = vcombine.high %v5836, %v5844
      %v6020 = vunpack.c.l.s4 1983009808
      %v6021 = vunpack.c.0.s8 %v6020
      %v6022 = vlaneseq
      %v6023 = vshrl.u32 %v6022, 7
      %v6024 = vsub.s32 %v6021, %v6023
      %v6025 = vrot.slane %v6017, %v6024
      %v6027 = vunpack.c.l.s4 1983009808
      %v6028 = vunpack.c.0.s8 %v6027
      %v6029 = vlaneseq
      %v6030 = vshrl.u32 %v6029, 7
      %v6031 = vsub.s32 %v6028, %v6030
      %v6032 = vrot.slane %v6018, %v6031
      %v6033 = vcombine.low %v5840, %v5848
      %v6034 = vcombine.high %v5840, %v5848
      %v6036 = vunpack.c.l.s4 1983009808
      %v6037 = vunpack.c.0.s8 %v6036
      %v6038 = vlaneseq
      %v6039 = vshrl.u32 %v6038, 7
      %v6040 = vsub.s32 %v6037, %v6039
      %v6041 = vrot.slane %v6033, %v6040
      %v6043 = vunpack.c.l.s4 1983009808
      %v6044 = vunpack.c.0.s8 %v6043
      %v6045 = vlaneseq
      %v6046 = vshrl.u32 %v6045, 7
      %v6047 = vsub.s32 %v6044, %v6046
      %v6048 = vrot.slane %v6034, %v6047
      %v6049 = vcombine.low %v5852, %v5860
      %v6050 = vcombine.high %v5852, %v5860
      %v6052 = vunpack.c.l.s4 1983009808
      %v6053 = vunpack.c.0.s8 %v6052
      %v6054 = vlaneseq
      %v6055 = vshrl.u32 %v6054, 7
      %v6056 = vsub.s32 %v6053, %v6055
      %v6057 = vrot.slane %v6049, %v6056
      %v6059 = vunpack.c.l.s4 1983009808
      %v6060 = vunpack.c.0.s8 %v6059
      %v6061 = vlaneseq
      %v6062 = vshrl.u32 %v6061, 7
      %v6063 = vsub.s32 %v6060, %v6062
      %v6064 = vrot.slane %v6050, %v6063
      %v6065 = vcombine.low %v5856, %v5864
      %v6066 = vcombine.high %v5856, %v5864
      %v6068 = vunpack.c.l.s4 1983009808
      %v6069 = vunpack.c.0.s8 %v6068
      %v6070 = vlaneseq
      %v6071 = vshrl.u32 %v6070, 7
      %v6072 = vsub.s32 %v6069, %v6071
      %v6073 = vrot.slane %v6065, %v6072
      %v6075 = vunpack.c.l.s4 1983009808
      %v6076 = vunpack.c.0.s8 %v6075
      %v6077 = vlaneseq
      %v6078 = vshrl.u32 %v6077, 7
      %v6079 = vsub.s32 %v6076, %v6078
      %v6080 = vrot.slane %v6066, %v6079
      %v6081 = vcombine.low %v6025, %v6041
      %v6082 = vcombine.high %v6025, %v6041
      %v6084 = vunpack.c.l.s4 1934713408
      %v6085 = vunpack.c.0.s8 %v6084
      %v6086 = vlaneseq
      %v6087 = vshrl.u32 %v6086, 7
      %v6088 = vsub.s32 %v6085, %v6087
      %v6089 = vrot.slane %v6081, %v6088
      %v6091 = vunpack.c.l.s4 1934713408
      %v6092 = vunpack.c.0.s8 %v6091
      %v6093 = vlaneseq
      %v6094 = vshrl.u32 %v6093, 7
      %v6095 = vsub.s32 %v6092, %v6094
      %v6096 = vrot.slane %v6082, %v6095
      %v6097 = vcombine.low %v6032, %v6048
      %v6098 = vcombine.high %v6032, %v6048
      %v6100 = vunpack.c.l.s4 1934713408
      %v6101 = vunpack.c.0.s8 %v6100
      %v6102 = vlaneseq
      %v6103 = vshrl.u32 %v6102, 7
      %v6104 = vsub.s32 %v6101, %v6103
      %v6105 = vrot.slane %v6097, %v6104
      %v6107 = vunpack.c.l.s4 1934713408
      %v6108 = vunpack.c.0.s8 %v6107
      %v6109 = vlaneseq
      %v6110 = vshrl.u32 %v6109, 7
      %v6111 = vsub.s32 %v6108, %v6110
      %v6112 = vrot.slane %v6098, %v6111
      %v6113 = vcombine.low %v6057, %v6073
      %v6114 = vcombine.high %v6057, %v6073
      %v6116 = vunpack.c.l.s4 1934713408
      %v6117 = vunpack.c.0.s8 %v6116
      %v6118 = vlaneseq
      %v6119 = vshrl.u32 %v6118, 7
      %v6120 = vsub.s32 %v6117, %v6119
      %v6121 = vrot.slane %v6113, %v6120
      %v6123 = vunpack.c.l.s4 1934713408
      %v6124 = vunpack.c.0.s8 %v6123
      %v6125 = vlaneseq
      %v6126 = vshrl.u32 %v6125, 7
      %v6127 = vsub.s32 %v6124, %v6126
      %v6128 = vrot.slane %v6114, %v6127
      %v6129 = vcombine.low %v6064, %v6080
      %v6130 = vcombine.high %v6064, %v6080
      %v6132 = vunpack.c.l.s4 1934713408
      %v6133 = vunpack.c.0.s8 %v6132
      %v6134 = vlaneseq
      %v6135 = vshrl.u32 %v6134, 7
      %v6136 = vsub.s32 %v6133, %v6135
      %v6137 = vrot.slane %v6129, %v6136
      %v6139 = vunpack.c.l.s4 1934713408
      %v6140 = vunpack.c.0.s8 %v6139
      %v6141 = vlaneseq
      %v6142 = vshrl.u32 %v6141, 7
      %v6143 = vsub.s32 %v6140, %v6142
      %v6144 = vrot.slane %v6130, %v6143
      %v6145 = vcombine.low %v6089, %v6121
      %v6146 = vcombine.high %v6089, %v6121
      %v6147 = vcombine.low %v6096, %v6128
      %v6148 = vcombine.high %v6096, %v6128
      %v6149 = vcombine.low %v6105, %v6137
      %v6150 = vcombine.high %v6105, %v6137
      %v6151 = vcombine.low %v6112, %v6144
      %v6152 = vcombine.high %v6112, %v6144
      %6154 = vrot.lane.b32.xlu0 %v6010, 16
      %v6155 = vpop.permute.xlu0 %6154
      %6158 = vrot.lane.b32.xlu0 %v6011, 32
      %v6159 = vpop.permute.xlu0 %6158
      %6162 = vrot.lane.b32.xlu0 %v6012, 48
      %v6163 = vpop.permute.xlu0 %6162
      %6166 = vrot.lane.b32.xlu0 %v6013, 64
      %v6167 = vpop.permute.xlu0 %6166
      %6170 = vrot.lane.b32.xlu0 %v6014, 80
      %v6171 = vpop.permute.xlu0 %6170
      %6174 = vrot.lane.b32.xlu0 %v6015, 96
      %v6175 = vpop.permute.xlu0 %6174
      %6178 = vrot.lane.b32.xlu0 %v6016, 112
      %v6179 = vpop.permute.xlu0 %6178
      %6182 = vrot.lane.b32.xlu0 %v6146, 16
      %v6183 = vpop.permute.xlu0 %6182
      %6186 = vrot.lane.b32.xlu0 %v6147, 32
      %v6187 = vpop.permute.xlu0 %6186
      %6190 = vrot.lane.b32.xlu0 %v6148, 48
      %v6191 = vpop.permute.xlu0 %6190
      %6194 = vrot.lane.b32.xlu0 %v6149, 64
      %v6195 = vpop.permute.xlu0 %6194
      %6198 = vrot.lane.b32.xlu0 %v6150, 80
      %v6199 = vpop.permute.xlu0 %6198
      %6202 = vrot.lane.b32.xlu0 %v6151, 96
      %v6203 = vpop.permute.xlu0 %6202
      %6206 = vrot.lane.b32.xlu0 %v6152, 112
      %v6207 = vpop.permute.xlu0 %6206
      %v6209 = vsel %vm1296, %v6009, %v6155
      %v6210 = vsel %vm1298, %v6209, %v6159
      %v6211 = vsel %vm1300, %v6210, %v6163
      %v6212 = vsel %vm1302, %v6211, %v6167
      %v6213 = vsel %vm1304, %v6212, %v6171
      %v6214 = vsel %vm1306, %v6213, %v6175
      %v6215 = vsel %vm1308, %v6214, %v6179
      %v6216 = vsel %vm1296, %v6145, %v6183
      %v6217 = vsel %vm1298, %v6216, %v6187
      %v6218 = vsel %vm1300, %v6217, %v6191
      %v6219 = vsel %vm1302, %v6218, %v6195
      %v6220 = vsel %vm1304, %v6219, %v6199
      %v6221 = vsel %vm1306, %v6220, %v6203
      %v6222 = vsel %vm1308, %v6221, %v6207
      %v6231 = vrot.slane %v5077, 1
      %v6232 = vrot.slane %v5031, 1
      %v6233 = vsel %vm2113, %v6231, %v6232
      %v6234 = vrot.slane %v5085, 1
      %v6235 = vsel %vm2113, %v6232, %v6234
      %v6236 = vrot.slane %v5078, 1
      %v6237 = vrot.slane %v5034, 1
      %v6238 = vsel %vm2113, %v6236, %v6237
      %v6239 = vrot.slane %v5086, 1
      %v6240 = vsel %vm2113, %v6237, %v6239
      %v6241 = vrot.slane %v5079, 1
      %v6242 = vrot.slane %v5037, 1
      %v6243 = vsel %vm2113, %v6241, %v6242
      %v6244 = vrot.slane %v5087, 1
      %v6245 = vsel %vm2113, %v6242, %v6244
      %v6246 = vrot.slane %v5080, 1
      %v6247 = vrot.slane %v5040, 1
      %v6248 = vsel %vm2113, %v6246, %v6247
      %v6249 = vrot.slane %v5088, 1
      %v6250 = vsel %vm2113, %v6247, %v6249
      %v6251 = vrot.slane %v5081, 1
      %v6252 = vrot.slane %v5043, 1
      %v6253 = vsel %vm2113, %v6251, %v6252
      %v6254 = vrot.slane %v5089, 1
      %v6255 = vsel %vm2113, %v6252, %v6254
      %v6256 = vrot.slane %v5082, 1
      %v6257 = vrot.slane %v5046, 1
      %v6258 = vsel %vm2113, %v6256, %v6257
      %v6259 = vrot.slane %v5090, 1
      %v6260 = vsel %vm2113, %v6257, %v6259
      %v6261 = vrot.slane %v5083, 1
      %v6262 = vrot.slane %v5049, 1
      %v6263 = vsel %vm2113, %v6261, %v6262
      %v6264 = vrot.slane %v5091, 1
      %v6265 = vsel %vm2113, %v6262, %v6264
      %v6266 = vrot.slane %v5084, 1
      %v6267 = vrot.slane %v5052, 1
      %v6268 = vsel %vm2113, %v6266, %v6267
      %v6269 = vrot.slane %v5092, 1
      %v6270 = vsel %vm2113, %v6267, %v6269
      %v6287 = vcombine.low %v6233, %v6243
      %v6288 = vcombine.high %v6233, %v6243
      %v6290 = vunpack.c.l.s4 1983009808
      %v6291 = vunpack.c.0.s8 %v6290
      %v6292 = vlaneseq
      %v6293 = vshrl.u32 %v6292, 7
      %v6294 = vsub.s32 %v6291, %v6293
      %v6295 = vrot.slane %v6287, %v6294
      %v6297 = vunpack.c.l.s4 1983009808
      %v6298 = vunpack.c.0.s8 %v6297
      %v6299 = vlaneseq
      %v6300 = vshrl.u32 %v6299, 7
      %v6301 = vsub.s32 %v6298, %v6300
      %v6302 = vrot.slane %v6288, %v6301
      %v6303 = vcombine.low %v6238, %v6248
      %v6304 = vcombine.high %v6238, %v6248
      %v6306 = vunpack.c.l.s4 1983009808
      %v6307 = vunpack.c.0.s8 %v6306
      %v6308 = vlaneseq
      %v6309 = vshrl.u32 %v6308, 7
      %v6310 = vsub.s32 %v6307, %v6309
      %v6311 = vrot.slane %v6303, %v6310
      %v6313 = vunpack.c.l.s4 1983009808
      %v6314 = vunpack.c.0.s8 %v6313
      %v6315 = vlaneseq
      %v6316 = vshrl.u32 %v6315, 7
      %v6317 = vsub.s32 %v6314, %v6316
      %v6318 = vrot.slane %v6304, %v6317
      %v6319 = vcombine.low %v6253, %v6263
      %v6320 = vcombine.high %v6253, %v6263
      %v6322 = vunpack.c.l.s4 1983009808
      %v6323 = vunpack.c.0.s8 %v6322
      %v6324 = vlaneseq
      %v6325 = vshrl.u32 %v6324, 7
      %v6326 = vsub.s32 %v6323, %v6325
      %v6327 = vrot.slane %v6319, %v6326
      %v6329 = vunpack.c.l.s4 1983009808
      %v6330 = vunpack.c.0.s8 %v6329
      %v6331 = vlaneseq
      %v6332 = vshrl.u32 %v6331, 7
      %v6333 = vsub.s32 %v6330, %v6332
      %v6334 = vrot.slane %v6320, %v6333
      %v6335 = vcombine.low %v6258, %v6268
      %v6336 = vcombine.high %v6258, %v6268
      %v6338 = vunpack.c.l.s4 1983009808
      %v6339 = vunpack.c.0.s8 %v6338
      %v6340 = vlaneseq
      %v6341 = vshrl.u32 %v6340, 7
      %v6342 = vsub.s32 %v6339, %v6341
      %v6343 = vrot.slane %v6335, %v6342
      %v6345 = vunpack.c.l.s4 1983009808
      %v6346 = vunpack.c.0.s8 %v6345
      %v6347 = vlaneseq
      %v6348 = vshrl.u32 %v6347, 7
      %v6349 = vsub.s32 %v6346, %v6348
      %v6350 = vrot.slane %v6336, %v6349
      %v6351 = vcombine.low %v6295, %v6311
      %v6352 = vcombine.high %v6295, %v6311
      %v6354 = vunpack.c.l.s4 1934713408
      %v6355 = vunpack.c.0.s8 %v6354
      %v6356 = vlaneseq
      %v6357 = vshrl.u32 %v6356, 7
      %v6358 = vsub.s32 %v6355, %v6357
      %v6359 = vrot.slane %v6351, %v6358
      %v6361 = vunpack.c.l.s4 1934713408
      %v6362 = vunpack.c.0.s8 %v6361
      %v6363 = vlaneseq
      %v6364 = vshrl.u32 %v6363, 7
      %v6365 = vsub.s32 %v6362, %v6364
      %v6366 = vrot.slane %v6352, %v6365
      %v6367 = vcombine.low %v6302, %v6318
      %v6368 = vcombine.high %v6302, %v6318
      %v6370 = vunpack.c.l.s4 1934713408
      %v6371 = vunpack.c.0.s8 %v6370
      %v6372 = vlaneseq
      %v6373 = vshrl.u32 %v6372, 7
      %v6374 = vsub.s32 %v6371, %v6373
      %v6375 = vrot.slane %v6367, %v6374
      %v6377 = vunpack.c.l.s4 1934713408
      %v6378 = vunpack.c.0.s8 %v6377
      %v6379 = vlaneseq
      %v6380 = vshrl.u32 %v6379, 7
      %v6381 = vsub.s32 %v6378, %v6380
      %v6382 = vrot.slane %v6368, %v6381
      %v6383 = vcombine.low %v6327, %v6343
      %v6384 = vcombine.high %v6327, %v6343
      %v6386 = vunpack.c.l.s4 1934713408
      %v6387 = vunpack.c.0.s8 %v6386
      %v6388 = vlaneseq
      %v6389 = vshrl.u32 %v6388, 7
      %v6390 = vsub.s32 %v6387, %v6389
      %v6391 = vrot.slane %v6383, %v6390
      %v6393 = vunpack.c.l.s4 1934713408
      %v6394 = vunpack.c.0.s8 %v6393
      %v6395 = vlaneseq
      %v6396 = vshrl.u32 %v6395, 7
      %v6397 = vsub.s32 %v6394, %v6396
      %v6398 = vrot.slane %v6384, %v6397
      %v6399 = vcombine.low %v6334, %v6350
      %v6400 = vcombine.high %v6334, %v6350
      %v6402 = vunpack.c.l.s4 1934713408
      %v6403 = vunpack.c.0.s8 %v6402
      %v6404 = vlaneseq
      %v6405 = vshrl.u32 %v6404, 7
      %v6406 = vsub.s32 %v6403, %v6405
      %v6407 = vrot.slane %v6399, %v6406
      %v6409 = vunpack.c.l.s4 1934713408
      %v6410 = vunpack.c.0.s8 %v6409
      %v6411 = vlaneseq
      %v6412 = vshrl.u32 %v6411, 7
      %v6413 = vsub.s32 %v6410, %v6412
      %v6414 = vrot.slane %v6400, %v6413
      %v6415 = vcombine.low %v6359, %v6391
      %v6416 = vcombine.high %v6359, %v6391
      %v6417 = vcombine.low %v6366, %v6398
      %v6418 = vcombine.high %v6366, %v6398
      %v6419 = vcombine.low %v6375, %v6407
      %v6420 = vcombine.high %v6375, %v6407
      %v6421 = vcombine.low %v6382, %v6414
      %v6422 = vcombine.high %v6382, %v6414
      %v6423 = vcombine.low %v6235, %v6245
      %v6424 = vcombine.high %v6235, %v6245
      %v6426 = vunpack.c.l.s4 1983009808
      %v6427 = vunpack.c.0.s8 %v6426
      %v6428 = vlaneseq
      %v6429 = vshrl.u32 %v6428, 7
      %v6430 = vsub.s32 %v6427, %v6429
      %v6431 = vrot.slane %v6423, %v6430
      %v6433 = vunpack.c.l.s4 1983009808
      %v6434 = vunpack.c.0.s8 %v6433
      %v6435 = vlaneseq
      %v6436 = vshrl.u32 %v6435, 7
      %v6437 = vsub.s32 %v6434, %v6436
      %v6438 = vrot.slane %v6424, %v6437
      %v6439 = vcombine.low %v6240, %v6250
      %v6440 = vcombine.high %v6240, %v6250
      %v6442 = vunpack.c.l.s4 1983009808
      %v6443 = vunpack.c.0.s8 %v6442
      %v6444 = vlaneseq
      %v6445 = vshrl.u32 %v6444, 7
      %v6446 = vsub.s32 %v6443, %v6445
      %v6447 = vrot.slane %v6439, %v6446
      %v6449 = vunpack.c.l.s4 1983009808
      %v6450 = vunpack.c.0.s8 %v6449
      %v6451 = vlaneseq
      %v6452 = vshrl.u32 %v6451, 7
      %v6453 = vsub.s32 %v6450, %v6452
      %v6454 = vrot.slane %v6440, %v6453
      %v6455 = vcombine.low %v6255, %v6265
      %v6456 = vcombine.high %v6255, %v6265
      %v6458 = vunpack.c.l.s4 1983009808
      %v6459 = vunpack.c.0.s8 %v6458
      %v6460 = vlaneseq
      %v6461 = vshrl.u32 %v6460, 7
      %v6462 = vsub.s32 %v6459, %v6461
      %v6463 = vrot.slane %v6455, %v6462
      %v6465 = vunpack.c.l.s4 1983009808
      %v6466 = vunpack.c.0.s8 %v6465
      %v6467 = vlaneseq
      %v6468 = vshrl.u32 %v6467, 7
      %v6469 = vsub.s32 %v6466, %v6468
      %v6470 = vrot.slane %v6456, %v6469
      %v6471 = vcombine.low %v6260, %v6270
      %v6472 = vcombine.high %v6260, %v6270
      %v6474 = vunpack.c.l.s4 1983009808
      %v6475 = vunpack.c.0.s8 %v6474
      %v6476 = vlaneseq
      %v6477 = vshrl.u32 %v6476, 7
      %v6478 = vsub.s32 %v6475, %v6477
      %v6479 = vrot.slane %v6471, %v6478
      %v6481 = vunpack.c.l.s4 1983009808
      %v6482 = vunpack.c.0.s8 %v6481
      %v6483 = vlaneseq
      %v6484 = vshrl.u32 %v6483, 7
      %v6485 = vsub.s32 %v6482, %v6484
      %v6486 = vrot.slane %v6472, %v6485
      %v6487 = vcombine.low %v6431, %v6447
      %v6488 = vcombine.high %v6431, %v6447
      %v6490 = vunpack.c.l.s4 1934713408
      %v6491 = vunpack.c.0.s8 %v6490
      %v6492 = vlaneseq
      %v6493 = vshrl.u32 %v6492, 7
      %v6494 = vsub.s32 %v6491, %v6493
      %v6495 = vrot.slane %v6487, %v6494
      %v6497 = vunpack.c.l.s4 1934713408
      %v6498 = vunpack.c.0.s8 %v6497
      %v6499 = vlaneseq
      %v6500 = vshrl.u32 %v6499, 7
      %v6501 = vsub.s32 %v6498, %v6500
      %v6502 = vrot.slane %v6488, %v6501
      %v6503 = vcombine.low %v6438, %v6454
      %v6504 = vcombine.high %v6438, %v6454
      %v6506 = vunpack.c.l.s4 1934713408
      %v6507 = vunpack.c.0.s8 %v6506
      %v6508 = vlaneseq
      %v6509 = vshrl.u32 %v6508, 7
      %v6510 = vsub.s32 %v6507, %v6509
      %v6511 = vrot.slane %v6503, %v6510
      %v6513 = vunpack.c.l.s4 1934713408
      %v6514 = vunpack.c.0.s8 %v6513
      %v6515 = vlaneseq
      %v6516 = vshrl.u32 %v6515, 7
      %v6517 = vsub.s32 %v6514, %v6516
      %v6518 = vrot.slane %v6504, %v6517
      %v6519 = vcombine.low %v6463, %v6479
      %v6520 = vcombine.high %v6463, %v6479
      %v6522 = vunpack.c.l.s4 1934713408
      %v6523 = vunpack.c.0.s8 %v6522
      %v6524 = vlaneseq
      %v6525 = vshrl.u32 %v6524, 7
      %v6526 = vsub.s32 %v6523, %v6525
      %v6527 = vrot.slane %v6519, %v6526
      %v6529 = vunpack.c.l.s4 1934713408
      %v6530 = vunpack.c.0.s8 %v6529
      %v6531 = vlaneseq
      %v6532 = vshrl.u32 %v6531, 7
      %v6533 = vsub.s32 %v6530, %v6532
      %v6534 = vrot.slane %v6520, %v6533
      %v6535 = vcombine.low %v6470, %v6486
      %v6536 = vcombine.high %v6470, %v6486
      %v6538 = vunpack.c.l.s4 1934713408
      %v6539 = vunpack.c.0.s8 %v6538
      %v6540 = vlaneseq
      %v6541 = vshrl.u32 %v6540, 7
      %v6542 = vsub.s32 %v6539, %v6541
      %v6543 = vrot.slane %v6535, %v6542
      %v6545 = vunpack.c.l.s4 1934713408
      %v6546 = vunpack.c.0.s8 %v6545
      %v6547 = vlaneseq
      %v6548 = vshrl.u32 %v6547, 7
      %v6549 = vsub.s32 %v6546, %v6548
      %v6550 = vrot.slane %v6536, %v6549
      %v6551 = vcombine.low %v6495, %v6527
      %v6552 = vcombine.high %v6495, %v6527
      %v6553 = vcombine.low %v6502, %v6534
      %v6554 = vcombine.high %v6502, %v6534
      %v6555 = vcombine.low %v6511, %v6543
      %v6556 = vcombine.high %v6511, %v6543
      %v6557 = vcombine.low %v6518, %v6550
      %v6558 = vcombine.high %v6518, %v6550
      %6560 = vrot.lane.b32.xlu0 %v6416, 16
      %v6561 = vpop.permute.xlu0 %6560
      %6564 = vrot.lane.b32.xlu0 %v6417, 32
      %v6565 = vpop.permute.xlu0 %6564
      %6568 = vrot.lane.b32.xlu0 %v6418, 48
      %v6569 = vpop.permute.xlu0 %6568
      %6572 = vrot.lane.b32.xlu0 %v6419, 64
      %v6573 = vpop.permute.xlu0 %6572
      %6576 = vrot.lane.b32.xlu0 %v6420, 80
      %v6577 = vpop.permute.xlu0 %6576
      %6580 = vrot.lane.b32.xlu0 %v6421, 96
      %v6581 = vpop.permute.xlu0 %6580
      %6584 = vrot.lane.b32.xlu0 %v6422, 112
      %v6585 = vpop.permute.xlu0 %6584
      %6588 = vrot.lane.b32.xlu0 %v6552, 16
      %v6589 = vpop.permute.xlu0 %6588
      %6592 = vrot.lane.b32.xlu0 %v6553, 32
      %v6593 = vpop.permute.xlu0 %6592
      %6596 = vrot.lane.b32.xlu0 %v6554, 48
      %v6597 = vpop.permute.xlu0 %6596
      %6600 = vrot.lane.b32.xlu0 %v6555, 64
      %v6601 = vpop.permute.xlu0 %6600
      %6604 = vrot.lane.b32.xlu0 %v6556, 80
      %v6605 = vpop.permute.xlu0 %6604
      %6608 = vrot.lane.b32.xlu0 %v6557, 96
      %v6609 = vpop.permute.xlu0 %6608
      %6612 = vrot.lane.b32.xlu0 %v6558, 112
      %v6613 = vpop.permute.xlu0 %6612
      %v6615 = vsel %vm1296, %v6415, %v6561
      %v6616 = vsel %vm1298, %v6615, %v6565
      %v6617 = vsel %vm1300, %v6616, %v6569
      %v6618 = vsel %vm1302, %v6617, %v6573
      %v6619 = vsel %vm1304, %v6618, %v6577
      %v6620 = vsel %vm1306, %v6619, %v6581
      %v6621 = vsel %vm1308, %v6620, %v6585
      %v6622 = vsel %vm1296, %v6551, %v6589
      %v6623 = vsel %vm1298, %v6622, %v6593
      %v6624 = vsel %vm1300, %v6623, %v6597
      %v6625 = vsel %vm1302, %v6624, %v6601
      %v6626 = vsel %vm1304, %v6625, %v6605
      %v6627 = vsel %vm1306, %v6626, %v6609
      %v6628 = vsel %vm1308, %v6627, %v6613
      %6629 = vrot.lane.b32.xlu0 %v6233, 127
      %v6630 = vpop.permute.xlu0 %6629
      %6631 = vrot.lane.b32.xlu0 %v6235, 127
      %v6632 = vpop.permute.xlu0 %6631
      %6633 = vrot.lane.b32.xlu0 %v6238, 127
      %v6634 = vpop.permute.xlu0 %6633
      %6635 = vrot.lane.b32.xlu0 %v6240, 127
      %v6636 = vpop.permute.xlu0 %6635
      %6637 = vrot.lane.b32.xlu0 %v6243, 127
      %v6638 = vpop.permute.xlu0 %6637
      %6639 = vrot.lane.b32.xlu0 %v6245, 127
      %v6640 = vpop.permute.xlu0 %6639
      %6641 = vrot.lane.b32.xlu0 %v6248, 127
      %v6642 = vpop.permute.xlu0 %6641
      %6643 = vrot.lane.b32.xlu0 %v6250, 127
      %v6644 = vpop.permute.xlu0 %6643
      %6645 = vrot.lane.b32.xlu0 %v6253, 127
      %v6646 = vpop.permute.xlu0 %6645
      %6647 = vrot.lane.b32.xlu0 %v6255, 127
      %v6648 = vpop.permute.xlu0 %6647
      %6649 = vrot.lane.b32.xlu0 %v6258, 127
      %v6650 = vpop.permute.xlu0 %6649
      %6651 = vrot.lane.b32.xlu0 %v6260, 127
      %v6652 = vpop.permute.xlu0 %6651
      %6653 = vrot.lane.b32.xlu0 %v6263, 127
      %v6654 = vpop.permute.xlu0 %6653
      %6655 = vrot.lane.b32.xlu0 %v6265, 127
      %v6656 = vpop.permute.xlu0 %6655
      %6657 = vrot.lane.b32.xlu0 %v6268, 127
      %v6658 = vpop.permute.xlu0 %6657
      %6659 = vrot.lane.b32.xlu0 %v6270, 127
      %v6660 = vpop.permute.xlu0 %6659
      %v6677 = vcombine.low %v6630, %v6638
      %v6678 = vcombine.high %v6630, %v6638
      %v6680 = vunpack.c.l.s4 1983009808
      %v6681 = vunpack.c.0.s8 %v6680
      %v6682 = vlaneseq
      %v6683 = vshrl.u32 %v6682, 7
      %v6684 = vsub.s32 %v6681, %v6683
      %v6685 = vrot.slane %v6677, %v6684
      %v6687 = vunpack.c.l.s4 1983009808
      %v6688 = vunpack.c.0.s8 %v6687
      %v6689 = vlaneseq
      %v6690 = vshrl.u32 %v6689, 7
      %v6691 = vsub.s32 %v6688, %v6690
      %v6692 = vrot.slane %v6678, %v6691
      %v6693 = vcombine.low %v6634, %v6642
      %v6694 = vcombine.high %v6634, %v6642
      %v6696 = vunpack.c.l.s4 1983009808
      %v6697 = vunpack.c.0.s8 %v6696
      %v6698 = vlaneseq
      %v6699 = vshrl.u32 %v6698, 7
      %v6700 = vsub.s32 %v6697, %v6699
      %v6701 = vrot.slane %v6693, %v6700
      %v6703 = vunpack.c.l.s4 1983009808
      %v6704 = vunpack.c.0.s8 %v6703
      %v6705 = vlaneseq
      %v6706 = vshrl.u32 %v6705, 7
      %v6707 = vsub.s32 %v6704, %v6706
      %v6708 = vrot.slane %v6694, %v6707
      %v6709 = vcombine.low %v6646, %v6654
      %v6710 = vcombine.high %v6646, %v6654
      %v6712 = vunpack.c.l.s4 1983009808
      %v6713 = vunpack.c.0.s8 %v6712
      %v6714 = vlaneseq
      %v6715 = vshrl.u32 %v6714, 7
      %v6716 = vsub.s32 %v6713, %v6715
      %v6717 = vrot.slane %v6709, %v6716
      %v6719 = vunpack.c.l.s4 1983009808
      %v6720 = vunpack.c.0.s8 %v6719
      %v6721 = vlaneseq
      %v6722 = vshrl.u32 %v6721, 7
      %v6723 = vsub.s32 %v6720, %v6722
      %v6724 = vrot.slane %v6710, %v6723
      %v6725 = vcombine.low %v6650, %v6658
      %v6726 = vcombine.high %v6650, %v6658
      %v6728 = vunpack.c.l.s4 1983009808
      %v6729 = vunpack.c.0.s8 %v6728
      %v6730 = vlaneseq
      %v6731 = vshrl.u32 %v6730, 7
      %v6732 = vsub.s32 %v6729, %v6731
      %v6733 = vrot.slane %v6725, %v6732
      %v6735 = vunpack.c.l.s4 1983009808
      %v6736 = vunpack.c.0.s8 %v6735
      %v6737 = vlaneseq
      %v6738 = vshrl.u32 %v6737, 7
      %v6739 = vsub.s32 %v6736, %v6738
      %v6740 = vrot.slane %v6726, %v6739
      %v6741 = vcombine.low %v6685, %v6701
      %v6742 = vcombine.high %v6685, %v6701
      %v6744 = vunpack.c.l.s4 1934713408
      %v6745 = vunpack.c.0.s8 %v6744
      %v6746 = vlaneseq
      %v6747 = vshrl.u32 %v6746, 7
      %v6748 = vsub.s32 %v6745, %v6747
      %v6749 = vrot.slane %v6741, %v6748
      %v6751 = vunpack.c.l.s4 1934713408
      %v6752 = vunpack.c.0.s8 %v6751
      %v6753 = vlaneseq
      %v6754 = vshrl.u32 %v6753, 7
      %v6755 = vsub.s32 %v6752, %v6754
      %v6756 = vrot.slane %v6742, %v6755
      %v6757 = vcombine.low %v6692, %v6708
      %v6758 = vcombine.high %v6692, %v6708
      %v6760 = vunpack.c.l.s4 1934713408
      %v6761 = vunpack.c.0.s8 %v6760
      %v6762 = vlaneseq
      %v6763 = vshrl.u32 %v6762, 7
      %v6764 = vsub.s32 %v6761, %v6763
      %v6765 = vrot.slane %v6757, %v6764
      %v6767 = vunpack.c.l.s4 1934713408
      %v6768 = vunpack.c.0.s8 %v6767
      %v6769 = vlaneseq
      %v6770 = vshrl.u32 %v6769, 7
      %v6771 = vsub.s32 %v6768, %v6770
      %v6772 = vrot.slane %v6758, %v6771
      %v6773 = vcombine.low %v6717, %v6733
      %v6774 = vcombine.high %v6717, %v6733
      %v6776 = vunpack.c.l.s4 1934713408
      %v6777 = vunpack.c.0.s8 %v6776
      %v6778 = vlaneseq
      %v6779 = vshrl.u32 %v6778, 7
      %v6780 = vsub.s32 %v6777, %v6779
      %v6781 = vrot.slane %v6773, %v6780
      %v6783 = vunpack.c.l.s4 1934713408
      %v6784 = vunpack.c.0.s8 %v6783
      %v6785 = vlaneseq
      %v6786 = vshrl.u32 %v6785, 7
      %v6787 = vsub.s32 %v6784, %v6786
      %v6788 = vrot.slane %v6774, %v6787
      %v6789 = vcombine.low %v6724, %v6740
      %v6790 = vcombine.high %v6724, %v6740
      %v6792 = vunpack.c.l.s4 1934713408
      %v6793 = vunpack.c.0.s8 %v6792
      %v6794 = vlaneseq
      %v6795 = vshrl.u32 %v6794, 7
      %v6796 = vsub.s32 %v6793, %v6795
      %v6797 = vrot.slane %v6789, %v6796
      %v6799 = vunpack.c.l.s4 1934713408
      %v6800 = vunpack.c.0.s8 %v6799
      %v6801 = vlaneseq
      %v6802 = vshrl.u32 %v6801, 7
      %v6803 = vsub.s32 %v6800, %v6802
      %v6804 = vrot.slane %v6790, %v6803
      %v6805 = vcombine.low %v6749, %v6781
      %v6806 = vcombine.high %v6749, %v6781
      %v6807 = vcombine.low %v6756, %v6788
      %v6808 = vcombine.high %v6756, %v6788
      %v6809 = vcombine.low %v6765, %v6797
      %v6810 = vcombine.high %v6765, %v6797
      %v6811 = vcombine.low %v6772, %v6804
      %v6812 = vcombine.high %v6772, %v6804
      %v6813 = vcombine.low %v6632, %v6640
      %v6814 = vcombine.high %v6632, %v6640
      %v6816 = vunpack.c.l.s4 1983009808
      %v6817 = vunpack.c.0.s8 %v6816
      %v6818 = vlaneseq
      %v6819 = vshrl.u32 %v6818, 7
      %v6820 = vsub.s32 %v6817, %v6819
      %v6821 = vrot.slane %v6813, %v6820
      %v6823 = vunpack.c.l.s4 1983009808
      %v6824 = vunpack.c.0.s8 %v6823
      %v6825 = vlaneseq
      %v6826 = vshrl.u32 %v6825, 7
      %v6827 = vsub.s32 %v6824, %v6826
      %v6828 = vrot.slane %v6814, %v6827
      %v6829 = vcombine.low %v6636, %v6644
      %v6830 = vcombine.high %v6636, %v6644
      %v6832 = vunpack.c.l.s4 1983009808
      %v6833 = vunpack.c.0.s8 %v6832
      %v6834 = vlaneseq
      %v6835 = vshrl.u32 %v6834, 7
      %v6836 = vsub.s32 %v6833, %v6835
      %v6837 = vrot.slane %v6829, %v6836
      %v6839 = vunpack.c.l.s4 1983009808
      %v6840 = vunpack.c.0.s8 %v6839
      %v6841 = vlaneseq
      %v6842 = vshrl.u32 %v6841, 7
      %v6843 = vsub.s32 %v6840, %v6842
      %v6844 = vrot.slane %v6830, %v6843
      %v6845 = vcombine.low %v6648, %v6656
      %v6846 = vcombine.high %v6648, %v6656
      %v6848 = vunpack.c.l.s4 1983009808
      %v6849 = vunpack.c.0.s8 %v6848
      %v6850 = vlaneseq
      %v6851 = vshrl.u32 %v6850, 7
      %v6852 = vsub.s32 %v6849, %v6851
      %v6853 = vrot.slane %v6845, %v6852
      %v6855 = vunpack.c.l.s4 1983009808
      %v6856 = vunpack.c.0.s8 %v6855
      %v6857 = vlaneseq
      %v6858 = vshrl.u32 %v6857, 7
      %v6859 = vsub.s32 %v6856, %v6858
      %v6860 = vrot.slane %v6846, %v6859
      %v6861 = vcombine.low %v6652, %v6660
      %v6862 = vcombine.high %v6652, %v6660
      %v6864 = vunpack.c.l.s4 1983009808
      %v6865 = vunpack.c.0.s8 %v6864
      %v6866 = vlaneseq
      %v6867 = vshrl.u32 %v6866, 7
      %v6868 = vsub.s32 %v6865, %v6867
      %v6869 = vrot.slane %v6861, %v6868
      %v6871 = vunpack.c.l.s4 1983009808
      %v6872 = vunpack.c.0.s8 %v6871
      %v6873 = vlaneseq
      %v6874 = vshrl.u32 %v6873, 7
      %v6875 = vsub.s32 %v6872, %v6874
      %v6876 = vrot.slane %v6862, %v6875
      %v6877 = vcombine.low %v6821, %v6837
      %v6878 = vcombine.high %v6821, %v6837
      %v6880 = vunpack.c.l.s4 1934713408
      %v6881 = vunpack.c.0.s8 %v6880
      %v6882 = vlaneseq
      %v6883 = vshrl.u32 %v6882, 7
      %v6884 = vsub.s32 %v6881, %v6883
      %v6885 = vrot.slane %v6877, %v6884
      %v6887 = vunpack.c.l.s4 1934713408
      %v6888 = vunpack.c.0.s8 %v6887
      %v6889 = vlaneseq
      %v6890 = vshrl.u32 %v6889, 7
      %v6891 = vsub.s32 %v6888, %v6890
      %v6892 = vrot.slane %v6878, %v6891
      %v6893 = vcombine.low %v6828, %v6844
      %v6894 = vcombine.high %v6828, %v6844
      %v6896 = vunpack.c.l.s4 1934713408
      %v6897 = vunpack.c.0.s8 %v6896
      %v6898 = vlaneseq
      %v6899 = vshrl.u32 %v6898, 7
      %v6900 = vsub.s32 %v6897, %v6899
      %v6901 = vrot.slane %v6893, %v6900
      %v6903 = vunpack.c.l.s4 1934713408
      %v6904 = vunpack.c.0.s8 %v6903
      %v6905 = vlaneseq
      %v6906 = vshrl.u32 %v6905, 7
      %v6907 = vsub.s32 %v6904, %v6906
      %v6908 = vrot.slane %v6894, %v6907
      %v6909 = vcombine.low %v6853, %v6869
      %v6910 = vcombine.high %v6853, %v6869
      %v6912 = vunpack.c.l.s4 1934713408
      %v6913 = vunpack.c.0.s8 %v6912
      %v6914 = vlaneseq
      %v6915 = vshrl.u32 %v6914, 7
      %v6916 = vsub.s32 %v6913, %v6915
      %v6917 = vrot.slane %v6909, %v6916
      %v6919 = vunpack.c.l.s4 1934713408
      %v6920 = vunpack.c.0.s8 %v6919
      %v6921 = vlaneseq
      %v6922 = vshrl.u32 %v6921, 7
      %v6923 = vsub.s32 %v6920, %v6922
      %v6924 = vrot.slane %v6910, %v6923
      %v6925 = vcombine.low %v6860, %v6876
      %v6926 = vcombine.high %v6860, %v6876
      %v6928 = vunpack.c.l.s4 1934713408
      %v6929 = vunpack.c.0.s8 %v6928
      %v6930 = vlaneseq
      %v6931 = vshrl.u32 %v6930, 7
      %v6932 = vsub.s32 %v6929, %v6931
      %v6933 = vrot.slane %v6925, %v6932
      %v6935 = vunpack.c.l.s4 1934713408
      %v6936 = vunpack.c.0.s8 %v6935
      %v6937 = vlaneseq
      %v6938 = vshrl.u32 %v6937, 7
      %v6939 = vsub.s32 %v6936, %v6938
      %v6940 = vrot.slane %v6926, %v6939
      %v6941 = vcombine.low %v6885, %v6917
      %v6942 = vcombine.high %v6885, %v6917
      %v6943 = vcombine.low %v6892, %v6924
      %v6944 = vcombine.high %v6892, %v6924
      %v6945 = vcombine.low %v6901, %v6933
      %v6946 = vcombine.high %v6901, %v6933
      %v6947 = vcombine.low %v6908, %v6940
      %v6948 = vcombine.high %v6908, %v6940
      %6950 = vrot.lane.b32.xlu0 %v6806, 16
      %v6951 = vpop.permute.xlu0 %6950
      %6954 = vrot.lane.b32.xlu0 %v6807, 32
      %v6955 = vpop.permute.xlu0 %6954
      %6958 = vrot.lane.b32.xlu0 %v6808, 48
      %v6959 = vpop.permute.xlu0 %6958
      %6962 = vrot.lane.b32.xlu0 %v6809, 64
      %v6963 = vpop.permute.xlu0 %6962
      %6966 = vrot.lane.b32.xlu0 %v6810, 80
      %v6967 = vpop.permute.xlu0 %6966
      %6970 = vrot.lane.b32.xlu0 %v6811, 96
      %v6971 = vpop.permute.xlu0 %6970
      %6974 = vrot.lane.b32.xlu0 %v6812, 112
      %v6975 = vpop.permute.xlu0 %6974
      %6978 = vrot.lane.b32.xlu0 %v6942, 16
      %v6979 = vpop.permute.xlu0 %6978
      %6982 = vrot.lane.b32.xlu0 %v6943, 32
      %v6983 = vpop.permute.xlu0 %6982
      %6986 = vrot.lane.b32.xlu0 %v6944, 48
      %v6987 = vpop.permute.xlu0 %6986
      %6990 = vrot.lane.b32.xlu0 %v6945, 64
      %v6991 = vpop.permute.xlu0 %6990
      %6994 = vrot.lane.b32.xlu0 %v6946, 80
      %v6995 = vpop.permute.xlu0 %6994
      %6998 = vrot.lane.b32.xlu0 %v6947, 96
      %v6999 = vpop.permute.xlu0 %6998
      %7002 = vrot.lane.b32.xlu0 %v6948, 112
      %v7003 = vpop.permute.xlu0 %7002
      %v7005 = vsel %vm1296, %v6805, %v6951
      %v7006 = vsel %vm1298, %v7005, %v6955
      %v7007 = vsel %vm1300, %v7006, %v6959
      %v7008 = vsel %vm1302, %v7007, %v6963
      %v7009 = vsel %vm1304, %v7008, %v6967
      %v7010 = vsel %vm1306, %v7009, %v6971
      %v7011 = vsel %vm1308, %v7010, %v6975
      %v7012 = vsel %vm1296, %v6941, %v6979
      %v7013 = vsel %vm1298, %v7012, %v6983
      %v7014 = vsel %vm1300, %v7013, %v6987
      %v7015 = vsel %vm1302, %v7014, %v6991
      %v7016 = vsel %vm1304, %v7015, %v6995
      %v7017 = vsel %vm1306, %v7016, %v6999
      %v7018 = vsel %vm1308, %v7017, %v7003
      %7019 = vrot.lane.b32.xlu0 %v6233, 126
      %v7020 = vpop.permute.xlu0 %7019
      %7021 = vrot.lane.b32.xlu0 %v6235, 126
      %v7022 = vpop.permute.xlu0 %7021
      %7023 = vrot.lane.b32.xlu0 %v6238, 126
      %v7024 = vpop.permute.xlu0 %7023
      %7025 = vrot.lane.b32.xlu0 %v6240, 126
      %v7026 = vpop.permute.xlu0 %7025
      %7027 = vrot.lane.b32.xlu0 %v6243, 126
      %v7028 = vpop.permute.xlu0 %7027
      %7029 = vrot.lane.b32.xlu0 %v6245, 126
      %v7030 = vpop.permute.xlu0 %7029
      %7031 = vrot.lane.b32.xlu0 %v6248, 126
      %v7032 = vpop.permute.xlu0 %7031
      %7033 = vrot.lane.b32.xlu0 %v6250, 126
      %v7034 = vpop.permute.xlu0 %7033
      %7035 = vrot.lane.b32.xlu0 %v6253, 126
      %v7036 = vpop.permute.xlu0 %7035
      %7037 = vrot.lane.b32.xlu0 %v6255, 126
      %v7038 = vpop.permute.xlu0 %7037
      %7039 = vrot.lane.b32.xlu0 %v6258, 126
      %v7040 = vpop.permute.xlu0 %7039
      %7041 = vrot.lane.b32.xlu0 %v6260, 126
      %v7042 = vpop.permute.xlu0 %7041
      %7043 = vrot.lane.b32.xlu0 %v6263, 126
      %v7044 = vpop.permute.xlu0 %7043
      %7045 = vrot.lane.b32.xlu0 %v6265, 126
      %v7046 = vpop.permute.xlu0 %7045
      %7047 = vrot.lane.b32.xlu0 %v6268, 126
      %v7048 = vpop.permute.xlu0 %7047
      %7049 = vrot.lane.b32.xlu0 %v6270, 126
      %v7050 = vpop.permute.xlu0 %7049
      %v7067 = vcombine.low %v7020, %v7028
      %v7068 = vcombine.high %v7020, %v7028
      %v7070 = vunpack.c.l.s4 1983009808
      %v7071 = vunpack.c.0.s8 %v7070
      %v7072 = vlaneseq
      %v7073 = vshrl.u32 %v7072, 7
      %v7074 = vsub.s32 %v7071, %v7073
      %v7075 = vrot.slane %v7067, %v7074
      %v7077 = vunpack.c.l.s4 1983009808
      %v7078 = vunpack.c.0.s8 %v7077
      %v7079 = vlaneseq
      %v7080 = vshrl.u32 %v7079, 7
      %v7081 = vsub.s32 %v7078, %v7080
      %v7082 = vrot.slane %v7068, %v7081
      %v7083 = vcombine.low %v7024, %v7032
      %v7084 = vcombine.high %v7024, %v7032
      %v7086 = vunpack.c.l.s4 1983009808
      %v7087 = vunpack.c.0.s8 %v7086
      %v7088 = vlaneseq
      %v7089 = vshrl.u32 %v7088, 7
      %v7090 = vsub.s32 %v7087, %v7089
      %v7091 = vrot.slane %v7083, %v7090
      %v7093 = vunpack.c.l.s4 1983009808
      %v7094 = vunpack.c.0.s8 %v7093
      %v7095 = vlaneseq
      %v7096 = vshrl.u32 %v7095, 7
      %v7097 = vsub.s32 %v7094, %v7096
      %v7098 = vrot.slane %v7084, %v7097
      %v7099 = vcombine.low %v7036, %v7044
      %v7100 = vcombine.high %v7036, %v7044
      %v7102 = vunpack.c.l.s4 1983009808
      %v7103 = vunpack.c.0.s8 %v7102
      %v7104 = vlaneseq
      %v7105 = vshrl.u32 %v7104, 7
      %v7106 = vsub.s32 %v7103, %v7105
      %v7107 = vrot.slane %v7099, %v7106
      %v7109 = vunpack.c.l.s4 1983009808
      %v7110 = vunpack.c.0.s8 %v7109
      %v7111 = vlaneseq
      %v7112 = vshrl.u32 %v7111, 7
      %v7113 = vsub.s32 %v7110, %v7112
      %v7114 = vrot.slane %v7100, %v7113
      %v7115 = vcombine.low %v7040, %v7048
      %v7116 = vcombine.high %v7040, %v7048
      %v7118 = vunpack.c.l.s4 1983009808
      %v7119 = vunpack.c.0.s8 %v7118
      %v7120 = vlaneseq
      %v7121 = vshrl.u32 %v7120, 7
      %v7122 = vsub.s32 %v7119, %v7121
      %v7123 = vrot.slane %v7115, %v7122
      %v7125 = vunpack.c.l.s4 1983009808
      %v7126 = vunpack.c.0.s8 %v7125
      %v7127 = vlaneseq
      %v7128 = vshrl.u32 %v7127, 7
      %v7129 = vsub.s32 %v7126, %v7128
      %v7130 = vrot.slane %v7116, %v7129
      %v7131 = vcombine.low %v7075, %v7091
      %v7132 = vcombine.high %v7075, %v7091
      %v7134 = vunpack.c.l.s4 1934713408
      %v7135 = vunpack.c.0.s8 %v7134
      %v7136 = vlaneseq
      %v7137 = vshrl.u32 %v7136, 7
      %v7138 = vsub.s32 %v7135, %v7137
      %v7139 = vrot.slane %v7131, %v7138
      %v7141 = vunpack.c.l.s4 1934713408
      %v7142 = vunpack.c.0.s8 %v7141
      %v7143 = vlaneseq
      %v7144 = vshrl.u32 %v7143, 7
      %v7145 = vsub.s32 %v7142, %v7144
      %v7146 = vrot.slane %v7132, %v7145
      %v7147 = vcombine.low %v7082, %v7098
      %v7148 = vcombine.high %v7082, %v7098
      %v7150 = vunpack.c.l.s4 1934713408
      %v7151 = vunpack.c.0.s8 %v7150
      %v7152 = vlaneseq
      %v7153 = vshrl.u32 %v7152, 7
      %v7154 = vsub.s32 %v7151, %v7153
      %v7155 = vrot.slane %v7147, %v7154
      %v7157 = vunpack.c.l.s4 1934713408
      %v7158 = vunpack.c.0.s8 %v7157
      %v7159 = vlaneseq
      %v7160 = vshrl.u32 %v7159, 7
      %v7161 = vsub.s32 %v7158, %v7160
      %v7162 = vrot.slane %v7148, %v7161
      %v7163 = vcombine.low %v7107, %v7123
      %v7164 = vcombine.high %v7107, %v7123
      %v7166 = vunpack.c.l.s4 1934713408
      %v7167 = vunpack.c.0.s8 %v7166
      %v7168 = vlaneseq
      %v7169 = vshrl.u32 %v7168, 7
      %v7170 = vsub.s32 %v7167, %v7169
      %v7171 = vrot.slane %v7163, %v7170
      %v7173 = vunpack.c.l.s4 1934713408
      %v7174 = vunpack.c.0.s8 %v7173
      %v7175 = vlaneseq
      %v7176 = vshrl.u32 %v7175, 7
      %v7177 = vsub.s32 %v7174, %v7176
      %v7178 = vrot.slane %v7164, %v7177
      %v7179 = vcombine.low %v7114, %v7130
      %v7180 = vcombine.high %v7114, %v7130
      %v7182 = vunpack.c.l.s4 1934713408
      %v7183 = vunpack.c.0.s8 %v7182
      %v7184 = vlaneseq
      %v7185 = vshrl.u32 %v7184, 7
      %v7186 = vsub.s32 %v7183, %v7185
      %v7187 = vrot.slane %v7179, %v7186
      %v7189 = vunpack.c.l.s4 1934713408
      %v7190 = vunpack.c.0.s8 %v7189
      %v7191 = vlaneseq
      %v7192 = vshrl.u32 %v7191, 7
      %v7193 = vsub.s32 %v7190, %v7192
      %v7194 = vrot.slane %v7180, %v7193
      %v7195 = vcombine.low %v7139, %v7171
      %v7196 = vcombine.high %v7139, %v7171
      %v7197 = vcombine.low %v7146, %v7178
      %v7198 = vcombine.high %v7146, %v7178
      %v7199 = vcombine.low %v7155, %v7187
      %v7200 = vcombine.high %v7155, %v7187
      %v7201 = vcombine.low %v7162, %v7194
      %v7202 = vcombine.high %v7162, %v7194
      %v7203 = vcombine.low %v7022, %v7030
      %v7204 = vcombine.high %v7022, %v7030
      %v7206 = vunpack.c.l.s4 1983009808
      %v7207 = vunpack.c.0.s8 %v7206
      %v7208 = vlaneseq
      %v7209 = vshrl.u32 %v7208, 7
      %v7210 = vsub.s32 %v7207, %v7209
      %v7211 = vrot.slane %v7203, %v7210
      %v7213 = vunpack.c.l.s4 1983009808
      %v7214 = vunpack.c.0.s8 %v7213
      %v7215 = vlaneseq
      %v7216 = vshrl.u32 %v7215, 7
      %v7217 = vsub.s32 %v7214, %v7216
      %v7218 = vrot.slane %v7204, %v7217
      %v7219 = vcombine.low %v7026, %v7034
      %v7220 = vcombine.high %v7026, %v7034
      %v7222 = vunpack.c.l.s4 1983009808
      %v7223 = vunpack.c.0.s8 %v7222
      %v7224 = vlaneseq
      %v7225 = vshrl.u32 %v7224, 7
      %v7226 = vsub.s32 %v7223, %v7225
      %v7227 = vrot.slane %v7219, %v7226
      %v7229 = vunpack.c.l.s4 1983009808
      %v7230 = vunpack.c.0.s8 %v7229
      %v7231 = vlaneseq
      %v7232 = vshrl.u32 %v7231, 7
      %v7233 = vsub.s32 %v7230, %v7232
      %v7234 = vrot.slane %v7220, %v7233
      %v7235 = vcombine.low %v7038, %v7046
      %v7236 = vcombine.high %v7038, %v7046
      %v7238 = vunpack.c.l.s4 1983009808
      %v7239 = vunpack.c.0.s8 %v7238
      %v7240 = vlaneseq
      %v7241 = vshrl.u32 %v7240, 7
      %v7242 = vsub.s32 %v7239, %v7241
      %v7243 = vrot.slane %v7235, %v7242
      %v7245 = vunpack.c.l.s4 1983009808
      %v7246 = vunpack.c.0.s8 %v7245
      %v7247 = vlaneseq
      %v7248 = vshrl.u32 %v7247, 7
      %v7249 = vsub.s32 %v7246, %v7248
      %v7250 = vrot.slane %v7236, %v7249
      %v7251 = vcombine.low %v7042, %v7050
      %v7252 = vcombine.high %v7042, %v7050
      %v7254 = vunpack.c.l.s4 1983009808
      %v7255 = vunpack.c.0.s8 %v7254
      %v7256 = vlaneseq
      %v7257 = vshrl.u32 %v7256, 7
      %v7258 = vsub.s32 %v7255, %v7257
      %v7259 = vrot.slane %v7251, %v7258
      %v7261 = vunpack.c.l.s4 1983009808
      %v7262 = vunpack.c.0.s8 %v7261
      %v7263 = vlaneseq
      %v7264 = vshrl.u32 %v7263, 7
      %v7265 = vsub.s32 %v7262, %v7264
      %v7266 = vrot.slane %v7252, %v7265
      %v7267 = vcombine.low %v7211, %v7227
      %v7268 = vcombine.high %v7211, %v7227
      %v7270 = vunpack.c.l.s4 1934713408
      %v7271 = vunpack.c.0.s8 %v7270
      %v7272 = vlaneseq
      %v7273 = vshrl.u32 %v7272, 7
      %v7274 = vsub.s32 %v7271, %v7273
      %v7275 = vrot.slane %v7267, %v7274
      %v7277 = vunpack.c.l.s4 1934713408
      %v7278 = vunpack.c.0.s8 %v7277
      %v7279 = vlaneseq
      %v7280 = vshrl.u32 %v7279, 7
      %v7281 = vsub.s32 %v7278, %v7280
      %v7282 = vrot.slane %v7268, %v7281
      %v7283 = vcombine.low %v7218, %v7234
      %v7284 = vcombine.high %v7218, %v7234
      %v7286 = vunpack.c.l.s4 1934713408
      %v7287 = vunpack.c.0.s8 %v7286
      %v7288 = vlaneseq
      %v7289 = vshrl.u32 %v7288, 7
      %v7290 = vsub.s32 %v7287, %v7289
      %v7291 = vrot.slane %v7283, %v7290
      %v7293 = vunpack.c.l.s4 1934713408
      %v7294 = vunpack.c.0.s8 %v7293
      %v7295 = vlaneseq
      %v7296 = vshrl.u32 %v7295, 7
      %v7297 = vsub.s32 %v7294, %v7296
      %v7298 = vrot.slane %v7284, %v7297
      %v7299 = vcombine.low %v7243, %v7259
      %v7300 = vcombine.high %v7243, %v7259
      %v7302 = vunpack.c.l.s4 1934713408
      %v7303 = vunpack.c.0.s8 %v7302
      %v7304 = vlaneseq
      %v7305 = vshrl.u32 %v7304, 7
      %v7306 = vsub.s32 %v7303, %v7305
      %v7307 = vrot.slane %v7299, %v7306
      %v7309 = vunpack.c.l.s4 1934713408
      %v7310 = vunpack.c.0.s8 %v7309
      %v7311 = vlaneseq
      %v7312 = vshrl.u32 %v7311, 7
      %v7313 = vsub.s32 %v7310, %v7312
      %v7314 = vrot.slane %v7300, %v7313
      %v7315 = vcombine.low %v7250, %v7266
      %v7316 = vcombine.high %v7250, %v7266
      %v7318 = vunpack.c.l.s4 1934713408
      %v7319 = vunpack.c.0.s8 %v7318
      %v7320 = vlaneseq
      %v7321 = vshrl.u32 %v7320, 7
      %v7322 = vsub.s32 %v7319, %v7321
      %v7323 = vrot.slane %v7315, %v7322
      %v7325 = vunpack.c.l.s4 1934713408
      %v7326 = vunpack.c.0.s8 %v7325
      %v7327 = vlaneseq
      %v7328 = vshrl.u32 %v7327, 7
      %v7329 = vsub.s32 %v7326, %v7328
      %v7330 = vrot.slane %v7316, %v7329
      %v7331 = vcombine.low %v7275, %v7307
      %v7332 = vcombine.high %v7275, %v7307
      %v7333 = vcombine.low %v7282, %v7314
      %v7334 = vcombine.high %v7282, %v7314
      %v7335 = vcombine.low %v7291, %v7323
      %v7336 = vcombine.high %v7291, %v7323
      %v7337 = vcombine.low %v7298, %v7330
      %v7338 = vcombine.high %v7298, %v7330
      %7340 = vrot.lane.b32.xlu0 %v7196, 16
      %v7341 = vpop.permute.xlu0 %7340
      %7344 = vrot.lane.b32.xlu0 %v7197, 32
      %v7345 = vpop.permute.xlu0 %7344
      %7348 = vrot.lane.b32.xlu0 %v7198, 48
      %v7349 = vpop.permute.xlu0 %7348
      %7352 = vrot.lane.b32.xlu0 %v7199, 64
      %v7353 = vpop.permute.xlu0 %7352
      %7356 = vrot.lane.b32.xlu0 %v7200, 80
      %v7357 = vpop.permute.xlu0 %7356
      %7360 = vrot.lane.b32.xlu0 %v7201, 96
      %v7361 = vpop.permute.xlu0 %7360
      %7364 = vrot.lane.b32.xlu0 %v7202, 112
      %v7365 = vpop.permute.xlu0 %7364
      %7368 = vrot.lane.b32.xlu0 %v7332, 16
      %v7369 = vpop.permute.xlu0 %7368
      %7372 = vrot.lane.b32.xlu0 %v7333, 32
      %v7373 = vpop.permute.xlu0 %7372
      %7376 = vrot.lane.b32.xlu0 %v7334, 48
      %v7377 = vpop.permute.xlu0 %7376
      %7380 = vrot.lane.b32.xlu0 %v7335, 64
      %v7381 = vpop.permute.xlu0 %7380
      %7384 = vrot.lane.b32.xlu0 %v7336, 80
      %v7385 = vpop.permute.xlu0 %7384
      %7388 = vrot.lane.b32.xlu0 %v7337, 96
      %v7389 = vpop.permute.xlu0 %7388
      %7392 = vrot.lane.b32.xlu0 %v7338, 112
      %v7393 = vpop.permute.xlu0 %7392
      %v7395 = vsel %vm1296, %v7195, %v7341
      %v7396 = vsel %vm1298, %v7395, %v7345
      %v7397 = vsel %vm1300, %v7396, %v7349
      %v7398 = vsel %vm1302, %v7397, %v7353
      %v7399 = vsel %vm1304, %v7398, %v7357
      %v7400 = vsel %vm1306, %v7399, %v7361
      %v7401 = vsel %vm1308, %v7400, %v7365
      %v7402 = vsel %vm1296, %v7331, %v7369
      %v7403 = vsel %vm1298, %v7402, %v7373
      %v7404 = vsel %vm1300, %v7403, %v7377
      %v7405 = vsel %vm1302, %v7404, %v7381
      %v7406 = vsel %vm1304, %v7405, %v7385
      %v7407 = vsel %vm1306, %v7406, %v7389
      %v7408 = vsel %vm1308, %v7407, %v7393
      %v7409 = vrot.slane %v5077, 2
      %v7410 = vrot.slane %v5031, 2
      %v7411 = vsel %vm3292, %v7409, %v7410
      %v7412 = vrot.slane %v5085, 2
      %v7413 = vsel %vm3292, %v7410, %v7412
      %v7414 = vrot.slane %v5078, 2
      %v7415 = vrot.slane %v5034, 2
      %v7416 = vsel %vm3292, %v7414, %v7415
      %v7417 = vrot.slane %v5086, 2
      %v7418 = vsel %vm3292, %v7415, %v7417
      %v7419 = vrot.slane %v5079, 2
      %v7420 = vrot.slane %v5037, 2
      %v7421 = vsel %vm3292, %v7419, %v7420
      %v7422 = vrot.slane %v5087, 2
      %v7423 = vsel %vm3292, %v7420, %v7422
      %v7424 = vrot.slane %v5080, 2
      %v7425 = vrot.slane %v5040, 2
      %v7426 = vsel %vm3292, %v7424, %v7425
      %v7427 = vrot.slane %v5088, 2
      %v7428 = vsel %vm3292, %v7425, %v7427
      %v7429 = vrot.slane %v5081, 2
      %v7430 = vrot.slane %v5043, 2
      %v7431 = vsel %vm3292, %v7429, %v7430
      %v7432 = vrot.slane %v5089, 2
      %v7433 = vsel %vm3292, %v7430, %v7432
      %v7434 = vrot.slane %v5082, 2
      %v7435 = vrot.slane %v5046, 2
      %v7436 = vsel %vm3292, %v7434, %v7435
      %v7437 = vrot.slane %v5090, 2
      %v7438 = vsel %vm3292, %v7435, %v7437
      %v7439 = vrot.slane %v5083, 2
      %v7440 = vrot.slane %v5049, 2
      %v7441 = vsel %vm3292, %v7439, %v7440
      %v7442 = vrot.slane %v5091, 2
      %v7443 = vsel %vm3292, %v7440, %v7442
      %v7444 = vrot.slane %v5084, 2
      %v7445 = vrot.slane %v5052, 2
      %v7446 = vsel %vm3292, %v7444, %v7445
      %v7447 = vrot.slane %v5092, 2
      %v7448 = vsel %vm3292, %v7445, %v7447
      %v7465 = vcombine.low %v7411, %v7421
      %v7466 = vcombine.high %v7411, %v7421
      %v7468 = vunpack.c.l.s4 1983009808
      %v7469 = vunpack.c.0.s8 %v7468
      %v7470 = vlaneseq
      %v7471 = vshrl.u32 %v7470, 7
      %v7472 = vsub.s32 %v7469, %v7471
      %v7473 = vrot.slane %v7465, %v7472
      %v7475 = vunpack.c.l.s4 1983009808
      %v7476 = vunpack.c.0.s8 %v7475
      %v7477 = vlaneseq
      %v7478 = vshrl.u32 %v7477, 7
      %v7479 = vsub.s32 %v7476, %v7478
      %v7480 = vrot.slane %v7466, %v7479
      %v7481 = vcombine.low %v7416, %v7426
      %v7482 = vcombine.high %v7416, %v7426
      %v7484 = vunpack.c.l.s4 1983009808
      %v7485 = vunpack.c.0.s8 %v7484
      %v7486 = vlaneseq
      %v7487 = vshrl.u32 %v7486, 7
      %v7488 = vsub.s32 %v7485, %v7487
      %v7489 = vrot.slane %v7481, %v7488
      %v7491 = vunpack.c.l.s4 1983009808
      %v7492 = vunpack.c.0.s8 %v7491
      %v7493 = vlaneseq
      %v7494 = vshrl.u32 %v7493, 7
      %v7495 = vsub.s32 %v7492, %v7494
      %v7496 = vrot.slane %v7482, %v7495
      %v7497 = vcombine.low %v7431, %v7441
      %v7498 = vcombine.high %v7431, %v7441
      %v7500 = vunpack.c.l.s4 1983009808
      %v7501 = vunpack.c.0.s8 %v7500
      %v7502 = vlaneseq
      %v7503 = vshrl.u32 %v7502, 7
      %v7504 = vsub.s32 %v7501, %v7503
      %v7505 = vrot.slane %v7497, %v7504
      %v7507 = vunpack.c.l.s4 1983009808
      %v7508 = vunpack.c.0.s8 %v7507
      %v7509 = vlaneseq
      %v7510 = vshrl.u32 %v7509, 7
      %v7511 = vsub.s32 %v7508, %v7510
      %v7512 = vrot.slane %v7498, %v7511
      %v7513 = vcombine.low %v7436, %v7446
      %v7514 = vcombine.high %v7436, %v7446
      %v7516 = vunpack.c.l.s4 1983009808
      %v7517 = vunpack.c.0.s8 %v7516
      %v7518 = vlaneseq
      %v7519 = vshrl.u32 %v7518, 7
      %v7520 = vsub.s32 %v7517, %v7519
      %v7521 = vrot.slane %v7513, %v7520
      %v7523 = vunpack.c.l.s4 1983009808
      %v7524 = vunpack.c.0.s8 %v7523
      %v7525 = vlaneseq
      %v7526 = vshrl.u32 %v7525, 7
      %v7527 = vsub.s32 %v7524, %v7526
      %v7528 = vrot.slane %v7514, %v7527
      %v7529 = vcombine.low %v7473, %v7489
      %v7530 = vcombine.high %v7473, %v7489
      %v7532 = vunpack.c.l.s4 1934713408
      %v7533 = vunpack.c.0.s8 %v7532
      %v7534 = vlaneseq
      %v7535 = vshrl.u32 %v7534, 7
      %v7536 = vsub.s32 %v7533, %v7535
      %v7537 = vrot.slane %v7529, %v7536
      %v7539 = vunpack.c.l.s4 1934713408
      %v7540 = vunpack.c.0.s8 %v7539
      %v7541 = vlaneseq
      %v7542 = vshrl.u32 %v7541, 7
      %v7543 = vsub.s32 %v7540, %v7542
      %v7544 = vrot.slane %v7530, %v7543
      %v7545 = vcombine.low %v7480, %v7496
      %v7546 = vcombine.high %v7480, %v7496
      %v7548 = vunpack.c.l.s4 1934713408
      %v7549 = vunpack.c.0.s8 %v7548
      %v7550 = vlaneseq
      %v7551 = vshrl.u32 %v7550, 7
      %v7552 = vsub.s32 %v7549, %v7551
      %v7553 = vrot.slane %v7545, %v7552
      %v7555 = vunpack.c.l.s4 1934713408
      %v7556 = vunpack.c.0.s8 %v7555
      %v7557 = vlaneseq
      %v7558 = vshrl.u32 %v7557, 7
      %v7559 = vsub.s32 %v7556, %v7558
      %v7560 = vrot.slane %v7546, %v7559
      %v7561 = vcombine.low %v7505, %v7521
      %v7562 = vcombine.high %v7505, %v7521
      %v7564 = vunpack.c.l.s4 1934713408
      %v7565 = vunpack.c.0.s8 %v7564
      %v7566 = vlaneseq
      %v7567 = vshrl.u32 %v7566, 7
      %v7568 = vsub.s32 %v7565, %v7567
      %v7569 = vrot.slane %v7561, %v7568
      %v7571 = vunpack.c.l.s4 1934713408
      %v7572 = vunpack.c.0.s8 %v7571
      %v7573 = vlaneseq
      %v7574 = vshrl.u32 %v7573, 7
      %v7575 = vsub.s32 %v7572, %v7574
      %v7576 = vrot.slane %v7562, %v7575
      %v7577 = vcombine.low %v7512, %v7528
      %v7578 = vcombine.high %v7512, %v7528
      %v7580 = vunpack.c.l.s4 1934713408
      %v7581 = vunpack.c.0.s8 %v7580
      %v7582 = vlaneseq
      %v7583 = vshrl.u32 %v7582, 7
      %v7584 = vsub.s32 %v7581, %v7583
      %v7585 = vrot.slane %v7577, %v7584
      %v7587 = vunpack.c.l.s4 1934713408
      %v7588 = vunpack.c.0.s8 %v7587
      %v7589 = vlaneseq
      %v7590 = vshrl.u32 %v7589, 7
      %v7591 = vsub.s32 %v7588, %v7590
      %v7592 = vrot.slane %v7578, %v7591
      %v7593 = vcombine.low %v7537, %v7569
      %v7594 = vcombine.high %v7537, %v7569
      %v7595 = vcombine.low %v7544, %v7576
      %v7596 = vcombine.high %v7544, %v7576
      %v7597 = vcombine.low %v7553, %v7585
      %v7598 = vcombine.high %v7553, %v7585
      %v7599 = vcombine.low %v7560, %v7592
      %v7600 = vcombine.high %v7560, %v7592
      %v7601 = vcombine.low %v7413, %v7423
      %v7602 = vcombine.high %v7413, %v7423
      %v7604 = vunpack.c.l.s4 1983009808
      %v7605 = vunpack.c.0.s8 %v7604
      %v7606 = vlaneseq
      %v7607 = vshrl.u32 %v7606, 7
      %v7608 = vsub.s32 %v7605, %v7607
      %v7609 = vrot.slane %v7601, %v7608
      %v7611 = vunpack.c.l.s4 1983009808
      %v7612 = vunpack.c.0.s8 %v7611
      %v7613 = vlaneseq
      %v7614 = vshrl.u32 %v7613, 7
      %v7615 = vsub.s32 %v7612, %v7614
      %v7616 = vrot.slane %v7602, %v7615
      %v7617 = vcombine.low %v7418, %v7428
      %v7618 = vcombine.high %v7418, %v7428
      %v7620 = vunpack.c.l.s4 1983009808
      %v7621 = vunpack.c.0.s8 %v7620
      %v7622 = vlaneseq
      %v7623 = vshrl.u32 %v7622, 7
      %v7624 = vsub.s32 %v7621, %v7623
      %v7625 = vrot.slane %v7617, %v7624
      %v7627 = vunpack.c.l.s4 1983009808
      %v7628 = vunpack.c.0.s8 %v7627
      %v7629 = vlaneseq
      %v7630 = vshrl.u32 %v7629, 7
      %v7631 = vsub.s32 %v7628, %v7630
      %v7632 = vrot.slane %v7618, %v7631
      %v7633 = vcombine.low %v7433, %v7443
      %v7634 = vcombine.high %v7433, %v7443
      %v7636 = vunpack.c.l.s4 1983009808
      %v7637 = vunpack.c.0.s8 %v7636
      %v7638 = vlaneseq
      %v7639 = vshrl.u32 %v7638, 7
      %v7640 = vsub.s32 %v7637, %v7639
      %v7641 = vrot.slane %v7633, %v7640
      %v7643 = vunpack.c.l.s4 1983009808
      %v7644 = vunpack.c.0.s8 %v7643
      %v7645 = vlaneseq
      %v7646 = vshrl.u32 %v7645, 7
      %v7647 = vsub.s32 %v7644, %v7646
      %v7648 = vrot.slane %v7634, %v7647
      %v7649 = vcombine.low %v7438, %v7448
      %v7650 = vcombine.high %v7438, %v7448
      %v7652 = vunpack.c.l.s4 1983009808
      %v7653 = vunpack.c.0.s8 %v7652
      %v7654 = vlaneseq
      %v7655 = vshrl.u32 %v7654, 7
      %v7656 = vsub.s32 %v7653, %v7655
      %v7657 = vrot.slane %v7649, %v7656
      %v7659 = vunpack.c.l.s4 1983009808
      %v7660 = vunpack.c.0.s8 %v7659
      %v7661 = vlaneseq
      %v7662 = vshrl.u32 %v7661, 7
      %v7663 = vsub.s32 %v7660, %v7662
      %v7664 = vrot.slane %v7650, %v7663
      %v7665 = vcombine.low %v7609, %v7625
      %v7666 = vcombine.high %v7609, %v7625
      %v7668 = vunpack.c.l.s4 1934713408
      %v7669 = vunpack.c.0.s8 %v7668
      %v7670 = vlaneseq
      %v7671 = vshrl.u32 %v7670, 7
      %v7672 = vsub.s32 %v7669, %v7671
      %v7673 = vrot.slane %v7665, %v7672
      %v7675 = vunpack.c.l.s4 1934713408
      %v7676 = vunpack.c.0.s8 %v7675
      %v7677 = vlaneseq
      %v7678 = vshrl.u32 %v7677, 7
      %v7679 = vsub.s32 %v7676, %v7678
      %v7680 = vrot.slane %v7666, %v7679
      %v7681 = vcombine.low %v7616, %v7632
      %v7682 = vcombine.high %v7616, %v7632
      %v7684 = vunpack.c.l.s4 1934713408
      %v7685 = vunpack.c.0.s8 %v7684
      %v7686 = vlaneseq
      %v7687 = vshrl.u32 %v7686, 7
      %v7688 = vsub.s32 %v7685, %v7687
      %v7689 = vrot.slane %v7681, %v7688
      %v7691 = vunpack.c.l.s4 1934713408
      %v7692 = vunpack.c.0.s8 %v7691
      %v7693 = vlaneseq
      %v7694 = vshrl.u32 %v7693, 7
      %v7695 = vsub.s32 %v7692, %v7694
      %v7696 = vrot.slane %v7682, %v7695
      %v7697 = vcombine.low %v7641, %v7657
      %v7698 = vcombine.high %v7641, %v7657
      %v7700 = vunpack.c.l.s4 1934713408
      %v7701 = vunpack.c.0.s8 %v7700
      %v7702 = vlaneseq
      %v7703 = vshrl.u32 %v7702, 7
      %v7704 = vsub.s32 %v7701, %v7703
      %v7705 = vrot.slane %v7697, %v7704
      %v7707 = vunpack.c.l.s4 1934713408
      %v7708 = vunpack.c.0.s8 %v7707
      %v7709 = vlaneseq
      %v7710 = vshrl.u32 %v7709, 7
      %v7711 = vsub.s32 %v7708, %v7710
      %v7712 = vrot.slane %v7698, %v7711
      %v7713 = vcombine.low %v7648, %v7664
      %v7714 = vcombine.high %v7648, %v7664
      %v7716 = vunpack.c.l.s4 1934713408
      %v7717 = vunpack.c.0.s8 %v7716
      %v7718 = vlaneseq
      %v7719 = vshrl.u32 %v7718, 7
      %v7720 = vsub.s32 %v7717, %v7719
      %v7721 = vrot.slane %v7713, %v7720
      %v7723 = vunpack.c.l.s4 1934713408
      %v7724 = vunpack.c.0.s8 %v7723
      %v7725 = vlaneseq
      %v7726 = vshrl.u32 %v7725, 7
      %v7727 = vsub.s32 %v7724, %v7726
      %v7728 = vrot.slane %v7714, %v7727
      %v7729 = vcombine.low %v7673, %v7705
      %v7730 = vcombine.high %v7673, %v7705
      %v7731 = vcombine.low %v7680, %v7712
      %v7732 = vcombine.high %v7680, %v7712
      %v7733 = vcombine.low %v7689, %v7721
      %v7734 = vcombine.high %v7689, %v7721
      %v7735 = vcombine.low %v7696, %v7728
      %v7736 = vcombine.high %v7696, %v7728
      %7738 = vrot.lane.b32.xlu0 %v7594, 16
      %v7739 = vpop.permute.xlu0 %7738
      %7742 = vrot.lane.b32.xlu0 %v7595, 32
      %v7743 = vpop.permute.xlu0 %7742
      %7746 = vrot.lane.b32.xlu0 %v7596, 48
      %v7747 = vpop.permute.xlu0 %7746
      %7750 = vrot.lane.b32.xlu0 %v7597, 64
      %v7751 = vpop.permute.xlu0 %7750
      %7754 = vrot.lane.b32.xlu0 %v7598, 80
      %v7755 = vpop.permute.xlu0 %7754
      %7758 = vrot.lane.b32.xlu0 %v7599, 96
      %v7759 = vpop.permute.xlu0 %7758
      %7762 = vrot.lane.b32.xlu0 %v7600, 112
      %v7763 = vpop.permute.xlu0 %7762
      %7766 = vrot.lane.b32.xlu0 %v7730, 16
      %v7767 = vpop.permute.xlu0 %7766
      %7770 = vrot.lane.b32.xlu0 %v7731, 32
      %v7771 = vpop.permute.xlu0 %7770
      %7774 = vrot.lane.b32.xlu0 %v7732, 48
      %v7775 = vpop.permute.xlu0 %7774
      %7778 = vrot.lane.b32.xlu0 %v7733, 64
      %v7779 = vpop.permute.xlu0 %7778
      %7782 = vrot.lane.b32.xlu0 %v7734, 80
      %v7783 = vpop.permute.xlu0 %7782
      %7786 = vrot.lane.b32.xlu0 %v7735, 96
      %v7787 = vpop.permute.xlu0 %7786
      %7790 = vrot.lane.b32.xlu0 %v7736, 112
      %v7791 = vpop.permute.xlu0 %7790
      %v7793 = vsel %vm1296, %v7593, %v7739
      %v7794 = vsel %vm1298, %v7793, %v7743
      %v7795 = vsel %vm1300, %v7794, %v7747
      %v7796 = vsel %vm1302, %v7795, %v7751
      %v7797 = vsel %vm1304, %v7796, %v7755
      %v7798 = vsel %vm1306, %v7797, %v7759
      %v7799 = vsel %vm1308, %v7798, %v7763
      %v7800 = vsel %vm1296, %v7729, %v7767
      %v7801 = vsel %vm1298, %v7800, %v7771
      %v7802 = vsel %vm1300, %v7801, %v7775
      %v7803 = vsel %vm1302, %v7802, %v7779
      %v7804 = vsel %vm1304, %v7803, %v7783
      %v7805 = vsel %vm1306, %v7804, %v7787
      %v7806 = vsel %vm1308, %v7805, %v7791
      %7807 = vrot.lane.b32.xlu0 %v7411, 127
      %v7808 = vpop.permute.xlu0 %7807
      %7809 = vrot.lane.b32.xlu0 %v7413, 127
      %v7810 = vpop.permute.xlu0 %7809
      %7811 = vrot.lane.b32.xlu0 %v7416, 127
      %v7812 = vpop.permute.xlu0 %7811
      %7813 = vrot.lane.b32.xlu0 %v7418, 127
      %v7814 = vpop.permute.xlu0 %7813
      %7815 = vrot.lane.b32.xlu0 %v7421, 127
      %v7816 = vpop.permute.xlu0 %7815
      %7817 = vrot.lane.b32.xlu0 %v7423, 127
      %v7818 = vpop.permute.xlu0 %7817
      %7819 = vrot.lane.b32.xlu0 %v7426, 127
      %v7820 = vpop.permute.xlu0 %7819
      %7821 = vrot.lane.b32.xlu0 %v7428, 127
      %v7822 = vpop.permute.xlu0 %7821
      %7823 = vrot.lane.b32.xlu0 %v7431, 127
      %v7824 = vpop.permute.xlu0 %7823
      %7825 = vrot.lane.b32.xlu0 %v7433, 127
      %v7826 = vpop.permute.xlu0 %7825
      %7827 = vrot.lane.b32.xlu0 %v7436, 127
      %v7828 = vpop.permute.xlu0 %7827
      %7829 = vrot.lane.b32.xlu0 %v7438, 127
      %v7830 = vpop.permute.xlu0 %7829
      %7831 = vrot.lane.b32.xlu0 %v7441, 127
      %v7832 = vpop.permute.xlu0 %7831
      %7833 = vrot.lane.b32.xlu0 %v7443, 127
      %v7834 = vpop.permute.xlu0 %7833
      %7835 = vrot.lane.b32.xlu0 %v7446, 127
      %v7836 = vpop.permute.xlu0 %7835
      %7837 = vrot.lane.b32.xlu0 %v7448, 127
      %v7838 = vpop.permute.xlu0 %7837
      %v7855 = vcombine.low %v7808, %v7816
      %v7856 = vcombine.high %v7808, %v7816
      %v7858 = vunpack.c.l.s4 1983009808
      %v7859 = vunpack.c.0.s8 %v7858
      %v7860 = vlaneseq
      %v7861 = vshrl.u32 %v7860, 7
      %v7862 = vsub.s32 %v7859, %v7861
      %v7863 = vrot.slane %v7855, %v7862
      %v7865 = vunpack.c.l.s4 1983009808
      %v7866 = vunpack.c.0.s8 %v7865
      %v7867 = vlaneseq
      %v7868 = vshrl.u32 %v7867, 7
      %v7869 = vsub.s32 %v7866, %v7868
      %v7870 = vrot.slane %v7856, %v7869
      %v7871 = vcombine.low %v7812, %v7820
      %v7872 = vcombine.high %v7812, %v7820
      %v7874 = vunpack.c.l.s4 1983009808
      %v7875 = vunpack.c.0.s8 %v7874
      %v7876 = vlaneseq
      %v7877 = vshrl.u32 %v7876, 7
      %v7878 = vsub.s32 %v7875, %v7877
      %v7879 = vrot.slane %v7871, %v7878
      %v7881 = vunpack.c.l.s4 1983009808
      %v7882 = vunpack.c.0.s8 %v7881
      %v7883 = vlaneseq
      %v7884 = vshrl.u32 %v7883, 7
      %v7885 = vsub.s32 %v7882, %v7884
      %v7886 = vrot.slane %v7872, %v7885
      %v7887 = vcombine.low %v7824, %v7832
      %v7888 = vcombine.high %v7824, %v7832
      %v7890 = vunpack.c.l.s4 1983009808
      %v7891 = vunpack.c.0.s8 %v7890
      %v7892 = vlaneseq
      %v7893 = vshrl.u32 %v7892, 7
      %v7894 = vsub.s32 %v7891, %v7893
      %v7895 = vrot.slane %v7887, %v7894
      %v7897 = vunpack.c.l.s4 1983009808
      %v7898 = vunpack.c.0.s8 %v7897
      %v7899 = vlaneseq
      %v7900 = vshrl.u32 %v7899, 7
      %v7901 = vsub.s32 %v7898, %v7900
      %v7902 = vrot.slane %v7888, %v7901
      %v7903 = vcombine.low %v7828, %v7836
      %v7904 = vcombine.high %v7828, %v7836
      %v7906 = vunpack.c.l.s4 1983009808
      %v7907 = vunpack.c.0.s8 %v7906
      %v7908 = vlaneseq
      %v7909 = vshrl.u32 %v7908, 7
      %v7910 = vsub.s32 %v7907, %v7909
      %v7911 = vrot.slane %v7903, %v7910
      %v7913 = vunpack.c.l.s4 1983009808
      %v7914 = vunpack.c.0.s8 %v7913
      %v7915 = vlaneseq
      %v7916 = vshrl.u32 %v7915, 7
      %v7917 = vsub.s32 %v7914, %v7916
      %v7918 = vrot.slane %v7904, %v7917
      %v7919 = vcombine.low %v7863, %v7879
      %v7920 = vcombine.high %v7863, %v7879
      %v7922 = vunpack.c.l.s4 1934713408
      %v7923 = vunpack.c.0.s8 %v7922
      %v7924 = vlaneseq
      %v7925 = vshrl.u32 %v7924, 7
      %v7926 = vsub.s32 %v7923, %v7925
      %v7927 = vrot.slane %v7919, %v7926
      %v7929 = vunpack.c.l.s4 1934713408
      %v7930 = vunpack.c.0.s8 %v7929
      %v7931 = vlaneseq
      %v7932 = vshrl.u32 %v7931, 7
      %v7933 = vsub.s32 %v7930, %v7932
      %v7934 = vrot.slane %v7920, %v7933
      %v7935 = vcombine.low %v7870, %v7886
      %v7936 = vcombine.high %v7870, %v7886
      %v7938 = vunpack.c.l.s4 1934713408
      %v7939 = vunpack.c.0.s8 %v7938
      %v7940 = vlaneseq
      %v7941 = vshrl.u32 %v7940, 7
      %v7942 = vsub.s32 %v7939, %v7941
      %v7943 = vrot.slane %v7935, %v7942
      %v7945 = vunpack.c.l.s4 1934713408
      %v7946 = vunpack.c.0.s8 %v7945
      %v7947 = vlaneseq
      %v7948 = vshrl.u32 %v7947, 7
      %v7949 = vsub.s32 %v7946, %v7948
      %v7950 = vrot.slane %v7936, %v7949
      %v7951 = vcombine.low %v7895, %v7911
      %v7952 = vcombine.high %v7895, %v7911
      %v7954 = vunpack.c.l.s4 1934713408
      %v7955 = vunpack.c.0.s8 %v7954
      %v7956 = vlaneseq
      %v7957 = vshrl.u32 %v7956, 7
      %v7958 = vsub.s32 %v7955, %v7957
      %v7959 = vrot.slane %v7951, %v7958
      %v7961 = vunpack.c.l.s4 1934713408
      %v7962 = vunpack.c.0.s8 %v7961
      %v7963 = vlaneseq
      %v7964 = vshrl.u32 %v7963, 7
      %v7965 = vsub.s32 %v7962, %v7964
      %v7966 = vrot.slane %v7952, %v7965
      %v7967 = vcombine.low %v7902, %v7918
      %v7968 = vcombine.high %v7902, %v7918
      %v7970 = vunpack.c.l.s4 1934713408
      %v7971 = vunpack.c.0.s8 %v7970
      %v7972 = vlaneseq
      %v7973 = vshrl.u32 %v7972, 7
      %v7974 = vsub.s32 %v7971, %v7973
      %v7975 = vrot.slane %v7967, %v7974
      %v7977 = vunpack.c.l.s4 1934713408
      %v7978 = vunpack.c.0.s8 %v7977
      %v7979 = vlaneseq
      %v7980 = vshrl.u32 %v7979, 7
      %v7981 = vsub.s32 %v7978, %v7980
      %v7982 = vrot.slane %v7968, %v7981
      %v7983 = vcombine.low %v7927, %v7959
      %v7984 = vcombine.high %v7927, %v7959
      %v7985 = vcombine.low %v7934, %v7966
      %v7986 = vcombine.high %v7934, %v7966
      %v7987 = vcombine.low %v7943, %v7975
      %v7988 = vcombine.high %v7943, %v7975
      %v7989 = vcombine.low %v7950, %v7982
      %v7990 = vcombine.high %v7950, %v7982
      %v7991 = vcombine.low %v7810, %v7818
      %v7992 = vcombine.high %v7810, %v7818
      %v7994 = vunpack.c.l.s4 1983009808
      %v7995 = vunpack.c.0.s8 %v7994
      %v7996 = vlaneseq
      %v7997 = vshrl.u32 %v7996, 7
      %v7998 = vsub.s32 %v7995, %v7997
      %v7999 = vrot.slane %v7991, %v7998
      %v8001 = vunpack.c.l.s4 1983009808
      %v8002 = vunpack.c.0.s8 %v8001
      %v8003 = vlaneseq
      %v8004 = vshrl.u32 %v8003, 7
      %v8005 = vsub.s32 %v8002, %v8004
      %v8006 = vrot.slane %v7992, %v8005
      %v8007 = vcombine.low %v7814, %v7822
      %v8008 = vcombine.high %v7814, %v7822
      %v8010 = vunpack.c.l.s4 1983009808
      %v8011 = vunpack.c.0.s8 %v8010
      %v8012 = vlaneseq
      %v8013 = vshrl.u32 %v8012, 7
      %v8014 = vsub.s32 %v8011, %v8013
      %v8015 = vrot.slane %v8007, %v8014
      %v8017 = vunpack.c.l.s4 1983009808
      %v8018 = vunpack.c.0.s8 %v8017
      %v8019 = vlaneseq
      %v8020 = vshrl.u32 %v8019, 7
      %v8021 = vsub.s32 %v8018, %v8020
      %v8022 = vrot.slane %v8008, %v8021
      %v8023 = vcombine.low %v7826, %v7834
      %v8024 = vcombine.high %v7826, %v7834
      %v8026 = vunpack.c.l.s4 1983009808
      %v8027 = vunpack.c.0.s8 %v8026
      %v8028 = vlaneseq
      %v8029 = vshrl.u32 %v8028, 7
      %v8030 = vsub.s32 %v8027, %v8029
      %v8031 = vrot.slane %v8023, %v8030
      %v8033 = vunpack.c.l.s4 1983009808
      %v8034 = vunpack.c.0.s8 %v8033
      %v8035 = vlaneseq
      %v8036 = vshrl.u32 %v8035, 7
      %v8037 = vsub.s32 %v8034, %v8036
      %v8038 = vrot.slane %v8024, %v8037
      %v8039 = vcombine.low %v7830, %v7838
      %v8040 = vcombine.high %v7830, %v7838
      %v8042 = vunpack.c.l.s4 1983009808
      %v8043 = vunpack.c.0.s8 %v8042
      %v8044 = vlaneseq
      %v8045 = vshrl.u32 %v8044, 7
      %v8046 = vsub.s32 %v8043, %v8045
      %v8047 = vrot.slane %v8039, %v8046
      %v8049 = vunpack.c.l.s4 1983009808
      %v8050 = vunpack.c.0.s8 %v8049
      %v8051 = vlaneseq
      %v8052 = vshrl.u32 %v8051, 7
      %v8053 = vsub.s32 %v8050, %v8052
      %v8054 = vrot.slane %v8040, %v8053
      %v8055 = vcombine.low %v7999, %v8015
      %v8056 = vcombine.high %v7999, %v8015
      %v8058 = vunpack.c.l.s4 1934713408
      %v8059 = vunpack.c.0.s8 %v8058
      %v8060 = vlaneseq
      %v8061 = vshrl.u32 %v8060, 7
      %v8062 = vsub.s32 %v8059, %v8061
      %v8063 = vrot.slane %v8055, %v8062
      %v8065 = vunpack.c.l.s4 1934713408
      %v8066 = vunpack.c.0.s8 %v8065
      %v8067 = vlaneseq
      %v8068 = vshrl.u32 %v8067, 7
      %v8069 = vsub.s32 %v8066, %v8068
      %v8070 = vrot.slane %v8056, %v8069
      %v8071 = vcombine.low %v8006, %v8022
      %v8072 = vcombine.high %v8006, %v8022
      %v8074 = vunpack.c.l.s4 1934713408
      %v8075 = vunpack.c.0.s8 %v8074
      %v8076 = vlaneseq
      %v8077 = vshrl.u32 %v8076, 7
      %v8078 = vsub.s32 %v8075, %v8077
      %v8079 = vrot.slane %v8071, %v8078
      %v8081 = vunpack.c.l.s4 1934713408
      %v8082 = vunpack.c.0.s8 %v8081
      %v8083 = vlaneseq
      %v8084 = vshrl.u32 %v8083, 7
      %v8085 = vsub.s32 %v8082, %v8084
      %v8086 = vrot.slane %v8072, %v8085
      %v8087 = vcombine.low %v8031, %v8047
      %v8088 = vcombine.high %v8031, %v8047
      %v8090 = vunpack.c.l.s4 1934713408
      %v8091 = vunpack.c.0.s8 %v8090
      %v8092 = vlaneseq
      %v8093 = vshrl.u32 %v8092, 7
      %v8094 = vsub.s32 %v8091, %v8093
      %v8095 = vrot.slane %v8087, %v8094
      %v8097 = vunpack.c.l.s4 1934713408
      %v8098 = vunpack.c.0.s8 %v8097
      %v8099 = vlaneseq
      %v8100 = vshrl.u32 %v8099, 7
      %v8101 = vsub.s32 %v8098, %v8100
      %v8102 = vrot.slane %v8088, %v8101
      %v8103 = vcombine.low %v8038, %v8054
      %v8104 = vcombine.high %v8038, %v8054
      %v8106 = vunpack.c.l.s4 1934713408
      %v8107 = vunpack.c.0.s8 %v8106
      %v8108 = vlaneseq
      %v8109 = vshrl.u32 %v8108, 7
      %v8110 = vsub.s32 %v8107, %v8109
      %v8111 = vrot.slane %v8103, %v8110
      %v8113 = vunpack.c.l.s4 1934713408
      %v8114 = vunpack.c.0.s8 %v8113
      %v8115 = vlaneseq
      %v8116 = vshrl.u32 %v8115, 7
      %v8117 = vsub.s32 %v8114, %v8116
      %v8118 = vrot.slane %v8104, %v8117
      %v8119 = vcombine.low %v8063, %v8095
      %v8120 = vcombine.high %v8063, %v8095
      %v8121 = vcombine.low %v8070, %v8102
      %v8122 = vcombine.high %v8070, %v8102
      %v8123 = vcombine.low %v8079, %v8111
      %v8124 = vcombine.high %v8079, %v8111
      %v8125 = vcombine.low %v8086, %v8118
      %v8126 = vcombine.high %v8086, %v8118
      %8128 = vrot.lane.b32.xlu0 %v7984, 16
      %v8129 = vpop.permute.xlu0 %8128
      %8132 = vrot.lane.b32.xlu0 %v7985, 32
      %v8133 = vpop.permute.xlu0 %8132
      %8136 = vrot.lane.b32.xlu0 %v7986, 48
      %v8137 = vpop.permute.xlu0 %8136
      %8140 = vrot.lane.b32.xlu0 %v7987, 64
      %v8141 = vpop.permute.xlu0 %8140
      %8144 = vrot.lane.b32.xlu0 %v7988, 80
      %v8145 = vpop.permute.xlu0 %8144
      %8148 = vrot.lane.b32.xlu0 %v7989, 96
      %v8149 = vpop.permute.xlu0 %8148
      %8152 = vrot.lane.b32.xlu0 %v7990, 112
      %v8153 = vpop.permute.xlu0 %8152
      %8156 = vrot.lane.b32.xlu0 %v8120, 16
      %v8157 = vpop.permute.xlu0 %8156
      %8160 = vrot.lane.b32.xlu0 %v8121, 32
      %v8161 = vpop.permute.xlu0 %8160
      %8164 = vrot.lane.b32.xlu0 %v8122, 48
      %v8165 = vpop.permute.xlu0 %8164
      %8168 = vrot.lane.b32.xlu0 %v8123, 64
      %v8169 = vpop.permute.xlu0 %8168
      %8172 = vrot.lane.b32.xlu0 %v8124, 80
      %v8173 = vpop.permute.xlu0 %8172
      %8176 = vrot.lane.b32.xlu0 %v8125, 96
      %v8177 = vpop.permute.xlu0 %8176
      %8180 = vrot.lane.b32.xlu0 %v8126, 112
      %v8181 = vpop.permute.xlu0 %8180
      %v8183 = vsel %vm1296, %v7983, %v8129
      %v8184 = vsel %vm1298, %v8183, %v8133
      %v8185 = vsel %vm1300, %v8184, %v8137
      %v8186 = vsel %vm1302, %v8185, %v8141
      %v8187 = vsel %vm1304, %v8186, %v8145
      %v8188 = vsel %vm1306, %v8187, %v8149
      %v8189 = vsel %vm1308, %v8188, %v8153
      %v8190 = vsel %vm1296, %v8119, %v8157
      %v8191 = vsel %vm1298, %v8190, %v8161
      %v8192 = vsel %vm1300, %v8191, %v8165
      %v8193 = vsel %vm1302, %v8192, %v8169
      %v8194 = vsel %vm1304, %v8193, %v8173
      %v8195 = vsel %vm1306, %v8194, %v8177
      %v8196 = vsel %vm1308, %v8195, %v8181
      %8197 = vrot.lane.b32.xlu0 %v7411, 126
      %v8198 = vpop.permute.xlu0 %8197
      %8199 = vrot.lane.b32.xlu0 %v7413, 126
      %v8200 = vpop.permute.xlu0 %8199
      %8201 = vrot.lane.b32.xlu0 %v7416, 126
      %v8202 = vpop.permute.xlu0 %8201
      %8203 = vrot.lane.b32.xlu0 %v7418, 126
      %v8204 = vpop.permute.xlu0 %8203
      %8205 = vrot.lane.b32.xlu0 %v7421, 126
      %v8206 = vpop.permute.xlu0 %8205
      %8207 = vrot.lane.b32.xlu0 %v7423, 126
      %v8208 = vpop.permute.xlu0 %8207
      %8209 = vrot.lane.b32.xlu0 %v7426, 126
      %v8210 = vpop.permute.xlu0 %8209
      %8211 = vrot.lane.b32.xlu0 %v7428, 126
      %v8212 = vpop.permute.xlu0 %8211
      %8213 = vrot.lane.b32.xlu0 %v7431, 126
      %v8214 = vpop.permute.xlu0 %8213
      %8215 = vrot.lane.b32.xlu0 %v7433, 126
      %v8216 = vpop.permute.xlu0 %8215
      %8217 = vrot.lane.b32.xlu0 %v7436, 126
      %v8218 = vpop.permute.xlu0 %8217
      %8219 = vrot.lane.b32.xlu0 %v7438, 126
      %v8220 = vpop.permute.xlu0 %8219
      %8221 = vrot.lane.b32.xlu0 %v7441, 126
      %v8222 = vpop.permute.xlu0 %8221
      %8223 = vrot.lane.b32.xlu0 %v7443, 126
      %v8224 = vpop.permute.xlu0 %8223
      %8225 = vrot.lane.b32.xlu0 %v7446, 126
      %v8226 = vpop.permute.xlu0 %8225
      %8227 = vrot.lane.b32.xlu0 %v7448, 126
      %v8228 = vpop.permute.xlu0 %8227
      %v8245 = vcombine.low %v8198, %v8206
      %v8246 = vcombine.high %v8198, %v8206
      %v8248 = vunpack.c.l.s4 1983009808
      %v8249 = vunpack.c.0.s8 %v8248
      %v8250 = vlaneseq
      %v8251 = vshrl.u32 %v8250, 7
      %v8252 = vsub.s32 %v8249, %v8251
      %v8253 = vrot.slane %v8245, %v8252
      %v8255 = vunpack.c.l.s4 1983009808
      %v8256 = vunpack.c.0.s8 %v8255
      %v8257 = vlaneseq
      %v8258 = vshrl.u32 %v8257, 7
      %v8259 = vsub.s32 %v8256, %v8258
      %v8260 = vrot.slane %v8246, %v8259
      %v8261 = vcombine.low %v8202, %v8210
      %v8262 = vcombine.high %v8202, %v8210
      %v8264 = vunpack.c.l.s4 1983009808
      %v8265 = vunpack.c.0.s8 %v8264
      %v8266 = vlaneseq
      %v8267 = vshrl.u32 %v8266, 7
      %v8268 = vsub.s32 %v8265, %v8267
      %v8269 = vrot.slane %v8261, %v8268
      %v8271 = vunpack.c.l.s4 1983009808
      %v8272 = vunpack.c.0.s8 %v8271
      %v8273 = vlaneseq
      %v8274 = vshrl.u32 %v8273, 7
      %v8275 = vsub.s32 %v8272, %v8274
      %v8276 = vrot.slane %v8262, %v8275
      %v8277 = vcombine.low %v8214, %v8222
      %v8278 = vcombine.high %v8214, %v8222
      %v8280 = vunpack.c.l.s4 1983009808
      %v8281 = vunpack.c.0.s8 %v8280
      %v8282 = vlaneseq
      %v8283 = vshrl.u32 %v8282, 7
      %v8284 = vsub.s32 %v8281, %v8283
      %v8285 = vrot.slane %v8277, %v8284
      %v8287 = vunpack.c.l.s4 1983009808
      %v8288 = vunpack.c.0.s8 %v8287
      %v8289 = vlaneseq
      %v8290 = vshrl.u32 %v8289, 7
      %v8291 = vsub.s32 %v8288, %v8290
      %v8292 = vrot.slane %v8278, %v8291
      %v8293 = vcombine.low %v8218, %v8226
      %v8294 = vcombine.high %v8218, %v8226
      %v8296 = vunpack.c.l.s4 1983009808
      %v8297 = vunpack.c.0.s8 %v8296
      %v8298 = vlaneseq
      %v8299 = vshrl.u32 %v8298, 7
      %v8300 = vsub.s32 %v8297, %v8299
      %v8301 = vrot.slane %v8293, %v8300
      %v8303 = vunpack.c.l.s4 1983009808
      %v8304 = vunpack.c.0.s8 %v8303
      %v8305 = vlaneseq
      %v8306 = vshrl.u32 %v8305, 7
      %v8307 = vsub.s32 %v8304, %v8306
      %v8308 = vrot.slane %v8294, %v8307
      %v8309 = vcombine.low %v8253, %v8269
      %v8310 = vcombine.high %v8253, %v8269
      %v8312 = vunpack.c.l.s4 1934713408
      %v8313 = vunpack.c.0.s8 %v8312
      %v8314 = vlaneseq
      %v8315 = vshrl.u32 %v8314, 7
      %v8316 = vsub.s32 %v8313, %v8315
      %v8317 = vrot.slane %v8309, %v8316
      %v8319 = vunpack.c.l.s4 1934713408
      %v8320 = vunpack.c.0.s8 %v8319
      %v8321 = vlaneseq
      %v8322 = vshrl.u32 %v8321, 7
      %v8323 = vsub.s32 %v8320, %v8322
      %v8324 = vrot.slane %v8310, %v8323
      %v8325 = vcombine.low %v8260, %v8276
      %v8326 = vcombine.high %v8260, %v8276
      %v8328 = vunpack.c.l.s4 1934713408
      %v8329 = vunpack.c.0.s8 %v8328
      %v8330 = vlaneseq
      %v8331 = vshrl.u32 %v8330, 7
      %v8332 = vsub.s32 %v8329, %v8331
      %v8333 = vrot.slane %v8325, %v8332
      %v8335 = vunpack.c.l.s4 1934713408
      %v8336 = vunpack.c.0.s8 %v8335
      %v8337 = vlaneseq
      %v8338 = vshrl.u32 %v8337, 7
      %v8339 = vsub.s32 %v8336, %v8338
      %v8340 = vrot.slane %v8326, %v8339
      %v8341 = vcombine.low %v8285, %v8301
      %v8342 = vcombine.high %v8285, %v8301
      %v8344 = vunpack.c.l.s4 1934713408
      %v8345 = vunpack.c.0.s8 %v8344
      %v8346 = vlaneseq
      %v8347 = vshrl.u32 %v8346, 7
      %v8348 = vsub.s32 %v8345, %v8347
      %v8349 = vrot.slane %v8341, %v8348
      %v8351 = vunpack.c.l.s4 1934713408
      %v8352 = vunpack.c.0.s8 %v8351
      %v8353 = vlaneseq
      %v8354 = vshrl.u32 %v8353, 7
      %v8355 = vsub.s32 %v8352, %v8354
      %v8356 = vrot.slane %v8342, %v8355
      %v8357 = vcombine.low %v8292, %v8308
      %v8358 = vcombine.high %v8292, %v8308
      %v8360 = vunpack.c.l.s4 1934713408
      %v8361 = vunpack.c.0.s8 %v8360
      %v8362 = vlaneseq
      %v8363 = vshrl.u32 %v8362, 7
      %v8364 = vsub.s32 %v8361, %v8363
      %v8365 = vrot.slane %v8357, %v8364
      %v8367 = vunpack.c.l.s4 1934713408
      %v8368 = vunpack.c.0.s8 %v8367
      %v8369 = vlaneseq
      %v8370 = vshrl.u32 %v8369, 7
      %v8371 = vsub.s32 %v8368, %v8370
      %v8372 = vrot.slane %v8358, %v8371
      %v8373 = vcombine.low %v8317, %v8349
      %v8374 = vcombine.high %v8317, %v8349
      %v8375 = vcombine.low %v8324, %v8356
      %v8376 = vcombine.high %v8324, %v8356
      %v8377 = vcombine.low %v8333, %v8365
      %v8378 = vcombine.high %v8333, %v8365
      %v8379 = vcombine.low %v8340, %v8372
      %v8380 = vcombine.high %v8340, %v8372
      %v8381 = vcombine.low %v8200, %v8208
      %v8382 = vcombine.high %v8200, %v8208
      %v8384 = vunpack.c.l.s4 1983009808
      %v8385 = vunpack.c.0.s8 %v8384
      %v8386 = vlaneseq
      %v8387 = vshrl.u32 %v8386, 7
      %v8388 = vsub.s32 %v8385, %v8387
      %v8389 = vrot.slane %v8381, %v8388
      %v8391 = vunpack.c.l.s4 1983009808
      %v8392 = vunpack.c.0.s8 %v8391
      %v8393 = vlaneseq
      %v8394 = vshrl.u32 %v8393, 7
      %v8395 = vsub.s32 %v8392, %v8394
      %v8396 = vrot.slane %v8382, %v8395
      %v8397 = vcombine.low %v8204, %v8212
      %v8398 = vcombine.high %v8204, %v8212
      %v8400 = vunpack.c.l.s4 1983009808
      %v8401 = vunpack.c.0.s8 %v8400
      %v8402 = vlaneseq
      %v8403 = vshrl.u32 %v8402, 7
      %v8404 = vsub.s32 %v8401, %v8403
      %v8405 = vrot.slane %v8397, %v8404
      %v8407 = vunpack.c.l.s4 1983009808
      %v8408 = vunpack.c.0.s8 %v8407
      %v8409 = vlaneseq
      %v8410 = vshrl.u32 %v8409, 7
      %v8411 = vsub.s32 %v8408, %v8410
      %v8412 = vrot.slane %v8398, %v8411
      %v8413 = vcombine.low %v8216, %v8224
      %v8414 = vcombine.high %v8216, %v8224
      %v8416 = vunpack.c.l.s4 1983009808
      %v8417 = vunpack.c.0.s8 %v8416
      %v8418 = vlaneseq
      %v8419 = vshrl.u32 %v8418, 7
      %v8420 = vsub.s32 %v8417, %v8419
      %v8421 = vrot.slane %v8413, %v8420
      %v8423 = vunpack.c.l.s4 1983009808
      %v8424 = vunpack.c.0.s8 %v8423
      %v8425 = vlaneseq
      %v8426 = vshrl.u32 %v8425, 7
      %v8427 = vsub.s32 %v8424, %v8426
      %v8428 = vrot.slane %v8414, %v8427
      %v8429 = vcombine.low %v8220, %v8228
      %v8430 = vcombine.high %v8220, %v8228
      %v8432 = vunpack.c.l.s4 1983009808
      %v8433 = vunpack.c.0.s8 %v8432
      %v8434 = vlaneseq
      %v8435 = vshrl.u32 %v8434, 7
      %v8436 = vsub.s32 %v8433, %v8435
      %v8437 = vrot.slane %v8429, %v8436
      %v8439 = vunpack.c.l.s4 1983009808
      %v8440 = vunpack.c.0.s8 %v8439
      %v8441 = vlaneseq
      %v8442 = vshrl.u32 %v8441, 7
      %v8443 = vsub.s32 %v8440, %v8442
      %v8444 = vrot.slane %v8430, %v8443
      %v8445 = vcombine.low %v8389, %v8405
      %v8446 = vcombine.high %v8389, %v8405
      %v8448 = vunpack.c.l.s4 1934713408
      %v8449 = vunpack.c.0.s8 %v8448
      %v8450 = vlaneseq
      %v8451 = vshrl.u32 %v8450, 7
      %v8452 = vsub.s32 %v8449, %v8451
      %v8453 = vrot.slane %v8445, %v8452
      %v8455 = vunpack.c.l.s4 1934713408
      %v8456 = vunpack.c.0.s8 %v8455
      %v8457 = vlaneseq
      %v8458 = vshrl.u32 %v8457, 7
      %v8459 = vsub.s32 %v8456, %v8458
      %v8460 = vrot.slane %v8446, %v8459
      %v8461 = vcombine.low %v8396, %v8412
      %v8462 = vcombine.high %v8396, %v8412
      %v8464 = vunpack.c.l.s4 1934713408
      %v8465 = vunpack.c.0.s8 %v8464
      %v8466 = vlaneseq
      %v8467 = vshrl.u32 %v8466, 7
      %v8468 = vsub.s32 %v8465, %v8467
      %v8469 = vrot.slane %v8461, %v8468
      %v8471 = vunpack.c.l.s4 1934713408
      %v8472 = vunpack.c.0.s8 %v8471
      %v8473 = vlaneseq
      %v8474 = vshrl.u32 %v8473, 7
      %v8475 = vsub.s32 %v8472, %v8474
      %v8476 = vrot.slane %v8462, %v8475
      %v8477 = vcombine.low %v8421, %v8437
      %v8478 = vcombine.high %v8421, %v8437
      %v8480 = vunpack.c.l.s4 1934713408
      %v8481 = vunpack.c.0.s8 %v8480
      %v8482 = vlaneseq
      %v8483 = vshrl.u32 %v8482, 7
      %v8484 = vsub.s32 %v8481, %v8483
      %v8485 = vrot.slane %v8477, %v8484
      %v8487 = vunpack.c.l.s4 1934713408
      %v8488 = vunpack.c.0.s8 %v8487
      %v8489 = vlaneseq
      %v8490 = vshrl.u32 %v8489, 7
      %v8491 = vsub.s32 %v8488, %v8490
      %v8492 = vrot.slane %v8478, %v8491
      %v8493 = vcombine.low %v8428, %v8444
      %v8494 = vcombine.high %v8428, %v8444
      %v8496 = vunpack.c.l.s4 1934713408
      %v8497 = vunpack.c.0.s8 %v8496
      %v8498 = vlaneseq
      %v8499 = vshrl.u32 %v8498, 7
      %v8500 = vsub.s32 %v8497, %v8499
      %v8501 = vrot.slane %v8493, %v8500
      %v8503 = vunpack.c.l.s4 1934713408
      %v8504 = vunpack.c.0.s8 %v8503
      %v8505 = vlaneseq
      %v8506 = vshrl.u32 %v8505, 7
      %v8507 = vsub.s32 %v8504, %v8506
      %v8508 = vrot.slane %v8494, %v8507
      %v8509 = vcombine.low %v8453, %v8485
      %v8510 = vcombine.high %v8453, %v8485
      %v8511 = vcombine.low %v8460, %v8492
      %v8512 = vcombine.high %v8460, %v8492
      %v8513 = vcombine.low %v8469, %v8501
      %v8514 = vcombine.high %v8469, %v8501
      %v8515 = vcombine.low %v8476, %v8508
      %v8516 = vcombine.high %v8476, %v8508
      %8518 = vrot.lane.b32.xlu0 %v8374, 16
      %v8519 = vpop.permute.xlu0 %8518
      %8522 = vrot.lane.b32.xlu0 %v8375, 32
      %v8523 = vpop.permute.xlu0 %8522
      %8526 = vrot.lane.b32.xlu0 %v8376, 48
      %v8527 = vpop.permute.xlu0 %8526
      %8530 = vrot.lane.b32.xlu0 %v8377, 64
      %v8531 = vpop.permute.xlu0 %8530
      %8534 = vrot.lane.b32.xlu0 %v8378, 80
      %v8535 = vpop.permute.xlu0 %8534
      %8538 = vrot.lane.b32.xlu0 %v8379, 96
      %v8539 = vpop.permute.xlu0 %8538
      %8542 = vrot.lane.b32.xlu0 %v8380, 112
      %v8543 = vpop.permute.xlu0 %8542
      %8546 = vrot.lane.b32.xlu0 %v8510, 16
      %v8547 = vpop.permute.xlu0 %8546
      %8550 = vrot.lane.b32.xlu0 %v8511, 32
      %v8551 = vpop.permute.xlu0 %8550
      %8554 = vrot.lane.b32.xlu0 %v8512, 48
      %v8555 = vpop.permute.xlu0 %8554
      %8558 = vrot.lane.b32.xlu0 %v8513, 64
      %v8559 = vpop.permute.xlu0 %8558
      %8562 = vrot.lane.b32.xlu0 %v8514, 80
      %v8563 = vpop.permute.xlu0 %8562
      %8566 = vrot.lane.b32.xlu0 %v8515, 96
      %v8567 = vpop.permute.xlu0 %8566
      %8570 = vrot.lane.b32.xlu0 %v8516, 112
      %v8571 = vpop.permute.xlu0 %8570
      %v8573 = vsel %vm1296, %v8373, %v8519
      %v8574 = vsel %vm1298, %v8573, %v8523
      %v8575 = vsel %vm1300, %v8574, %v8527
      %v8576 = vsel %vm1302, %v8575, %v8531
      %v8577 = vsel %vm1304, %v8576, %v8535
      %v8578 = vsel %vm1306, %v8577, %v8539
      %v8579 = vsel %vm1308, %v8578, %v8543
      %v8580 = vsel %vm1296, %v8509, %v8547
      %v8581 = vsel %vm1298, %v8580, %v8551
      %v8582 = vsel %vm1300, %v8581, %v8555
      %v8583 = vsel %vm1302, %v8582, %v8559
      %v8584 = vsel %vm1304, %v8583, %v8563
      %v8585 = vsel %vm1306, %v8584, %v8567
      %v8586 = vsel %vm1308, %v8585, %v8571
      %v8587 = vld [vmem:[%s4] sm:$0xff]
      %v8589 = vsel %vm4473, %v8587, 0
      %8591 = vmatprep.subr.mxu0 %v5434
      %8592 = vmatpush1.msra.mxu0 %v5427
      %8593 = vmatprep.subr.mxu0 %v5832
      %8594 = vmatpush1.msra.mxu0 %v5825
      %8595 = vmatprep.subr.mxu0 %v6222
      %8596 = vmatpush1.msra.mxu0 %v6215
      %8597 = vmatprep.subr.mxu0 %v6628
      %8598 = vmatpush1.msra.mxu0 %v6621
      %8599 = vmatprep.subr.mxu0 %v7018
      %8600 = vmatpush1.msra.mxu0 %v7011
      %8601 = vmatprep.subr.mxu0 %v7408
      %8602 = vmatpush1.msra.mxu0 %v7401
      %8603 = vmatprep.subr.mxu0 %v7806
      %8604 = vmatpush1.msra.mxu0 %v7799
      %8605 = vmatprep.subr.mxu0 %v8196
      %8606 = vmatpush1.msra.mxu0 %v8189
      %8607 = vmatprep.subr.mxu0 %v8586
      %8608 = vmatpush1.msra.mxu0 %v8579
      %8609 = vmatprep.subr.mxu0 0.0
      %8610 = vmatpush1.msra.mxu0 0.0
      %8611 = vmatprep.subr.mxu0 0.0
      %8612 = vmatpush1.msra.mxu0 0.0
      %8613 = vmatprep.subr.mxu0 0.0
      %8614 = vmatpush1.msra.mxu0 0.0
      %8615 = vmatprep.subr.mxu0 0.0
      %8616 = vmatpush1.msra.mxu0 0.0
      %8617 = vmatprep.subr.mxu0 0.0
      %8618 = vmatpush1.msra.mxu0 0.0
      %8619 = vmatprep.subr.mxu0 0.0
      %8620 = vmatpush1.msra.mxu0 0.0
      %8621 = vmatprep.subr.mxu0 0.0
      %8622 = vmatpush1.msra.mxu0 0.0
      %8623 = vmatprep.subr.mxu0 0.0
      %8624 = vmatpush1.msra.mxu0 0.0
      %8625 = vmatprep.subr.mxu0 0.0
      %8626 = vmatpush1.msra.mxu0 0.0
      %8627 = vmatprep.subr.mxu0 0.0
      %8628 = vmatpush1.msra.mxu0 0.0
      %8629 = vmatprep.subr.mxu0 0.0
      %8630 = vmatpush1.msra.mxu0 0.0
      %8631 = vmatprep.subr.mxu0 0.0
      %8632 = vmatpush1.msra.mxu0 0.0
      %8633 = vmatprep.subr.mxu0 0.0
      %8634 = vmatpush1.msra.mxu0 0.0
      %8635 = vmatprep.subr.mxu0 0.0
      %8636 = vmatpush1.msra.mxu0 0.0
      %8637 = vmatprep.subr.mxu0 0.0
      %8638 = vmatpush1.msra.mxu0 0.0
      %8639 = vmatprep.subr.mxu0 0.0
      %8640 = vmatpush1.msra.mxu0 0.0
      %8641 = vmatprep.subr.mxu0 0.0
      %8642 = vmatpush1.msra.mxu0 0.0
      %8643 = vmatprep.subr.mxu0 0.0
      %8644 = vmatpush1.msra.mxu0 0.0
      %8645 = vmatprep.subr.mxu0 0.0
      %8646 = vmatpush1.msra.mxu0 0.0
      %8647 = vmatprep.subr.mxu0 0.0
      %8648 = vmatpush1.msra.mxu0 0.0
      %8649 = vmatprep.subr.mxu0 0.0
      %8650 = vmatpush1.msra.mxu0 0.0
      %8651 = vmatprep.subr.mxu0 0.0
      %8652 = vmatpush1.msra.mxu0 0.0
      %8653 = vmatprep.subr.mxu0 0.0
      %8654 = vmatpush1.msra.mxu0 0.0
      %8655 = vmatprep.mubr.f32.mxu0 0.0
      %8656 = vmatmul.mubr.f32.gmra.mrb[0].mxu0 %v8589
      %v8657 = vpop.f32.mrb[0].mxu0
      %v8658 = vadd.f32 0.0, %v8657
      %v8659 = vpop.f32.mrb[0].mxu0
      %v8660 = vadd.f32 0.0, %v8659
      %8661 = vdwg.mxu0
      %v8662 = vld [vmem:[%s5] sm:$0xff]
      %8664 = vset.pattern.permute.xlu0 0
      %8665 = vperm.xlu0 %8664, %v8662
      %v8666 = vpop.permute.xlu0 %8665
      %v8668 = vmul.f32 %v8658, %v8666
      %v8669 = vmul.f32 %v8660, %v8666
      %v8670 = vld [vmem:[%s6] sm:$0xff]
      %8672 = vset.pattern.permute.xlu0 0
      %8673 = vperm.xlu0 %8672, %v8670
      %v8674 = vpop.permute.xlu0 %8673
      %v8676 = vadd.f32 %v8668, %v8674
      %v8677 = vadd.f32 %v8669, %v8674
      %vm8678 = vcmp.gt.f32.partialorder %v8676, 0.0
      %vm8679 = vcmp.gt.f32.partialorder %v8677, 0.0
      %v8680 = vmul.f32 %v8676, 0.2
      %v8681 = vmul.f32 %v8677, 0.2
      %v8682 = vsel %vm8678, %v8676, %v8680
      %v8683 = vsel %vm8679, %v8677, %v8681
      %v8684 = vadd.f32 %v4597, %v8682
      %v8685 = vadd.f32 %v4598, %v8683
      %v8686 = vadd.f32 %v8684, %v8685
      %8687 = vadd.xlane.f32.xlu0 %v8686
      %v8688 = vpop.xlane.xlu0 %8687
      %v8689 = vrcp.pop 256.0
      %v8690 = vmul.f32 %v8688, %v8689
      %v8691 = vmax.f32 %v8684, %v8685
      %8692 = vmax.xlane.f32.xlu0 %v8691
      %v8693 = vpop.xlane.xlu0 %8692
      %v8695 = vlaneseq
      %v8696 = vshrl.u32 %v8695, 7
      %v8697 = vsub.s32 0, %v8696
      %v8698 = vrot.slane %v470, %v8697
      %v8700 = vmul.f32 %v8698, %v8690
      %v8701 = vsub.f32 1.0, %v470
      %v8703 = vlaneseq
      %v8704 = vshrl.u32 %v8703, 7
      %v8705 = vsub.s32 0, %v8704
      %v8706 = vrot.slane %v8701, %v8705
      %v8708 = vmul.f32 %v8706, %v8693
      %v8709 = vadd.f32 %v8700, %v8708
      %v8710 = vld [vmem:[%s7] sm:$0xff]
      %v8711 = vld [vmem:[%s8] sm:$0xff]
      %vm8712 = vcmask 64512
      %v8714 = vsel %vm8712, %v8710, 0
      %8716 = vmatprep.subr.mxu0 0.0
      %8717 = vmatpush1.msra.mxu0 %v8709
      %8718 = vmatprep.subr.mxu0 0.0
      %8719 = vmatpush1.msra.mxu0 0.0
      %8720 = vmatprep.subr.mxu0 0.0
      %8721 = vmatpush1.msra.mxu0 0.0
      %8722 = vmatprep.subr.mxu0 0.0
      %8723 = vmatpush1.msra.mxu0 0.0
      %8724 = vmatprep.subr.mxu0 0.0
      %8725 = vmatpush1.msra.mxu0 0.0
      %8726 = vmatprep.subr.mxu0 0.0
      %8727 = vmatpush1.msra.mxu0 0.0
      %8728 = vmatprep.subr.mxu0 0.0
      %8729 = vmatpush1.msra.mxu0 0.0
      %8730 = vmatprep.subr.mxu0 0.0
      %8731 = vmatpush1.msra.mxu0 0.0
      %8732 = vmatprep.subr.mxu0 0.0
      %8733 = vmatpush1.msra.mxu0 0.0
      %8734 = vmatprep.subr.mxu0 0.0
      %8735 = vmatpush1.msra.mxu0 0.0
      %8736 = vmatprep.subr.mxu0 0.0
      %8737 = vmatpush1.msra.mxu0 0.0
      %8738 = vmatprep.subr.mxu0 0.0
      %8739 = vmatpush1.msra.mxu0 0.0
      %8740 = vmatprep.subr.mxu0 0.0
      %8741 = vmatpush1.msra.mxu0 0.0
      %8742 = vmatprep.subr.mxu0 0.0
      %8743 = vmatpush1.msra.mxu0 0.0
      %8744 = vmatprep.subr.mxu0 0.0
      %8745 = vmatpush1.msra.mxu0 0.0
      %8746 = vmatprep.subr.mxu0 0.0
      %8747 = vmatpush1.msra.mxu0 0.0
      %8748 = vmatprep.subr.mxu0 0.0
      %8749 = vmatpush1.msra.mxu0 0.0
      %8750 = vmatprep.subr.mxu0 0.0
      %8751 = vmatpush1.msra.mxu0 0.0
      %8752 = vmatprep.subr.mxu0 0.0
      %8753 = vmatpush1.msra.mxu0 0.0
      %8754 = vmatprep.subr.mxu0 0.0
      %8755 = vmatpush1.msra.mxu0 0.0
      %8756 = vmatprep.subr.mxu0 0.0
      %8757 = vmatpush1.msra.mxu0 0.0
      %8758 = vmatprep.subr.mxu0 0.0
      %8759 = vmatpush1.msra.mxu0 0.0
      %8760 = vmatprep.subr.mxu0 0.0
      %8761 = vmatpush1.msra.mxu0 0.0
      %8762 = vmatprep.subr.mxu0 0.0
      %8763 = vmatpush1.msra.mxu0 0.0
      %8764 = vmatprep.subr.mxu0 0.0
      %8765 = vmatpush1.msra.mxu0 0.0
      %8766 = vmatprep.subr.mxu0 0.0
      %8767 = vmatpush1.msra.mxu0 0.0
      %8768 = vmatprep.subr.mxu0 0.0
      %8769 = vmatpush1.msra.mxu0 0.0
      %8770 = vmatprep.subr.mxu0 0.0
      %8771 = vmatpush1.msra.mxu0 0.0
      %8772 = vmatprep.subr.mxu0 0.0
      %8773 = vmatpush1.msra.mxu0 0.0
      %8774 = vmatprep.subr.mxu0 0.0
      %8775 = vmatpush1.msra.mxu0 0.0
      %8776 = vmatprep.subr.mxu0 0.0
      %8777 = vmatpush1.msra.mxu0 0.0
      %8778 = vmatprep.subr.mxu0 0.0
      %8779 = vmatpush1.msra.mxu0 0.0
      %8780 = vmatprep.mubr.f32.mxu0 0.0
      %8781 = vmatmul.mubr.f32.gmra.mrb[0].mxu0 %v8714
      %v8782 = vpop.f32.mrb[0].mxu0
      %v8783 = vadd.f32 %v8711, %v8782
      %v8784 = vpop.f32.mrb[0].mxu0
      %8785 = vdwg.mxu0
      %v8786 = vld [vmem:[%s9] sm:$0xff]
      %v8787 = vld [vmem:[%s10] sm:$0xff]
      %v8789 = vsel %vm8712, %v8786, 0
      %8791 = vmatprep.subr.mxu0 0.0
      %8792 = vmatpush1.msra.mxu0 %v8783
      %8793 = vmatprep.subr.mxu0 0.0
      %8794 = vmatpush1.msra.mxu0 0.0
      %8795 = vmatprep.subr.mxu0 0.0
      %8796 = vmatpush1.msra.mxu0 0.0
      %8797 = vmatprep.subr.mxu0 0.0
      %8798 = vmatpush1.msra.mxu0 0.0
      %8799 = vmatprep.subr.mxu0 0.0
      %8800 = vmatpush1.msra.mxu0 0.0
      %8801 = vmatprep.subr.mxu0 0.0
      %8802 = vmatpush1.msra.mxu0 0.0
      %8803 = vmatprep.subr.mxu0 0.0
      %8804 = vmatpush1.msra.mxu0 0.0
      %8805 = vmatprep.subr.mxu0 0.0
      %8806 = vmatpush1.msra.mxu0 0.0
      %8807 = vmatprep.subr.mxu0 0.0
      %8808 = vmatpush1.msra.mxu0 0.0
      %8809 = vmatprep.subr.mxu0 0.0
      %8810 = vmatpush1.msra.mxu0 0.0
      %8811 = vmatprep.subr.mxu0 0.0
      %8812 = vmatpush1.msra.mxu0 0.0
      %8813 = vmatprep.subr.mxu0 0.0
      %8814 = vmatpush1.msra.mxu0 0.0
      %8815 = vmatprep.subr.mxu0 0.0
      %8816 = vmatpush1.msra.mxu0 0.0
      %8817 = vmatprep.subr.mxu0 0.0
      %8818 = vmatpush1.msra.mxu0 0.0
      %8819 = vmatprep.subr.mxu0 0.0
      %8820 = vmatpush1.msra.mxu0 0.0
      %8821 = vmatprep.subr.mxu0 0.0
      %8822 = vmatpush1.msra.mxu0 0.0
      %8823 = vmatprep.subr.mxu0 0.0
      %8824 = vmatpush1.msra.mxu0 0.0
      %8825 = vmatprep.subr.mxu0 0.0
      %8826 = vmatpush1.msra.mxu0 0.0
      %8827 = vmatprep.subr.mxu0 0.0
      %8828 = vmatpush1.msra.mxu0 0.0
      %8829 = vmatprep.subr.mxu0 0.0
      %8830 = vmatpush1.msra.mxu0 0.0
      %8831 = vmatprep.subr.mxu0 0.0
      %8832 = vmatpush1.msra.mxu0 0.0
      %8833 = vmatprep.subr.mxu0 0.0
      %8834 = vmatpush1.msra.mxu0 0.0
      %8835 = vmatprep.subr.mxu0 0.0
      %8836 = vmatpush1.msra.mxu0 0.0
      %8837 = vmatprep.subr.mxu0 0.0
      %8838 = vmatpush1.msra.mxu0 0.0
      %8839 = vmatprep.subr.mxu0 0.0
      %8840 = vmatpush1.msra.mxu0 0.0
      %8841 = vmatprep.subr.mxu0 0.0
      %8842 = vmatpush1.msra.mxu0 0.0
      %8843 = vmatprep.subr.mxu0 0.0
      %8844 = vmatpush1.msra.mxu0 0.0
      %8845 = vmatprep.subr.mxu0 0.0
      %8846 = vmatpush1.msra.mxu0 0.0
      %8847 = vmatprep.subr.mxu0 0.0
      %8848 = vmatpush1.msra.mxu0 0.0
      %8849 = vmatprep.subr.mxu0 0.0
      %8850 = vmatpush1.msra.mxu0 0.0
      %8851 = vmatprep.subr.mxu0 0.0
      %8852 = vmatpush1.msra.mxu0 0.0
      %8853 = vmatprep.subr.mxu0 0.0
      %8854 = vmatpush1.msra.mxu0 0.0
      %8855 = vmatprep.mubr.f32.mxu0 0.0
      %8856 = vmatmul.mubr.f32.gmra.mrb[0].mxu0 %v8789
      %v8857 = vpop.f32.mrb[0].mxu0
      %v8858 = vadd.f32 %v8787, %v8857
      %v8859 = vpop.f32.mrb[0].mxu0
      %8860 = vdwg.mxu0
      %v8861 = vld [vmem:[%s11] sm:$0xff]
      %v8862 = vld [vmem:[%s12] sm:$0xff]
      %v8864 = vsel %vm8712, %v8861, 0
      %8866 = vmatprep.subr.mxu0 0.0
      %8867 = vmatpush1.msra.mxu0 %v8783
      %8868 = vmatprep.subr.mxu0 0.0
      %8869 = vmatpush1.msra.mxu0 0.0
      %8870 = vmatprep.subr.mxu0 0.0
      %8871 = vmatpush1.msra.mxu0 0.0
      %8872 = vmatprep.subr.mxu0 0.0
      %8873 = vmatpush1.msra.mxu0 0.0
      %8874 = vmatprep.subr.mxu0 0.0
      %8875 = vmatpush1.msra.mxu0 0.0
      %8876 = vmatprep.subr.mxu0 0.0
      %8877 = vmatpush1.msra.mxu0 0.0
      %8878 = vmatprep.subr.mxu0 0.0
      %8879 = vmatpush1.msra.mxu0 0.0
      %8880 = vmatprep.subr.mxu0 0.0
      %8881 = vmatpush1.msra.mxu0 0.0
      %8882 = vmatprep.subr.mxu0 0.0
      %8883 = vmatpush1.msra.mxu0 0.0
      %8884 = vmatprep.subr.mxu0 0.0
      %8885 = vmatpush1.msra.mxu0 0.0
      %8886 = vmatprep.subr.mxu0 0.0
      %8887 = vmatpush1.msra.mxu0 0.0
      %8888 = vmatprep.subr.mxu0 0.0
      %8889 = vmatpush1.msra.mxu0 0.0
      %8890 = vmatprep.subr.mxu0 0.0
      %8891 = vmatpush1.msra.mxu0 0.0
      %8892 = vmatprep.subr.mxu0 0.0
      %8893 = vmatpush1.msra.mxu0 0.0
      %8894 = vmatprep.subr.mxu0 0.0
      %8895 = vmatpush1.msra.mxu0 0.0
      %8896 = vmatprep.subr.mxu0 0.0
      %8897 = vmatpush1.msra.mxu0 0.0
      %8898 = vmatprep.subr.mxu0 0.0
      %8899 = vmatpush1.msra.mxu0 0.0
      %8900 = vmatprep.subr.mxu0 0.0
      %8901 = vmatpush1.msra.mxu0 0.0
      %8902 = vmatprep.subr.mxu0 0.0
      %8903 = vmatpush1.msra.mxu0 0.0
      %8904 = vmatprep.subr.mxu0 0.0
      %8905 = vmatpush1.msra.mxu0 0.0
      %8906 = vmatprep.subr.mxu0 0.0
      %8907 = vmatpush1.msra.mxu0 0.0
      %8908 = vmatprep.subr.mxu0 0.0
      %8909 = vmatpush1.msra.mxu0 0.0
      %8910 = vmatprep.subr.mxu0 0.0
      %8911 = vmatpush1.msra.mxu0 0.0
      %8912 = vmatprep.subr.mxu0 0.0
      %8913 = vmatpush1.msra.mxu0 0.0
      %8914 = vmatprep.subr.mxu0 0.0
      %8915 = vmatpush1.msra.mxu0 0.0
      %8916 = vmatprep.subr.mxu0 0.0
      %8917 = vmatpush1.msra.mxu0 0.0
      %8918 = vmatprep.subr.mxu0 0.0
      %8919 = vmatpush1.msra.mxu0 0.0
      %8920 = vmatprep.subr.mxu0 0.0
      %8921 = vmatpush1.msra.mxu0 0.0
      %8922 = vmatprep.subr.mxu0 0.0
      %8923 = vmatpush1.msra.mxu0 0.0
      %8924 = vmatprep.subr.mxu0 0.0
      %8925 = vmatpush1.msra.mxu0 0.0
      %8926 = vmatprep.subr.mxu0 0.0
      %8927 = vmatpush1.msra.mxu0 0.0
      %8928 = vmatprep.subr.mxu0 0.0
      %8929 = vmatpush1.msra.mxu0 0.0
      %8930 = vmatprep.mubr.f32.mxu0 0.0
      %8931 = vmatmul.mubr.f32.gmra.mrb[0].mxu0 %v8864
      %v8932 = vpop.f32.mrb[0].mxu0
      %v8933 = vadd.f32 %v8862, %v8932
      %v8934 = vpop.f32.mrb[0].mxu0
      %8935 = vdwg.mxu0
      %v8936 = vmax.f32 %v8858, %v8933
      %v8937 = vsub.f32 %v8858, %v8936
      %v8938 = vmul.f32 %v8937, 1.442695
      %v8939 = vpow.pop %v8938
      %v8940 = vsub.f32 %v8933, %v8936
      %v8941 = vmul.f32 %v8940, 1.442695
      %v8942 = vpow.pop %v8941
      %v8943 = vadd.f32 %v8939, %v8942
      %v8944 = vrcp.pop %v8943
      %v8945 = vmul.f32 1.0, %v8944
      %v8946 = vmul.f32 %v8939, %v8945
      %v8947 = vmul.f32 %v8942, %v8945
      %8949 = vset.pattern.permute.xlu0 0
      %8950 = vperm.xlu0 %8949, %v8946
      %v8951 = vpop.permute.xlu0 %8950
      %v8953 = vmul.f32 %v4597, %v8951
      %v8954 = vmul.f32 %v4598, %v8951
      %8956 = vset.pattern.permute.xlu0 0
      %8957 = vperm.xlu0 %8956, %v8947
      %v8958 = vpop.permute.xlu0 %8957
      %v8960 = vmul.f32 %v8682, %v8958
      %v8961 = vmul.f32 %v8683, %v8958
      %v8962 = vadd.f32 %v8953, %v8960
      %v8963 = vadd.f32 %v8954, %v8961
      %8964 = vst [vmem:[%s469] sm:$0xff] %v8962
      %8965 = vst [vmem:[%s469 + $0x8] sm:$0xff] %v8963
      %p8966 = scmp.lt.s32.totalorder %s27, 1
      %s8967 = scalar_select %p8966, %s27, 1
      %s8968 = smul.addr %s8967, 2
      %s8969 = smul.addr %s8968, 8
      %s8970 = scalar_lea.vmem %s14, %s8969
      // Predicated region
      $region77: #{sk_conv_forward.1} parent=75 // pred_check
        %p8971 = pneg %p344
      $region78: #{sk_conv_forward.1} parent=75 // pred_check_branch
        %8973 = sbr.rel (%p8971) target = $region80
      $region79: #{sk_conv_forward.1} parent=75 // pred_region
        _
      $region80: #{sk_conv_forward.1} parent=75 // pred_fallthru
        _
    $region76: #{sk_conv_forward.1} parent=5 // pred_fallthru
      _
    %p8974 = scmp.le.s32.totalorder 2, %s22
    // Predicated region
    $region81: #{sk_conv_forward.1} parent=5 // pred_check
      %p8975 = pneg %p8974
    $region82: #{sk_conv_forward.1} parent=5 // pred_check_branch
      %8977 = sbr.rel (%p8975) target = $region84
    $region83: #{sk_conv_forward.1} parent=5 // pred_region
      %s8978 = ssub.s32 %s22, 2
      // Predicated region
      $region85: #{sk_conv_forward.1} parent=83 // pred_check
        %p8979 = pneg %p350
      $region86: #{sk_conv_forward.1} parent=83 // pred_check_branch
        %8981 = sbr.rel (%p8979) target = $region88
      $region87: #{sk_conv_forward.1} parent=83 // pred_region
        %p8982 = scmp.lt.s32.totalorder %s28, 1
        %s8983 = scalar_select %p8982, %s28, 1
        %s8984 = smul.addr %s8983, 2
        %s8985 = smul.addr %s8984, 8
        %s8986 = scalar_lea.vmem %s14, %s8985
      $region88: #{sk_conv_forward.1} parent=83 // pred_fallthru
        _
    $region84: #{sk_conv_forward.1} parent=5 // pred_fallthru
      _
  $region6: #{sk_conv_forward.1} parent=0 // loop_footer
    %s26 = sadd.s32 1, %s22
  $region7: #{sk_conv_forward.1} parent=0 // loop_footer_branch
    %21 = sbr.rel target = $region3
  $region8: #{sk_conv_forward.1} parent=0 // loop_exit
    _

</llo_original>
